<compile_context>
chip_gen: v7x
topology: tpu7x:2x2x1
jax: 0.10.0
libtpu: 0.0.40
codegen_flags: <defaults>
</compile_context>

<pallas_src>
import functools
import math

import jax
import jax.numpy as jnp
from jax import lax
from jax.experimental import pallas as pl
from jax.experimental.pallas import tpu as pltpu

_VMEM_LIMIT = 64 * 1024 * 1024  # above v5e's 16 MiB scoped default, safe on all gens


# ----------------------------- tiling helpers --------------------------------

def _round_up(x, m):
    return ((x + m - 1) // m) * m


def _pick_row_tile(M, max_tile=256):
    """Fixed row tile: multiple of 8, <= max_tile; grid = cdiv, tail padded."""
    return min(_round_up(M, 8), max_tile)


def _pick_seq_tile(T, max_tile=128):
    """Largest divisor of T that is a multiple of 8 and <= max_tile, else T."""
    if T <= max_tile:
        return T
    for t in range(max_tile, 7, -8):
        if T % t == 0:
            return t
    return T


# ------------------- fused attention + out-proj + LN1 kernel -----------------

def _attn_ln_kernel(xlen_ref, ylen_ref, h_ref, inw_ref, inb_ref,
                    outw_ref, outb_ref, g_ref, be_ref, o_ref, qkv_sc,
                    *, Tx, Ty, H, Dh, tq, scale):
    b = pl.program_id(0)
    qi = pl.program_id(1)
    T = Tx + Ty
    D = H * Dh

    # QKV projection for this batch element, computed once (qi == 0) and kept
    # resident in a bf16 VMEM scratch across the query tiles.
    @pl.when(qi == 0)
    def _():
        h = h_ref[0].astype(jnp.bfloat16)                                # (T, D)
        qkv = jnp.dot(h, inw_ref[...], preferred_element_type=jnp.float32)
        qkv_sc[...] = (qkv + inb_ref[...]).astype(jnp.bfloat16)          # (T, 3D)

    x_len = xlen_ref[b]
    y_len = ylen_ref[b]
    q0 = pl.multiple_of(qi * tq, tq)

    # Rebuild the additive attention mask for this query tile in-kernel
    # (structural: text rows can't see audio, audio rows causal; plus per-batch
    # key padding from the scalar-prefetched lengths).  Never materialized in HBM.
    row = q0 + lax.broadcasted_iota(jnp.int32, (tq, T), 0)
    col = lax.broadcasted_iota(jnp.int32, (tq, T), 1)
    struct = ((row < Tx) & (col >= Tx)) | ((row >= Tx) & (col > row))
    pad = ((col < Tx) & (col >= x_len)) | ((col >= Tx) & ((col - Tx) >= y_len))
    masked = struct | pad

    # Per-head attention; each head's output goes straight through its slice of
    # the out-projection and accumulates into y (no concat, no extra scratch).
    y = jnp.zeros((tq, D), jnp.float32)
    for hh in range(H):
        q = qkv_sc[pl.ds(q0, tq), hh * Dh:(hh + 1) * Dh]                 # (tq, Dh)
        k = qkv_sc[:, D + hh * Dh:D + (hh + 1) * Dh]                     # (T, Dh)
        v = qkv_sc[:, 2 * D + hh * Dh:2 * D + (hh + 1) * Dh]             # (T, Dh)
        s = lax.dot_general(q, k, (((1,), (1,)), ((), ())),
                            preferred_element_type=jnp.float32) * scale  # (tq, T)
        s = jnp.where(masked, jnp.float32(-1e30), s)
        s = s - jnp.max(s, axis=-1, keepdims=True)
        p = jnp.exp(s)
        p = p * pl.reciprocal(jnp.sum(p, axis=-1, keepdims=True), approx=True)
        ah = jnp.dot(p.astype(jnp.bfloat16), v,
                     preferred_element_type=jnp.float32)                 # (tq, Dh)
        y = y + jnp.dot(ah.astype(jnp.bfloat16),
                        outw_ref[hh * Dh:(hh + 1) * Dh, :],
                        preferred_element_type=jnp.float32)              # (tq, D)

    # out-proj bias + residual + LayerNorm1 (post-norm, eps=1e-5)
    y = y + outb_ref[...] + h_ref[0, pl.ds(q0, tq), :]
    mean = jnp.mean(y, axis=-1, keepdims=True)
    yc = y - mean
    var = jnp.mean(yc * yc, axis=-1, keepdims=True)
    o_ref[0] = yc * lax.rsqrt(var + 1e-5) * g_ref[...] + be_ref[...]


def attn_ln_block(h3d, x_lens, y_lens, lp, *, Tx, Ty, H):
    B, T, D = h3d.shape
    Dh = D // H
    tq = _pick_seq_tile(T)
    grid_spec = pltpu.PrefetchScalarGridSpec(
        num_scalar_prefetch=2,
        grid=(B, T // tq),
        in_specs=[
            pl.BlockSpec((1, T, D), lambda b, q, xl, yl: (b, 0, 0)),
            pl.BlockSpec((D, 3 * D), lambda b, q, xl, yl: (0, 0)),
            pl.BlockSpec((1, 3 * D), lambda b, q, xl, yl: (0, 0)),
            pl.BlockSpec((D, D), lambda b, q, xl, yl: (0, 0)),
            pl.BlockSpec((1, D), lambda b, q, xl, yl: (0, 0)),
            pl.BlockSpec((1, D), lambda b, q, xl, yl: (0, 0)),
            pl.BlockSpec((1, D), lambda b, q, xl, yl: (0, 0)),
        ],
        out_specs=pl.BlockSpec((1, tq, D), lambda b, q, xl, yl: (b, q, 0)),
        scratch_shapes=[pltpu.VMEM((T, 3 * D), jnp.bfloat16)],
    )
    return pl.pallas_call(
        functools.partial(_attn_ln_kernel, Tx=Tx, Ty=Ty, H=H, Dh=Dh,
                          tq=tq, scale=1.0 / math.sqrt(Dh)),
        out_shape=jax.ShapeDtypeStruct((B, T, D), jnp.float32),
        grid_spec=grid_spec,
        compiler_params=pltpu.CompilerParams(
            dimension_semantics=("parallel", "arbitrary"),
            vmem_limit_bytes=_VMEM_LIMIT),
    )(x_lens, y_lens, h3d,
      lp['in_w'], lp['in_b'].reshape(1, -1),
      lp['out_w'], lp['out_b'].reshape(1, -1),
      lp['ln1_g'].reshape(1, -1), lp['ln1_b'].reshape(1, -1))


# --------------------- fused FF1+ReLU -> FF2 -> +res -> LN2 ------------------

def _ffn_ln_kernel(x_ref, w1_ref, b1_ref, w2_ref, b2_ref, g_ref, be_ref, o_ref):
    x = x_ref[...]                                                        # (tm, D)
    hid = jnp.dot(x.astype(jnp.bfloat16), w1_ref[...],
                  preferred_element_type=jnp.float32) + b1_ref[...]       # (tm, F)
    hid = jnp.maximum(hid, 0.0)
    y = jnp.dot(hid.astype(jnp.bfloat16), w2_ref[...],
                preferred_element_type=jnp.float32) + b2_ref[...] + x
    mean = jnp.mean(y, axis=-1, keepdims=True)
    yc = y - mean
    var = jnp.mean(yc * yc, axis=-1, keepdims=True)
    o_ref[...] = yc * lax.rsqrt(var + 1e-5) * g_ref[...] + be_ref[...]


def ffn_ln_block(x2d, lp, max_rows=256):
    M, D = x2d.shape
    F = lp['ff1_w'].shape[1]
    tm = _pick_row_tile(M, max_rows)
    Mp = _round_up(M, tm)
    xp = jnp.pad(x2d, ((0, Mp - M), (0, 0))) if Mp != M else x2d
    out = pl.pallas_call(
        _ffn_ln_kernel,
        out_shape=jax.ShapeDtypeStruct((Mp, D), jnp.float32),
        grid=(Mp // tm,),
        in_specs=[pl.BlockSpec((tm, D), lambda i: (i, 0)),
                  pl.BlockSpec((D, F), lambda i: (0, 0)),
                  pl.BlockSpec((1, F), lambda i: (0, 0)),
                  pl.BlockSpec((F, D), lambda i: (0, 0)),
                  pl.BlockSpec((1, D), lambda i: (0, 0)),
                  pl.BlockSpec((1, D), lambda i: (0, 0)),
                  pl.BlockSpec((1, D), lambda i: (0, 0))],
        out_specs=pl.BlockSpec((tm, D), lambda i: (i, 0)),
        compiler_params=pltpu.CompilerParams(
            dimension_semantics=("parallel",),
            vmem_limit_bytes=_VMEM_LIMIT),
    )(xp, lp['ff1_w'], lp['ff1_b'].reshape(1, -1),
      lp['ff2_w'], lp['ff2_b'].reshape(1, -1),
      lp['ln2_g'].reshape(1, -1), lp['ln2_b'].reshape(1, -1))
    return out[:M] if Mp != M else out


# ------------- fused prediction head + CE(sum) + top-k hits (reduced) --------

def _head_ce_kernel(x_ref, w_ref, tgt_ref, loss_ref, corr_ref,
                    *, M, tm, EOS, top_k):
    i = pl.program_id(0)

    @pl.when(i == 0)
    def _():
        loss_ref[...] = jnp.zeros_like(loss_ref)
        corr_ref[...] = jnp.zeros_like(corr_ref)

    logits = jnp.dot(x_ref[...].astype(jnp.bfloat16), w_ref[...],
                     preferred_element_type=jnp.float32)                  # (tm, V)
    tgt = tgt_ref[...]                                                    # (tm, 1)
    col = lax.broadcasted_iota(jnp.int32, logits.shape, 1)
    # target logit without materializing a dense one-hot
    tlogit = jnp.sum(jnp.where(col == tgt, logits, 0.0), axis=-1, keepdims=True)
    m = jnp.max(logits, axis=-1, keepdims=True)
    lse = jnp.log(jnp.sum(jnp.exp(logits - m), axis=-1, keepdims=True)) + m
    row_loss = lse - tlogit                                               # -log p
    rank = jnp.sum((logits > tlogit).astype(jnp.float32), axis=-1, keepdims=True)

    # mask out padded tail rows; accuracy additionally ignores EOS targets
    grow = i * tm + lax.broadcasted_iota(jnp.int32, (tm, 1), 0)
    in_range = grow < M
    keep = in_range.astype(jnp.float32)
    valid = jnp.logical_and(in_range, tgt != EOS).astype(jnp.float32)
    hit = (rank < float(top_k)).astype(jnp.float32)

    loss_ref[...] += jnp.sum(row_loss * keep, axis=0, keepdims=True)
    corr_ref[...] += jnp.sum(hit * valid, axis=0, keepdims=True)


def pred_head_ce_acc(x2d, w, targets_flat, *, EOS, top_k=3, max_rows=256):
    M, D = x2d.shape
    V = w.shape[1]
    tm = _pick_row_tile(M, max_rows)
    Mp = _round_up(M, tm)
    if Mp != M:
        x2d = jnp.pad(x2d, ((0, Mp - M), (0, 0)))
        targets_flat = jnp.pad(targets_flat, ((0, Mp - M),), constant_values=EOS)
    loss, correct = pl.pallas_call(
        functools.partial(_head_ce_kernel, M=M, tm=tm, EOS=EOS, top_k=top_k),
        out_shape=(jax.ShapeDtypeStruct((1, 1), jnp.float32),
                   jax.ShapeDtypeStruct((1, 1), jnp.float32)),
        grid=(Mp // tm,),
        in_specs=[pl.BlockSpec((tm, D), lambda i: (i, 0)),
                  pl.BlockSpec((D, V), lambda i: (0, 0)),
                  pl.BlockSpec((tm, 1), lambda i: (i, 0))],
        out_specs=(pl.BlockSpec((1, 1), lambda i: (0, 0)),
                   pl.BlockSpec((1, 1), lambda i: (0, 0))),
        compiler_params=pltpu.CompilerParams(
            dimension_semantics=("arbitrary",),
            vmem_limit_bytes=_VMEM_LIMIT),
    )(x2d, w, targets_flat.reshape(Mp, 1).astype(jnp.int32))
    return loss[0, 0], correct[0, 0]


# ------------------------------ model pieces --------------------------------

@functools.lru_cache(maxsize=None)
def sine_pe(T, D):
    """Precomputed (host constant, cached) sine positional embedding table."""
    import numpy as np
    position = np.arange(T, dtype=np.float32)[:, None]
    div_term = np.exp(np.arange(0, D, 2, dtype=np.float32)
                      * (-math.log(10000.0) / D))
    pe = np.zeros((T, D), np.float32)
    pe[:, 0::2] = np.sin(position * div_term)
    pe[:, 1::2] = np.cos(position * div_term)
    return jnp.asarray(pe)


def make_pad_mask(lengths, max_len):
    return jnp.arange(max_len)[None, :] >= lengths[:, None]


def encoder_layer(h3d, x_lens, y_lens, lp, *, Tx, Ty, H):
    """Post-norm (norm_first=False) nn.TransformerEncoderLayer, ReLU FFN."""
    B, T, D = h3d.shape
    h3d = attn_ln_block(h3d, x_lens, y_lens, lp, Tx=Tx, Ty=Ty, H=H)
    h2d = ffn_ln_block(h3d.reshape(B * T, D), lp)
    return h2d.reshape(B, T, D)


def init_params(key, cfg):
    D = cfg['hidden_dim']
    L = cfg['n_layer']
    V = cfg['vocab_size']
    PV = cfg['phoneme_vocab_size']
    F = 4 * D
    keys = list(jax.random.split(key, 3 + L * 4))
    it = iter(keys)

    def nrm(shape, dtype=jnp.float32, s=0.02):
        return (jax.random.normal(next(it), shape, jnp.float32) * s).astype(dtype)

    bf = jnp.bfloat16
    params = {
        'text_emb': nrm((PV, D)),
        'audio_emb': nrm((V, D)),
        'text_alpha': jnp.float32(1.0),
        'audio_alpha': jnp.float32(1.0),
        'pred_w': nrm((D, V), bf),          # ar_predict_layer (bias=False)
        'layers': [],
    }
    for _ in range(L):
        params['layers'].append({
            'in_w': nrm((D, 3 * D), bf),
            'in_b': jnp.zeros((3 * D,), jnp.float32),
            'out_w': nrm((D, D), bf),
            'out_b': jnp.zeros((D,), jnp.float32),
            'ff1_w': nrm((D, F), bf),
            'ff1_b': jnp.zeros((F,), jnp.float32),
            'ff2_w': nrm((F, D), bf),
            'ff2_b': jnp.zeros((D,), jnp.float32),
            'ln1_g': jnp.ones((D,), jnp.float32),
            'ln1_b': jnp.zeros((D,), jnp.float32),
            'ln2_g': jnp.ones((D,), jnp.float32),
            'ln2_b': jnp.zeros((D,), jnp.float32),
        })
    return params


def t2s_forward(params, x_tok, x_lens, y_tok, y_lens, *, cfg):
    B, Tx = x_tok.shape
    Ty = y_tok.shape[1]
    D, H = cfg['hidden_dim'], cfg['head']
    EOS = cfg['EOS']

    # text branch: embedding gather + alpha-scaled sine PE (XLA glue)
    x = params['text_emb'][x_tok] + params['text_alpha'] * sine_pe(Tx, D)[None]

    # pad_y_eos
    y_mask = make_pad_mask(y_lens, Ty)
    y_mask_int = y_mask.astype(jnp.int32)
    codes = y_tok.astype(jnp.int32) * (1 - y_mask_int)
    t_full = (jnp.pad(codes, ((0, 0), (0, 1)))
              + EOS * jnp.pad(y_mask_int, ((0, 0), (0, 1)), constant_values=1))
    y_in, targets = t_full[:, :-1], t_full[:, 1:]

    # audio branch
    y_pos = (params['audio_emb'][y_in]
             + params['audio_alpha'] * sine_pe(Ty, D)[None])

    # transformer encoder (post-norm); attention mask built in-kernel
    h3d = jnp.concatenate([x, y_pos], axis=1)                      # (B, T, D)
    for lp in params['layers']:
        h3d = encoder_layer(h3d, x_lens, y_lens, lp, Tx=Tx, Ty=Ty, H=H)

    # fused prediction head + CE(sum) + top-k accuracy (logits stay in VMEM)
    y_dec = h3d[:, Tx:].reshape(B * Ty, D)
    loss, correct = pred_head_ce_acc(y_dec, params['pred_w'],
                                     targets.reshape(-1), EOS=EOS, top_k=3)
    total = jnp.sum((targets != EOS).astype(jnp.float32))          # ignore_index=EOS
    acc = correct / jnp.maximum(total, 1.0)
    return loss, acc


# ---------------------------------- main -------------------------------------

if __name__ == "__main__":
    cfg = dict(hidden_dim=32, embedding_dim=32, head=2, n_layer=2,
               vocab_size=64, phoneme_vocab_size=50, dropout=0.0, EOS=63)
    assert cfg['EOS'] == cfg['vocab_size'] - 1

    key = jax.random.PRNGKey(0)
    kp, kx, ky = jax.random.split(key, 3)
    params = init_params(kp, cfg)

    # Shapes chosen so the row-tiled kernels run a multi-step grid (B*T = 512)
    # and the attention grid is (B, T//tq) = (2, 2).
    B, Tx, Ty = 2, 136, 120
    x_tok = jax.random.randint(kx, (B, Tx), 0, cfg['phoneme_vocab_size'],
                               jnp.int32)
    y_tok = jax.random.randint(ky, (B, Ty), 0, cfg['vocab_size'] - 1,
                               jnp.int32)
    x_lens = jnp.array([Tx, 100], jnp.int32)   # max == Tx
    y_lens = jnp.array([Ty, 77], jnp.int32)    # max == Ty

    forward = jax.jit(functools.partial(t2s_forward, cfg=cfg))
    loss, acc = forward(params, x_tok, x_lens, y_tok, y_lens)
    jax.block_until_ready((loss, acc))
    print("KERNEL_OK")
</pallas_src>

<mosaic_0001>
module attributes {stable_mosaic.version = 11 : i64} {
  func.func @_attn_ln_kernel(%arg0: i32, %arg1: i32, %arg2: memref<2xi32, #tpu.memory_space<smem>>, %arg3: memref<2xi32, #tpu.memory_space<smem>>, %arg4: memref<1x256x32xf32, #tpu.memory_space<vmem>>, %arg5: memref<32x96xbf16, #tpu.memory_space<vmem>>, %arg6: memref<1x96xf32, #tpu.memory_space<vmem>>, %arg7: memref<32x32xbf16, #tpu.memory_space<vmem>>, %arg8: memref<1x32xf32, #tpu.memory_space<vmem>>, %arg9: memref<1x32xf32, #tpu.memory_space<vmem>>, %arg10: memref<1x32xf32, #tpu.memory_space<vmem>>, %arg11: memref<1x128x32xf32, #tpu.memory_space<vmem>>, %arg12: memref<256x96xbf16, #tpu.memory_space<vmem>>) attributes {dimension_semantics = [#tpu.dimension_semantics<parallel>, #tpu.dimension_semantics<arbitrary>], iteration_bounds = array<i64: 2, 2>, scalar_prefetch = 2 : i64, scratch_operands = 1 : i64, tpu.core_type = #tpu.core_type<tc>, window_params = [{transform_indices = @transform_0, window_bounds = array<i64: 1, 256, 32>}, {pipeline_mode = #tpu.pipeline_mode<synchronous>, transform_indices = @transform_1, window_bounds = array<i64: 32, 96>}, {pipeline_mode = #tpu.pipeline_mode<synchronous>, transform_indices = @transform_2, window_bounds = array<i64: 1, 96>}, {pipeline_mode = #tpu.pipeline_mode<synchronous>, transform_indices = @transform_3, window_bounds = array<i64: 32, 32>}, {pipeline_mode = #tpu.pipeline_mode<synchronous>, transform_indices = @transform_4, window_bounds = array<i64: 1, 32>}, {pipeline_mode = #tpu.pipeline_mode<synchronous>, transform_indices = @transform_5, window_bounds = array<i64: 1, 32>}, {pipeline_mode = #tpu.pipeline_mode<synchronous>, transform_indices = @transform_6, window_bounds = array<i64: 1, 32>}, {transform_indices = @transform_7, window_bounds = array<i64: 1, 128, 32>}]} {
    %c0_i32 = arith.constant 0 : i32
    %0 = arith.cmpi eq, %arg1, %c0_i32 : i32
    %1 = arith.extui %0 : i1 to i32
    %c0_i32_0 = arith.constant 0 : i32
    %2 = arith.cmpi ne, %1, %c0_i32_0 : i32
    scf.if %2 {
      %c0_44 = arith.constant 0 : index
      %c0_45 = arith.constant 0 : index
      %c0_46 = arith.constant 0 : index
      %120 = vector.load %arg4[%c0_44, %c0_45, %c0_46] : memref<1x256x32xf32, #tpu.memory_space<vmem>>, vector<1x256x32xf32>
      %121 = vector.shape_cast %120 : vector<1x256x32xf32> to vector<256x32xf32>
      %122 = arith.truncf %121 : vector<256x32xf32> to vector<256x32xbf16>
      %c0_47 = arith.constant 0 : index
      %c0_48 = arith.constant 0 : index
      %123 = vector.load %arg5[%c0_47, %c0_48] : memref<32x96xbf16, #tpu.memory_space<vmem>>, vector<32x96xbf16>
      %cst_49 = arith.constant dense<0.000000e+00> : vector<256x96xf32>
      %124 = tpu.matmul %122, %123, %cst_49 {dimension_numbers = #tpu.dot_dimension_numbers<[1], [0], [0], [1], [0, 0, 1, 1], [], []>} : vector<256x32xbf16>, vector<32x96xbf16>, vector<256x96xf32> -> vector<256x96xf32>
      %c0_50 = arith.constant 0 : index
      %c0_51 = arith.constant 0 : index
      %125 = vector.load %arg6[%c0_50, %c0_51] : memref<1x96xf32, #tpu.memory_space<vmem>>, vector<1x96xf32>
      %126 = vector.broadcast %125 : vector<1x96xf32> to vector<256x96xf32>
      %127 = arith.addf %124, %126 : vector<256x96xf32>
      %128 = arith.truncf %127 : vector<256x96xf32> to vector<256x96xbf16>
      %c0_52 = arith.constant 0 : index
      %c0_53 = arith.constant 0 : index
      %129 = vector.load %arg12[%c0_52, %c0_53] : memref<256x96xbf16, #tpu.memory_space<vmem>>, vector<256x96xbf16>
      tpu.vector_store %arg12[%c0_52, %c0_53], %128 {strides = array<i32>} : memref<256x96xbf16, #tpu.memory_space<vmem>>, vector<256x96xbf16>,
    } else {
    }
    %3 = arith.index_cast %arg0 : i32 to index
    %4 = memref.load %arg2[%3] : memref<2xi32, #tpu.memory_space<smem>>
    %5 = arith.index_cast %arg0 : i32 to index
    %6 = memref.load %arg3[%5] : memref<2xi32, #tpu.memory_space<smem>>
    %c128_i32 = arith.constant 128 : i32
    %7 = arith.muli %arg1, %c128_i32 : i32
    %8 = tpu.assume_multiple %7, 128 : i32
    %9 = tpu.iota {dimensions = array<i32: 0>} : vector<128x256xi32>
    %10 = vector.broadcast %8 : i32 to vector<128x256xi32>
    %11 = arith.addi %10, %9 : vector<128x256xi32>
    %12 = tpu.iota {dimensions = array<i32: 1>} : vector<128x256xi32>
    %c136_i32 = arith.constant 136 : i32
    %13 = vector.broadcast %c136_i32 : i32 to vector<128x256xi32>
    %14 = arith.cmpi slt, %11, %13 : vector<128x256xi32>
    %c136_i32_1 = arith.constant 136 : i32
    %15 = vector.broadcast %c136_i32_1 : i32 to vector<128x256xi32>
    %16 = arith.cmpi sge, %12, %15 : vector<128x256xi32>
    %17 = arith.andi %14, %16 : vector<128x256xi1>
    %c136_i32_2 = arith.constant 136 : i32
    %18 = vector.broadcast %c136_i32_2 : i32 to vector<128x256xi32>
    %19 = arith.cmpi sge, %11, %18 : vector<128x256xi32>
    %20 = arith.cmpi sgt, %12, %11 : vector<128x256xi32>
    %21 = arith.andi %19, %20 : vector<128x256xi1>
    %22 = arith.ori %17, %21 : vector<128x256xi1>
    %c136_i32_3 = arith.constant 136 : i32
    %23 = vector.broadcast %c136_i32_3 : i32 to vector<128x256xi32>
    %24 = arith.cmpi slt, %12, %23 : vector<128x256xi32>
    %25 = vector.broadcast %4 : i32 to vector<128x256xi32>
    %26 = arith.cmpi sge, %12, %25 : vector<128x256xi32>
    %27 = arith.andi %24, %26 : vector<128x256xi1>
    %c136_i32_4 = arith.constant 136 : i32
    %28 = vector.broadcast %c136_i32_4 : i32 to vector<128x256xi32>
    %29 = arith.cmpi sge, %12, %28 : vector<128x256xi32>
    %c136_i32_5 = arith.constant 136 : i32
    %30 = vector.broadcast %c136_i32_5 : i32 to vector<128x256xi32>
    %31 = arith.subi %12, %30 : vector<128x256xi32>
    %32 = vector.broadcast %6 : i32 to vector<128x256xi32>
    %33 = arith.cmpi sge, %31, %32 : vector<128x256xi32>
    %34 = arith.andi %29, %33 : vector<128x256xi1>
    %35 = arith.ori %27, %34 : vector<128x256xi1>
    %36 = arith.ori %22, %35 : vector<128x256xi1>
    %cst = arith.constant 0.000000e+00 : f32
    %37 = vector.broadcast %cst : f32 to vector<128x32xf32>
    %38 = arith.index_cast %8 : i32 to index
    %c0 = arith.constant 0 : index
    %39 = vector.load %arg12[%38, %c0] : memref<256x96xbf16, #tpu.memory_space<vmem>>, vector<128x16xbf16>
    %c0_6 = arith.constant 0 : index
    %c32 = arith.constant 32 : index
    %40 = vector.load %arg12[%c0_6, %c32] : memref<256x96xbf16, #tpu.memory_space<vmem>>, vector<256x16xbf16>
    %c0_7 = arith.constant 0 : index
    %c64 = arith.constant 64 : index
    %41 = vector.load %arg12[%c0_7, %c64] : memref<256x96xbf16, #tpu.memory_space<vmem>>, vector<256x16xbf16>
    %cst_8 = arith.constant dense<0.000000e+00> : vector<128x256xf32>
    %42 = tpu.matmul %39, %40, %cst_8 {dimension_numbers = #tpu.dot_dimension_numbers<[1], [1], [0], [0], [0, 0, 1, 0], [], []>} : vector<128x16xbf16>, vector<256x16xbf16>, vector<128x256xf32> -> vector<128x256xf32>
    %cst_9 = arith.constant 2.500000e-01 : f32
    %43 = vector.broadcast %cst_9 : f32 to vector<128x256xf32>
    %44 = arith.mulf %42, %43 : vector<128x256xf32>
    %cst_10 = arith.constant -1.000000e+30 : f32
    %45 = vector.broadcast %cst_10 : f32 to vector<128x256xf32>
    %46 = arith.select %36, %45, %44 : vector<128x256xi1>, vector<128x256xf32>
    %cst_11 = arith.constant dense<0xFF800000> : vector<128xf32>
    %47 = vector.multi_reduction <maximumf>, %46, %cst_11 [1] : vector<128x256xf32> to vector<128xf32>
    %48 = vector.shape_cast %47 : vector<128xf32> to vector<128x1xf32>
    %49 = vector.broadcast %48 : vector<128x1xf32> to vector<128x256xf32>
    %50 = arith.subf %46, %49 : vector<128x256xf32>
    %51 = math.exp %50 : vector<128x256xf32>
    %cst_12 = arith.constant dense<0.000000e+00> : vector<128xf32>
    %52 = vector.multi_reduction <add>, %51, %cst_12 [1] : vector<128x256xf32> to vector<128xf32>
    %53 = vector.shape_cast %52 : vector<128xf32> to vector<128x1xf32>
    %54 = tpu.reciprocal %53 {approx = true} : vector<128x1xf32> -> vector<128x1xf32>
    %55 = vector.broadcast %54 : vector<128x1xf32> to vector<128x256xf32>
    %56 = arith.mulf %51, %55 : vector<128x256xf32>
    %57 = arith.truncf %56 : vector<128x256xf32> to vector<128x256xbf16>
    %cst_13 = arith.constant dense<0.000000e+00> : vector<128x16xf32>
    %58 = tpu.matmul %57, %41, %cst_13 {dimension_numbers = #tpu.dot_dimension_numbers<[1], [0], [0], [1], [0, 0, 1, 1], [], []>} : vector<128x256xbf16>, vector<256x16xbf16>, vector<128x16xf32> -> vector<128x16xf32>
    %59 = arith.truncf %58 : vector<128x16xf32> to vector<128x16xbf16>
    %c0_14 = arith.constant 0 : index
    %c0_15 = arith.constant 0 : index
    %60 = vector.load %arg7[%c0_14, %c0_15] : memref<32x32xbf16, #tpu.memory_space<vmem>>, vector<16x32xbf16>
    %cst_16 = arith.constant dense<0.000000e+00> : vector<128x32xf32>
    %61 = tpu.matmul %59, %60, %cst_16 {dimension_numbers = #tpu.dot_dimension_numbers<[1], [0], [0], [1], [0, 0, 1, 1], [], []>} : vector<128x16xbf16>, vector<16x32xbf16>, vector<128x32xf32> -> vector<128x32xf32>
    %62 = arith.addf %37, %61 : vector<128x32xf32>
    %63 = arith.index_cast %8 : i32 to index
    %c16 = arith.constant 16 : index
    %64 = vector.load %arg12[%63, %c16] : memref<256x96xbf16, #tpu.memory_space<vmem>>, vector<128x16xbf16>
    %c0_17 = arith.constant 0 : index
    %c48 = arith.constant 48 : index
    %65 = vector.load %arg12[%c0_17, %c48] : memref<256x96xbf16, #tpu.memory_space<vmem>>, vector<256x16xbf16>
    %c0_18 = arith.constant 0 : index
    %c80 = arith.constant 80 : index
    %66 = vector.load %arg12[%c0_18, %c80] : memref<256x96xbf16, #tpu.memory_space<vmem>>, vector<256x16xbf16>
    %cst_19 = arith.constant dense<0.000000e+00> : vector<128x256xf32>
    %67 = tpu.matmul %64, %65, %cst_19 {dimension_numbers = #tpu.dot_dimension_numbers<[1], [1], [0], [0], [0, 0, 1, 0], [], []>} : vector<128x16xbf16>, vector<256x16xbf16>, vector<128x256xf32> -> vector<128x256xf32>
    %cst_20 = arith.constant 2.500000e-01 : f32
    %68 = vector.broadcast %cst_20 : f32 to vector<128x256xf32>
    %69 = arith.mulf %67, %68 : vector<128x256xf32>
    %cst_21 = arith.constant -1.000000e+30 : f32
    %70 = vector.broadcast %cst_21 : f32 to vector<128x256xf32>
    %71 = arith.select %36, %70, %69 : vector<128x256xi1>, vector<128x256xf32>
    %cst_22 = arith.constant dense<0xFF800000> : vector<128xf32>
    %72 = vector.multi_reduction <maximumf>, %71, %cst_22 [1] : vector<128x256xf32> to vector<128xf32>
    %73 = vector.shape_cast %72 : vector<128xf32> to vector<128x1xf32>
    %74 = vector.broadcast %73 : vector<128x1xf32> to vector<128x256xf32>
    %75 = arith.subf %71, %74 : vector<128x256xf32>
    %76 = math.exp %75 : vector<128x256xf32>
    %cst_23 = arith.constant dense<0.000000e+00> : vector<128xf32>
    %77 = vector.multi_reduction <add>, %76, %cst_23 [1] : vector<128x256xf32> to vector<128xf32>
    %78 = vector.shape_cast %77 : vector<128xf32> to vector<128x1xf32>
    %79 = tpu.reciprocal %78 {approx = true} : vector<128x1xf32> -> vector<128x1xf32>
    %80 = vector.broadcast %79 : vector<128x1xf32> to vector<128x256xf32>
    %81 = arith.mulf %76, %80 : vector<128x256xf32>
    %82 = arith.truncf %81 : vector<128x256xf32> to vector<128x256xbf16>
    %cst_24 = arith.constant dense<0.000000e+00> : vector<128x16xf32>
    %83 = tpu.matmul %82, %66, %cst_24 {dimension_numbers = #tpu.dot_dimension_numbers<[1], [0], [0], [1], [0, 0, 1, 1], [], []>} : vector<128x256xbf16>, vector<256x16xbf16>, vector<128x16xf32> -> vector<128x16xf32>
    %84 = arith.truncf %83 : vector<128x16xf32> to vector<128x16xbf16>
    %c16_25 = arith.constant 16 : index
    %c0_26 = arith.constant 0 : index
    %85 = vector.load %arg7[%c16_25, %c0_26] : memref<32x32xbf16, #tpu.memory_space<vmem>>, vector<16x32xbf16>
    %cst_27 = arith.constant dense<0.000000e+00> : vector<128x32xf32>
    %86 = tpu.matmul %84, %85, %cst_27 {dimension_numbers = #tpu.dot_dimension_numbers<[1], [0], [0], [1], [0, 0, 1, 1], [], []>} : vector<128x16xbf16>, vector<16x32xbf16>, vector<128x32xf32> -> vector<128x32xf32>
    %87 = arith.addf %62, %86 : vector<128x32xf32>
    %c0_28 = arith.constant 0 : index
    %c0_29 = arith.constant 0 : index
    %88 = vector.load %arg8[%c0_28, %c0_29] : memref<1x32xf32, #tpu.memory_space<vmem>>, vector<1x32xf32>
    %89 = vector.broadcast %88 : vector<1x32xf32> to vector<128x32xf32>
    %90 = arith.addf %87, %89 : vector<128x32xf32>
    %c0_30 = arith.constant 0 : index
    %91 = arith.index_cast %8 : i32 to index
    %c0_31 = arith.constant 0 : index
    %92 = vector.load %arg4[%c0_30, %91, %c0_31] : memref<1x256x32xf32, #tpu.memory_space<vmem>>, vector<1x128x32xf32>
    %93 = vector.shape_cast %92 : vector<1x128x32xf32> to vector<128x32xf32>
    %94 = arith.addf %90, %93 : vector<128x32xf32>
    %cst_32 = arith.constant dense<0.000000e+00> : vector<128xf32>
    %95 = vector.multi_reduction <add>, %94, %cst_32 [1] : vector<128x32xf32> to vector<128xf32>
    %96 = vector.shape_cast %95 : vector<128xf32> to vector<128x1xf32>
    %cst_33 = arith.constant 3.200000e+01 : f32
    %97 = vector.broadcast %cst_33 : f32 to vector<128x1xf32>
    %98 = arith.divf %96, %97 : vector<128x1xf32>
    %99 = vector.broadcast %98 : vector<128x1xf32> to vector<128x32xf32>
    %100 = arith.subf %94, %99 : vector<128x32xf32>
    %101 = arith.mulf %100, %100 : vector<128x32xf32>
    %cst_34 = arith.constant dense<0.000000e+00> : vector<128xf32>
    %102 = vector.multi_reduction <add>, %101, %cst_34 [1] : vector<128x32xf32> to vector<128xf32>
    %103 = vector.shape_cast %102 : vector<128xf32> to vector<128x1xf32>
    %cst_35 = arith.constant 3.200000e+01 : f32
    %104 = vector.broadcast %cst_35 : f32 to vector<128x1xf32>
    %105 = arith.divf %103, %104 : vector<128x1xf32>
    %cst_36 = arith.constant 9.99999974E-6 : f32
    %106 = vector.broadcast %cst_36 : f32 to vector<128x1xf32>
    %107 = arith.addf %105, %106 : vector<128x1xf32>
    %108 = math.rsqrt %107 : vector<128x1xf32>
    %109 = vector.broadcast %108 : vector<128x1xf32> to vector<128x32xf32>
    %110 = arith.mulf %100, %109 : vector<128x32xf32>
    %c0_37 = arith.constant 0 : index
    %c0_38 = arith.constant 0 : index
    %111 = vector.load %arg9[%c0_37, %c0_38] : memref<1x32xf32, #tpu.memory_space<vmem>>, vector<1x32xf32>
    %112 = vector.broadcast %111 : vector<1x32xf32> to vector<128x32xf32>
    %113 = arith.mulf %110, %112 : vector<128x32xf32>
    %c0_39 = arith.constant 0 : index
    %c0_40 = arith.constant 0 : index
    %114 = vector.load %arg10[%c0_39, %c0_40] : memref<1x32xf32, #tpu.memory_space<vmem>>, vector<1x32xf32>
    %115 = vector.broadcast %114 : vector<1x32xf32> to vector<128x32xf32>
    %116 = arith.addf %113, %115 : vector<128x32xf32>
    %c0_41 = arith.constant 0 : index
    %c0_42 = arith.constant 0 : index
    %c0_43 = arith.constant 0 : index
    %117 = vector.load %arg11[%c0_41, %c0_42, %c0_43] : memref<1x128x32xf32, #tpu.memory_space<vmem>>, vector<1x128x32xf32>
    %118 = vector.shape_cast %117 : vector<1x128x32xf32> to vector<128x32xf32>
    %119 = vector.shape_cast %116 : vector<128x32xf32> to vector<1x128x32xf32>
    tpu.vector_store %arg11[%c0_41, %c0_42, %c0_43], %119 {strides = array<i32>} : memref<1x128x32xf32, #tpu.memory_space<vmem>>, vector<1x128x32xf32>,
    return
  }
  func.func @transform_0(%arg0: i32, %arg1: i32, %arg2: memref<2xi32, #tpu.memory_space<smem>>, %arg3: memref<2xi32, #tpu.memory_space<smem>>) -> (i32, i32, i32) {
    %c0_i32 = arith.constant 0 : i32
    %c0_i32_0 = arith.constant 0 : i32
    %c0_i32_1 = arith.constant 0 : i32
    return %arg0, %c0_i32, %c0_i32_0 : i32, i32, i32
  }
  func.func @transform_1(%arg0: i32, %arg1: i32, %arg2: memref<2xi32, #tpu.memory_space<smem>>, %arg3: memref<2xi32, #tpu.memory_space<smem>>) -> (i32, i32) {
    %c0_i32 = arith.constant 0 : i32
    %c0_i32_0 = arith.constant 0 : i32
    %c0_i32_1 = arith.constant 0 : i32
    return %c0_i32, %c0_i32_0 : i32, i32
  }
  func.func @transform_2(%arg0: i32, %arg1: i32, %arg2: memref<2xi32, #tpu.memory_space<smem>>, %arg3: memref<2xi32, #tpu.memory_space<smem>>) -> (i32, i32) {
    %c0_i32 = arith.constant 0 : i32
    %c0_i32_0 = arith.constant 0 : i32
    %c0_i32_1 = arith.constant 0 : i32
    return %c0_i32, %c0_i32_0 : i32, i32
  }
  func.func @transform_3(%arg0: i32, %arg1: i32, %arg2: memref<2xi32, #tpu.memory_space<smem>>, %arg3: memref<2xi32, #tpu.memory_space<smem>>) -> (i32, i32) {
    %c0_i32 = arith.constant 0 : i32
    %c0_i32_0 = arith.constant 0 : i32
    %c0_i32_1 = arith.constant 0 : i32
    return %c0_i32, %c0_i32_0 : i32, i32
  }
  func.func @transform_4(%arg0: i32, %arg1: i32, %arg2: memref<2xi32, #tpu.memory_space<smem>>, %arg3: memref<2xi32, #tpu.memory_space<smem>>) -> (i32, i32) {
    %c0_i32 = arith.constant 0 : i32
    %c0_i32_0 = arith.constant 0 : i32
    %c0_i32_1 = arith.constant 0 : i32
    return %c0_i32, %c0_i32_0 : i32, i32
  }
  func.func @transform_5(%arg0: i32, %arg1: i32, %arg2: memref<2xi32, #tpu.memory_space<smem>>, %arg3: memref<2xi32, #tpu.memory_space<smem>>) -> (i32, i32) {
    %c0_i32 = arith.constant 0 : i32
    %c0_i32_0 = arith.constant 0 : i32
    %c0_i32_1 = arith.constant 0 : i32
    return %c0_i32, %c0_i32_0 : i32, i32
  }
  func.func @transform_6(%arg0: i32, %arg1: i32, %arg2: memref<2xi32, #tpu.memory_space<smem>>, %arg3: memref<2xi32, #tpu.memory_space<smem>>) -> (i32, i32) {
    %c0_i32 = arith.constant 0 : i32
    %c0_i32_0 = arith.constant 0 : i32
    %c0_i32_1 = arith.constant 0 : i32
    return %c0_i32, %c0_i32_0 : i32, i32
  }
  func.func @transform_7(%arg0: i32, %arg1: i32, %arg2: memref<2xi32, #tpu.memory_space<smem>>, %arg3: memref<2xi32, #tpu.memory_space<smem>>) -> (i32, i32, i32) {
    %c0_i32 = arith.constant 0 : i32
    %c0_i32_0 = arith.constant 0 : i32
    return %arg0, %arg1, %c0_i32 : i32, i32, i32
  }
}

module attributes {stable_mosaic.version = 11 : i64} {
  func.func @_ffn_ln_kernel(%arg0: i32, %arg1: memref<256x32xf32, #tpu.memory_space<vmem>>, %arg2: memref<32x128xbf16, #tpu.memory_space<vmem>>, %arg3: memref<1x128xf32, #tpu.memory_space<vmem>>, %arg4: memref<128x32xbf16, #tpu.memory_space<vmem>>, %arg5: memref<1x32xf32, #tpu.memory_space<vmem>>, %arg6: memref<1x32xf32, #tpu.memory_space<vmem>>, %arg7: memref<1x32xf32, #tpu.memory_space<vmem>>, %arg8: memref<256x32xf32, #tpu.memory_space<vmem>>) attributes {dimension_semantics = [#tpu.dimension_semantics<parallel>], iteration_bounds = array<i64: 2>, scalar_prefetch = 0 : i64, scratch_operands = 0 : i64, tpu.core_type = #tpu.core_type<tc>, window_params = [{transform_indices = @transform_0, window_bounds = array<i64: 256, 32>}, {pipeline_mode = #tpu.pipeline_mode<synchronous>, transform_indices = @transform_1, window_bounds = array<i64: 32, 128>}, {pipeline_mode = #tpu.pipeline_mode<synchronous>, transform_indices = @transform_2, window_bounds = array<i64: 1, 128>}, {pipeline_mode = #tpu.pipeline_mode<synchronous>, transform_indices = @transform_3, window_bounds = array<i64: 128, 32>}, {pipeline_mode = #tpu.pipeline_mode<synchronous>, transform_indices = @transform_4, window_bounds = array<i64: 1, 32>}, {pipeline_mode = #tpu.pipeline_mode<synchronous>, transform_indices = @transform_5, window_bounds = array<i64: 1, 32>}, {pipeline_mode = #tpu.pipeline_mode<synchronous>, transform_indices = @transform_6, window_bounds = array<i64: 1, 32>}, {transform_indices = @transform_7, window_bounds = array<i64: 256, 32>}]} {
    %c0 = arith.constant 0 : index
    %c0_0 = arith.constant 0 : index
    %0 = vector.load %arg1[%c0, %c0_0] : memref<256x32xf32, #tpu.memory_space<vmem>>, vector<256x32xf32>
    %1 = arith.truncf %0 : vector<256x32xf32> to vector<256x32xbf16>
    %c0_1 = arith.constant 0 : index
    %c0_2 = arith.constant 0 : index
    %2 = vector.load %arg2[%c0_1, %c0_2] : memref<32x128xbf16, #tpu.memory_space<vmem>>, vector<32x128xbf16>
    %cst = arith.constant dense<0.000000e+00> : vector<256x128xf32>
    %3 = tpu.matmul %1, %2, %cst {dimension_numbers = #tpu.dot_dimension_numbers<[1], [0], [0], [1], [0, 0, 1, 1], [], []>} : vector<256x32xbf16>, vector<32x128xbf16>, vector<256x128xf32> -> vector<256x128xf32>
    %c0_3 = arith.constant 0 : index
    %c0_4 = arith.constant 0 : index
    %4 = vector.load %arg3[%c0_3, %c0_4] : memref<1x128xf32, #tpu.memory_space<vmem>>, vector<1x128xf32>
    %5 = vector.broadcast %4 : vector<1x128xf32> to vector<256x128xf32>
    %6 = arith.addf %3, %5 : vector<256x128xf32>
    %cst_5 = arith.constant 0.000000e+00 : f32
    %7 = vector.broadcast %cst_5 : f32 to vector<256x128xf32>
    %8 = arith.maximumf %6, %7 : vector<256x128xf32>
    %9 = arith.truncf %8 : vector<256x128xf32> to vector<256x128xbf16>
    %c0_6 = arith.constant 0 : index
    %c0_7 = arith.constant 0 : index
    %10 = vector.load %arg4[%c0_6, %c0_7] : memref<128x32xbf16, #tpu.memory_space<vmem>>, vector<128x32xbf16>
    %cst_8 = arith.constant dense<0.000000e+00> : vector<256x32xf32>
    %11 = tpu.matmul %9, %10, %cst_8 {dimension_numbers = #tpu.dot_dimension_numbers<[1], [0], [0], [1], [0, 0, 1, 1], [], []>} : vector<256x128xbf16>, vector<128x32xbf16>, vector<256x32xf32> -> vector<256x32xf32>
    %c0_9 = arith.constant 0 : index
    %c0_10 = arith.constant 0 : index
    %12 = vector.load %arg5[%c0_9, %c0_10] : memref<1x32xf32, #tpu.memory_space<vmem>>, vector<1x32xf32>
    %13 = vector.broadcast %12 : vector<1x32xf32> to vector<256x32xf32>
    %14 = arith.addf %11, %13 : vector<256x32xf32>
    %15 = arith.addf %14, %0 : vector<256x32xf32>
    %cst_11 = arith.constant dense<0.000000e+00> : vector<256xf32>
    %16 = vector.multi_reduction <add>, %15, %cst_11 [1] : vector<256x32xf32> to vector<256xf32>
    %17 = vector.shape_cast %16 : vector<256xf32> to vector<256x1xf32>
    %cst_12 = arith.constant 3.200000e+01 : f32
    %18 = vector.broadcast %cst_12 : f32 to vector<256x1xf32>
    %19 = arith.divf %17, %18 : vector<256x1xf32>
    %20 = vector.broadcast %19 : vector<256x1xf32> to vector<256x32xf32>
    %21 = arith.subf %15, %20 : vector<256x32xf32>
    %22 = arith.mulf %21, %21 : vector<256x32xf32>
    %cst_13 = arith.constant dense<0.000000e+00> : vector<256xf32>
    %23 = vector.multi_reduction <add>, %22, %cst_13 [1] : vector<256x32xf32> to vector<256xf32>
    %24 = vector.shape_cast %23 : vector<256xf32> to vector<256x1xf32>
    %cst_14 = arith.constant 3.200000e+01 : f32
    %25 = vector.broadcast %cst_14 : f32 to vector<256x1xf32>
    %26 = arith.divf %24, %25 : vector<256x1xf32>
    %cst_15 = arith.constant 9.99999974E-6 : f32
    %27 = vector.broadcast %cst_15 : f32 to vector<256x1xf32>
    %28 = arith.addf %26, %27 : vector<256x1xf32>
    %29 = math.rsqrt %28 : vector<256x1xf32>
    %30 = vector.broadcast %29 : vector<256x1xf32> to vector<256x32xf32>
    %31 = arith.mulf %21, %30 : vector<256x32xf32>
    %c0_16 = arith.constant 0 : index
    %c0_17 = arith.constant 0 : index
    %32 = vector.load %arg6[%c0_16, %c0_17] : memref<1x32xf32, #tpu.memory_space<vmem>>, vector<1x32xf32>
    %33 = vector.broadcast %32 : vector<1x32xf32> to vector<256x32xf32>
    %34 = arith.mulf %31, %33 : vector<256x32xf32>
    %c0_18 = arith.constant 0 : index
    %c0_19 = arith.constant 0 : index
    %35 = vector.load %arg7[%c0_18, %c0_19] : memref<1x32xf32, #tpu.memory_space<vmem>>, vector<1x32xf32>
    %36 = vector.broadcast %35 : vector<1x32xf32> to vector<256x32xf32>
    %37 = arith.addf %34, %36 : vector<256x32xf32>
    %c0_20 = arith.constant 0 : index
    %c0_21 = arith.constant 0 : index
    %38 = vector.load %arg8[%c0_20, %c0_21] : memref<256x32xf32, #tpu.memory_space<vmem>>, vector<256x32xf32>
    tpu.vector_store %arg8[%c0_20, %c0_21], %37 {strides = array<i32>} : memref<256x32xf32, #tpu.memory_space<vmem>>, vector<256x32xf32>,
    return
  }
  func.func @transform_0(%arg0: i32) -> (i32, i32) {
    %c0_i32 = arith.constant 0 : i32
    %c0_i32_0 = arith.constant 0 : i32
    return %arg0, %c0_i32 : i32, i32
  }
  func.func @transform_1(%arg0: i32) -> (i32, i32) {
    %c0_i32 = arith.constant 0 : i32
    %c0_i32_0 = arith.constant 0 : i32
    %c0_i32_1 = arith.constant 0 : i32
    return %c0_i32, %c0_i32_0 : i32, i32
  }
  func.func @transform_2(%arg0: i32) -> (i32, i32) {
    %c0_i32 = arith.constant 0 : i32
    %c0_i32_0 = arith.constant 0 : i32
    %c0_i32_1 = arith.constant 0 : i32
    return %c0_i32, %c0_i32_0 : i32, i32
  }
  func.func @transform_3(%arg0: i32) -> (i32, i32) {
    %c0_i32 = arith.constant 0 : i32
    %c0_i32_0 = arith.constant 0 : i32
    %c0_i32_1 = arith.constant 0 : i32
    return %c0_i32, %c0_i32_0 : i32, i32
  }
  func.func @transform_4(%arg0: i32) -> (i32, i32) {
    %c0_i32 = arith.constant 0 : i32
    %c0_i32_0 = arith.constant 0 : i32
    %c0_i32_1 = arith.constant 0 : i32
    return %c0_i32, %c0_i32_0 : i32, i32
  }
  func.func @transform_5(%arg0: i32) -> (i32, i32) {
    %c0_i32 = arith.constant 0 : i32
    %c0_i32_0 = arith.constant 0 : i32
    %c0_i32_1 = arith.constant 0 : i32
    return %c0_i32, %c0_i32_0 : i32, i32
  }
  func.func @transform_6(%arg0: i32) -> (i32, i32) {
    %c0_i32 = arith.constant 0 : i32
    %c0_i32_0 = arith.constant 0 : i32
    %c0_i32_1 = arith.constant 0 : i32
    return %c0_i32, %c0_i32_0 : i32, i32
  }
  func.func @transform_7(%arg0: i32) -> (i32, i32) {
    %c0_i32 = arith.constant 0 : i32
    %c0_i32_0 = arith.constant 0 : i32
    return %arg0, %c0_i32 : i32, i32
  }
}

module attributes {stable_mosaic.version = 11 : i64} {
  func.func @_head_ce_kernel(%arg0: i32, %arg1: memref<240x32xf32, #tpu.memory_space<vmem>>, %arg2: memref<32x64xbf16, #tpu.memory_space<vmem>>, %arg3: memref<240x1xi32, #tpu.memory_space<vmem>>, %arg4: memref<1x1xf32, #tpu.memory_space<vmem>>, %arg5: memref<1x1xf32, #tpu.memory_space<vmem>>) attributes {dimension_semantics = [#tpu.dimension_semantics<arbitrary>], iteration_bounds = array<i64: 1>, scalar_prefetch = 0 : i64, scratch_operands = 0 : i64, tpu.core_type = #tpu.core_type<tc>, window_params = [{transform_indices = @transform_0, window_bounds = array<i64: 240, 32>}, {pipeline_mode = #tpu.pipeline_mode<synchronous>, transform_indices = @transform_1, window_bounds = array<i64: 32, 64>}, {transform_indices = @transform_2, window_bounds = array<i64: 240, 1>}, {pipeline_mode = #tpu.pipeline_mode<synchronous>, transform_indices = @transform_3, window_bounds = array<i64: 1, 1>}, {pipeline_mode = #tpu.pipeline_mode<synchronous>, transform_indices = @transform_4, window_bounds = array<i64: 1, 1>}]} {
    %c0_i32 = arith.constant 0 : i32
    %0 = arith.cmpi eq, %arg0, %c0_i32 : i32
    %1 = arith.extui %0 : i1 to i32
    %c0_i32_0 = arith.constant 0 : i32
    %2 = arith.cmpi ne, %1, %c0_i32_0 : i32
    scf.if %2 {
      %cst_23 = arith.constant 0.000000e+00 : f32
      %60 = vector.broadcast %cst_23 : f32 to vector<1x1xf32>
      %c0_24 = arith.constant 0 : index
      %c0_25 = arith.constant 0 : index
      %61 = vector.load %arg4[%c0_24, %c0_25] : memref<1x1xf32, #tpu.memory_space<vmem>>, vector<1x1xf32>
      tpu.vector_store %arg4[%c0_24, %c0_25], %60 {strides = array<i32>} : memref<1x1xf32, #tpu.memory_space<vmem>>, vector<1x1xf32>,
      %cst_26 = arith.constant 0.000000e+00 : f32
      %62 = vector.broadcast %cst_26 : f32 to vector<1x1xf32>
      %c0_27 = arith.constant 0 : index
      %c0_28 = arith.constant 0 : index
      %63 = vector.load %arg5[%c0_27, %c0_28] : memref<1x1xf32, #tpu.memory_space<vmem>>, vector<1x1xf32>
      tpu.vector_store %arg5[%c0_27, %c0_28], %62 {strides = array<i32>} : memref<1x1xf32, #tpu.memory_space<vmem>>, vector<1x1xf32>,
    } else {
    }
    %c0 = arith.constant 0 : index
    %c0_1 = arith.constant 0 : index
    %3 = vector.load %arg1[%c0, %c0_1] : memref<240x32xf32, #tpu.memory_space<vmem>>, vector<240x32xf32>
    %4 = arith.truncf %3 : vector<240x32xf32> to vector<240x32xbf16>
    %c0_2 = arith.constant 0 : index
    %c0_3 = arith.constant 0 : index
    %5 = vector.load %arg2[%c0_2, %c0_3] : memref<32x64xbf16, #tpu.memory_space<vmem>>, vector<32x64xbf16>
    %cst = arith.constant dense<0.000000e+00> : vector<240x64xf32>
    %6 = tpu.matmul %4, %5, %cst {dimension_numbers = #tpu.dot_dimension_numbers<[1], [0], [0], [1], [0, 0, 1, 1], [], []>} : vector<240x32xbf16>, vector<32x64xbf16>, vector<240x64xf32> -> vector<240x64xf32>
    %c0_4 = arith.constant 0 : index
    %c0_5 = arith.constant 0 : index
    %7 = vector.load %arg3[%c0_4, %c0_5] : memref<240x1xi32, #tpu.memory_space<vmem>>, vector<240x1xi32>
    %8 = tpu.iota {dimensions = array<i32: 1>} : vector<240x64xi32>
    %9 = vector.broadcast %7 : vector<240x1xi32> to vector<240x64xi32>
    %10 = arith.cmpi eq, %8, %9 : vector<240x64xi32>
    %cst_6 = arith.constant 0.000000e+00 : f32
    %11 = vector.broadcast %cst_6 : f32 to vector<240x64xf32>
    %12 = arith.select %10, %6, %11 : vector<240x64xi1>, vector<240x64xf32>
    %cst_7 = arith.constant dense<0.000000e+00> : vector<240xf32>
    %13 = vector.multi_reduction <add>, %12, %cst_7 [1] : vector<240x64xf32> to vector<240xf32>
    %14 = vector.shape_cast %13 : vector<240xf32> to vector<240x1xf32>
    %cst_8 = arith.constant dense<0xFF800000> : vector<240xf32>
    %15 = vector.multi_reduction <maximumf>, %6, %cst_8 [1] : vector<240x64xf32> to vector<240xf32>
    %16 = vector.shape_cast %15 : vector<240xf32> to vector<240x1xf32>
    %17 = vector.broadcast %16 : vector<240x1xf32> to vector<240x64xf32>
    %18 = arith.subf %6, %17 : vector<240x64xf32>
    %19 = math.exp %18 : vector<240x64xf32>
    %cst_9 = arith.constant dense<0.000000e+00> : vector<240xf32>
    %20 = vector.multi_reduction <add>, %19, %cst_9 [1] : vector<240x64xf32> to vector<240xf32>
    %21 = vector.shape_cast %20 : vector<240xf32> to vector<240x1xf32>
    %22 = math.log %21 : vector<240x1xf32>
    %23 = arith.addf %22, %16 : vector<240x1xf32>
    %24 = arith.subf %23, %14 : vector<240x1xf32>
    %25 = vector.broadcast %14 : vector<240x1xf32> to vector<240x64xf32>
    %26 = arith.cmpf ogt, %6, %25 : vector<240x64xf32>
    %27 = arith.extui %26 : vector<240x64xi1> to vector<240x64xi32>
    %28 = arith.sitofp %27 : vector<240x64xi32> to vector<240x64xf32>
    %cst_10 = arith.constant dense<0.000000e+00> : vector<240xf32>
    %29 = vector.multi_reduction <add>, %28, %cst_10 [1] : vector<240x64xf32> to vector<240xf32>
    %30 = vector.shape_cast %29 : vector<240xf32> to vector<240x1xf32>
    %c240_i32 = arith.constant 240 : i32
    %31 = arith.muli %arg0, %c240_i32 : i32
    %32 = tpu.iota {dimensions = array<i32: 0>} : vector<240x1xi32>
    %33 = vector.broadcast %31 : i32 to vector<240x1xi32>
    %34 = arith.addi %33, %32 : vector<240x1xi32>
    %c240_i32_11 = arith.constant 240 : i32
    %35 = vector.broadcast %c240_i32_11 : i32 to vector<240x1xi32>
    %36 = arith.cmpi slt, %34, %35 : vector<240x1xi32>
    %37 = arith.extui %36 : vector<240x1xi1> to vector<240x1xi32>
    %38 = arith.sitofp %37 : vector<240x1xi32> to vector<240x1xf32>
    %c63_i32 = arith.constant 63 : i32
    %39 = vector.broadcast %c63_i32 : i32 to vector<240x1xi32>
    %40 = arith.cmpi ne, %7, %39 : vector<240x1xi32>
    %41 = arith.andi %36, %40 : vector<240x1xi1>
    %42 = arith.extui %41 : vector<240x1xi1> to vector<240x1xi32>
    %43 = arith.sitofp %42 : vector<240x1xi32> to vector<240x1xf32>
    %cst_12 = arith.constant 3.000000e+00 : f32
    %44 = vector.broadcast %cst_12 : f32 to vector<240x1xf32>
    %45 = arith.cmpf olt, %30, %44 : vector<240x1xf32>
    %46 = arith.extui %45 : vector<240x1xi1> to vector<240x1xi32>
    %47 = arith.sitofp %46 : vector<240x1xi32> to vector<240x1xf32>
    %c0_13 = arith.constant 0 : index
    %c0_14 = arith.constant 0 : index
    %48 = vector.load %arg4[%c0_13, %c0_14] : memref<1x1xf32, #tpu.memory_space<vmem>>, vector<1x1xf32>
    %49 = arith.mulf %24, %38 : vector<240x1xf32>
    %cst_15 = arith.constant dense<0.000000e+00> : vector<1xf32>
    %50 = vector.multi_reduction <add>, %49, %cst_15 [0] : vector<240x1xf32> to vector<1xf32>
    %51 = vector.shape_cast %50 : vector<1xf32> to vector<1x1xf32>
    %52 = arith.addf %48, %51 : vector<1x1xf32>
    %c0_16 = arith.constant 0 : index
    %c0_17 = arith.constant 0 : index
    %53 = vector.load %arg4[%c0_16, %c0_17] : memref<1x1xf32, #tpu.memory_space<vmem>>, vector<1x1xf32>
    tpu.vector_store %arg4[%c0_16, %c0_17], %52 {strides = array<i32>} : memref<1x1xf32, #tpu.memory_space<vmem>>, vector<1x1xf32>,
    %c0_18 = arith.constant 0 : index
    %c0_19 = arith.constant 0 : index
    %54 = vector.load %arg5[%c0_18, %c0_19] : memref<1x1xf32, #tpu.memory_space<vmem>>, vector<1x1xf32>
    %55 = arith.mulf %47, %43 : vector<240x1xf32>
    %cst_20 = arith.constant dense<0.000000e+00> : vector<1xf32>
    %56 = vector.multi_reduction <add>, %55, %cst_20 [0] : vector<240x1xf32> to vector<1xf32>
    %57 = vector.shape_cast %56 : vector<1xf32> to vector<1x1xf32>
    %58 = arith.addf %54, %57 : vector<1x1xf32>
    %c0_21 = arith.constant 0 : index
    %c0_22 = arith.constant 0 : index
    %59 = vector.load %arg5[%c0_21, %c0_22] : memref<1x1xf32, #tpu.memory_space<vmem>>, vector<1x1xf32>
    tpu.vector_store %arg5[%c0_21, %c0_22], %58 {strides = array<i32>} : memref<1x1xf32, #tpu.memory_space<vmem>>, vector<1x1xf32>,
    return
  }
  func.func @transform_0(%arg0: i32) -> (i32, i32) {
    %c0_i32 = arith.constant 0 : i32
    %c0_i32_0 = arith.constant 0 : i32
    return %arg0, %c0_i32 : i32, i32
  }
  func.func @transform_1(%arg0: i32) -> (i32, i32) {
    %c0_i32 = arith.constant 0 : i32
    %c0_i32_0 = arith.constant 0 : i32
    %c0_i32_1 = arith.constant 0 : i32
    return %c0_i32, %c0_i32_0 : i32, i32
  }
  func.func @transform_2(%arg0: i32) -> (i32, i32) {
    %c0_i32 = arith.constant 0 : i32
    %c0_i32_0 = arith.constant 0 : i32
    return %arg0, %c0_i32 : i32, i32
  }
  func.func @transform_3(%arg0: i32) -> (i32, i32) {
    %c0_i32 = arith.constant 0 : i32
    %c0_i32_0 = arith.constant 0 : i32
    %c0_i32_1 = arith.constant 0 : i32
    return %c0_i32, %c0_i32_0 : i32, i32
  }
  func.func @transform_4(%arg0: i32) -> (i32, i32) {
    %c0_i32 = arith.constant 0 : i32
    %c0_i32_0 = arith.constant 0 : i32
    %c0_i32_1 = arith.constant 0 : i32
    return %c0_i32, %c0_i32_0 : i32, i32
  }
}

</mosaic_0001>

<llo_original>
// kernel: t2s_forward.6
$region0: #{t2s_forward.6}
  #allocation0 [shape = 'u32[]', space=smem, size = 0x4, offset = 0x4, fixed_abs, tag = 'smem constant byte address 0x4 - core index']
  #allocation1 [shape = 'u32[144,128]{1,0:T(1,128)}', space=vmem, size = 0x12000, scoped, tag = 'internal scratch']
  %s0 = inlined_call_operand.hbm [shape: f32[512,32], index: 0, kind: input, shape index: {}]
  %s1 = inlined_call_operand.hbm [shape: bf16[32,128], index: 1, kind: input, shape index: {}]
  %s2 = inlined_call_operand.hbm [shape: f32[1,128], index: 2, kind: input, shape index: {}]
  %s3 = inlined_call_operand.hbm [shape: bf16[128,32], index: 3, kind: input, shape index: {}]
  %s4 = inlined_call_operand.hbm [shape: f32[1,32], index: 4, kind: input, shape index: {}]
  %s5 = inlined_call_operand.hbm [shape: f32[1,32], index: 5, kind: input, shape index: {}]
  %s6 = inlined_call_operand.hbm [shape: f32[1,32], index: 6, kind: input, shape index: {}]
  %s7 = inlined_call_operand.hbm [shape: f32[512,32], index: 7, kind: output, shape index: {}]
  %s8 = sld [smem:[#allocation0]]
  $region89: #{t2s_forward.6} parent=0
    _
  %s10 = ssub.s32 1, %s8
  %s11 = scalar_select 0, %s10, %s8
  $region1: #{t2s_forward.6} parent=0
    #allocation2 [shape = 'u8[262144]{0}', space=vmem, size = 0x40000, scoped, tag = 'input window, operand 0']
    #allocation3 [shape = 's32[2]{0}', space=sflag, size = 0x8, scoped, tag = 'scoped memory for t2s_forward.6']
    #allocation4 [shape = 's32[2]{0}', space=sflag, size = 0x8, scoped, tag = 'scoped memory for t2s_forward.6']
    #allocation5 [shape = 'u8[8192]{0}', space=vmem, size = 0x2000, scoped, tag = 'input window, operand 1, single buffered']
    #allocation6 [shape = 's32[1]{0}', space=sflag, size = 0x4, scoped, tag = 'scoped memory for t2s_forward.6']
    #allocation7 [shape = 'u8[512]{0}', space=vmem, size = 0x400, scoped, tag = 'input window, operand 2, single buffered']
    #allocation8 [shape = 'u8[32768]{0}', space=vmem, size = 0x8000, scoped, tag = 'input window, operand 3, single buffered']
    #allocation9 [shape = 's32[1]{0}', space=sflag, size = 0x4, scoped, tag = 'scoped memory for t2s_forward.6']
    #allocation10 [shape = 'u8[512]{0}', space=vmem, size = 0x400, scoped, tag = 'input window, operand 4, single buffered']
    #allocation11 [shape = 'u8[512]{0}', space=vmem, size = 0x400, scoped, tag = 'input window, operand 5, single buffered']
    #allocation12 [shape = 's32[1]{0}', space=sflag, size = 0x4, scoped, tag = 'scoped memory for t2s_forward.6']
    #allocation13 [shape = 'u8[512]{0}', space=vmem, size = 0x400, scoped, tag = 'input window, operand 6, single buffered']
    #allocation14 [shape = 'u8[262144]{0}', space=vmem, size = 0x40000, scoped, tag = 'output window, operand 0']
    %12 = vsyncpa [#allocation3], 0
    %s13 = scalar_lea.sflag [#allocation3], 1
    %14 = vsyncpa %s13, 0
    %15 = vsyncpa [#allocation6], 0
    %16 = vsyncpa [#allocation9], 0
    %17 = vsyncpa [#allocation12], 0
    %18 = vsyncpa [#allocation4], 0
    %s19 = scalar_lea.sflag [#allocation4], 1
    %20 = vsyncpa %s19, 0
    loop: start=0, step=1, limit=4
    $region2: #{t2s_forward.6} parent=1 // loop_pre_header
      _
    $region3: #{t2s_forward.6} parent=1 // loop_header
      %s22 = sphi 0, %s26
      %p23 = scmp.ge.s32.totalorder %s22, 4
      %s32 = sphi 0, %s34
      %s35 = sphi 0, %s32
      %s36 = sphi 0, %s35
      %s52 = sphi 0, %s36
      %s56 = sphi 0, %s56
      %s58 = sphi 0, %s56
      %s59 = sphi 0, %s58
      %s73 = sphi 0, %s59
      %s77 = sphi 0, %s77
      %s79 = sphi 0, %s77
      %s80 = sphi 0, %s79
      %s94 = sphi 0, %s80
      %s98 = sphi 0, %s98
      %s100 = sphi 0, %s98
      %s101 = sphi 0, %s100
      %s115 = sphi 0, %s101
      %s119 = sphi 0, %s119
      %s121 = sphi 0, %s119
      %s122 = sphi 0, %s121
      %s136 = sphi 0, %s122
      %s140 = sphi 0, %s140
      %s142 = sphi 0, %s140
      %s143 = sphi 0, %s142
      %s157 = sphi 0, %s143
      %s161 = sphi 0, %s161
      %s163 = sphi 0, %s161
      %s164 = sphi 0, %s163
      %s178 = sphi 0, %s164
      %s184 = sphi 0, %s186
      %s187 = sphi 0, %s184
      %s188 = sphi 0, %s187
      %s204 = sphi 0, %s188
    $region4: #{t2s_forward.6} parent=1 // loop_header_branch
      %25 = sbr.rel (%p23) target = $region8
    $region5: #{t2s_forward.6} parent=1 // loop_body
      %s27 = ssub.s32 %s22, 1
      %s28 = ssub.s32 %s22, 2
      %s29 = sadd.s32 %s22, 1
      %s30 = ssub.s32 %s22, %s29
      %p31 = scmp.eq.s32.totalorder %s30, 0
      %s33 = sadd.s32 %s32, 1
      %s34 = scalar_select %p31, %s32, %s33
      %p37 = pneg %p31
      %p38 = scmp.eq.s32.totalorder %s22, 1
      %p39 = por %p37, %p38
      %p40 = scmp.ne.s32.totalorder %s32, %s35
      %p41 = scmp.eq.s32.totalorder %s22, 0
      %p42 = por %p40, %p41
      %p43 = scmp.ne.s32.totalorder %s32, %s35
      %p44 = scmp.eq.s32.totalorder %s27, 1
      %p45 = por %p43, %p44
      %p46 = scmp.ne.s32.totalorder %s35, %s36
      %p47 = scmp.eq.s32.totalorder %s27, 0
      %p48 = por %p46, %p47
      %p49 = scmp.ne.s32.totalorder %s35, %s36
      %p50 = scmp.eq.s32.totalorder %s28, 1
      %p51 = por %p49, %p50
      %p53 = scmp.ne.s32.totalorder %s36, %s52
      %p54 = scmp.eq.s32.totalorder %s28, 0
      %p55 = por %p53, %p54
      %s57 = sadd.s32 %s56, 1
      %p60 = scmp.eq.s32.totalorder %s22, 1
      %p61 = scmp.ne.s32.totalorder %s56, %s58
      %p62 = scmp.eq.s32.totalorder %s22, 0
      %p63 = por %p61, %p62
      %p64 = scmp.ne.s32.totalorder %s56, %s58
      %p65 = scmp.eq.s32.totalorder %s27, 1
      %p66 = por %p64, %p65
      %p67 = scmp.ne.s32.totalorder %s58, %s59
      %p68 = scmp.eq.s32.totalorder %s27, 0
      %p69 = por %p67, %p68
      %p70 = scmp.ne.s32.totalorder %s58, %s59
      %p71 = scmp.eq.s32.totalorder %s28, 1
      %p72 = por %p70, %p71
      %p74 = scmp.ne.s32.totalorder %s59, %s73
      %p75 = scmp.eq.s32.totalorder %s28, 0
      %p76 = por %p74, %p75
      %s78 = sadd.s32 %s77, 1
      %p81 = scmp.eq.s32.totalorder %s22, 1
      %p82 = scmp.ne.s32.totalorder %s77, %s79
      %p83 = scmp.eq.s32.totalorder %s22, 0
      %p84 = por %p82, %p83
      %p85 = scmp.ne.s32.totalorder %s77, %s79
      %p86 = scmp.eq.s32.totalorder %s27, 1
      %p87 = por %p85, %p86
      %p88 = scmp.ne.s32.totalorder %s79, %s80
      %p89 = scmp.eq.s32.totalorder %s27, 0
      %p90 = por %p88, %p89
      %p91 = scmp.ne.s32.totalorder %s79, %s80
      %p92 = scmp.eq.s32.totalorder %s28, 1
      %p93 = por %p91, %p92
      %p95 = scmp.ne.s32.totalorder %s80, %s94
      %p96 = scmp.eq.s32.totalorder %s28, 0
      %p97 = por %p95, %p96
      %s99 = sadd.s32 %s98, 1
      %p102 = scmp.eq.s32.totalorder %s22, 1
      %p103 = scmp.ne.s32.totalorder %s98, %s100
      %p104 = scmp.eq.s32.totalorder %s22, 0
      %p105 = por %p103, %p104
      %p106 = scmp.ne.s32.totalorder %s98, %s100
      %p107 = scmp.eq.s32.totalorder %s27, 1
      %p108 = por %p106, %p107
      %p109 = scmp.ne.s32.totalorder %s100, %s101
      %p110 = scmp.eq.s32.totalorder %s27, 0
      %p111 = por %p109, %p110
      %p112 = scmp.ne.s32.totalorder %s100, %s101
      %p113 = scmp.eq.s32.totalorder %s28, 1
      %p114 = por %p112, %p113
      %p116 = scmp.ne.s32.totalorder %s101, %s115
      %p117 = scmp.eq.s32.totalorder %s28, 0
      %p118 = por %p116, %p117
      %s120 = sadd.s32 %s119, 1
      %p123 = scmp.eq.s32.totalorder %s22, 1
      %p124 = scmp.ne.s32.totalorder %s119, %s121
      %p125 = scmp.eq.s32.totalorder %s22, 0
      %p126 = por %p124, %p125
      %p127 = scmp.ne.s32.totalorder %s119, %s121
      %p128 = scmp.eq.s32.totalorder %s27, 1
      %p129 = por %p127, %p128
      %p130 = scmp.ne.s32.totalorder %s121, %s122
      %p131 = scmp.eq.s32.totalorder %s27, 0
      %p132 = por %p130, %p131
      %p133 = scmp.ne.s32.totalorder %s121, %s122
      %p134 = scmp.eq.s32.totalorder %s28, 1
      %p135 = por %p133, %p134
      %p137 = scmp.ne.s32.totalorder %s122, %s136
      %p138 = scmp.eq.s32.totalorder %s28, 0
      %p139 = por %p137, %p138
      %s141 = sadd.s32 %s140, 1
      %p144 = scmp.eq.s32.totalorder %s22, 1
      %p145 = scmp.ne.s32.totalorder %s140, %s142
      %p146 = scmp.eq.s32.totalorder %s22, 0
      %p147 = por %p145, %p146
      %p148 = scmp.ne.s32.totalorder %s140, %s142
      %p149 = scmp.eq.s32.totalorder %s27, 1
      %p150 = por %p148, %p149
      %p151 = scmp.ne.s32.totalorder %s142, %s143
      %p152 = scmp.eq.s32.totalorder %s27, 0
      %p153 = por %p151, %p152
      %p154 = scmp.ne.s32.totalorder %s142, %s143
      %p155 = scmp.eq.s32.totalorder %s28, 1
      %p156 = por %p154, %p155
      %p158 = scmp.ne.s32.totalorder %s143, %s157
      %p159 = scmp.eq.s32.totalorder %s28, 0
      %p160 = por %p158, %p159
      %s162 = sadd.s32 %s161, 1
      %p165 = scmp.eq.s32.totalorder %s22, 1
      %p166 = scmp.ne.s32.totalorder %s161, %s163
      %p167 = scmp.eq.s32.totalorder %s22, 0
      %p168 = por %p166, %p167
      %p169 = scmp.ne.s32.totalorder %s161, %s163
      %p170 = scmp.eq.s32.totalorder %s27, 1
      %p171 = por %p169, %p170
      %p172 = scmp.ne.s32.totalorder %s163, %s164
      %p173 = scmp.eq.s32.totalorder %s27, 0
      %p174 = por %p172, %p173
      %p175 = scmp.ne.s32.totalorder %s163, %s164
      %p176 = scmp.eq.s32.totalorder %s28, 1
      %p177 = por %p175, %p176
      %p179 = scmp.ne.s32.totalorder %s164, %s178
      %p180 = scmp.eq.s32.totalorder %s28, 0
      %p181 = por %p179, %p180
      %s182 = ssub.s32 %s22, %s29
      %p183 = scmp.eq.s32.totalorder %s182, 0
      %s185 = sadd.s32 %s184, 1
      %s186 = scalar_select %p183, %s184, %s185
      %p189 = pneg %p183
      %p190 = scmp.eq.s32.totalorder %s22, 1
      %p191 = por %p189, %p190
      %p192 = scmp.ne.s32.totalorder %s184, %s187
      %p193 = scmp.eq.s32.totalorder %s22, 0
      %p194 = por %p192, %p193
      %p195 = scmp.ne.s32.totalorder %s184, %s187
      %p196 = scmp.eq.s32.totalorder %s27, 1
      %p197 = por %p195, %p196
      %p198 = scmp.ne.s32.totalorder %s187, %s188
      %p199 = scmp.eq.s32.totalorder %s27, 0
      %p200 = por %p198, %p199
      %p201 = scmp.ne.s32.totalorder %s187, %s188
      %p202 = scmp.eq.s32.totalorder %s28, 1
      %p203 = por %p201, %p202
      %p205 = scmp.ne.s32.totalorder %s188, %s204
      %p206 = scmp.eq.s32.totalorder %s28, 0
      %p207 = por %p205, %p206
      %p208 = scmp.le.s32.totalorder 1, %s22
      %p209 = scmp.lt.s32.totalorder %s22, 3
      %p210 = pnand %p208, %p209
      %p211 = pneg %p210
      // Predicated region
      $region9: #{t2s_forward.6} parent=5 // pred_check
        _
      $region10: #{t2s_forward.6} parent=5 // pred_check_branch
        %213 = sbr.rel (%p210) target = $region12
      $region11: #{t2s_forward.6} parent=5 // pred_region
        %s214 = ssub.s32 %s22, 1
        // Predicated region
        $region13: #{t2s_forward.6} parent=11 // pred_check
          %p215 = pneg %p69
        $region14: #{t2s_forward.6} parent=11 // pred_check_branch
          %217 = sbr.rel (%p215) target = $region16
        $region15: #{t2s_forward.6} parent=11 // pred_region
          %s219 = ssub.s32 256, 256
          %220 = vsyncadd [#allocation6], %s219
          %s221 = sshll.u32 [#allocation5], 4
          %s222 = int_to_ptr.vmem [resolvable:$true] %s221
          %227 = dma.hbm_to_vmem [thread:$0]  %s1, 256, %s222, [#allocation6], 64, 64, 4
        $region16: #{t2s_forward.6} parent=11 // pred_fallthru
          _
        // Predicated region
        $region17: #{t2s_forward.6} parent=11 // pred_check
          %p228 = pneg %p90
        $region18: #{t2s_forward.6} parent=11 // pred_check_branch
          %230 = sbr.rel (%p228) target = $region20
        $region19: #{t2s_forward.6} parent=11 // pred_region
          %s232 = ssub.s32 16, 16
          %233 = vsyncadd [#allocation6], %s232
          %s235 = sshll.u32 [#allocation7], 4
          %s236 = int_to_ptr.vmem [resolvable:$true] %s235
          %238 = dma.hbm_to_vmem [thread:$0]  %s2, 16, %s236, [#allocation6]
        $region20: #{t2s_forward.6} parent=11 // pred_fallthru
          _
        // Predicated region
        $region21: #{t2s_forward.6} parent=11 // pred_check
          %p239 = pneg %p111
        $region22: #{t2s_forward.6} parent=11 // pred_check_branch
          %241 = sbr.rel (%p239) target = $region24
        $region23: #{t2s_forward.6} parent=11 // pred_region
          %s243 = ssub.s32 1024, 1024
          %244 = vsyncadd [#allocation9], %s243
          %s245 = sshll.u32 [#allocation8], 4
          %s246 = int_to_ptr.vmem [resolvable:$true] %s245
          %251 = dma.hbm_to_vmem [thread:$0]  %s3, 1024, %s246, [#allocation9], 64, 64, 4
        $region24: #{t2s_forward.6} parent=11 // pred_fallthru
          _
        // Predicated region
        $region25: #{t2s_forward.6} parent=11 // pred_check
          %p252 = pneg %p132
        $region26: #{t2s_forward.6} parent=11 // pred_check_branch
          %254 = sbr.rel (%p252) target = $region28
        $region27: #{t2s_forward.6} parent=11 // pred_region
          %s256 = ssub.s32 16, 16
          %257 = vsyncadd [#allocation9], %s256
          %s259 = sshll.u32 [#allocation10], 4
          %s260 = int_to_ptr.vmem [resolvable:$true] %s259
          %262 = dma.hbm_to_vmem [thread:$0]  %s4, 16, %s260, [#allocation9]
        $region28: #{t2s_forward.6} parent=11 // pred_fallthru
          _
        // Predicated region
        $region29: #{t2s_forward.6} parent=11 // pred_check
          %p263 = pneg %p153
        $region30: #{t2s_forward.6} parent=11 // pred_check_branch
          %265 = sbr.rel (%p263) target = $region32
        $region31: #{t2s_forward.6} parent=11 // pred_region
          %s267 = ssub.s32 16, 16
          %268 = vsyncadd [#allocation12], %s267
          %s270 = sshll.u32 [#allocation11], 4
          %s271 = int_to_ptr.vmem [resolvable:$true] %s270
          %273 = dma.hbm_to_vmem [thread:$0]  %s5, 16, %s271, [#allocation12]
        $region32: #{t2s_forward.6} parent=11 // pred_fallthru
          _
        // Predicated region
        $region33: #{t2s_forward.6} parent=11 // pred_check
          %p274 = pneg %p174
        $region34: #{t2s_forward.6} parent=11 // pred_check_branch
          %276 = sbr.rel (%p274) target = $region36
        $region35: #{t2s_forward.6} parent=11 // pred_region
          %s278 = ssub.s32 16, 16
          %279 = vsyncadd [#allocation12], %s278
          %s281 = sshll.u32 [#allocation13], 4
          %s282 = int_to_ptr.vmem [resolvable:$true] %s281
          %284 = dma.hbm_to_vmem [thread:$0]  %s6, 16, %s282, [#allocation12]
        $region36: #{t2s_forward.6} parent=11 // pred_fallthru
          _
      $region12: #{t2s_forward.6} parent=5 // pred_fallthru
        _
      %p285 = scmp.lt.s32.totalorder %s22, 2
      // Predicated region
      $region37: #{t2s_forward.6} parent=5 // pred_check
        %p286 = pneg %p285
      $region38: #{t2s_forward.6} parent=5 // pred_check_branch
        %288 = sbr.rel (%p286) target = $region40
      $region39: #{t2s_forward.6} parent=5 // pred_region
        // Predicated region
        $region41: #{t2s_forward.6} parent=39 // pred_check
          %p289 = pneg %p42
        $region42: #{t2s_forward.6} parent=39 // pred_check_branch
          %291 = sbr.rel (%p289) target = $region44
        $region43: #{t2s_forward.6} parent=39 // pred_region
          %s292 = sand.u32 %s32, 1
          %s293 = scalar_lea.sflag [#allocation3], %s292
          %s294 = sand.u32 %s32, 1
          %s295 = smul.addr %s294, 256
          %s296 = scalar_lea.vmem [#allocation2], %s295
          %s297 = smul.u32 32, %s22
          %s299 = ssub.s32 4096, 4096
          %300 = vsyncadd %s293, %s299
          %s301 = smul.addr %s297, 128
          %s302 = scalar_lea.hbm %s0, %s301
          %s303 = sshll.u32 %s296, 4
          %s304 = int_to_ptr.vmem [resolvable:$true] %s303
          %309 = dma.hbm_to_vmem [thread:$0]  %s302, 4096, %s304, %s293, 128, 128, 8
        $region44: #{t2s_forward.6} parent=39 // pred_fallthru
          _
      $region40: #{t2s_forward.6} parent=5 // pred_fallthru
        _
      %p310 = scmp.le.s32.totalorder 1, %s22
      %p311 = scmp.lt.s32.totalorder %s22, 3
      %p312 = pnand %p310, %p311
      %p313 = pneg %p312
      // Predicated region
      $region45: #{t2s_forward.6} parent=5 // pred_check
        _
      $region46: #{t2s_forward.6} parent=5 // pred_check_branch
        %315 = sbr.rel (%p312) target = $region48
      $region47: #{t2s_forward.6} parent=5 // pred_region
        %s316 = ssub.s32 %s22, 1
        %s317 = sand.u32 %s35, 1
        %s318 = scalar_lea.sflag [#allocation3], %s317
        %s319 = sand.u32 %s35, 1
        %s320 = smul.addr %s319, 256
        %s321 = scalar_lea.vmem [#allocation2], %s320
        // Predicated region
        $region49: #{t2s_forward.6} parent=47 // pred_check
          %p322 = pneg %p48
        $region50: #{t2s_forward.6} parent=47 // pred_check_branch
          %324 = sbr.rel (%p322) target = $region52
        $region51: #{t2s_forward.6} parent=47 // pred_region
          %325 = dma.done %s318, 4096
        $region52: #{t2s_forward.6} parent=47 // pred_fallthru
          _
        // Predicated region
        $region53: #{t2s_forward.6} parent=47 // pred_check
          %p326 = pneg %p69
        $region54: #{t2s_forward.6} parent=47 // pred_check_branch
          %328 = sbr.rel (%p326) target = $region56
        $region55: #{t2s_forward.6} parent=47 // pred_region
          %329 = dma.done [#allocation6], 256
        $region56: #{t2s_forward.6} parent=47 // pred_fallthru
          _
        // Predicated region
        $region57: #{t2s_forward.6} parent=47 // pred_check
          %p330 = pneg %p90
        $region58: #{t2s_forward.6} parent=47 // pred_check_branch
          %332 = sbr.rel (%p330) target = $region60
        $region59: #{t2s_forward.6} parent=47 // pred_region
          %333 = dma.done [#allocation6], 16
        $region60: #{t2s_forward.6} parent=47 // pred_fallthru
          _
        // Predicated region
        $region61: #{t2s_forward.6} parent=47 // pred_check
          %p334 = pneg %p111
        $region62: #{t2s_forward.6} parent=47 // pred_check_branch
          %336 = sbr.rel (%p334) target = $region64
        $region63: #{t2s_forward.6} parent=47 // pred_region
          %337 = dma.done [#allocation9], 1024
        $region64: #{t2s_forward.6} parent=47 // pred_fallthru
          _
        // Predicated region
        $region65: #{t2s_forward.6} parent=47 // pred_check
          %p338 = pneg %p132
        $region66: #{t2s_forward.6} parent=47 // pred_check_branch
          %340 = sbr.rel (%p338) target = $region68
        $region67: #{t2s_forward.6} parent=47 // pred_region
          %341 = dma.done [#allocation9], 16
        $region68: #{t2s_forward.6} parent=47 // pred_fallthru
          _
        // Predicated region
        $region69: #{t2s_forward.6} parent=47 // pred_check
          %p342 = pneg %p153
        $region70: #{t2s_forward.6} parent=47 // pred_check_branch
          %344 = sbr.rel (%p342) target = $region72
        $region71: #{t2s_forward.6} parent=47 // pred_region
          %345 = dma.done [#allocation12], 16
        $region72: #{t2s_forward.6} parent=47 // pred_fallthru
          _
        // Predicated region
        $region73: #{t2s_forward.6} parent=47 // pred_check
          %p346 = pneg %p174
        $region74: #{t2s_forward.6} parent=47 // pred_check_branch
          %348 = sbr.rel (%p346) target = $region76
        $region75: #{t2s_forward.6} parent=47 // pred_region
          %349 = dma.done [#allocation12], 16
        $region76: #{t2s_forward.6} parent=47 // pred_fallthru
          _
        %s350 = sand.u32 %s35, 1
        %s351 = scalar_lea.sflag [#allocation3], %s350
        %s352 = sand.u32 %s35, 1
        %s353 = smul.addr %s352, 256
        %s354 = scalar_lea.vmem [#allocation2], %s353
        %p355 = pneg %p48
        %p356 = pneg %p45
        %p357 = pneg %p69
        %p358 = pneg %p66
        %p359 = pneg %p90
        %p360 = pneg %p87
        %p361 = pneg %p111
        %p362 = pneg %p108
        %p363 = pneg %p132
        %p364 = pneg %p129
        %p365 = pneg %p153
        %p366 = pneg %p150
        %p367 = pneg %p174
        %p368 = pneg %p171
        %p369 = pneg %p200
        %p370 = pneg %p197
        %s371 = sand.u32 %s187, 1
        %s372 = scalar_lea.sflag [#allocation4], %s371
        %s373 = sand.u32 %s187, 1
        %s374 = smul.addr %s373, 256
        %s375 = scalar_lea.vmem [#allocation14], %s374
        %s376 = smul.u32 32, %s27
        %s377 = smul.u32 32, %s27
        %v379 = vld [vmem:[%s321] sm:$0xff]
        %v380 = vld [vmem:[%s321 + $0x8] sm:$0xff]
        %v381 = vld [vmem:[%s321 + $0x10] sm:$0xff]
        %v382 = vld [vmem:[%s321 + $0x18] sm:$0xff]
        %v383 = vld [vmem:[%s321 + $0x20] sm:$0xff]
        %v384 = vld [vmem:[%s321 + $0x28] sm:$0xff]
        %v385 = vld [vmem:[%s321 + $0x30] sm:$0xff]
        %v386 = vld [vmem:[%s321 + $0x38] sm:$0xff]
        %v387 = vld [vmem:[%s321 + $0x40] sm:$0xff]
        %v388 = vld [vmem:[%s321 + $0x48] sm:$0xff]
        %v389 = vld [vmem:[%s321 + $0x50] sm:$0xff]
        %v390 = vld [vmem:[%s321 + $0x58] sm:$0xff]
        %v391 = vld [vmem:[%s321 + $0x60] sm:$0xff]
        %v392 = vld [vmem:[%s321 + $0x68] sm:$0xff]
        %v393 = vld [vmem:[%s321 + $0x70] sm:$0xff]
        %v394 = vld [vmem:[%s321 + $0x78] sm:$0xff]
        %v395 = vld [vmem:[%s321 + $0x80] sm:$0xff]
        %v396 = vld [vmem:[%s321 + $0x88] sm:$0xff]
        %v397 = vld [vmem:[%s321 + $0x90] sm:$0xff]
        %v398 = vld [vmem:[%s321 + $0x98] sm:$0xff]
        %v399 = vld [vmem:[%s321 + $0xa0] sm:$0xff]
        %v400 = vld [vmem:[%s321 + $0xa8] sm:$0xff]
        %v401 = vld [vmem:[%s321 + $0xb0] sm:$0xff]
        %v402 = vld [vmem:[%s321 + $0xb8] sm:$0xff]
        %v403 = vld [vmem:[%s321 + $0xc0] sm:$0xff]
        %v404 = vld [vmem:[%s321 + $0xc8] sm:$0xff]
        %v405 = vld [vmem:[%s321 + $0xd0] sm:$0xff]
        %v406 = vld [vmem:[%s321 + $0xd8] sm:$0xff]
        %v407 = vld [vmem:[%s321 + $0xe0] sm:$0xff]
        %v408 = vld [vmem:[%s321 + $0xe8] sm:$0xff]
        %v409 = vld [vmem:[%s321 + $0xf0] sm:$0xff]
        %v410 = vld [vmem:[%s321 + $0xf8] sm:$0xff]
        %v411 = vpack.c.bf16 %v380, %v379
        %v412 = vpack.c.bf16 %v382, %v381
        %v413 = vpack.c.bf16 %v384, %v383
        %v414 = vpack.c.bf16 %v386, %v385
        %v415 = vpack.c.bf16 %v388, %v387
        %v416 = vpack.c.bf16 %v390, %v389
        %v417 = vpack.c.bf16 %v392, %v391
        %v418 = vpack.c.bf16 %v394, %v393
        %v419 = vpack.c.bf16 %v396, %v395
        %v420 = vpack.c.bf16 %v398, %v397
        %v421 = vpack.c.bf16 %v400, %v399
        %v422 = vpack.c.bf16 %v402, %v401
        %v423 = vpack.c.bf16 %v404, %v403
        %v424 = vpack.c.bf16 %v406, %v405
        %v425 = vpack.c.bf16 %v408, %v407
        %v426 = vpack.c.bf16 %v410, %v409
        %v427 = vld [vmem:[#allocation5] sm:$0xf]
        %v428 = vld [vmem:[#allocation5 + $0x4] sm:$0xf]
        %v429 = vld [vmem:[#allocation5 + $0x8] sm:$0xf]
        %v430 = vld [vmem:[#allocation5 + $0xc] sm:$0xf]
        %v431 = vld [vmem:[#allocation7] sm:$0x1]
        %v433 = vlaneseq
        %v434 = vshrl.u32 %v433, 7
        %v435 = vsub.s32 0, %v434
        %v436 = vrot.slane %v431, %v435
        %v442 = vunpack.c.l.b16 %v427
        %v443 = vunpack.c.l.b16 %v428
        %v444 = vunpack.c.l.b16 %v429
        %v445 = vunpack.c.l.b16 %v430
        %v446 = vpack.c.b16 %v443, %v442
        %v447 = vpack.c.b16 %v445, %v444
        %vm450 = vcmask 261120
        %v452 = vsel %vm450, %v411, 0
        %v455 = vsel %vm450, %v412, 0
        %v458 = vsel %vm450, %v413, 0
        %v461 = vsel %vm450, %v414, 0
        %v464 = vsel %vm450, %v415, 0
        %v467 = vsel %vm450, %v416, 0
        %v470 = vsel %vm450, %v417, 0
        %v473 = vsel %vm450, %v418, 0
        %v476 = vsel %vm450, %v419, 0
        %v479 = vsel %vm450, %v420, 0
        %v482 = vsel %vm450, %v421, 0
        %v485 = vsel %vm450, %v422, 0
        %v488 = vsel %vm450, %v423, 0
        %v491 = vsel %vm450, %v424, 0
        %v494 = vsel %vm450, %v425, 0
        %v497 = vsel %vm450, %v426, 0
        %499 = vmatprep.subr.bf16.mxu0 0
        %500 = vmatpush1.bf16.msra.mxu0 %v446
        %501 = vmatprep.subr.bf16.mxu0 0
        %502 = vmatpush1.bf16.msra.mxu0 %v447
        %503 = vmatprep.subr.bf16.mxu0 0
        %504 = vmatpush1.bf16.msra.mxu0 0
        %505 = vmatprep.subr.bf16.mxu0 0
        %506 = vmatpush1.bf16.msra.mxu0 0
        %507 = vmatprep.subr.bf16.mxu0 0
        %508 = vmatpush1.bf16.msra.mxu0 0
        %509 = vmatprep.subr.bf16.mxu0 0
        %510 = vmatpush1.bf16.msra.mxu0 0
        %511 = vmatprep.subr.bf16.mxu0 0
        %512 = vmatpush1.bf16.msra.mxu0 0
        %513 = vmatprep.subr.bf16.mxu0 0
        %514 = vmatpush1.bf16.msra.mxu0 0
        %515 = vmatprep.subr.bf16.mxu0 0
        %516 = vmatpush1.bf16.msra.mxu0 0
        %517 = vmatprep.subr.bf16.mxu0 0
        %518 = vmatpush1.bf16.msra.mxu0 0
        %519 = vmatprep.subr.bf16.mxu0 0
        %520 = vmatpush1.bf16.msra.mxu0 0
        %521 = vmatprep.subr.bf16.mxu0 0
        %522 = vmatpush1.bf16.msra.mxu0 0
        %523 = vmatprep.subr.bf16.mxu0 0
        %524 = vmatpush1.bf16.msra.mxu0 0
        %525 = vmatprep.subr.bf16.mxu0 0
        %526 = vmatpush1.bf16.msra.mxu0 0
        %527 = vmatprep.subr.bf16.mxu0 0
        %528 = vmatpush1.bf16.msra.mxu0 0
        %529 = vmatprep.subr.bf16.mxu0 0
        %530 = vmatpush1.bf16.msra.mxu0 0
        %531 = vmatprep.mubr.bf16.mxu0 0
        %532 = vmatmul.mubr.bf16.gmra.mrb[0].mxu0 %v452
        %v533 = vpop.f32.mrb[0].mxu0
        %v534 = vadd.f32 %v436, %v533
        %v535 = vpop.f32.mrb[0].mxu0
        %v536 = vpop.f32.mrb[0].mxu0
        %v537 = vadd.f32 %v436, %v536
        %v538 = vpop.f32.mrb[0].mxu0
        %539 = vmatprep.mubr.bf16.mxu0 0
        %540 = vmatmul.mubr.bf16.gmra.mrb[0].mxu0 %v455
        %v541 = vpop.f32.mrb[0].mxu0
        %v542 = vadd.f32 %v436, %v541
        %v543 = vpop.f32.mrb[0].mxu0
        %v544 = vpop.f32.mrb[0].mxu0
        %v545 = vadd.f32 %v436, %v544
        %v546 = vpop.f32.mrb[0].mxu0
        %547 = vmatprep.mubr.bf16.mxu0 0
        %548 = vmatmul.mubr.bf16.gmra.mrb[0].mxu0 %v458
        %v549 = vpop.f32.mrb[0].mxu0
        %v550 = vadd.f32 %v436, %v549
        %v551 = vpop.f32.mrb[0].mxu0
        %v552 = vpop.f32.mrb[0].mxu0
        %v553 = vadd.f32 %v436, %v552
        %v554 = vpop.f32.mrb[0].mxu0
        %555 = vmatprep.mubr.bf16.mxu0 0
        %556 = vmatmul.mubr.bf16.gmra.mrb[0].mxu0 %v461
        %v557 = vpop.f32.mrb[0].mxu0
        %v558 = vadd.f32 %v436, %v557
        %v559 = vpop.f32.mrb[0].mxu0
        %v560 = vpop.f32.mrb[0].mxu0
        %v561 = vadd.f32 %v436, %v560
        %v562 = vpop.f32.mrb[0].mxu0
        %563 = vmatprep.mubr.bf16.mxu0 0
        %564 = vmatmul.mubr.bf16.gmra.mrb[0].mxu0 %v464
        %v565 = vpop.f32.mrb[0].mxu0
        %v566 = vadd.f32 %v436, %v565
        %v567 = vpop.f32.mrb[0].mxu0
        %v568 = vpop.f32.mrb[0].mxu0
        %v569 = vadd.f32 %v436, %v568
        %v570 = vpop.f32.mrb[0].mxu0
        %571 = vmatprep.mubr.bf16.mxu0 0
        %572 = vmatmul.mubr.bf16.gmra.mrb[0].mxu0 %v467
        %v573 = vpop.f32.mrb[0].mxu0
        %v574 = vadd.f32 %v436, %v573
        %v575 = vpop.f32.mrb[0].mxu0
        %v576 = vpop.f32.mrb[0].mxu0
        %v577 = vadd.f32 %v436, %v576
        %v578 = vpop.f32.mrb[0].mxu0
        %579 = vmatprep.mubr.bf16.mxu0 0
        %580 = vmatmul.mubr.bf16.gmra.mrb[0].mxu0 %v470
        %v581 = vpop.f32.mrb[0].mxu0
        %v582 = vadd.f32 %v436, %v581
        %v583 = vpop.f32.mrb[0].mxu0
        %v584 = vpop.f32.mrb[0].mxu0
        %v585 = vadd.f32 %v436, %v584
        %v586 = vpop.f32.mrb[0].mxu0
        %587 = vmatprep.mubr.bf16.mxu0 0
        %588 = vmatmul.mubr.bf16.gmra.mrb[0].mxu0 %v473
        %v589 = vpop.f32.mrb[0].mxu0
        %v590 = vadd.f32 %v436, %v589
        %v591 = vpop.f32.mrb[0].mxu0
        %v592 = vpop.f32.mrb[0].mxu0
        %v593 = vadd.f32 %v436, %v592
        %v594 = vpop.f32.mrb[0].mxu0
        %595 = vmatprep.mubr.bf16.mxu0 0
        %596 = vmatmul.mubr.bf16.gmra.mrb[0].mxu0 %v476
        %v597 = vpop.f32.mrb[0].mxu0
        %v598 = vadd.f32 %v436, %v597
        %v599 = vpop.f32.mrb[0].mxu0
        %v600 = vpop.f32.mrb[0].mxu0
        %v601 = vadd.f32 %v436, %v600
        %v602 = vpop.f32.mrb[0].mxu0
        %603 = vmatprep.mubr.bf16.mxu0 0
        %604 = vmatmul.mubr.bf16.gmra.mrb[0].mxu0 %v479
        %v605 = vpop.f32.mrb[0].mxu0
        %v606 = vadd.f32 %v436, %v605
        %v607 = vpop.f32.mrb[0].mxu0
        %v608 = vpop.f32.mrb[0].mxu0
        %v609 = vadd.f32 %v436, %v608
        %v610 = vpop.f32.mrb[0].mxu0
        %611 = vmatprep.mubr.bf16.mxu0 0
        %612 = vmatmul.mubr.bf16.gmra.mrb[0].mxu0 %v482
        %v613 = vpop.f32.mrb[0].mxu0
        %v614 = vadd.f32 %v436, %v613
        %v615 = vpop.f32.mrb[0].mxu0
        %v616 = vpop.f32.mrb[0].mxu0
        %v617 = vadd.f32 %v436, %v616
        %v618 = vpop.f32.mrb[0].mxu0
        %619 = vmatprep.mubr.bf16.mxu0 0
        %620 = vmatmul.mubr.bf16.gmra.mrb[0].mxu0 %v485
        %v621 = vpop.f32.mrb[0].mxu0
        %v622 = vadd.f32 %v436, %v621
        %v623 = vpop.f32.mrb[0].mxu0
        %v624 = vpop.f32.mrb[0].mxu0
        %v625 = vadd.f32 %v436, %v624
        %v626 = vpop.f32.mrb[0].mxu0
        %627 = vmatprep.mubr.bf16.mxu0 0
        %628 = vmatmul.mubr.bf16.gmra.mrb[0].mxu0 %v488
        %v629 = vpop.f32.mrb[0].mxu0
        %v630 = vadd.f32 %v436, %v629
        %v631 = vpop.f32.mrb[0].mxu0
        %v632 = vpop.f32.mrb[0].mxu0
        %v633 = vadd.f32 %v436, %v632
        %v634 = vpop.f32.mrb[0].mxu0
        %635 = vmatprep.mubr.bf16.mxu0 0
        %636 = vmatmul.mubr.bf16.gmra.mrb[0].mxu0 %v491
        %v637 = vpop.f32.mrb[0].mxu0
        %v638 = vadd.f32 %v436, %v637
        %v639 = vpop.f32.mrb[0].mxu0
        %v640 = vpop.f32.mrb[0].mxu0
        %v641 = vadd.f32 %v436, %v640
        %v642 = vpop.f32.mrb[0].mxu0
        %643 = vmatprep.mubr.bf16.mxu0 0
        %644 = vmatmul.mubr.bf16.gmra.mrb[0].mxu0 %v494
        %v645 = vpop.f32.mrb[0].mxu0
        %v646 = vadd.f32 %v436, %v645
        %v647 = vpop.f32.mrb[0].mxu0
        %v648 = vpop.f32.mrb[0].mxu0
        %v649 = vadd.f32 %v436, %v648
        %v650 = vpop.f32.mrb[0].mxu0
        %651 = vmatprep.mubr.bf16.mxu0 0
        %652 = vmatmul.mubr.bf16.gmra.mrb[0].mxu0 %v497
        %v653 = vpop.f32.mrb[0].mxu0
        %v654 = vadd.f32 %v436, %v653
        %v655 = vpop.f32.mrb[0].mxu0
        %v656 = vpop.f32.mrb[0].mxu0
        %v657 = vadd.f32 %v436, %v656
        %v658 = vpop.f32.mrb[0].mxu0
        %659 = vdwg.mxu0
        %v660 = vmax.f32 %v534, 0.0
        %v661 = vmax.f32 %v537, 0.0
        %v662 = vmax.f32 %v542, 0.0
        %v663 = vmax.f32 %v545, 0.0
        %v664 = vmax.f32 %v550, 0.0
        %v665 = vmax.f32 %v553, 0.0
        %v666 = vmax.f32 %v558, 0.0
        %v667 = vmax.f32 %v561, 0.0
        %v668 = vmax.f32 %v566, 0.0
        %v669 = vmax.f32 %v569, 0.0
        %v670 = vmax.f32 %v574, 0.0
        %v671 = vmax.f32 %v577, 0.0
        %v672 = vmax.f32 %v582, 0.0
        %v673 = vmax.f32 %v585, 0.0
        %v674 = vmax.f32 %v590, 0.0
        %v675 = vmax.f32 %v593, 0.0
        %v676 = vmax.f32 %v598, 0.0
        %v677 = vmax.f32 %v601, 0.0
        %v678 = vmax.f32 %v606, 0.0
        %v679 = vmax.f32 %v609, 0.0
        %v680 = vmax.f32 %v614, 0.0
        %v681 = vmax.f32 %v617, 0.0
        %v682 = vmax.f32 %v622, 0.0
        %v683 = vmax.f32 %v625, 0.0
        %v684 = vmax.f32 %v630, 0.0
        %v685 = vmax.f32 %v633, 0.0
        %v686 = vmax.f32 %v638, 0.0
        %v687 = vmax.f32 %v641, 0.0
        %v688 = vmax.f32 %v646, 0.0
        %v689 = vmax.f32 %v649, 0.0
        %v690 = vmax.f32 %v654, 0.0
        %v691 = vmax.f32 %v657, 0.0
        %v692 = vpack.c.bf16 %v661, %v660
        %v693 = vpack.c.bf16 %v663, %v662
        %v694 = vpack.c.bf16 %v665, %v664
        %v695 = vpack.c.bf16 %v667, %v666
        %v696 = vpack.c.bf16 %v669, %v668
        %v697 = vpack.c.bf16 %v671, %v670
        %v698 = vpack.c.bf16 %v673, %v672
        %v699 = vpack.c.bf16 %v675, %v674
        %v700 = vpack.c.bf16 %v677, %v676
        %v701 = vpack.c.bf16 %v679, %v678
        %v702 = vpack.c.bf16 %v681, %v680
        %v703 = vpack.c.bf16 %v683, %v682
        %v704 = vpack.c.bf16 %v685, %v684
        %v705 = vpack.c.bf16 %v687, %v686
        %v706 = vpack.c.bf16 %v689, %v688
        %v707 = vpack.c.bf16 %v691, %v690
        %v708 = vld [vmem:[#allocation8] sm:$0xf]
        %v709 = vld [vmem:[#allocation8 + $0x4] sm:$0xf]
        %v710 = vld [vmem:[#allocation8 + $0x8] sm:$0xf]
        %v711 = vld [vmem:[#allocation8 + $0xc] sm:$0xf]
        %v712 = vld [vmem:[#allocation8 + $0x10] sm:$0xf]
        %v713 = vld [vmem:[#allocation8 + $0x14] sm:$0xf]
        %v714 = vld [vmem:[#allocation8 + $0x18] sm:$0xf]
        %v715 = vld [vmem:[#allocation8 + $0x1c] sm:$0xf]
        %v716 = vld [vmem:[#allocation8 + $0x20] sm:$0xf]
        %v717 = vld [vmem:[#allocation8 + $0x24] sm:$0xf]
        %v718 = vld [vmem:[#allocation8 + $0x28] sm:$0xf]
        %v719 = vld [vmem:[#allocation8 + $0x2c] sm:$0xf]
        %v720 = vld [vmem:[#allocation8 + $0x30] sm:$0xf]
        %v721 = vld [vmem:[#allocation8 + $0x34] sm:$0xf]
        %v722 = vld [vmem:[#allocation8 + $0x38] sm:$0xf]
        %v723 = vld [vmem:[#allocation8 + $0x3c] sm:$0xf]
        %v724 = vld [vmem:[#allocation10] sm:$0x1]
        %v726 = vlaneseq
        %v727 = vshrl.u32 %v726, 7
        %v728 = vsub.s32 0, %v727
        %v729 = vrot.slane %v724, %v728
        %v747 = vunpack.c.l.b16 %v708
        %v748 = vunpack.c.l.b16 %v709
        %v749 = vunpack.c.l.b16 %v710
        %v750 = vunpack.c.l.b16 %v711
        %v751 = vunpack.c.l.b16 %v712
        %v752 = vunpack.c.l.b16 %v713
        %v753 = vunpack.c.l.b16 %v714
        %v754 = vunpack.c.l.b16 %v715
        %v755 = vunpack.c.l.b16 %v716
        %v756 = vunpack.c.l.b16 %v717
        %v757 = vunpack.c.l.b16 %v718
        %v758 = vunpack.c.l.b16 %v719
        %v759 = vunpack.c.l.b16 %v720
        %v760 = vunpack.c.l.b16 %v721
        %v761 = vunpack.c.l.b16 %v722
        %v762 = vunpack.c.l.b16 %v723
        %v763 = vpack.c.b16 %v748, %v747
        %v764 = vpack.c.b16 %v750, %v749
        %v765 = vpack.c.b16 %v752, %v751
        %v766 = vpack.c.b16 %v754, %v753
        %v767 = vpack.c.b16 %v756, %v755
        %v768 = vpack.c.b16 %v758, %v757
        %v769 = vpack.c.b16 %v760, %v759
        %v770 = vpack.c.b16 %v762, %v761
        %779 = vmatprep.subr.bf16.mxu0 0
        %780 = vmatpush1.bf16.msra.mxu0 %v763
        %781 = vmatprep.subr.bf16.mxu0 0
        %782 = vmatpush1.bf16.msra.mxu0 %v764
        %783 = vmatprep.subr.bf16.mxu0 0
        %784 = vmatpush1.bf16.msra.mxu0 %v765
        %785 = vmatprep.subr.bf16.mxu0 0
        %786 = vmatpush1.bf16.msra.mxu0 %v766
        %787 = vmatprep.subr.bf16.mxu0 0
        %788 = vmatpush1.bf16.msra.mxu0 %v767
        %789 = vmatprep.subr.bf16.mxu0 0
        %790 = vmatpush1.bf16.msra.mxu0 %v768
        %791 = vmatprep.subr.bf16.mxu0 0
        %792 = vmatpush1.bf16.msra.mxu0 %v769
        %793 = vmatprep.subr.bf16.mxu0 0
        %794 = vmatpush1.bf16.msra.mxu0 %v770
        %795 = vmatprep.subr.bf16.mxu0 0
        %796 = vmatpush1.bf16.msra.mxu0 0
        %797 = vmatprep.subr.bf16.mxu0 0
        %798 = vmatpush1.bf16.msra.mxu0 0
        %799 = vmatprep.subr.bf16.mxu0 0
        %800 = vmatpush1.bf16.msra.mxu0 0
        %801 = vmatprep.subr.bf16.mxu0 0
        %802 = vmatpush1.bf16.msra.mxu0 0
        %803 = vmatprep.subr.bf16.mxu0 0
        %804 = vmatpush1.bf16.msra.mxu0 0
        %805 = vmatprep.subr.bf16.mxu0 0
        %806 = vmatpush1.bf16.msra.mxu0 0
        %807 = vmatprep.subr.bf16.mxu0 0
        %808 = vmatpush1.bf16.msra.mxu0 0
        %809 = vmatprep.subr.bf16.mxu0 0
        %810 = vmatpush1.bf16.msra.mxu0 0
        %811 = vmatprep.mubr.bf16.mxu0 0
        %812 = vmatmul.mubr.bf16.gmra.mrb[0].mxu0 %v692
        %v813 = vpop.f32.mrb[0].mxu0
        %v814 = vadd.f32 %v729, %v813
        %v815 = vpop.f32.mrb[0].mxu0
        %v816 = vpop.f32.mrb[0].mxu0
        %v817 = vadd.f32 %v729, %v816
        %v818 = vpop.f32.mrb[0].mxu0
        %819 = vmatprep.mubr.bf16.mxu0 0
        %820 = vmatmul.mubr.bf16.gmra.mrb[0].mxu0 %v693
        %v821 = vpop.f32.mrb[0].mxu0
        %v822 = vadd.f32 %v729, %v821
        %v823 = vpop.f32.mrb[0].mxu0
        %v824 = vpop.f32.mrb[0].mxu0
        %v825 = vadd.f32 %v729, %v824
        %v826 = vpop.f32.mrb[0].mxu0
        %827 = vmatprep.mubr.bf16.mxu0 0
        %828 = vmatmul.mubr.bf16.gmra.mrb[0].mxu0 %v694
        %v829 = vpop.f32.mrb[0].mxu0
        %v830 = vadd.f32 %v729, %v829
        %v831 = vpop.f32.mrb[0].mxu0
        %v832 = vpop.f32.mrb[0].mxu0
        %v833 = vadd.f32 %v729, %v832
        %v834 = vpop.f32.mrb[0].mxu0
        %835 = vmatprep.mubr.bf16.mxu0 0
        %836 = vmatmul.mubr.bf16.gmra.mrb[0].mxu0 %v695
        %v837 = vpop.f32.mrb[0].mxu0
        %v838 = vadd.f32 %v729, %v837
        %v839 = vpop.f32.mrb[0].mxu0
        %v840 = vpop.f32.mrb[0].mxu0
        %v841 = vadd.f32 %v729, %v840
        %v842 = vpop.f32.mrb[0].mxu0
        %843 = vmatprep.mubr.bf16.mxu0 0
        %844 = vmatmul.mubr.bf16.gmra.mrb[0].mxu0 %v696
        %v845 = vpop.f32.mrb[0].mxu0
        %v846 = vadd.f32 %v729, %v845
        %v847 = vpop.f32.mrb[0].mxu0
        %v848 = vpop.f32.mrb[0].mxu0
        %v849 = vadd.f32 %v729, %v848
        %v850 = vpop.f32.mrb[0].mxu0
        %851 = vmatprep.mubr.bf16.mxu0 0
        %852 = vmatmul.mubr.bf16.gmra.mrb[0].mxu0 %v697
        %v853 = vpop.f32.mrb[0].mxu0
        %v854 = vadd.f32 %v729, %v853
        %v855 = vpop.f32.mrb[0].mxu0
        %v856 = vpop.f32.mrb[0].mxu0
        %v857 = vadd.f32 %v729, %v856
        %v858 = vpop.f32.mrb[0].mxu0
        %859 = vmatprep.mubr.bf16.mxu0 0
        %860 = vmatmul.mubr.bf16.gmra.mrb[0].mxu0 %v698
        %v861 = vpop.f32.mrb[0].mxu0
        %v862 = vadd.f32 %v729, %v861
        %v863 = vpop.f32.mrb[0].mxu0
        %v864 = vpop.f32.mrb[0].mxu0
        %v865 = vadd.f32 %v729, %v864
        %v866 = vpop.f32.mrb[0].mxu0
        %867 = vmatprep.mubr.bf16.mxu0 0
        %868 = vmatmul.mubr.bf16.gmra.mrb[0].mxu0 %v699
        %v869 = vpop.f32.mrb[0].mxu0
        %v870 = vadd.f32 %v729, %v869
        %v871 = vpop.f32.mrb[0].mxu0
        %v872 = vpop.f32.mrb[0].mxu0
        %v873 = vadd.f32 %v729, %v872
        %v874 = vpop.f32.mrb[0].mxu0
        %875 = vmatprep.mubr.bf16.mxu0 0
        %876 = vmatmul.mubr.bf16.gmra.mrb[0].mxu0 %v700
        %v877 = vpop.f32.mrb[0].mxu0
        %v878 = vadd.f32 %v729, %v877
        %v879 = vpop.f32.mrb[0].mxu0
        %v880 = vpop.f32.mrb[0].mxu0
        %v881 = vadd.f32 %v729, %v880
        %v882 = vpop.f32.mrb[0].mxu0
        %883 = vmatprep.mubr.bf16.mxu0 0
        %884 = vmatmul.mubr.bf16.gmra.mrb[0].mxu0 %v701
        %v885 = vpop.f32.mrb[0].mxu0
        %v886 = vadd.f32 %v729, %v885
        %v887 = vpop.f32.mrb[0].mxu0
        %v888 = vpop.f32.mrb[0].mxu0
        %v889 = vadd.f32 %v729, %v888
        %v890 = vpop.f32.mrb[0].mxu0
        %891 = vmatprep.mubr.bf16.mxu0 0
        %892 = vmatmul.mubr.bf16.gmra.mrb[0].mxu0 %v702
        %v893 = vpop.f32.mrb[0].mxu0
        %v894 = vadd.f32 %v729, %v893
        %v895 = vpop.f32.mrb[0].mxu0
        %v896 = vpop.f32.mrb[0].mxu0
        %v897 = vadd.f32 %v729, %v896
        %v898 = vpop.f32.mrb[0].mxu0
        %899 = vmatprep.mubr.bf16.mxu0 0
        %900 = vmatmul.mubr.bf16.gmra.mrb[0].mxu0 %v703
        %v901 = vpop.f32.mrb[0].mxu0
        %v902 = vadd.f32 %v729, %v901
        %v903 = vpop.f32.mrb[0].mxu0
        %v904 = vpop.f32.mrb[0].mxu0
        %v905 = vadd.f32 %v729, %v904
        %v906 = vpop.f32.mrb[0].mxu0
        %907 = vmatprep.mubr.bf16.mxu0 0
        %908 = vmatmul.mubr.bf16.gmra.mrb[0].mxu0 %v704
        %v909 = vpop.f32.mrb[0].mxu0
        %v910 = vadd.f32 %v729, %v909
        %v911 = vpop.f32.mrb[0].mxu0
        %v912 = vpop.f32.mrb[0].mxu0
        %v913 = vadd.f32 %v729, %v912
        %v914 = vpop.f32.mrb[0].mxu0
        %915 = vmatprep.mubr.bf16.mxu0 0
        %916 = vmatmul.mubr.bf16.gmra.mrb[0].mxu0 %v705
        %v917 = vpop.f32.mrb[0].mxu0
        %v918 = vadd.f32 %v729, %v917
        %v919 = vpop.f32.mrb[0].mxu0
        %v920 = vpop.f32.mrb[0].mxu0
        %v921 = vadd.f32 %v729, %v920
        %v922 = vpop.f32.mrb[0].mxu0
        %923 = vmatprep.mubr.bf16.mxu0 0
        %924 = vmatmul.mubr.bf16.gmra.mrb[0].mxu0 %v706
        %v925 = vpop.f32.mrb[0].mxu0
        %v926 = vadd.f32 %v729, %v925
        %v927 = vpop.f32.mrb[0].mxu0
        %v928 = vpop.f32.mrb[0].mxu0
        %v929 = vadd.f32 %v729, %v928
        %v930 = vpop.f32.mrb[0].mxu0
        %931 = vmatprep.mubr.bf16.mxu0 0
        %932 = vmatmul.mubr.bf16.gmra.mrb[0].mxu0 %v707
        %v933 = vpop.f32.mrb[0].mxu0
        %v934 = vadd.f32 %v729, %v933
        %v935 = vpop.f32.mrb[0].mxu0
        %v936 = vpop.f32.mrb[0].mxu0
        %v937 = vadd.f32 %v729, %v936
        %v938 = vpop.f32.mrb[0].mxu0
        %939 = vdwg.mxu0
        %v940 = vadd.f32 %v814, %v379
        %v941 = vadd.f32 %v817, %v380
        %v942 = vadd.f32 %v822, %v381
        %v943 = vadd.f32 %v825, %v382
        %v944 = vadd.f32 %v830, %v383
        %v945 = vadd.f32 %v833, %v384
        %v946 = vadd.f32 %v838, %v385
        %v947 = vadd.f32 %v841, %v386
        %v948 = vadd.f32 %v846, %v387
        %v949 = vadd.f32 %v849, %v388
        %v950 = vadd.f32 %v854, %v389
        %v951 = vadd.f32 %v857, %v390
        %v952 = vadd.f32 %v862, %v391
        %v953 = vadd.f32 %v865, %v392
        %v954 = vadd.f32 %v870, %v393
        %v955 = vadd.f32 %v873, %v394
        %v956 = vadd.f32 %v878, %v395
        %v957 = vadd.f32 %v881, %v396
        %v958 = vadd.f32 %v886, %v397
        %v959 = vadd.f32 %v889, %v398
        %v960 = vadd.f32 %v894, %v399
        %v961 = vadd.f32 %v897, %v400
        %v962 = vadd.f32 %v902, %v401
        %v963 = vadd.f32 %v905, %v402
        %v964 = vadd.f32 %v910, %v403
        %v965 = vadd.f32 %v913, %v404
        %v966 = vadd.f32 %v918, %v405
        %v967 = vadd.f32 %v921, %v406
        %v968 = vadd.f32 %v926, %v407
        %v969 = vadd.f32 %v929, %v408
        %v970 = vadd.f32 %v934, %v409
        %v971 = vadd.f32 %v937, %v410
        %v972 = vsel %vm450, %v940, 0.0
        %973 = vadd.xlane.f32.xlu0 %v972
        %v974 = vpop.xlane.xlu0 %973
        %v975 = vsel %vm450, %v941, 0.0
        %976 = vadd.xlane.f32.xlu0 %v975
        %v977 = vpop.xlane.xlu0 %976
        %v978 = vsel %vm450, %v942, 0.0
        %979 = vadd.xlane.f32.xlu0 %v978
        %v980 = vpop.xlane.xlu0 %979
        %v981 = vsel %vm450, %v943, 0.0
        %982 = vadd.xlane.f32.xlu0 %v981
        %v983 = vpop.xlane.xlu0 %982
        %v984 = vsel %vm450, %v944, 0.0
        %985 = vadd.xlane.f32.xlu0 %v984
        %v986 = vpop.xlane.xlu0 %985
        %v987 = vsel %vm450, %v945, 0.0
        %988 = vadd.xlane.f32.xlu0 %v987
        %v989 = vpop.xlane.xlu0 %988
        %v990 = vsel %vm450, %v946, 0.0
        %991 = vadd.xlane.f32.xlu0 %v990
        %v992 = vpop.xlane.xlu0 %991
        %v993 = vsel %vm450, %v947, 0.0
        %994 = vadd.xlane.f32.xlu0 %v993
        %v995 = vpop.xlane.xlu0 %994
        %v996 = vsel %vm450, %v948, 0.0
        %997 = vadd.xlane.f32.xlu0 %v996
        %v998 = vpop.xlane.xlu0 %997
        %v999 = vsel %vm450, %v949, 0.0
        %1000 = vadd.xlane.f32.xlu0 %v999
        %v1001 = vpop.xlane.xlu0 %1000
        %v1002 = vsel %vm450, %v950, 0.0
        %1003 = vadd.xlane.f32.xlu0 %v1002
        %v1004 = vpop.xlane.xlu0 %1003
        %v1005 = vsel %vm450, %v951, 0.0
        %1006 = vadd.xlane.f32.xlu0 %v1005
        %v1007 = vpop.xlane.xlu0 %1006
        %v1008 = vsel %vm450, %v952, 0.0
        %1009 = vadd.xlane.f32.xlu0 %v1008
        %v1010 = vpop.xlane.xlu0 %1009
        %v1011 = vsel %vm450, %v953, 0.0
        %1012 = vadd.xlane.f32.xlu0 %v1011
        %v1013 = vpop.xlane.xlu0 %1012
        %v1014 = vsel %vm450, %v954, 0.0
        %1015 = vadd.xlane.f32.xlu0 %v1014
        %v1016 = vpop.xlane.xlu0 %1015
        %v1017 = vsel %vm450, %v955, 0.0
        %1018 = vadd.xlane.f32.xlu0 %v1017
        %v1019 = vpop.xlane.xlu0 %1018
        %v1020 = vsel %vm450, %v956, 0.0
        %1021 = vadd.xlane.f32.xlu0 %v1020
        %v1022 = vpop.xlane.xlu0 %1021
        %v1023 = vsel %vm450, %v957, 0.0
        %1024 = vadd.xlane.f32.xlu0 %v1023
        %v1025 = vpop.xlane.xlu0 %1024
        %v1026 = vsel %vm450, %v958, 0.0
        %1027 = vadd.xlane.f32.xlu0 %v1026
        %v1028 = vpop.xlane.xlu0 %1027
        %v1029 = vsel %vm450, %v959, 0.0
        %1030 = vadd.xlane.f32.xlu0 %v1029
        %v1031 = vpop.xlane.xlu0 %1030
        %v1032 = vsel %vm450, %v960, 0.0
        %1033 = vadd.xlane.f32.xlu0 %v1032
        %v1034 = vpop.xlane.xlu0 %1033
        %v1035 = vsel %vm450, %v961, 0.0
        %1036 = vadd.xlane.f32.xlu0 %v1035
        %v1037 = vpop.xlane.xlu0 %1036
        %v1038 = vsel %vm450, %v962, 0.0
        %1039 = vadd.xlane.f32.xlu0 %v1038
        %v1040 = vpop.xlane.xlu0 %1039
        %v1041 = vsel %vm450, %v963, 0.0
        %1042 = vadd.xlane.f32.xlu0 %v1041
        %v1043 = vpop.xlane.xlu0 %1042
        %v1044 = vsel %vm450, %v964, 0.0
        %1045 = vadd.xlane.f32.xlu0 %v1044
        %v1046 = vpop.xlane.xlu0 %1045
        %v1047 = vsel %vm450, %v965, 0.0
        %1048 = vadd.xlane.f32.xlu0 %v1047
        %v1049 = vpop.xlane.xlu0 %1048
        %v1050 = vsel %vm450, %v966, 0.0
        %1051 = vadd.xlane.f32.xlu0 %v1050
        %v1052 = vpop.xlane.xlu0 %1051
        %v1053 = vsel %vm450, %v967, 0.0
        %1054 = vadd.xlane.f32.xlu0 %v1053
        %v1055 = vpop.xlane.xlu0 %1054
        %v1056 = vsel %vm450, %v968, 0.0
        %1057 = vadd.xlane.f32.xlu0 %v1056
        %v1058 = vpop.xlane.xlu0 %1057
        %v1059 = vsel %vm450, %v969, 0.0
        %1060 = vadd.xlane.f32.xlu0 %v1059
        %v1061 = vpop.xlane.xlu0 %1060
        %v1062 = vsel %vm450, %v970, 0.0
        %1063 = vadd.xlane.f32.xlu0 %v1062
        %v1064 = vpop.xlane.xlu0 %1063
        %v1065 = vsel %vm450, %v971, 0.0
        %1066 = vadd.xlane.f32.xlu0 %v1065
        %v1067 = vpop.xlane.xlu0 %1066
        %v1068 = vrcp.pop 32.0
        %v1069 = vmul.f32 %v974, %v1068
        %v1070 = vmul.f32 %v977, %v1068
        %v1071 = vmul.f32 %v980, %v1068
        %v1072 = vmul.f32 %v983, %v1068
        %v1073 = vmul.f32 %v986, %v1068
        %v1074 = vmul.f32 %v989, %v1068
        %v1075 = vmul.f32 %v992, %v1068
        %v1076 = vmul.f32 %v995, %v1068
        %v1077 = vmul.f32 %v998, %v1068
        %v1078 = vmul.f32 %v1001, %v1068
        %v1079 = vmul.f32 %v1004, %v1068
        %v1080 = vmul.f32 %v1007, %v1068
        %v1081 = vmul.f32 %v1010, %v1068
        %v1082 = vmul.f32 %v1013, %v1068
        %v1083 = vmul.f32 %v1016, %v1068
        %v1084 = vmul.f32 %v1019, %v1068
        %v1085 = vmul.f32 %v1022, %v1068
        %v1086 = vmul.f32 %v1025, %v1068
        %v1087 = vmul.f32 %v1028, %v1068
        %v1088 = vmul.f32 %v1031, %v1068
        %v1089 = vmul.f32 %v1034, %v1068
        %v1090 = vmul.f32 %v1037, %v1068
        %v1091 = vmul.f32 %v1040, %v1068
        %v1092 = vmul.f32 %v1043, %v1068
        %v1093 = vmul.f32 %v1046, %v1068
        %v1094 = vmul.f32 %v1049, %v1068
        %v1095 = vmul.f32 %v1052, %v1068
        %v1096 = vmul.f32 %v1055, %v1068
        %v1097 = vmul.f32 %v1058, %v1068
        %v1098 = vmul.f32 %v1061, %v1068
        %v1099 = vmul.f32 %v1064, %v1068
        %v1100 = vmul.f32 %v1067, %v1068
        %v1101 = vsub.f32 %v940, %v1069
        %v1102 = vsub.f32 %v941, %v1070
        %v1103 = vsub.f32 %v942, %v1071
        %v1104 = vsub.f32 %v943, %v1072
        %v1105 = vsub.f32 %v944, %v1073
        %v1106 = vsub.f32 %v945, %v1074
        %v1107 = vsub.f32 %v946, %v1075
        %v1108 = vsub.f32 %v947, %v1076
        %v1109 = vsub.f32 %v948, %v1077
        %v1110 = vsub.f32 %v949, %v1078
        %v1111 = vsub.f32 %v950, %v1079
        %v1112 = vsub.f32 %v951, %v1080
        %v1113 = vsub.f32 %v952, %v1081
        %v1114 = vsub.f32 %v953, %v1082
        %v1115 = vsub.f32 %v954, %v1083
        %v1116 = vsub.f32 %v955, %v1084
        %v1117 = vsub.f32 %v956, %v1085
        %v1118 = vsub.f32 %v957, %v1086
        %v1119 = vsub.f32 %v958, %v1087
        %v1120 = vsub.f32 %v959, %v1088
        %v1121 = vsub.f32 %v960, %v1089
        %v1122 = vsub.f32 %v961, %v1090
        %v1123 = vsub.f32 %v962, %v1091
        %v1124 = vsub.f32 %v963, %v1092
        %v1125 = vsub.f32 %v964, %v1093
        %v1126 = vsub.f32 %v965, %v1094
        %v1127 = vsub.f32 %v966, %v1095
        %v1128 = vsub.f32 %v967, %v1096
        %v1129 = vsub.f32 %v968, %v1097
        %v1130 = vsub.f32 %v969, %v1098
        %v1131 = vsub.f32 %v970, %v1099
        %v1132 = vsub.f32 %v971, %v1100
        %v1133 = vmul.f32 %v1101, %v1101
        %v1134 = vmul.f32 %v1102, %v1102
        %v1135 = vmul.f32 %v1103, %v1103
        %v1136 = vmul.f32 %v1104, %v1104
        %v1137 = vmul.f32 %v1105, %v1105
        %v1138 = vmul.f32 %v1106, %v1106
        %v1139 = vmul.f32 %v1107, %v1107
        %v1140 = vmul.f32 %v1108, %v1108
        %v1141 = vmul.f32 %v1109, %v1109
        %v1142 = vmul.f32 %v1110, %v1110
        %v1143 = vmul.f32 %v1111, %v1111
        %v1144 = vmul.f32 %v1112, %v1112
        %v1145 = vmul.f32 %v1113, %v1113
        %v1146 = vmul.f32 %v1114, %v1114
        %v1147 = vmul.f32 %v1115, %v1115
        %v1148 = vmul.f32 %v1116, %v1116
        %v1149 = vmul.f32 %v1117, %v1117
        %v1150 = vmul.f32 %v1118, %v1118
        %v1151 = vmul.f32 %v1119, %v1119
        %v1152 = vmul.f32 %v1120, %v1120
        %v1153 = vmul.f32 %v1121, %v1121
        %v1154 = vmul.f32 %v1122, %v1122
        %v1155 = vmul.f32 %v1123, %v1123
        %v1156 = vmul.f32 %v1124, %v1124
        %v1157 = vmul.f32 %v1125, %v1125
        %v1158 = vmul.f32 %v1126, %v1126
        %v1159 = vmul.f32 %v1127, %v1127
        %v1160 = vmul.f32 %v1128, %v1128
        %v1161 = vmul.f32 %v1129, %v1129
        %v1162 = vmul.f32 %v1130, %v1130
        %v1163 = vmul.f32 %v1131, %v1131
        %v1164 = vmul.f32 %v1132, %v1132
        %v1165 = vsel %vm450, %v1133, 0.0
        %1166 = vadd.xlane.f32.xlu0 %v1165
        %v1167 = vpop.xlane.xlu0 %1166
        %v1168 = vsel %vm450, %v1134, 0.0
        %1169 = vadd.xlane.f32.xlu0 %v1168
        %v1170 = vpop.xlane.xlu0 %1169
        %v1171 = vsel %vm450, %v1135, 0.0
        %1172 = vadd.xlane.f32.xlu0 %v1171
        %v1173 = vpop.xlane.xlu0 %1172
        %v1174 = vsel %vm450, %v1136, 0.0
        %1175 = vadd.xlane.f32.xlu0 %v1174
        %v1176 = vpop.xlane.xlu0 %1175
        %v1177 = vsel %vm450, %v1137, 0.0
        %1178 = vadd.xlane.f32.xlu0 %v1177
        %v1179 = vpop.xlane.xlu0 %1178
        %v1180 = vsel %vm450, %v1138, 0.0
        %1181 = vadd.xlane.f32.xlu0 %v1180
        %v1182 = vpop.xlane.xlu0 %1181
        %v1183 = vsel %vm450, %v1139, 0.0
        %1184 = vadd.xlane.f32.xlu0 %v1183
        %v1185 = vpop.xlane.xlu0 %1184
        %v1186 = vsel %vm450, %v1140, 0.0
        %1187 = vadd.xlane.f32.xlu0 %v1186
        %v1188 = vpop.xlane.xlu0 %1187
        %v1189 = vsel %vm450, %v1141, 0.0
        %1190 = vadd.xlane.f32.xlu0 %v1189
        %v1191 = vpop.xlane.xlu0 %1190
        %v1192 = vsel %vm450, %v1142, 0.0
        %1193 = vadd.xlane.f32.xlu0 %v1192
        %v1194 = vpop.xlane.xlu0 %1193
        %v1195 = vsel %vm450, %v1143, 0.0
        %1196 = vadd.xlane.f32.xlu0 %v1195
        %v1197 = vpop.xlane.xlu0 %1196
        %v1198 = vsel %vm450, %v1144, 0.0
        %1199 = vadd.xlane.f32.xlu0 %v1198
        %v1200 = vpop.xlane.xlu0 %1199
        %v1201 = vsel %vm450, %v1145, 0.0
        %1202 = vadd.xlane.f32.xlu0 %v1201
        %v1203 = vpop.xlane.xlu0 %1202
        %v1204 = vsel %vm450, %v1146, 0.0
        %1205 = vadd.xlane.f32.xlu0 %v1204
        %v1206 = vpop.xlane.xlu0 %1205
        %v1207 = vsel %vm450, %v1147, 0.0
        %1208 = vadd.xlane.f32.xlu0 %v1207
        %v1209 = vpop.xlane.xlu0 %1208
        %v1210 = vsel %vm450, %v1148, 0.0
        %1211 = vadd.xlane.f32.xlu0 %v1210
        %v1212 = vpop.xlane.xlu0 %1211
        %v1213 = vsel %vm450, %v1149, 0.0
        %1214 = vadd.xlane.f32.xlu0 %v1213
        %v1215 = vpop.xlane.xlu0 %1214
        %v1216 = vsel %vm450, %v1150, 0.0
        %1217 = vadd.xlane.f32.xlu0 %v1216
        %v1218 = vpop.xlane.xlu0 %1217
        %v1219 = vsel %vm450, %v1151, 0.0
        %1220 = vadd.xlane.f32.xlu0 %v1219
        %v1221 = vpop.xlane.xlu0 %1220
        %v1222 = vsel %vm450, %v1152, 0.0
        %1223 = vadd.xlane.f32.xlu0 %v1222
        %v1224 = vpop.xlane.xlu0 %1223
        %v1225 = vsel %vm450, %v1153, 0.0
        %1226 = vadd.xlane.f32.xlu0 %v1225
        %v1227 = vpop.xlane.xlu0 %1226
        %v1228 = vsel %vm450, %v1154, 0.0
        %1229 = vadd.xlane.f32.xlu0 %v1228
        %v1230 = vpop.xlane.xlu0 %1229
        %v1231 = vsel %vm450, %v1155, 0.0
        %1232 = vadd.xlane.f32.xlu0 %v1231
        %v1233 = vpop.xlane.xlu0 %1232
        %v1234 = vsel %vm450, %v1156, 0.0
        %1235 = vadd.xlane.f32.xlu0 %v1234
        %v1236 = vpop.xlane.xlu0 %1235
        %v1237 = vsel %vm450, %v1157, 0.0
        %1238 = vadd.xlane.f32.xlu0 %v1237
        %v1239 = vpop.xlane.xlu0 %1238
        %v1240 = vsel %vm450, %v1158, 0.0
        %1241 = vadd.xlane.f32.xlu0 %v1240
        %v1242 = vpop.xlane.xlu0 %1241
        %v1243 = vsel %vm450, %v1159, 0.0
        %1244 = vadd.xlane.f32.xlu0 %v1243
        %v1245 = vpop.xlane.xlu0 %1244
        %v1246 = vsel %vm450, %v1160, 0.0
        %1247 = vadd.xlane.f32.xlu0 %v1246
        %v1248 = vpop.xlane.xlu0 %1247
        %v1249 = vsel %vm450, %v1161, 0.0
        %1250 = vadd.xlane.f32.xlu0 %v1249
        %v1251 = vpop.xlane.xlu0 %1250
        %v1252 = vsel %vm450, %v1162, 0.0
        %1253 = vadd.xlane.f32.xlu0 %v1252
        %v1254 = vpop.xlane.xlu0 %1253
        %v1255 = vsel %vm450, %v1163, 0.0
        %1256 = vadd.xlane.f32.xlu0 %v1255
        %v1257 = vpop.xlane.xlu0 %1256
        %v1258 = vsel %vm450, %v1164, 0.0
        %1259 = vadd.xlane.f32.xlu0 %v1258
        %v1260 = vpop.xlane.xlu0 %1259
        %v1261 = vmul.f32 %v1167, %v1068
        %v1262 = vmul.f32 %v1170, %v1068
        %v1263 = vmul.f32 %v1173, %v1068
        %v1264 = vmul.f32 %v1176, %v1068
        %v1265 = vmul.f32 %v1179, %v1068
        %v1266 = vmul.f32 %v1182, %v1068
        %v1267 = vmul.f32 %v1185, %v1068
        %v1268 = vmul.f32 %v1188, %v1068
        %v1269 = vmul.f32 %v1191, %v1068
        %v1270 = vmul.f32 %v1194, %v1068
        %v1271 = vmul.f32 %v1197, %v1068
        %v1272 = vmul.f32 %v1200, %v1068
        %v1273 = vmul.f32 %v1203, %v1068
        %v1274 = vmul.f32 %v1206, %v1068
        %v1275 = vmul.f32 %v1209, %v1068
        %v1276 = vmul.f32 %v1212, %v1068
        %v1277 = vmul.f32 %v1215, %v1068
        %v1278 = vmul.f32 %v1218, %v1068
        %v1279 = vmul.f32 %v1221, %v1068
        %v1280 = vmul.f32 %v1224, %v1068
        %v1281 = vmul.f32 %v1227, %v1068
        %v1282 = vmul.f32 %v1230, %v1068
        %v1283 = vmul.f32 %v1233, %v1068
        %v1284 = vmul.f32 %v1236, %v1068
        %v1285 = vmul.f32 %v1239, %v1068
        %v1286 = vmul.f32 %v1242, %v1068
        %v1287 = vmul.f32 %v1245, %v1068
        %v1288 = vmul.f32 %v1248, %v1068
        %v1289 = vmul.f32 %v1251, %v1068
        %v1290 = vmul.f32 %v1254, %v1068
        %v1291 = vmul.f32 %v1257, %v1068
        %v1292 = vmul.f32 %v1260, %v1068
        %v1293 = vadd.f32 %v1261, 1e-05
        %v1294 = vadd.f32 %v1262, 1e-05
        %v1295 = vadd.f32 %v1263, 1e-05
        %v1296 = vadd.f32 %v1264, 1e-05
        %v1297 = vadd.f32 %v1265, 1e-05
        %v1298 = vadd.f32 %v1266, 1e-05
        %v1299 = vadd.f32 %v1267, 1e-05
        %v1300 = vadd.f32 %v1268, 1e-05
        %v1301 = vadd.f32 %v1269, 1e-05
        %v1302 = vadd.f32 %v1270, 1e-05
        %v1303 = vadd.f32 %v1271, 1e-05
        %v1304 = vadd.f32 %v1272, 1e-05
        %v1305 = vadd.f32 %v1273, 1e-05
        %v1306 = vadd.f32 %v1274, 1e-05
        %v1307 = vadd.f32 %v1275, 1e-05
        %v1308 = vadd.f32 %v1276, 1e-05
        %v1309 = vadd.f32 %v1277, 1e-05
        %v1310 = vadd.f32 %v1278, 1e-05
        %v1311 = vadd.f32 %v1279, 1e-05
        %v1312 = vadd.f32 %v1280, 1e-05
        %v1313 = vadd.f32 %v1281, 1e-05
        %v1314 = vadd.f32 %v1282, 1e-05
        %v1315 = vadd.f32 %v1283, 1e-05
        %v1316 = vadd.f32 %v1284, 1e-05
        %v1317 = vadd.f32 %v1285, 1e-05
        %v1318 = vadd.f32 %v1286, 1e-05
        %v1319 = vadd.f32 %v1287, 1e-05
        %v1320 = vadd.f32 %v1288, 1e-05
        %v1321 = vadd.f32 %v1289, 1e-05
        %v1322 = vadd.f32 %v1290, 1e-05
        %v1323 = vadd.f32 %v1291, 1e-05
        %v1324 = vadd.f32 %v1292, 1e-05
        %v1325 = vrsqrt.pop %v1293
        %v1326 = vrsqrt.pop %v1294
        %v1327 = vrsqrt.pop %v1295
        %v1328 = vrsqrt.pop %v1296
        %v1329 = vrsqrt.pop %v1297
        %v1330 = vrsqrt.pop %v1298
        %v1331 = vrsqrt.pop %v1299
        %v1332 = vrsqrt.pop %v1300
        %v1333 = vrsqrt.pop %v1301
        %v1334 = vrsqrt.pop %v1302
        %v1335 = vrsqrt.pop %v1303
        %v1336 = vrsqrt.pop %v1304
        %v1337 = vrsqrt.pop %v1305
        %v1338 = vrsqrt.pop %v1306
        %v1339 = vrsqrt.pop %v1307
        %v1340 = vrsqrt.pop %v1308
        %v1341 = vrsqrt.pop %v1309
        %v1342 = vrsqrt.pop %v1310
        %v1343 = vrsqrt.pop %v1311
        %v1344 = vrsqrt.pop %v1312
        %v1345 = vrsqrt.pop %v1313
        %v1346 = vrsqrt.pop %v1314
        %v1347 = vrsqrt.pop %v1315
        %v1348 = vrsqrt.pop %v1316
        %v1349 = vrsqrt.pop %v1317
        %v1350 = vrsqrt.pop %v1318
        %v1351 = vrsqrt.pop %v1319
        %v1352 = vrsqrt.pop %v1320
        %v1353 = vrsqrt.pop %v1321
        %v1354 = vrsqrt.pop %v1322
        %v1355 = vrsqrt.pop %v1323
        %v1356 = vrsqrt.pop %v1324
        %v1357 = vmul.f32 %v1101, %v1325
        %v1358 = vmul.f32 %v1102, %v1326
        %v1359 = vmul.f32 %v1103, %v1327
        %v1360 = vmul.f32 %v1104, %v1328
        %v1361 = vmul.f32 %v1105, %v1329
        %v1362 = vmul.f32 %v1106, %v1330
        %v1363 = vmul.f32 %v1107, %v1331
        %v1364 = vmul.f32 %v1108, %v1332
        %v1365 = vmul.f32 %v1109, %v1333
        %v1366 = vmul.f32 %v1110, %v1334
        %v1367 = vmul.f32 %v1111, %v1335
        %v1368 = vmul.f32 %v1112, %v1336
        %v1369 = vmul.f32 %v1113, %v1337
        %v1370 = vmul.f32 %v1114, %v1338
        %v1371 = vmul.f32 %v1115, %v1339
        %v1372 = vmul.f32 %v1116, %v1340
        %v1373 = vmul.f32 %v1117, %v1341
        %v1374 = vmul.f32 %v1118, %v1342
        %v1375 = vmul.f32 %v1119, %v1343
        %v1376 = vmul.f32 %v1120, %v1344
        %v1377 = vmul.f32 %v1121, %v1345
        %v1378 = vmul.f32 %v1122, %v1346
        %v1379 = vmul.f32 %v1123, %v1347
        %v1380 = vmul.f32 %v1124, %v1348
        %v1381 = vmul.f32 %v1125, %v1349
        %v1382 = vmul.f32 %v1126, %v1350
        %v1383 = vmul.f32 %v1127, %v1351
        %v1384 = vmul.f32 %v1128, %v1352
        %v1385 = vmul.f32 %v1129, %v1353
        %v1386 = vmul.f32 %v1130, %v1354
        %v1387 = vmul.f32 %v1131, %v1355
        %v1388 = vmul.f32 %v1132, %v1356
        %v1389 = vld [vmem:[#allocation11] sm:$0x1]
        %v1391 = vlaneseq
        %v1392 = vshrl.u32 %v1391, 7
        %v1393 = vsub.s32 0, %v1392
        %v1394 = vrot.slane %v1389, %v1393
        %v1396 = vmul.f32 %v1357, %v1394
        %v1397 = vmul.f32 %v1358, %v1394
        %v1398 = vmul.f32 %v1359, %v1394
        %v1399 = vmul.f32 %v1360, %v1394
        %v1400 = vmul.f32 %v1361, %v1394
        %v1401 = vmul.f32 %v1362, %v1394
        %v1402 = vmul.f32 %v1363, %v1394
        %v1403 = vmul.f32 %v1364, %v1394
        %v1404 = vmul.f32 %v1365, %v1394
        %v1405 = vmul.f32 %v1366, %v1394
        %v1406 = vmul.f32 %v1367, %v1394
        %v1407 = vmul.f32 %v1368, %v1394
        %v1408 = vmul.f32 %v1369, %v1394
        %v1409 = vmul.f32 %v1370, %v1394
        %v1410 = vmul.f32 %v1371, %v1394
        %v1411 = vmul.f32 %v1372, %v1394
        %v1412 = vmul.f32 %v1373, %v1394
        %v1413 = vmul.f32 %v1374, %v1394
        %v1414 = vmul.f32 %v1375, %v1394
        %v1415 = vmul.f32 %v1376, %v1394
        %v1416 = vmul.f32 %v1377, %v1394
        %v1417 = vmul.f32 %v1378, %v1394
        %v1418 = vmul.f32 %v1379, %v1394
        %v1419 = vmul.f32 %v1380, %v1394
        %v1420 = vmul.f32 %v1381, %v1394
        %v1421 = vmul.f32 %v1382, %v1394
        %v1422 = vmul.f32 %v1383, %v1394
        %v1423 = vmul.f32 %v1384, %v1394
        %v1424 = vmul.f32 %v1385, %v1394
        %v1425 = vmul.f32 %v1386, %v1394
        %v1426 = vmul.f32 %v1387, %v1394
        %v1427 = vmul.f32 %v1388, %v1394
        %v1428 = vld [vmem:[#allocation13] sm:$0x1]
        %v1430 = vlaneseq
        %v1431 = vshrl.u32 %v1430, 7
        %v1432 = vsub.s32 0, %v1431
        %v1433 = vrot.slane %v1428, %v1432
        %v1435 = vadd.f32 %v1396, %v1433
        %v1436 = vadd.f32 %v1397, %v1433
        %v1437 = vadd.f32 %v1398, %v1433
        %v1438 = vadd.f32 %v1399, %v1433
        %v1439 = vadd.f32 %v1400, %v1433
        %v1440 = vadd.f32 %v1401, %v1433
        %v1441 = vadd.f32 %v1402, %v1433
        %v1442 = vadd.f32 %v1403, %v1433
        %v1443 = vadd.f32 %v1404, %v1433
        %v1444 = vadd.f32 %v1405, %v1433
        %v1445 = vadd.f32 %v1406, %v1433
        %v1446 = vadd.f32 %v1407, %v1433
        %v1447 = vadd.f32 %v1408, %v1433
        %v1448 = vadd.f32 %v1409, %v1433
        %v1449 = vadd.f32 %v1410, %v1433
        %v1450 = vadd.f32 %v1411, %v1433
        %v1451 = vadd.f32 %v1412, %v1433
        %v1452 = vadd.f32 %v1413, %v1433
        %v1453 = vadd.f32 %v1414, %v1433
        %v1454 = vadd.f32 %v1415, %v1433
        %v1455 = vadd.f32 %v1416, %v1433
        %v1456 = vadd.f32 %v1417, %v1433
        %v1457 = vadd.f32 %v1418, %v1433
        %v1458 = vadd.f32 %v1419, %v1433
        %v1459 = vadd.f32 %v1420, %v1433
        %v1460 = vadd.f32 %v1421, %v1433
        %v1461 = vadd.f32 %v1422, %v1433
        %v1462 = vadd.f32 %v1423, %v1433
        %v1463 = vadd.f32 %v1424, %v1433
        %v1464 = vadd.f32 %v1425, %v1433
        %v1465 = vadd.f32 %v1426, %v1433
        %v1466 = vadd.f32 %v1427, %v1433
        %1467 = vst.msk [vmem:[%s375] sm:$0xff] %vm450, %v1435
        %1468 = vst.msk [vmem:[%s375 + $0x8] sm:$0xff] %vm450, %v1436
        %1469 = vst.msk [vmem:[%s375 + $0x10] sm:$0xff] %vm450, %v1437
        %1470 = vst.msk [vmem:[%s375 + $0x18] sm:$0xff] %vm450, %v1438
        %1471 = vst.msk [vmem:[%s375 + $0x20] sm:$0xff] %vm450, %v1439
        %1472 = vst.msk [vmem:[%s375 + $0x28] sm:$0xff] %vm450, %v1440
        %1473 = vst.msk [vmem:[%s375 + $0x30] sm:$0xff] %vm450, %v1441
        %1474 = vst.msk [vmem:[%s375 + $0x38] sm:$0xff] %vm450, %v1442
        %1475 = vst.msk [vmem:[%s375 + $0x40] sm:$0xff] %vm450, %v1443
        %1476 = vst.msk [vmem:[%s375 + $0x48] sm:$0xff] %vm450, %v1444
        %1477 = vst.msk [vmem:[%s375 + $0x50] sm:$0xff] %vm450, %v1445
        %1478 = vst.msk [vmem:[%s375 + $0x58] sm:$0xff] %vm450, %v1446
        %1479 = vst.msk [vmem:[%s375 + $0x60] sm:$0xff] %vm450, %v1447
        %1480 = vst.msk [vmem:[%s375 + $0x68] sm:$0xff] %vm450, %v1448
        %1481 = vst.msk [vmem:[%s375 + $0x70] sm:$0xff] %vm450, %v1449
        %1482 = vst.msk [vmem:[%s375 + $0x78] sm:$0xff] %vm450, %v1450
        %1483 = vst.msk [vmem:[%s375 + $0x80] sm:$0xff] %vm450, %v1451
        %1484 = vst.msk [vmem:[%s375 + $0x88] sm:$0xff] %vm450, %v1452
        %1485 = vst.msk [vmem:[%s375 + $0x90] sm:$0xff] %vm450, %v1453
        %1486 = vst.msk [vmem:[%s375 + $0x98] sm:$0xff] %vm450, %v1454
        %1487 = vst.msk [vmem:[%s375 + $0xa0] sm:$0xff] %vm450, %v1455
        %1488 = vst.msk [vmem:[%s375 + $0xa8] sm:$0xff] %vm450, %v1456
        %1489 = vst.msk [vmem:[%s375 + $0xb0] sm:$0xff] %vm450, %v1457
        %1490 = vst.msk [vmem:[%s375 + $0xb8] sm:$0xff] %vm450, %v1458
        %1491 = vst.msk [vmem:[%s375 + $0xc0] sm:$0xff] %vm450, %v1459
        %1492 = vst.msk [vmem:[%s375 + $0xc8] sm:$0xff] %vm450, %v1460
        %1493 = vst.msk [vmem:[%s375 + $0xd0] sm:$0xff] %vm450, %v1461
        %1494 = vst.msk [vmem:[%s375 + $0xd8] sm:$0xff] %vm450, %v1462
        %1495 = vst.msk [vmem:[%s375 + $0xe0] sm:$0xff] %vm450, %v1463
        %1496 = vst.msk [vmem:[%s375 + $0xe8] sm:$0xff] %vm450, %v1464
        %1497 = vst.msk [vmem:[%s375 + $0xf0] sm:$0xff] %vm450, %v1465
        %1498 = vst.msk [vmem:[%s375 + $0xf8] sm:$0xff] %vm450, %v1466
        %s1499 = sand.u32 %s187, 1
        %s1500 = scalar_lea.sflag [#allocation4], %s1499
        %s1501 = sand.u32 %s187, 1
        %s1502 = smul.addr %s1501, 256
        %s1503 = scalar_lea.vmem [#allocation14], %s1502
        // Predicated region
        $region77: #{t2s_forward.6} parent=47 // pred_check
          %p1504 = pneg %p197
        $region78: #{t2s_forward.6} parent=47 // pred_check_branch
          %1506 = sbr.rel (%p1504) target = $region80
        $region79: #{t2s_forward.6} parent=47 // pred_region
          %s1507 = smul.u32 32, %s27
          %s1509 = ssub.s32 4096, 4096
          %1510 = vsyncadd %s1500, %s1509
          %s1511 = smul.addr %s1507, 128
          %s1512 = scalar_lea.hbm %s7, %s1511
          %s1513 = sshll.u32 %s1503, 4
          %s1514 = int_to_ptr.vmem [resolvable:$true] %s1513
          %1519 = dma.vmem_to_hbm [thread:$0]  %s1514, 4096, %s1512, %s1500, 128, 128, 8
        $region80: #{t2s_forward.6} parent=47 // pred_fallthru
          _
      $region48: #{t2s_forward.6} parent=5 // pred_fallthru
        _
      %p1520 = scmp.le.s32.totalorder 2, %s22
      // Predicated region
      $region81: #{t2s_forward.6} parent=5 // pred_check
        %p1521 = pneg %p1520
      $region82: #{t2s_forward.6} parent=5 // pred_check_branch
        %1523 = sbr.rel (%p1521) target = $region84
      $region83: #{t2s_forward.6} parent=5 // pred_region
        %s1524 = ssub.s32 %s22, 2
        // Predicated region
        $region85: #{t2s_forward.6} parent=83 // pred_check
          %p1525 = pneg %p203
        $region86: #{t2s_forward.6} parent=83 // pred_check_branch
          %1527 = sbr.rel (%p1525) target = $region88
        $region87: #{t2s_forward.6} parent=83 // pred_region
          %s1528 = sand.u32 %s188, 1
          %s1529 = scalar_lea.sflag [#allocation4], %s1528
          %s1530 = sand.u32 %s188, 1
          %s1531 = smul.addr %s1530, 256
          %s1532 = scalar_lea.vmem [#allocation14], %s1531
          %1533 = dma.done %s1529, 4096
        $region88: #{t2s_forward.6} parent=83 // pred_fallthru
          _
      $region84: #{t2s_forward.6} parent=5 // pred_fallthru
        _
    $region6: #{t2s_forward.6} parent=1 // loop_footer
      %s26 = sadd.s32 1, %s22
    $region7: #{t2s_forward.6} parent=1 // loop_footer_branch
      %21 = sbr.rel target = $region3
    $region8: #{t2s_forward.6} parent=1 // loop_exit
      _
    %1534 = vsyncpa [#allocation3], 1
    %s1535 = scalar_lea.sflag [#allocation3], 1
    %1536 = vsyncpa %s1535, 1
    %1537 = vsyncpa [#allocation6], 1
    %1538 = vsyncpa [#allocation9], 1
    %1539 = vsyncpa [#allocation12], 1
    %1540 = vsyncpa [#allocation4], 1
    %s1541 = scalar_lea.sflag [#allocation4], 1
    %1542 = vsyncpa %s1541, 1

// kernel: t2s_forward.9
$region0: #{t2s_forward.9}
  #allocation0 [shape = 'u32[]', space=smem, size = 0x4, offset = 0x4, fixed_abs, tag = 'smem constant byte address 0x4 - core index']
  #allocation1 [shape = 'u32[144,128]{1,0:T(1,128)}', space=vmem, size = 0x12000, scoped, tag = 'internal scratch']
  %s0 = inlined_call_operand.hbm [shape: f32[240,32], index: 0, kind: input, shape index: {}]
  %s1 = inlined_call_operand.hbm [shape: bf16[32,64], index: 1, kind: input, shape index: {}]
  %s2 = inlined_call_operand.hbm [shape: s32[240,1], index: 2, kind: input, shape index: {}]
  %s3 = inlined_call_operand.hbm [shape: f32[1,1], index: 3, kind: output, shape index: {0}]
  %s4 = inlined_call_operand.hbm [shape: f32[1,1], index: 4, kind: output, shape index: {1}]
  %5 = xla_tuple %s3, %s4
  %s6 = sld [smem:[#allocation0]]
  $region46: #{t2s_forward.9} parent=0
    _
  %s8 = ssub.s32 1, %s6
  %s9 = scalar_select 0, %s8, %s6
  $region1: #{t2s_forward.9} parent=0
    #allocation2 [shape = 'u8[122880]{0}', space=vmem, size = 0x1e000, scoped, tag = 'input window, operand 0, single buffered']
    #allocation3 [shape = 's32[1]{0}', space=sflag, size = 0x4, scoped, tag = 'scoped memory for t2s_forward.9']
    #allocation4 [shape = 's32[1]{0}', space=sflag, size = 0x4, scoped, tag = 'scoped memory for t2s_forward.9']
    #allocation5 [shape = 'u8[8192]{0}', space=vmem, size = 0x2000, scoped, tag = 'input window, operand 1, single buffered']
    #allocation6 [shape = 's32[1]{0}', space=sflag, size = 0x4, scoped, tag = 'scoped memory for t2s_forward.9']
    #allocation7 [shape = 'u8[122880]{0}', space=vmem, size = 0x1e000, scoped, tag = 'input window, operand 2, single buffered']
    #allocation8 [shape = 'u8[512]{0}', space=vmem, size = 0x400, scoped, tag = 'output window, operand 0, single buffered']
    #allocation9 [shape = 'u8[512]{0}', space=vmem, size = 0x400, scoped, tag = 'output window, operand 1, single buffered']
    #allocation10 [shape = 's32[1]{0}', space=sflag, size = 0x4, scoped, tag = 'scoped memory for t2s_forward.9']
    %10 = vsyncpa [#allocation3], 0
    %11 = vsyncpa [#allocation6], 0
    %12 = vsyncpa [#allocation4], 0
    %13 = vsyncpa [#allocation10], 0
    // Predicated region
    $region2: #{t2s_forward.9} parent=1 // pred_check
      _
    $region3: #{t2s_forward.9} parent=1 // pred_check_branch
      %15 = sbr.rel (0) target = $region5
    $region4: #{t2s_forward.9} parent=1 // pred_region
      %s17 = ssub.s32 3840, 3840
      %18 = vsyncadd [#allocation3], %s17
      %s19 = sshll.u32 [#allocation2], 4
      %s20 = int_to_ptr.vmem [resolvable:$true] %s19
      %25 = dma.hbm_to_vmem [thread:$0]  %s0, 3840, %s20, [#allocation3], 128, 128, 8
    $region5: #{t2s_forward.9} parent=1 // pred_fallthru
      _
    // Predicated region
    $region6: #{t2s_forward.9} parent=1 // pred_check
      _
    $region7: #{t2s_forward.9} parent=1 // pred_check_branch
      %27 = sbr.rel (0) target = $region9
    $region8: #{t2s_forward.9} parent=1 // pred_region
      %s29 = ssub.s32 256, 256
      %30 = vsyncadd [#allocation6], %s29
      %s31 = sshll.u32 [#allocation5], 4
      %s32 = int_to_ptr.vmem [resolvable:$true] %s31
      %37 = dma.hbm_to_vmem [thread:$0]  %s1, 256, %s32, [#allocation6], 64, 64, 4
    $region9: #{t2s_forward.9} parent=1 // pred_fallthru
      _
    // Predicated region
    $region10: #{t2s_forward.9} parent=1 // pred_check
      _
    $region11: #{t2s_forward.9} parent=1 // pred_check_branch
      %39 = sbr.rel (0) target = $region13
    $region12: #{t2s_forward.9} parent=1 // pred_region
      %s41 = ssub.s32 3840, 3840
      %42 = vsyncadd [#allocation6], %s41
      %s43 = sshll.u32 [#allocation7], 4
      %s44 = int_to_ptr.vmem [resolvable:$true] %s43
      %49 = dma.hbm_to_vmem [thread:$0]  %s2, 3840, %s44, [#allocation6], 128, 128, 8
    $region13: #{t2s_forward.9} parent=1 // pred_fallthru
      _
    // Predicated region
    $region14: #{t2s_forward.9} parent=1 // pred_check
      _
    $region15: #{t2s_forward.9} parent=1 // pred_check_branch
      %51 = sbr.rel (0) target = $region17
    $region16: #{t2s_forward.9} parent=1 // pred_region
      %52 = dma.done [#allocation3], 3840
    $region17: #{t2s_forward.9} parent=1 // pred_fallthru
      _
    // Predicated region
    $region18: #{t2s_forward.9} parent=1 // pred_check
      _
    $region19: #{t2s_forward.9} parent=1 // pred_check_branch
      %54 = sbr.rel (0) target = $region21
    $region20: #{t2s_forward.9} parent=1 // pred_region
      %55 = dma.done [#allocation6], 256
    $region21: #{t2s_forward.9} parent=1 // pred_fallthru
      _
    // Predicated region
    $region22: #{t2s_forward.9} parent=1 // pred_check
      _
    $region23: #{t2s_forward.9} parent=1 // pred_check_branch
      %57 = sbr.rel (0) target = $region25
    $region24: #{t2s_forward.9} parent=1 // pred_region
      %58 = dma.done [#allocation6], 3840
    $region25: #{t2s_forward.9} parent=1 // pred_fallthru
      _
    %p60 = scmp.eq.s32.totalorder 0, 0
    // Predicated region
    $region26: #{t2s_forward.9} parent=1 // pred_check
      %p61 = pneg %p60
    $region27: #{t2s_forward.9} parent=1 // pred_check_branch
      %63 = sbr.rel (%p61) target = $region29
    $region28: #{t2s_forward.9} parent=1 // pred_region
      %vm64 = vcmask 0
      %65 = vst.msk [vmem:[#allocation8] sm:$0x1] %vm64, 0.0
      %66 = vst.msk [vmem:[#allocation9] sm:$0x1] %vm64, 0.0
    $region29: #{t2s_forward.9} parent=1 // pred_fallthru
      _
    %v67 = vld [vmem:[#allocation2] sm:$0xff]
    %v68 = vld [vmem:[#allocation2 + $0x8] sm:$0xff]
    %v69 = vld [vmem:[#allocation2 + $0x10] sm:$0xff]
    %v70 = vld [vmem:[#allocation2 + $0x18] sm:$0xff]
    %v71 = vld [vmem:[#allocation2 + $0x20] sm:$0xff]
    %v72 = vld [vmem:[#allocation2 + $0x28] sm:$0xff]
    %v73 = vld [vmem:[#allocation2 + $0x30] sm:$0xff]
    %v74 = vld [vmem:[#allocation2 + $0x38] sm:$0xff]
    %v75 = vld [vmem:[#allocation2 + $0x40] sm:$0xff]
    %v76 = vld [vmem:[#allocation2 + $0x48] sm:$0xff]
    %v77 = vld [vmem:[#allocation2 + $0x50] sm:$0xff]
    %v78 = vld [vmem:[#allocation2 + $0x58] sm:$0xff]
    %v79 = vld [vmem:[#allocation2 + $0x60] sm:$0xff]
    %v80 = vld [vmem:[#allocation2 + $0x68] sm:$0xff]
    %v81 = vld [vmem:[#allocation2 + $0x70] sm:$0xff]
    %v82 = vld [vmem:[#allocation2 + $0x78] sm:$0xff]
    %v83 = vld [vmem:[#allocation2 + $0x80] sm:$0xff]
    %v84 = vld [vmem:[#allocation2 + $0x88] sm:$0xff]
    %v85 = vld [vmem:[#allocation2 + $0x90] sm:$0xff]
    %v86 = vld [vmem:[#allocation2 + $0x98] sm:$0xff]
    %v87 = vld [vmem:[#allocation2 + $0xa0] sm:$0xff]
    %v88 = vld [vmem:[#allocation2 + $0xa8] sm:$0xff]
    %v89 = vld [vmem:[#allocation2 + $0xb0] sm:$0xff]
    %v90 = vld [vmem:[#allocation2 + $0xb8] sm:$0xff]
    %v91 = vld [vmem:[#allocation2 + $0xc0] sm:$0xff]
    %v92 = vld [vmem:[#allocation2 + $0xc8] sm:$0xff]
    %v93 = vld [vmem:[#allocation2 + $0xd0] sm:$0xff]
    %v94 = vld [vmem:[#allocation2 + $0xd8] sm:$0xff]
    %v95 = vld [vmem:[#allocation2 + $0xe0] sm:$0xff]
    %v96 = vld [vmem:[#allocation2 + $0xe8] sm:$0xff]
    %v97 = vpack.c.bf16 %v68, %v67
    %v98 = vpack.c.bf16 %v70, %v69
    %v99 = vpack.c.bf16 %v72, %v71
    %v100 = vpack.c.bf16 %v74, %v73
    %v101 = vpack.c.bf16 %v76, %v75
    %v102 = vpack.c.bf16 %v78, %v77
    %v103 = vpack.c.bf16 %v80, %v79
    %v104 = vpack.c.bf16 %v82, %v81
    %v105 = vpack.c.bf16 %v84, %v83
    %v106 = vpack.c.bf16 %v86, %v85
    %v107 = vpack.c.bf16 %v88, %v87
    %v108 = vpack.c.bf16 %v90, %v89
    %v109 = vpack.c.bf16 %v92, %v91
    %v110 = vpack.c.bf16 %v94, %v93
    %v111 = vpack.c.bf16 %v96, %v95
    %v112 = vld [vmem:[#allocation5] sm:$0xf]
    %v113 = vld [vmem:[#allocation5 + $0x4] sm:$0xf]
    %v114 = vld [vmem:[#allocation5 + $0x8] sm:$0xf]
    %v115 = vld [vmem:[#allocation5 + $0xc] sm:$0xf]
    %v120 = vunpack.c.l.b16 %v112
    %v121 = vunpack.c.l.b16 %v113
    %v122 = vunpack.c.l.b16 %v114
    %v123 = vunpack.c.l.b16 %v115
    %v124 = vpack.c.b16 %v121, %v120
    %v125 = vpack.c.b16 %v123, %v122
    %vm128 = vcmask 261120
    %v130 = vsel %vm128, %v97, 0
    %v133 = vsel %vm128, %v98, 0
    %v136 = vsel %vm128, %v99, 0
    %v139 = vsel %vm128, %v100, 0
    %v142 = vsel %vm128, %v101, 0
    %v145 = vsel %vm128, %v102, 0
    %v148 = vsel %vm128, %v103, 0
    %v151 = vsel %vm128, %v104, 0
    %v154 = vsel %vm128, %v105, 0
    %v157 = vsel %vm128, %v106, 0
    %v160 = vsel %vm128, %v107, 0
    %v163 = vsel %vm128, %v108, 0
    %v166 = vsel %vm128, %v109, 0
    %v169 = vsel %vm128, %v110, 0
    %v172 = vsel %vm128, %v111, 0
    %174 = vmatprep.subr.bf16.mxu0 0
    %175 = vmatpush1.bf16.msra.mxu0 %v124
    %176 = vmatprep.subr.bf16.mxu0 0
    %177 = vmatpush1.bf16.msra.mxu0 %v125
    %178 = vmatprep.subr.bf16.mxu0 0
    %179 = vmatpush1.bf16.msra.mxu0 0
    %180 = vmatprep.subr.bf16.mxu0 0
    %181 = vmatpush1.bf16.msra.mxu0 0
    %182 = vmatprep.subr.bf16.mxu0 0
    %183 = vmatpush1.bf16.msra.mxu0 0
    %184 = vmatprep.subr.bf16.mxu0 0
    %185 = vmatpush1.bf16.msra.mxu0 0
    %186 = vmatprep.subr.bf16.mxu0 0
    %187 = vmatpush1.bf16.msra.mxu0 0
    %188 = vmatprep.subr.bf16.mxu0 0
    %189 = vmatpush1.bf16.msra.mxu0 0
    %190 = vmatprep.subr.bf16.mxu0 0
    %191 = vmatpush1.bf16.msra.mxu0 0
    %192 = vmatprep.subr.bf16.mxu0 0
    %193 = vmatpush1.bf16.msra.mxu0 0
    %194 = vmatprep.subr.bf16.mxu0 0
    %195 = vmatpush1.bf16.msra.mxu0 0
    %196 = vmatprep.subr.bf16.mxu0 0
    %197 = vmatpush1.bf16.msra.mxu0 0
    %198 = vmatprep.subr.bf16.mxu0 0
    %199 = vmatpush1.bf16.msra.mxu0 0
    %200 = vmatprep.subr.bf16.mxu0 0
    %201 = vmatpush1.bf16.msra.mxu0 0
    %202 = vmatprep.subr.bf16.mxu0 0
    %203 = vmatpush1.bf16.msra.mxu0 0
    %204 = vmatprep.subr.bf16.mxu0 0
    %205 = vmatpush1.bf16.msra.mxu0 0
    %206 = vmatprep.mubr.bf16.mxu0 0
    %207 = vmatmul.mubr.bf16.gmra.mrb[0].mxu0 %v130
    %v208 = vpop.f32.mrb[0].mxu0
    %v209 = vadd.f32 0.0, %v208
    %v210 = vpop.f32.mrb[0].mxu0
    %v211 = vpop.f32.mrb[0].mxu0
    %v212 = vadd.f32 0.0, %v211
    %v213 = vpop.f32.mrb[0].mxu0
    %214 = vmatprep.mubr.bf16.mxu0 0
    %215 = vmatmul.mubr.bf16.gmra.mrb[0].mxu0 %v133
    %v216 = vpop.f32.mrb[0].mxu0
    %v217 = vadd.f32 0.0, %v216
    %v218 = vpop.f32.mrb[0].mxu0
    %v219 = vpop.f32.mrb[0].mxu0
    %v220 = vadd.f32 0.0, %v219
    %v221 = vpop.f32.mrb[0].mxu0
    %222 = vmatprep.mubr.bf16.mxu0 0
    %223 = vmatmul.mubr.bf16.gmra.mrb[0].mxu0 %v136
    %v224 = vpop.f32.mrb[0].mxu0
    %v225 = vadd.f32 0.0, %v224
    %v226 = vpop.f32.mrb[0].mxu0
    %v227 = vpop.f32.mrb[0].mxu0
    %v228 = vadd.f32 0.0, %v227
    %v229 = vpop.f32.mrb[0].mxu0
    %230 = vmatprep.mubr.bf16.mxu0 0
    %231 = vmatmul.mubr.bf16.gmra.mrb[0].mxu0 %v139
    %v232 = vpop.f32.mrb[0].mxu0
    %v233 = vadd.f32 0.0, %v232
    %v234 = vpop.f32.mrb[0].mxu0
    %v235 = vpop.f32.mrb[0].mxu0
    %v236 = vadd.f32 0.0, %v235
    %v237 = vpop.f32.mrb[0].mxu0
    %238 = vmatprep.mubr.bf16.mxu0 0
    %239 = vmatmul.mubr.bf16.gmra.mrb[0].mxu0 %v142
    %v240 = vpop.f32.mrb[0].mxu0
    %v241 = vadd.f32 0.0, %v240
    %v242 = vpop.f32.mrb[0].mxu0
    %v243 = vpop.f32.mrb[0].mxu0
    %v244 = vadd.f32 0.0, %v243
    %v245 = vpop.f32.mrb[0].mxu0
    %246 = vmatprep.mubr.bf16.mxu0 0
    %247 = vmatmul.mubr.bf16.gmra.mrb[0].mxu0 %v145
    %v248 = vpop.f32.mrb[0].mxu0
    %v249 = vadd.f32 0.0, %v248
    %v250 = vpop.f32.mrb[0].mxu0
    %v251 = vpop.f32.mrb[0].mxu0
    %v252 = vadd.f32 0.0, %v251
    %v253 = vpop.f32.mrb[0].mxu0
    %254 = vmatprep.mubr.bf16.mxu0 0
    %255 = vmatmul.mubr.bf16.gmra.mrb[0].mxu0 %v148
    %v256 = vpop.f32.mrb[0].mxu0
    %v257 = vadd.f32 0.0, %v256
    %v258 = vpop.f32.mrb[0].mxu0
    %v259 = vpop.f32.mrb[0].mxu0
    %v260 = vadd.f32 0.0, %v259
    %v261 = vpop.f32.mrb[0].mxu0
    %262 = vmatprep.mubr.bf16.mxu0 0
    %263 = vmatmul.mubr.bf16.gmra.mrb[0].mxu0 %v151
    %v264 = vpop.f32.mrb[0].mxu0
    %v265 = vadd.f32 0.0, %v264
    %v266 = vpop.f32.mrb[0].mxu0
    %v267 = vpop.f32.mrb[0].mxu0
    %v268 = vadd.f32 0.0, %v267
    %v269 = vpop.f32.mrb[0].mxu0
    %270 = vmatprep.mubr.bf16.mxu0 0
    %271 = vmatmul.mubr.bf16.gmra.mrb[0].mxu0 %v154
    %v272 = vpop.f32.mrb[0].mxu0
    %v273 = vadd.f32 0.0, %v272
    %v274 = vpop.f32.mrb[0].mxu0
    %v275 = vpop.f32.mrb[0].mxu0
    %v276 = vadd.f32 0.0, %v275
    %v277 = vpop.f32.mrb[0].mxu0
    %278 = vmatprep.mubr.bf16.mxu0 0
    %279 = vmatmul.mubr.bf16.gmra.mrb[0].mxu0 %v157
    %v280 = vpop.f32.mrb[0].mxu0
    %v281 = vadd.f32 0.0, %v280
    %v282 = vpop.f32.mrb[0].mxu0
    %v283 = vpop.f32.mrb[0].mxu0
    %v284 = vadd.f32 0.0, %v283
    %v285 = vpop.f32.mrb[0].mxu0
    %286 = vmatprep.mubr.bf16.mxu0 0
    %287 = vmatmul.mubr.bf16.gmra.mrb[0].mxu0 %v160
    %v288 = vpop.f32.mrb[0].mxu0
    %v289 = vadd.f32 0.0, %v288
    %v290 = vpop.f32.mrb[0].mxu0
    %v291 = vpop.f32.mrb[0].mxu0
    %v292 = vadd.f32 0.0, %v291
    %v293 = vpop.f32.mrb[0].mxu0
    %294 = vmatprep.mubr.bf16.mxu0 0
    %295 = vmatmul.mubr.bf16.gmra.mrb[0].mxu0 %v163
    %v296 = vpop.f32.mrb[0].mxu0
    %v297 = vadd.f32 0.0, %v296
    %v298 = vpop.f32.mrb[0].mxu0
    %v299 = vpop.f32.mrb[0].mxu0
    %v300 = vadd.f32 0.0, %v299
    %v301 = vpop.f32.mrb[0].mxu0
    %302 = vmatprep.mubr.bf16.mxu0 0
    %303 = vmatmul.mubr.bf16.gmra.mrb[0].mxu0 %v166
    %v304 = vpop.f32.mrb[0].mxu0
    %v305 = vadd.f32 0.0, %v304
    %v306 = vpop.f32.mrb[0].mxu0
    %v307 = vpop.f32.mrb[0].mxu0
    %v308 = vadd.f32 0.0, %v307
    %v309 = vpop.f32.mrb[0].mxu0
    %310 = vmatprep.mubr.bf16.mxu0 0
    %311 = vmatmul.mubr.bf16.gmra.mrb[0].mxu0 %v169
    %v312 = vpop.f32.mrb[0].mxu0
    %v313 = vadd.f32 0.0, %v312
    %v314 = vpop.f32.mrb[0].mxu0
    %v315 = vpop.f32.mrb[0].mxu0
    %v316 = vadd.f32 0.0, %v315
    %v317 = vpop.f32.mrb[0].mxu0
    %318 = vmatprep.mubr.bf16.mxu0 0
    %319 = vmatmul.mubr.bf16.gmra.mrb[0].mxu0 %v172
    %v320 = vpop.f32.mrb[0].mxu0
    %v321 = vadd.f32 0.0, %v320
    %v322 = vpop.f32.mrb[0].mxu0
    %v323 = vpop.f32.mrb[0].mxu0
    %v324 = vadd.f32 0.0, %v323
    %v325 = vpop.f32.mrb[0].mxu0
    %326 = vdwg.mxu0
    %v327 = vld [vmem:[#allocation7] sm:$0xff]
    %v328 = vld [vmem:[#allocation7 + $0x8] sm:$0xff]
    %v329 = vld [vmem:[#allocation7 + $0x10] sm:$0xff]
    %v330 = vld [vmem:[#allocation7 + $0x18] sm:$0xff]
    %v331 = vld [vmem:[#allocation7 + $0x20] sm:$0xff]
    %v332 = vld [vmem:[#allocation7 + $0x28] sm:$0xff]
    %v333 = vld [vmem:[#allocation7 + $0x30] sm:$0xff]
    %v334 = vld [vmem:[#allocation7 + $0x38] sm:$0xff]
    %v335 = vld [vmem:[#allocation7 + $0x40] sm:$0xff]
    %v336 = vld [vmem:[#allocation7 + $0x48] sm:$0xff]
    %v337 = vld [vmem:[#allocation7 + $0x50] sm:$0xff]
    %v338 = vld [vmem:[#allocation7 + $0x58] sm:$0xff]
    %v339 = vld [vmem:[#allocation7 + $0x60] sm:$0xff]
    %v340 = vld [vmem:[#allocation7 + $0x68] sm:$0xff]
    %v341 = vld [vmem:[#allocation7 + $0x70] sm:$0xff]
    %v342 = vld [vmem:[#allocation7 + $0x78] sm:$0xff]
    %v343 = vld [vmem:[#allocation7 + $0x80] sm:$0xff]
    %v344 = vld [vmem:[#allocation7 + $0x88] sm:$0xff]
    %v345 = vld [vmem:[#allocation7 + $0x90] sm:$0xff]
    %v346 = vld [vmem:[#allocation7 + $0x98] sm:$0xff]
    %v347 = vld [vmem:[#allocation7 + $0xa0] sm:$0xff]
    %v348 = vld [vmem:[#allocation7 + $0xa8] sm:$0xff]
    %v349 = vld [vmem:[#allocation7 + $0xb0] sm:$0xff]
    %v350 = vld [vmem:[#allocation7 + $0xb8] sm:$0xff]
    %v351 = vld [vmem:[#allocation7 + $0xc0] sm:$0xff]
    %v352 = vld [vmem:[#allocation7 + $0xc8] sm:$0xff]
    %v353 = vld [vmem:[#allocation7 + $0xd0] sm:$0xff]
    %v354 = vld [vmem:[#allocation7 + $0xd8] sm:$0xff]
    %v355 = vld [vmem:[#allocation7 + $0xe0] sm:$0xff]
    %v356 = vld [vmem:[#allocation7 + $0xe8] sm:$0xff]
    %v357 = vlaneseq
    %v358 = vand.u32 %v357, 127
    %359 = vset.pattern.permute.xlu0 0
    %360 = vperm.xlu0 %359, %v327
    %v361 = vpop.permute.xlu0 %360
    %362 = vset.pattern.permute.xlu0 0
    %363 = vperm.xlu0 %362, %v328
    %v364 = vpop.permute.xlu0 %363
    %365 = vset.pattern.permute.xlu0 0
    %366 = vperm.xlu0 %365, %v329
    %v367 = vpop.permute.xlu0 %366
    %368 = vset.pattern.permute.xlu0 0
    %369 = vperm.xlu0 %368, %v330
    %v370 = vpop.permute.xlu0 %369
    %371 = vset.pattern.permute.xlu0 0
    %372 = vperm.xlu0 %371, %v331
    %v373 = vpop.permute.xlu0 %372
    %374 = vset.pattern.permute.xlu0 0
    %375 = vperm.xlu0 %374, %v332
    %v376 = vpop.permute.xlu0 %375
    %377 = vset.pattern.permute.xlu0 0
    %378 = vperm.xlu0 %377, %v333
    %v379 = vpop.permute.xlu0 %378
    %380 = vset.pattern.permute.xlu0 0
    %381 = vperm.xlu0 %380, %v334
    %v382 = vpop.permute.xlu0 %381
    %383 = vset.pattern.permute.xlu0 0
    %384 = vperm.xlu0 %383, %v335
    %v385 = vpop.permute.xlu0 %384
    %386 = vset.pattern.permute.xlu0 0
    %387 = vperm.xlu0 %386, %v336
    %v388 = vpop.permute.xlu0 %387
    %389 = vset.pattern.permute.xlu0 0
    %390 = vperm.xlu0 %389, %v337
    %v391 = vpop.permute.xlu0 %390
    %392 = vset.pattern.permute.xlu0 0
    %393 = vperm.xlu0 %392, %v338
    %v394 = vpop.permute.xlu0 %393
    %395 = vset.pattern.permute.xlu0 0
    %396 = vperm.xlu0 %395, %v339
    %v397 = vpop.permute.xlu0 %396
    %398 = vset.pattern.permute.xlu0 0
    %399 = vperm.xlu0 %398, %v340
    %v400 = vpop.permute.xlu0 %399
    %401 = vset.pattern.permute.xlu0 0
    %402 = vperm.xlu0 %401, %v341
    %v403 = vpop.permute.xlu0 %402
    %404 = vset.pattern.permute.xlu0 0
    %405 = vperm.xlu0 %404, %v342
    %v406 = vpop.permute.xlu0 %405
    %407 = vset.pattern.permute.xlu0 0
    %408 = vperm.xlu0 %407, %v343
    %v409 = vpop.permute.xlu0 %408
    %410 = vset.pattern.permute.xlu0 0
    %411 = vperm.xlu0 %410, %v344
    %v412 = vpop.permute.xlu0 %411
    %413 = vset.pattern.permute.xlu0 0
    %414 = vperm.xlu0 %413, %v345
    %v415 = vpop.permute.xlu0 %414
    %416 = vset.pattern.permute.xlu0 0
    %417 = vperm.xlu0 %416, %v346
    %v418 = vpop.permute.xlu0 %417
    %419 = vset.pattern.permute.xlu0 0
    %420 = vperm.xlu0 %419, %v347
    %v421 = vpop.permute.xlu0 %420
    %422 = vset.pattern.permute.xlu0 0
    %423 = vperm.xlu0 %422, %v348
    %v424 = vpop.permute.xlu0 %423
    %425 = vset.pattern.permute.xlu0 0
    %426 = vperm.xlu0 %425, %v349
    %v427 = vpop.permute.xlu0 %426
    %428 = vset.pattern.permute.xlu0 0
    %429 = vperm.xlu0 %428, %v350
    %v430 = vpop.permute.xlu0 %429
    %431 = vset.pattern.permute.xlu0 0
    %432 = vperm.xlu0 %431, %v351
    %v433 = vpop.permute.xlu0 %432
    %434 = vset.pattern.permute.xlu0 0
    %435 = vperm.xlu0 %434, %v352
    %v436 = vpop.permute.xlu0 %435
    %437 = vset.pattern.permute.xlu0 0
    %438 = vperm.xlu0 %437, %v353
    %v439 = vpop.permute.xlu0 %438
    %440 = vset.pattern.permute.xlu0 0
    %441 = vperm.xlu0 %440, %v354
    %v442 = vpop.permute.xlu0 %441
    %443 = vset.pattern.permute.xlu0 0
    %444 = vperm.xlu0 %443, %v355
    %v445 = vpop.permute.xlu0 %444
    %446 = vset.pattern.permute.xlu0 0
    %447 = vperm.xlu0 %446, %v356
    %v448 = vpop.permute.xlu0 %447
    %vm449 = vcmp.eq.s32.totalorder %v358, %v361
    %vm450 = vcmp.eq.s32.totalorder %v358, %v364
    %vm451 = vcmp.eq.s32.totalorder %v358, %v367
    %vm452 = vcmp.eq.s32.totalorder %v358, %v370
    %vm453 = vcmp.eq.s32.totalorder %v358, %v373
    %vm454 = vcmp.eq.s32.totalorder %v358, %v376
    %vm455 = vcmp.eq.s32.totalorder %v358, %v379
    %vm456 = vcmp.eq.s32.totalorder %v358, %v382
    %vm457 = vcmp.eq.s32.totalorder %v358, %v385
    %vm458 = vcmp.eq.s32.totalorder %v358, %v388
    %vm459 = vcmp.eq.s32.totalorder %v358, %v391
    %vm460 = vcmp.eq.s32.totalorder %v358, %v394
    %vm461 = vcmp.eq.s32.totalorder %v358, %v397
    %vm462 = vcmp.eq.s32.totalorder %v358, %v400
    %vm463 = vcmp.eq.s32.totalorder %v358, %v403
    %vm464 = vcmp.eq.s32.totalorder %v358, %v406
    %vm465 = vcmp.eq.s32.totalorder %v358, %v409
    %vm466 = vcmp.eq.s32.totalorder %v358, %v412
    %vm467 = vcmp.eq.s32.totalorder %v358, %v415
    %vm468 = vcmp.eq.s32.totalorder %v358, %v418
    %vm469 = vcmp.eq.s32.totalorder %v358, %v421
    %vm470 = vcmp.eq.s32.totalorder %v358, %v424
    %vm471 = vcmp.eq.s32.totalorder %v358, %v427
    %vm472 = vcmp.eq.s32.totalorder %v358, %v430
    %vm473 = vcmp.eq.s32.totalorder %v358, %v433
    %vm474 = vcmp.eq.s32.totalorder %v358, %v436
    %vm475 = vcmp.eq.s32.totalorder %v358, %v439
    %vm476 = vcmp.eq.s32.totalorder %v358, %v442
    %vm477 = vcmp.eq.s32.totalorder %v358, %v445
    %vm478 = vcmp.eq.s32.totalorder %v358, %v448
    %v479 = vsel %vm449, %v209, 0.0
    %v480 = vsel %vm450, %v212, 0.0
    %v481 = vsel %vm451, %v217, 0.0
    %v482 = vsel %vm452, %v220, 0.0
    %v483 = vsel %vm453, %v225, 0.0
    %v484 = vsel %vm454, %v228, 0.0
    %v485 = vsel %vm455, %v233, 0.0
    %v486 = vsel %vm456, %v236, 0.0
    %v487 = vsel %vm457, %v241, 0.0
    %v488 = vsel %vm458, %v244, 0.0
    %v489 = vsel %vm459, %v249, 0.0
    %v490 = vsel %vm460, %v252, 0.0
    %v491 = vsel %vm461, %v257, 0.0
    %v492 = vsel %vm462, %v260, 0.0
    %v493 = vsel %vm463, %v265, 0.0
    %v494 = vsel %vm464, %v268, 0.0
    %v495 = vsel %vm465, %v273, 0.0
    %v496 = vsel %vm466, %v276, 0.0
    %v497 = vsel %vm467, %v281, 0.0
    %v498 = vsel %vm468, %v284, 0.0
    %v499 = vsel %vm469, %v289, 0.0
    %v500 = vsel %vm470, %v292, 0.0
    %v501 = vsel %vm471, %v297, 0.0
    %v502 = vsel %vm472, %v300, 0.0
    %v503 = vsel %vm473, %v305, 0.0
    %v504 = vsel %vm474, %v308, 0.0
    %v505 = vsel %vm475, %v313, 0.0
    %v506 = vsel %vm476, %v316, 0.0
    %v507 = vsel %vm477, %v321, 0.0
    %v508 = vsel %vm478, %v324, 0.0
    %vm509 = vcmask 523264
    %v510 = vsel %vm509, %v479, 0.0
    %511 = vadd.xlane.f32.xlu0 %v510
    %v512 = vpop.xlane.xlu0 %511
    %v513 = vsel %vm509, %v480, 0.0
    %514 = vadd.xlane.f32.xlu0 %v513
    %v515 = vpop.xlane.xlu0 %514
    %v516 = vsel %vm509, %v481, 0.0
    %517 = vadd.xlane.f32.xlu0 %v516
    %v518 = vpop.xlane.xlu0 %517
    %v519 = vsel %vm509, %v482, 0.0
    %520 = vadd.xlane.f32.xlu0 %v519
    %v521 = vpop.xlane.xlu0 %520
    %v522 = vsel %vm509, %v483, 0.0
    %523 = vadd.xlane.f32.xlu0 %v522
    %v524 = vpop.xlane.xlu0 %523
    %v525 = vsel %vm509, %v484, 0.0
    %526 = vadd.xlane.f32.xlu0 %v525
    %v527 = vpop.xlane.xlu0 %526
    %v528 = vsel %vm509, %v485, 0.0
    %529 = vadd.xlane.f32.xlu0 %v528
    %v530 = vpop.xlane.xlu0 %529
    %v531 = vsel %vm509, %v486, 0.0
    %532 = vadd.xlane.f32.xlu0 %v531
    %v533 = vpop.xlane.xlu0 %532
    %v534 = vsel %vm509, %v487, 0.0
    %535 = vadd.xlane.f32.xlu0 %v534
    %v536 = vpop.xlane.xlu0 %535
    %v537 = vsel %vm509, %v488, 0.0
    %538 = vadd.xlane.f32.xlu0 %v537
    %v539 = vpop.xlane.xlu0 %538
    %v540 = vsel %vm509, %v489, 0.0
    %541 = vadd.xlane.f32.xlu0 %v540
    %v542 = vpop.xlane.xlu0 %541
    %v543 = vsel %vm509, %v490, 0.0
    %544 = vadd.xlane.f32.xlu0 %v543
    %v545 = vpop.xlane.xlu0 %544
    %v546 = vsel %vm509, %v491, 0.0
    %547 = vadd.xlane.f32.xlu0 %v546
    %v548 = vpop.xlane.xlu0 %547
    %v549 = vsel %vm509, %v492, 0.0
    %550 = vadd.xlane.f32.xlu0 %v549
    %v551 = vpop.xlane.xlu0 %550
    %v552 = vsel %vm509, %v493, 0.0
    %553 = vadd.xlane.f32.xlu0 %v552
    %v554 = vpop.xlane.xlu0 %553
    %v555 = vsel %vm509, %v494, 0.0
    %556 = vadd.xlane.f32.xlu0 %v555
    %v557 = vpop.xlane.xlu0 %556
    %v558 = vsel %vm509, %v495, 0.0
    %559 = vadd.xlane.f32.xlu0 %v558
    %v560 = vpop.xlane.xlu0 %559
    %v561 = vsel %vm509, %v496, 0.0
    %562 = vadd.xlane.f32.xlu0 %v561
    %v563 = vpop.xlane.xlu0 %562
    %v564 = vsel %vm509, %v497, 0.0
    %565 = vadd.xlane.f32.xlu0 %v564
    %v566 = vpop.xlane.xlu0 %565
    %v567 = vsel %vm509, %v498, 0.0
    %568 = vadd.xlane.f32.xlu0 %v567
    %v569 = vpop.xlane.xlu0 %568
    %v570 = vsel %vm509, %v499, 0.0
    %571 = vadd.xlane.f32.xlu0 %v570
    %v572 = vpop.xlane.xlu0 %571
    %v573 = vsel %vm509, %v500, 0.0
    %574 = vadd.xlane.f32.xlu0 %v573
    %v575 = vpop.xlane.xlu0 %574
    %v576 = vsel %vm509, %v501, 0.0
    %577 = vadd.xlane.f32.xlu0 %v576
    %v578 = vpop.xlane.xlu0 %577
    %v579 = vsel %vm509, %v502, 0.0
    %580 = vadd.xlane.f32.xlu0 %v579
    %v581 = vpop.xlane.xlu0 %580
    %v582 = vsel %vm509, %v503, 0.0
    %583 = vadd.xlane.f32.xlu0 %v582
    %v584 = vpop.xlane.xlu0 %583
    %v585 = vsel %vm509, %v504, 0.0
    %586 = vadd.xlane.f32.xlu0 %v585
    %v587 = vpop.xlane.xlu0 %586
    %v588 = vsel %vm509, %v505, 0.0
    %589 = vadd.xlane.f32.xlu0 %v588
    %v590 = vpop.xlane.xlu0 %589
    %v591 = vsel %vm509, %v506, 0.0
    %592 = vadd.xlane.f32.xlu0 %v591
    %v593 = vpop.xlane.xlu0 %592
    %v594 = vsel %vm509, %v507, 0.0
    %595 = vadd.xlane.f32.xlu0 %v594
    %v596 = vpop.xlane.xlu0 %595
    %v597 = vsel %vm509, %v508, 0.0
    %598 = vadd.xlane.f32.xlu0 %v597
    %v599 = vpop.xlane.xlu0 %598
    %v600 = vsel %vm509, %v209, -inf
    %601 = vmax.xlane.f32.xlu0 %v600
    %v602 = vpop.xlane.xlu0 %601
    %v603 = vsel %vm509, %v212, -inf
    %604 = vmax.xlane.f32.xlu0 %v603
    %v605 = vpop.xlane.xlu0 %604
    %v606 = vsel %vm509, %v217, -inf
    %607 = vmax.xlane.f32.xlu0 %v606
    %v608 = vpop.xlane.xlu0 %607
    %v609 = vsel %vm509, %v220, -inf
    %610 = vmax.xlane.f32.xlu0 %v609
    %v611 = vpop.xlane.xlu0 %610
    %v612 = vsel %vm509, %v225, -inf
    %613 = vmax.xlane.f32.xlu0 %v612
    %v614 = vpop.xlane.xlu0 %613
    %v615 = vsel %vm509, %v228, -inf
    %616 = vmax.xlane.f32.xlu0 %v615
    %v617 = vpop.xlane.xlu0 %616
    %v618 = vsel %vm509, %v233, -inf
    %619 = vmax.xlane.f32.xlu0 %v618
    %v620 = vpop.xlane.xlu0 %619
    %v621 = vsel %vm509, %v236, -inf
    %622 = vmax.xlane.f32.xlu0 %v621
    %v623 = vpop.xlane.xlu0 %622
    %v624 = vsel %vm509, %v241, -inf
    %625 = vmax.xlane.f32.xlu0 %v624
    %v626 = vpop.xlane.xlu0 %625
    %v627 = vsel %vm509, %v244, -inf
    %628 = vmax.xlane.f32.xlu0 %v627
    %v629 = vpop.xlane.xlu0 %628
    %v630 = vsel %vm509, %v249, -inf
    %631 = vmax.xlane.f32.xlu0 %v630
    %v632 = vpop.xlane.xlu0 %631
    %v633 = vsel %vm509, %v252, -inf
    %634 = vmax.xlane.f32.xlu0 %v633
    %v635 = vpop.xlane.xlu0 %634
    %v636 = vsel %vm509, %v257, -inf
    %637 = vmax.xlane.f32.xlu0 %v636
    %v638 = vpop.xlane.xlu0 %637
    %v639 = vsel %vm509, %v260, -inf
    %640 = vmax.xlane.f32.xlu0 %v639
    %v641 = vpop.xlane.xlu0 %640
    %v642 = vsel %vm509, %v265, -inf
    %643 = vmax.xlane.f32.xlu0 %v642
    %v644 = vpop.xlane.xlu0 %643
    %v645 = vsel %vm509, %v268, -inf
    %646 = vmax.xlane.f32.xlu0 %v645
    %v647 = vpop.xlane.xlu0 %646
    %v648 = vsel %vm509, %v273, -inf
    %649 = vmax.xlane.f32.xlu0 %v648
    %v650 = vpop.xlane.xlu0 %649
    %v651 = vsel %vm509, %v276, -inf
    %652 = vmax.xlane.f32.xlu0 %v651
    %v653 = vpop.xlane.xlu0 %652
    %v654 = vsel %vm509, %v281, -inf
    %655 = vmax.xlane.f32.xlu0 %v654
    %v656 = vpop.xlane.xlu0 %655
    %v657 = vsel %vm509, %v284, -inf
    %658 = vmax.xlane.f32.xlu0 %v657
    %v659 = vpop.xlane.xlu0 %658
    %v660 = vsel %vm509, %v289, -inf
    %661 = vmax.xlane.f32.xlu0 %v660
    %v662 = vpop.xlane.xlu0 %661
    %v663 = vsel %vm509, %v292, -inf
    %664 = vmax.xlane.f32.xlu0 %v663
    %v665 = vpop.xlane.xlu0 %664
    %v666 = vsel %vm509, %v297, -inf
    %667 = vmax.xlane.f32.xlu0 %v666
    %v668 = vpop.xlane.xlu0 %667
    %v669 = vsel %vm509, %v300, -inf
    %670 = vmax.xlane.f32.xlu0 %v669
    %v671 = vpop.xlane.xlu0 %670
    %v672 = vsel %vm509, %v305, -inf
    %673 = vmax.xlane.f32.xlu0 %v672
    %v674 = vpop.xlane.xlu0 %673
    %v675 = vsel %vm509, %v308, -inf
    %676 = vmax.xlane.f32.xlu0 %v675
    %v677 = vpop.xlane.xlu0 %676
    %v678 = vsel %vm509, %v313, -inf
    %679 = vmax.xlane.f32.xlu0 %v678
    %v680 = vpop.xlane.xlu0 %679
    %v681 = vsel %vm509, %v316, -inf
    %682 = vmax.xlane.f32.xlu0 %v681
    %v683 = vpop.xlane.xlu0 %682
    %v684 = vsel %vm509, %v321, -inf
    %685 = vmax.xlane.f32.xlu0 %v684
    %v686 = vpop.xlane.xlu0 %685
    %v687 = vsel %vm509, %v324, -inf
    %688 = vmax.xlane.f32.xlu0 %v687
    %v689 = vpop.xlane.xlu0 %688
    %v690 = vsub.f32 %v209, %v602
    %v691 = vsub.f32 %v212, %v605
    %v692 = vsub.f32 %v217, %v608
    %v693 = vsub.f32 %v220, %v611
    %v694 = vsub.f32 %v225, %v614
    %v695 = vsub.f32 %v228, %v617
    %v696 = vsub.f32 %v233, %v620
    %v697 = vsub.f32 %v236, %v623
    %v698 = vsub.f32 %v241, %v626
    %v699 = vsub.f32 %v244, %v629
    %v700 = vsub.f32 %v249, %v632
    %v701 = vsub.f32 %v252, %v635
    %v702 = vsub.f32 %v257, %v638
    %v703 = vsub.f32 %v260, %v641
    %v704 = vsub.f32 %v265, %v644
    %v705 = vsub.f32 %v268, %v647
    %v706 = vsub.f32 %v273, %v650
    %v707 = vsub.f32 %v276, %v653
    %v708 = vsub.f32 %v281, %v656
    %v709 = vsub.f32 %v284, %v659
    %v710 = vsub.f32 %v289, %v662
    %v711 = vsub.f32 %v292, %v665
    %v712 = vsub.f32 %v297, %v668
    %v713 = vsub.f32 %v300, %v671
    %v714 = vsub.f32 %v305, %v674
    %v715 = vsub.f32 %v308, %v677
    %v716 = vsub.f32 %v313, %v680
    %v717 = vsub.f32 %v316, %v683
    %v718 = vsub.f32 %v321, %v686
    %v719 = vsub.f32 %v324, %v689
    %v720 = vmul.f32 %v690, 1.442695
    %v721 = vpow.pop %v720
    %v722 = vmul.f32 %v691, 1.442695
    %v723 = vpow.pop %v722
    %v724 = vmul.f32 %v692, 1.442695
    %v725 = vpow.pop %v724
    %v726 = vmul.f32 %v693, 1.442695
    %v727 = vpow.pop %v726
    %v728 = vmul.f32 %v694, 1.442695
    %v729 = vpow.pop %v728
    %v730 = vmul.f32 %v695, 1.442695
    %v731 = vpow.pop %v730
    %v732 = vmul.f32 %v696, 1.442695
    %v733 = vpow.pop %v732
    %v734 = vmul.f32 %v697, 1.442695
    %v735 = vpow.pop %v734
    %v736 = vmul.f32 %v698, 1.442695
    %v737 = vpow.pop %v736
    %v738 = vmul.f32 %v699, 1.442695
    %v739 = vpow.pop %v738
    %v740 = vmul.f32 %v700, 1.442695
    %v741 = vpow.pop %v740
    %v742 = vmul.f32 %v701, 1.442695
    %v743 = vpow.pop %v742
    %v744 = vmul.f32 %v702, 1.442695
    %v745 = vpow.pop %v744
    %v746 = vmul.f32 %v703, 1.442695
    %v747 = vpow.pop %v746
    %v748 = vmul.f32 %v704, 1.442695
    %v749 = vpow.pop %v748
    %v750 = vmul.f32 %v705, 1.442695
    %v751 = vpow.pop %v750
    %v752 = vmul.f32 %v706, 1.442695
    %v753 = vpow.pop %v752
    %v754 = vmul.f32 %v707, 1.442695
    %v755 = vpow.pop %v754
    %v756 = vmul.f32 %v708, 1.442695
    %v757 = vpow.pop %v756
    %v758 = vmul.f32 %v709, 1.442695
    %v759 = vpow.pop %v758
    %v760 = vmul.f32 %v710, 1.442695
    %v761 = vpow.pop %v760
    %v762 = vmul.f32 %v711, 1.442695
    %v763 = vpow.pop %v762
    %v764 = vmul.f32 %v712, 1.442695
    %v765 = vpow.pop %v764
    %v766 = vmul.f32 %v713, 1.442695
    %v767 = vpow.pop %v766
    %v768 = vmul.f32 %v714, 1.442695
    %v769 = vpow.pop %v768
    %v770 = vmul.f32 %v715, 1.442695
    %v771 = vpow.pop %v770
    %v772 = vmul.f32 %v716, 1.442695
    %v773 = vpow.pop %v772
    %v774 = vmul.f32 %v717, 1.442695
    %v775 = vpow.pop %v774
    %v776 = vmul.f32 %v718, 1.442695
    %v777 = vpow.pop %v776
    %v778 = vmul.f32 %v719, 1.442695
    %v779 = vpow.pop %v778
    %v780 = vsel %vm509, %v721, 0.0
    %781 = vadd.xlane.f32.xlu0 %v780
    %v782 = vpop.xlane.xlu0 %781
    %v783 = vsel %vm509, %v723, 0.0
    %784 = vadd.xlane.f32.xlu0 %v783
    %v785 = vpop.xlane.xlu0 %784
    %v786 = vsel %vm509, %v725, 0.0
    %787 = vadd.xlane.f32.xlu0 %v786
    %v788 = vpop.xlane.xlu0 %787
    %v789 = vsel %vm509, %v727, 0.0
    %790 = vadd.xlane.f32.xlu0 %v789
    %v791 = vpop.xlane.xlu0 %790
    %v792 = vsel %vm509, %v729, 0.0
    %793 = vadd.xlane.f32.xlu0 %v792
    %v794 = vpop.xlane.xlu0 %793
    %v795 = vsel %vm509, %v731, 0.0
    %796 = vadd.xlane.f32.xlu0 %v795
    %v797 = vpop.xlane.xlu0 %796
    %v798 = vsel %vm509, %v733, 0.0
    %799 = vadd.xlane.f32.xlu0 %v798
    %v800 = vpop.xlane.xlu0 %799
    %v801 = vsel %vm509, %v735, 0.0
    %802 = vadd.xlane.f32.xlu0 %v801
    %v803 = vpop.xlane.xlu0 %802
    %v804 = vsel %vm509, %v737, 0.0
    %805 = vadd.xlane.f32.xlu0 %v804
    %v806 = vpop.xlane.xlu0 %805
    %v807 = vsel %vm509, %v739, 0.0
    %808 = vadd.xlane.f32.xlu0 %v807
    %v809 = vpop.xlane.xlu0 %808
    %v810 = vsel %vm509, %v741, 0.0
    %811 = vadd.xlane.f32.xlu0 %v810
    %v812 = vpop.xlane.xlu0 %811
    %v813 = vsel %vm509, %v743, 0.0
    %814 = vadd.xlane.f32.xlu0 %v813
    %v815 = vpop.xlane.xlu0 %814
    %v816 = vsel %vm509, %v745, 0.0
    %817 = vadd.xlane.f32.xlu0 %v816
    %v818 = vpop.xlane.xlu0 %817
    %v819 = vsel %vm509, %v747, 0.0
    %820 = vadd.xlane.f32.xlu0 %v819
    %v821 = vpop.xlane.xlu0 %820
    %v822 = vsel %vm509, %v749, 0.0
    %823 = vadd.xlane.f32.xlu0 %v822
    %v824 = vpop.xlane.xlu0 %823
    %v825 = vsel %vm509, %v751, 0.0
    %826 = vadd.xlane.f32.xlu0 %v825
    %v827 = vpop.xlane.xlu0 %826
    %v828 = vsel %vm509, %v753, 0.0
    %829 = vadd.xlane.f32.xlu0 %v828
    %v830 = vpop.xlane.xlu0 %829
    %v831 = vsel %vm509, %v755, 0.0
    %832 = vadd.xlane.f32.xlu0 %v831
    %v833 = vpop.xlane.xlu0 %832
    %v834 = vsel %vm509, %v757, 0.0
    %835 = vadd.xlane.f32.xlu0 %v834
    %v836 = vpop.xlane.xlu0 %835
    %v837 = vsel %vm509, %v759, 0.0
    %838 = vadd.xlane.f32.xlu0 %v837
    %v839 = vpop.xlane.xlu0 %838
    %v840 = vsel %vm509, %v761, 0.0
    %841 = vadd.xlane.f32.xlu0 %v840
    %v842 = vpop.xlane.xlu0 %841
    %v843 = vsel %vm509, %v763, 0.0
    %844 = vadd.xlane.f32.xlu0 %v843
    %v845 = vpop.xlane.xlu0 %844
    %v846 = vsel %vm509, %v765, 0.0
    %847 = vadd.xlane.f32.xlu0 %v846
    %v848 = vpop.xlane.xlu0 %847
    %v849 = vsel %vm509, %v767, 0.0
    %850 = vadd.xlane.f32.xlu0 %v849
    %v851 = vpop.xlane.xlu0 %850
    %v852 = vsel %vm509, %v769, 0.0
    %853 = vadd.xlane.f32.xlu0 %v852
    %v854 = vpop.xlane.xlu0 %853
    %v855 = vsel %vm509, %v771, 0.0
    %856 = vadd.xlane.f32.xlu0 %v855
    %v857 = vpop.xlane.xlu0 %856
    %v858 = vsel %vm509, %v773, 0.0
    %859 = vadd.xlane.f32.xlu0 %v858
    %v860 = vpop.xlane.xlu0 %859
    %v861 = vsel %vm509, %v775, 0.0
    %862 = vadd.xlane.f32.xlu0 %v861
    %v863 = vpop.xlane.xlu0 %862
    %v864 = vsel %vm509, %v777, 0.0
    %865 = vadd.xlane.f32.xlu0 %v864
    %v866 = vpop.xlane.xlu0 %865
    %v867 = vsel %vm509, %v779, 0.0
    %868 = vadd.xlane.f32.xlu0 %v867
    %v869 = vpop.xlane.xlu0 %868
    %v870 = vlog2.pop %v782
    %v871 = vmul.f32 %v870, 0.6931472
    %v872 = vlog2.pop %v785
    %v873 = vmul.f32 %v872, 0.6931472
    %v874 = vlog2.pop %v788
    %v875 = vmul.f32 %v874, 0.6931472
    %v876 = vlog2.pop %v791
    %v877 = vmul.f32 %v876, 0.6931472
    %v878 = vlog2.pop %v794
    %v879 = vmul.f32 %v878, 0.6931472
    %v880 = vlog2.pop %v797
    %v881 = vmul.f32 %v880, 0.6931472
    %v882 = vlog2.pop %v800
    %v883 = vmul.f32 %v882, 0.6931472
    %v884 = vlog2.pop %v803
    %v885 = vmul.f32 %v884, 0.6931472
    %v886 = vlog2.pop %v806
    %v887 = vmul.f32 %v886, 0.6931472
    %v888 = vlog2.pop %v809
    %v889 = vmul.f32 %v888, 0.6931472
    %v890 = vlog2.pop %v812
    %v891 = vmul.f32 %v890, 0.6931472
    %v892 = vlog2.pop %v815
    %v893 = vmul.f32 %v892, 0.6931472
    %v894 = vlog2.pop %v818
    %v895 = vmul.f32 %v894, 0.6931472
    %v896 = vlog2.pop %v821
    %v897 = vmul.f32 %v896, 0.6931472
    %v898 = vlog2.pop %v824
    %v899 = vmul.f32 %v898, 0.6931472
    %v900 = vlog2.pop %v827
    %v901 = vmul.f32 %v900, 0.6931472
    %v902 = vlog2.pop %v830
    %v903 = vmul.f32 %v902, 0.6931472
    %v904 = vlog2.pop %v833
    %v905 = vmul.f32 %v904, 0.6931472
    %v906 = vlog2.pop %v836
    %v907 = vmul.f32 %v906, 0.6931472
    %v908 = vlog2.pop %v839
    %v909 = vmul.f32 %v908, 0.6931472
    %v910 = vlog2.pop %v842
    %v911 = vmul.f32 %v910, 0.6931472
    %v912 = vlog2.pop %v845
    %v913 = vmul.f32 %v912, 0.6931472
    %v914 = vlog2.pop %v848
    %v915 = vmul.f32 %v914, 0.6931472
    %v916 = vlog2.pop %v851
    %v917 = vmul.f32 %v916, 0.6931472
    %v918 = vlog2.pop %v854
    %v919 = vmul.f32 %v918, 0.6931472
    %v920 = vlog2.pop %v857
    %v921 = vmul.f32 %v920, 0.6931472
    %v922 = vlog2.pop %v860
    %v923 = vmul.f32 %v922, 0.6931472
    %v924 = vlog2.pop %v863
    %v925 = vmul.f32 %v924, 0.6931472
    %v926 = vlog2.pop %v866
    %v927 = vmul.f32 %v926, 0.6931472
    %v928 = vlog2.pop %v869
    %v929 = vmul.f32 %v928, 0.6931472
    %v930 = vadd.f32 %v871, %v602
    %v931 = vadd.f32 %v873, %v605
    %v932 = vadd.f32 %v875, %v608
    %v933 = vadd.f32 %v877, %v611
    %v934 = vadd.f32 %v879, %v614
    %v935 = vadd.f32 %v881, %v617
    %v936 = vadd.f32 %v883, %v620
    %v937 = vadd.f32 %v885, %v623
    %v938 = vadd.f32 %v887, %v626
    %v939 = vadd.f32 %v889, %v629
    %v940 = vadd.f32 %v891, %v632
    %v941 = vadd.f32 %v893, %v635
    %v942 = vadd.f32 %v895, %v638
    %v943 = vadd.f32 %v897, %v641
    %v944 = vadd.f32 %v899, %v644
    %v945 = vadd.f32 %v901, %v647
    %v946 = vadd.f32 %v903, %v650
    %v947 = vadd.f32 %v905, %v653
    %v948 = vadd.f32 %v907, %v656
    %v949 = vadd.f32 %v909, %v659
    %v950 = vadd.f32 %v911, %v662
    %v951 = vadd.f32 %v913, %v665
    %v952 = vadd.f32 %v915, %v668
    %v953 = vadd.f32 %v917, %v671
    %v954 = vadd.f32 %v919, %v674
    %v955 = vadd.f32 %v921, %v677
    %v956 = vadd.f32 %v923, %v680
    %v957 = vadd.f32 %v925, %v683
    %v958 = vadd.f32 %v927, %v686
    %v959 = vadd.f32 %v929, %v689
    %v960 = vsub.f32 %v930, %v512
    %v961 = vsub.f32 %v931, %v515
    %v962 = vsub.f32 %v932, %v518
    %v963 = vsub.f32 %v933, %v521
    %v964 = vsub.f32 %v934, %v524
    %v965 = vsub.f32 %v935, %v527
    %v966 = vsub.f32 %v936, %v530
    %v967 = vsub.f32 %v937, %v533
    %v968 = vsub.f32 %v938, %v536
    %v969 = vsub.f32 %v939, %v539
    %v970 = vsub.f32 %v940, %v542
    %v971 = vsub.f32 %v941, %v545
    %v972 = vsub.f32 %v942, %v548
    %v973 = vsub.f32 %v943, %v551
    %v974 = vsub.f32 %v944, %v554
    %v975 = vsub.f32 %v945, %v557
    %v976 = vsub.f32 %v946, %v560
    %v977 = vsub.f32 %v947, %v563
    %v978 = vsub.f32 %v948, %v566
    %v979 = vsub.f32 %v949, %v569
    %v980 = vsub.f32 %v950, %v572
    %v981 = vsub.f32 %v951, %v575
    %v982 = vsub.f32 %v952, %v578
    %v983 = vsub.f32 %v953, %v581
    %v984 = vsub.f32 %v954, %v584
    %v985 = vsub.f32 %v955, %v587
    %v986 = vsub.f32 %v956, %v590
    %v987 = vsub.f32 %v957, %v593
    %v988 = vsub.f32 %v958, %v596
    %v989 = vsub.f32 %v959, %v599
    %vm990 = vcmp.gt.f32.partialorder %v209, %v512
    %vm991 = vcmp.gt.f32.partialorder %v212, %v515
    %vm992 = vcmp.gt.f32.partialorder %v217, %v518
    %vm993 = vcmp.gt.f32.partialorder %v220, %v521
    %vm994 = vcmp.gt.f32.partialorder %v225, %v524
    %vm995 = vcmp.gt.f32.partialorder %v228, %v527
    %vm996 = vcmp.gt.f32.partialorder %v233, %v530
    %vm997 = vcmp.gt.f32.partialorder %v236, %v533
    %vm998 = vcmp.gt.f32.partialorder %v241, %v536
    %vm999 = vcmp.gt.f32.partialorder %v244, %v539
    %vm1000 = vcmp.gt.f32.partialorder %v249, %v542
    %vm1001 = vcmp.gt.f32.partialorder %v252, %v545
    %vm1002 = vcmp.gt.f32.partialorder %v257, %v548
    %vm1003 = vcmp.gt.f32.partialorder %v260, %v551
    %vm1004 = vcmp.gt.f32.partialorder %v265, %v554
    %vm1005 = vcmp.gt.f32.partialorder %v268, %v557
    %vm1006 = vcmp.gt.f32.partialorder %v273, %v560
    %vm1007 = vcmp.gt.f32.partialorder %v276, %v563
    %vm1008 = vcmp.gt.f32.partialorder %v281, %v566
    %vm1009 = vcmp.gt.f32.partialorder %v284, %v569
    %vm1010 = vcmp.gt.f32.partialorder %v289, %v572
    %vm1011 = vcmp.gt.f32.partialorder %v292, %v575
    %vm1012 = vcmp.gt.f32.partialorder %v297, %v578
    %vm1013 = vcmp.gt.f32.partialorder %v300, %v581
    %vm1014 = vcmp.gt.f32.partialorder %v305, %v584
    %vm1015 = vcmp.gt.f32.partialorder %v308, %v587
    %vm1016 = vcmp.gt.f32.partialorder %v313, %v590
    %vm1017 = vcmp.gt.f32.partialorder %v316, %v593
    %vm1018 = vcmp.gt.f32.partialorder %v321, %v596
    %vm1019 = vcmp.gt.f32.partialorder %v324, %v599
    %v1020 = vsel %vm990, 1, 0
    %v1021 = vsel %vm991, 1, 0
    %v1022 = vsel %vm992, 1, 0
    %v1023 = vsel %vm993, 1, 0
    %v1024 = vsel %vm994, 1, 0
    %v1025 = vsel %vm995, 1, 0
    %v1026 = vsel %vm996, 1, 0
    %v1027 = vsel %vm997, 1, 0
    %v1028 = vsel %vm998, 1, 0
    %v1029 = vsel %vm999, 1, 0
    %v1030 = vsel %vm1000, 1, 0
    %v1031 = vsel %vm1001, 1, 0
    %v1032 = vsel %vm1002, 1, 0
    %v1033 = vsel %vm1003, 1, 0
    %v1034 = vsel %vm1004, 1, 0
    %v1035 = vsel %vm1005, 1, 0
    %v1036 = vsel %vm1006, 1, 0
    %v1037 = vsel %vm1007, 1, 0
    %v1038 = vsel %vm1008, 1, 0
    %v1039 = vsel %vm1009, 1, 0
    %v1040 = vsel %vm1010, 1, 0
    %v1041 = vsel %vm1011, 1, 0
    %v1042 = vsel %vm1012, 1, 0
    %v1043 = vsel %vm1013, 1, 0
    %v1044 = vsel %vm1014, 1, 0
    %v1045 = vsel %vm1015, 1, 0
    %v1046 = vsel %vm1016, 1, 0
    %v1047 = vsel %vm1017, 1, 0
    %v1048 = vsel %vm1018, 1, 0
    %v1049 = vsel %vm1019, 1, 0
    %v1050 = vcvt.s32.f32 %v1020
    %v1051 = vcvt.s32.f32 %v1021
    %v1052 = vcvt.s32.f32 %v1022
    %v1053 = vcvt.s32.f32 %v1023
    %v1054 = vcvt.s32.f32 %v1024
    %v1055 = vcvt.s32.f32 %v1025
    %v1056 = vcvt.s32.f32 %v1026
    %v1057 = vcvt.s32.f32 %v1027
    %v1058 = vcvt.s32.f32 %v1028
    %v1059 = vcvt.s32.f32 %v1029
    %v1060 = vcvt.s32.f32 %v1030
    %v1061 = vcvt.s32.f32 %v1031
    %v1062 = vcvt.s32.f32 %v1032
    %v1063 = vcvt.s32.f32 %v1033
    %v1064 = vcvt.s32.f32 %v1034
    %v1065 = vcvt.s32.f32 %v1035
    %v1066 = vcvt.s32.f32 %v1036
    %v1067 = vcvt.s32.f32 %v1037
    %v1068 = vcvt.s32.f32 %v1038
    %v1069 = vcvt.s32.f32 %v1039
    %v1070 = vcvt.s32.f32 %v1040
    %v1071 = vcvt.s32.f32 %v1041
    %v1072 = vcvt.s32.f32 %v1042
    %v1073 = vcvt.s32.f32 %v1043
    %v1074 = vcvt.s32.f32 %v1044
    %v1075 = vcvt.s32.f32 %v1045
    %v1076 = vcvt.s32.f32 %v1046
    %v1077 = vcvt.s32.f32 %v1047
    %v1078 = vcvt.s32.f32 %v1048
    %v1079 = vcvt.s32.f32 %v1049
    %v1080 = vsel %vm509, %v1050, 0.0
    %1081 = vadd.xlane.f32.xlu0 %v1080
    %v1082 = vpop.xlane.xlu0 %1081
    %v1083 = vsel %vm509, %v1051, 0.0
    %1084 = vadd.xlane.f32.xlu0 %v1083
    %v1085 = vpop.xlane.xlu0 %1084
    %v1086 = vsel %vm509, %v1052, 0.0
    %1087 = vadd.xlane.f32.xlu0 %v1086
    %v1088 = vpop.xlane.xlu0 %1087
    %v1089 = vsel %vm509, %v1053, 0.0
    %1090 = vadd.xlane.f32.xlu0 %v1089
    %v1091 = vpop.xlane.xlu0 %1090
    %v1092 = vsel %vm509, %v1054, 0.0
    %1093 = vadd.xlane.f32.xlu0 %v1092
    %v1094 = vpop.xlane.xlu0 %1093
    %v1095 = vsel %vm509, %v1055, 0.0
    %1096 = vadd.xlane.f32.xlu0 %v1095
    %v1097 = vpop.xlane.xlu0 %1096
    %v1098 = vsel %vm509, %v1056, 0.0
    %1099 = vadd.xlane.f32.xlu0 %v1098
    %v1100 = vpop.xlane.xlu0 %1099
    %v1101 = vsel %vm509, %v1057, 0.0
    %1102 = vadd.xlane.f32.xlu0 %v1101
    %v1103 = vpop.xlane.xlu0 %1102
    %v1104 = vsel %vm509, %v1058, 0.0
    %1105 = vadd.xlane.f32.xlu0 %v1104
    %v1106 = vpop.xlane.xlu0 %1105
    %v1107 = vsel %vm509, %v1059, 0.0
    %1108 = vadd.xlane.f32.xlu0 %v1107
    %v1109 = vpop.xlane.xlu0 %1108
    %v1110 = vsel %vm509, %v1060, 0.0
    %1111 = vadd.xlane.f32.xlu0 %v1110
    %v1112 = vpop.xlane.xlu0 %1111
    %v1113 = vsel %vm509, %v1061, 0.0
    %1114 = vadd.xlane.f32.xlu0 %v1113
    %v1115 = vpop.xlane.xlu0 %1114
    %v1116 = vsel %vm509, %v1062, 0.0
    %1117 = vadd.xlane.f32.xlu0 %v1116
    %v1118 = vpop.xlane.xlu0 %1117
    %v1119 = vsel %vm509, %v1063, 0.0
    %1120 = vadd.xlane.f32.xlu0 %v1119
    %v1121 = vpop.xlane.xlu0 %1120
    %v1122 = vsel %vm509, %v1064, 0.0
    %1123 = vadd.xlane.f32.xlu0 %v1122
    %v1124 = vpop.xlane.xlu0 %1123
    %v1125 = vsel %vm509, %v1065, 0.0
    %1126 = vadd.xlane.f32.xlu0 %v1125
    %v1127 = vpop.xlane.xlu0 %1126
    %v1128 = vsel %vm509, %v1066, 0.0
    %1129 = vadd.xlane.f32.xlu0 %v1128
    %v1130 = vpop.xlane.xlu0 %1129
    %v1131 = vsel %vm509, %v1067, 0.0
    %1132 = vadd.xlane.f32.xlu0 %v1131
    %v1133 = vpop.xlane.xlu0 %1132
    %v1134 = vsel %vm509, %v1068, 0.0
    %1135 = vadd.xlane.f32.xlu0 %v1134
    %v1136 = vpop.xlane.xlu0 %1135
    %v1137 = vsel %vm509, %v1069, 0.0
    %1138 = vadd.xlane.f32.xlu0 %v1137
    %v1139 = vpop.xlane.xlu0 %1138
    %v1140 = vsel %vm509, %v1070, 0.0
    %1141 = vadd.xlane.f32.xlu0 %v1140
    %v1142 = vpop.xlane.xlu0 %1141
    %v1143 = vsel %vm509, %v1071, 0.0
    %1144 = vadd.xlane.f32.xlu0 %v1143
    %v1145 = vpop.xlane.xlu0 %1144
    %v1146 = vsel %vm509, %v1072, 0.0
    %1147 = vadd.xlane.f32.xlu0 %v1146
    %v1148 = vpop.xlane.xlu0 %1147
    %v1149 = vsel %vm509, %v1073, 0.0
    %1150 = vadd.xlane.f32.xlu0 %v1149
    %v1151 = vpop.xlane.xlu0 %1150
    %v1152 = vsel %vm509, %v1074, 0.0
    %1153 = vadd.xlane.f32.xlu0 %v1152
    %v1154 = vpop.xlane.xlu0 %1153
    %v1155 = vsel %vm509, %v1075, 0.0
    %1156 = vadd.xlane.f32.xlu0 %v1155
    %v1157 = vpop.xlane.xlu0 %1156
    %v1158 = vsel %vm509, %v1076, 0.0
    %1159 = vadd.xlane.f32.xlu0 %v1158
    %v1160 = vpop.xlane.xlu0 %1159
    %v1161 = vsel %vm509, %v1077, 0.0
    %1162 = vadd.xlane.f32.xlu0 %v1161
    %v1163 = vpop.xlane.xlu0 %1162
    %v1164 = vsel %vm509, %v1078, 0.0
    %1165 = vadd.xlane.f32.xlu0 %v1164
    %v1166 = vpop.xlane.xlu0 %1165
    %v1167 = vsel %vm509, %v1079, 0.0
    %1168 = vadd.xlane.f32.xlu0 %v1167
    %v1169 = vpop.xlane.xlu0 %1168
    %s1170 = smul.u32 0, 240
    %v1171 = vlaneseq
    %v1172 = vshrl.u32 %v1171, 7
    %v1173 = vadd.s32 %v1172, 8
    %v1174 = vadd.s32 %v1172, 16
    %v1175 = vadd.s32 %v1172, 24
    %v1176 = vadd.s32 %v1172, 32
    %v1177 = vadd.s32 %v1172, 40
    %v1178 = vadd.s32 %v1172, 48
    %v1179 = vadd.s32 %v1172, 56
    %v1180 = vadd.s32 %v1172, 64
    %v1181 = vadd.s32 %v1172, 72
    %v1182 = vadd.s32 %v1172, 80
    %v1183 = vadd.s32 %v1172, 88
    %v1184 = vadd.s32 %v1172, 96
    %v1185 = vadd.s32 %v1172, 104
    %v1186 = vadd.s32 %v1172, 112
    %v1187 = vadd.s32 %v1172, 120
    %v1188 = vadd.s32 %v1172, 128
    %v1189 = vadd.s32 %v1172, 136
    %v1190 = vadd.s32 %v1172, 144
    %v1191 = vadd.s32 %v1172, 152
    %v1192 = vadd.s32 %v1172, 160
    %v1193 = vadd.s32 %v1172, 168
    %v1194 = vadd.s32 %v1172, 176
    %v1195 = vadd.s32 %v1172, 184
    %v1196 = vadd.s32 %v1172, 192
    %v1197 = vadd.s32 %v1172, 200
    %v1198 = vadd.s32 %v1172, 208
    %v1199 = vadd.s32 %v1172, 216
    %v1200 = vadd.s32 %v1172, 224
    %v1201 = vadd.s32 %v1172, 232
    %v1202 = vstv %s1170
    %v1203 = vadd.s32 %v1202, %v1172
    %v1204 = vadd.s32 %v1202, %v1173
    %v1205 = vadd.s32 %v1202, %v1174
    %v1206 = vadd.s32 %v1202, %v1175
    %v1207 = vadd.s32 %v1202, %v1176
    %v1208 = vadd.s32 %v1202, %v1177
    %v1209 = vadd.s32 %v1202, %v1178
    %v1210 = vadd.s32 %v1202, %v1179
    %v1211 = vadd.s32 %v1202, %v1180
    %v1212 = vadd.s32 %v1202, %v1181
    %v1213 = vadd.s32 %v1202, %v1182
    %v1214 = vadd.s32 %v1202, %v1183
    %v1215 = vadd.s32 %v1202, %v1184
    %v1216 = vadd.s32 %v1202, %v1185
    %v1217 = vadd.s32 %v1202, %v1186
    %v1218 = vadd.s32 %v1202, %v1187
    %v1219 = vadd.s32 %v1202, %v1188
    %v1220 = vadd.s32 %v1202, %v1189
    %v1221 = vadd.s32 %v1202, %v1190
    %v1222 = vadd.s32 %v1202, %v1191
    %v1223 = vadd.s32 %v1202, %v1192
    %v1224 = vadd.s32 %v1202, %v1193
    %v1225 = vadd.s32 %v1202, %v1194
    %v1226 = vadd.s32 %v1202, %v1195
    %v1227 = vadd.s32 %v1202, %v1196
    %v1228 = vadd.s32 %v1202, %v1197
    %v1229 = vadd.s32 %v1202, %v1198
    %v1230 = vadd.s32 %v1202, %v1199
    %v1231 = vadd.s32 %v1202, %v1200
    %v1232 = vadd.s32 %v1202, %v1201
    %vm1233 = vcmp.lt.s32.totalorder %v1203, 240
    %vm1234 = vcmp.lt.s32.totalorder %v1204, 240
    %vm1235 = vcmp.lt.s32.totalorder %v1205, 240
    %vm1236 = vcmp.lt.s32.totalorder %v1206, 240
    %vm1237 = vcmp.lt.s32.totalorder %v1207, 240
    %vm1238 = vcmp.lt.s32.totalorder %v1208, 240
    %vm1239 = vcmp.lt.s32.totalorder %v1209, 240
    %vm1240 = vcmp.lt.s32.totalorder %v1210, 240
    %vm1241 = vcmp.lt.s32.totalorder %v1211, 240
    %vm1242 = vcmp.lt.s32.totalorder %v1212, 240
    %vm1243 = vcmp.lt.s32.totalorder %v1213, 240
    %vm1244 = vcmp.lt.s32.totalorder %v1214, 240
    %vm1245 = vcmp.lt.s32.totalorder %v1215, 240
    %vm1246 = vcmp.lt.s32.totalorder %v1216, 240
    %vm1247 = vcmp.lt.s32.totalorder %v1217, 240
    %vm1248 = vcmp.lt.s32.totalorder %v1218, 240
    %vm1249 = vcmp.lt.s32.totalorder %v1219, 240
    %vm1250 = vcmp.lt.s32.totalorder %v1220, 240
    %vm1251 = vcmp.lt.s32.totalorder %v1221, 240
    %vm1252 = vcmp.lt.s32.totalorder %v1222, 240
    %vm1253 = vcmp.lt.s32.totalorder %v1223, 240
    %vm1254 = vcmp.lt.s32.totalorder %v1224, 240
    %vm1255 = vcmp.lt.s32.totalorder %v1225, 240
    %vm1256 = vcmp.lt.s32.totalorder %v1226, 240
    %vm1257 = vcmp.lt.s32.totalorder %v1227, 240
    %vm1258 = vcmp.lt.s32.totalorder %v1228, 240
    %vm1259 = vcmp.lt.s32.totalorder %v1229, 240
    %vm1260 = vcmp.lt.s32.totalorder %v1230, 240
    %vm1261 = vcmp.lt.s32.totalorder %v1231, 240
    %vm1262 = vcmp.lt.s32.totalorder %v1232, 240
    %v1263 = vsel %vm1233, 1, 0
    %v1264 = vsel %vm1234, 1, 0
    %v1265 = vsel %vm1235, 1, 0
    %v1266 = vsel %vm1236, 1, 0
    %v1267 = vsel %vm1237, 1, 0
    %v1268 = vsel %vm1238, 1, 0
    %v1269 = vsel %vm1239, 1, 0
    %v1270 = vsel %vm1240, 1, 0
    %v1271 = vsel %vm1241, 1, 0
    %v1272 = vsel %vm1242, 1, 0
    %v1273 = vsel %vm1243, 1, 0
    %v1274 = vsel %vm1244, 1, 0
    %v1275 = vsel %vm1245, 1, 0
    %v1276 = vsel %vm1246, 1, 0
    %v1277 = vsel %vm1247, 1, 0
    %v1278 = vsel %vm1248, 1, 0
    %v1279 = vsel %vm1249, 1, 0
    %v1280 = vsel %vm1250, 1, 0
    %v1281 = vsel %vm1251, 1, 0
    %v1282 = vsel %vm1252, 1, 0
    %v1283 = vsel %vm1253, 1, 0
    %v1284 = vsel %vm1254, 1, 0
    %v1285 = vsel %vm1255, 1, 0
    %v1286 = vsel %vm1256, 1, 0
    %v1287 = vsel %vm1257, 1, 0
    %v1288 = vsel %vm1258, 1, 0
    %v1289 = vsel %vm1259, 1, 0
    %v1290 = vsel %vm1260, 1, 0
    %v1291 = vsel %vm1261, 1, 0
    %v1292 = vsel %vm1262, 1, 0
    %v1293 = vcvt.s32.f32 %v1263
    %v1294 = vcvt.s32.f32 %v1264
    %v1295 = vcvt.s32.f32 %v1265
    %v1296 = vcvt.s32.f32 %v1266
    %v1297 = vcvt.s32.f32 %v1267
    %v1298 = vcvt.s32.f32 %v1268
    %v1299 = vcvt.s32.f32 %v1269
    %v1300 = vcvt.s32.f32 %v1270
    %v1301 = vcvt.s32.f32 %v1271
    %v1302 = vcvt.s32.f32 %v1272
    %v1303 = vcvt.s32.f32 %v1273
    %v1304 = vcvt.s32.f32 %v1274
    %v1305 = vcvt.s32.f32 %v1275
    %v1306 = vcvt.s32.f32 %v1276
    %v1307 = vcvt.s32.f32 %v1277
    %v1308 = vcvt.s32.f32 %v1278
    %v1309 = vcvt.s32.f32 %v1279
    %v1310 = vcvt.s32.f32 %v1280
    %v1311 = vcvt.s32.f32 %v1281
    %v1312 = vcvt.s32.f32 %v1282
    %v1313 = vcvt.s32.f32 %v1283
    %v1314 = vcvt.s32.f32 %v1284
    %v1315 = vcvt.s32.f32 %v1285
    %v1316 = vcvt.s32.f32 %v1286
    %v1317 = vcvt.s32.f32 %v1287
    %v1318 = vcvt.s32.f32 %v1288
    %v1319 = vcvt.s32.f32 %v1289
    %v1320 = vcvt.s32.f32 %v1290
    %v1321 = vcvt.s32.f32 %v1291
    %v1322 = vcvt.s32.f32 %v1292
    %vm1323 = vcmp.ne.s32.totalorder %v327, 63
    %vm1324 = vcmp.ne.s32.totalorder %v328, 63
    %vm1325 = vcmp.ne.s32.totalorder %v329, 63
    %vm1326 = vcmp.ne.s32.totalorder %v330, 63
    %vm1327 = vcmp.ne.s32.totalorder %v331, 63
    %vm1328 = vcmp.ne.s32.totalorder %v332, 63
    %vm1329 = vcmp.ne.s32.totalorder %v333, 63
    %vm1330 = vcmp.ne.s32.totalorder %v334, 63
    %vm1331 = vcmp.ne.s32.totalorder %v335, 63
    %vm1332 = vcmp.ne.s32.totalorder %v336, 63
    %vm1333 = vcmp.ne.s32.totalorder %v337, 63
    %vm1334 = vcmp.ne.s32.totalorder %v338, 63
    %vm1335 = vcmp.ne.s32.totalorder %v339, 63
    %vm1336 = vcmp.ne.s32.totalorder %v340, 63
    %vm1337 = vcmp.ne.s32.totalorder %v341, 63
    %vm1338 = vcmp.ne.s32.totalorder %v342, 63
    %vm1339 = vcmp.ne.s32.totalorder %v343, 63
    %vm1340 = vcmp.ne.s32.totalorder %v344, 63
    %vm1341 = vcmp.ne.s32.totalorder %v345, 63
    %vm1342 = vcmp.ne.s32.totalorder %v346, 63
    %vm1343 = vcmp.ne.s32.totalorder %v347, 63
    %vm1344 = vcmp.ne.s32.totalorder %v348, 63
    %vm1345 = vcmp.ne.s32.totalorder %v349, 63
    %vm1346 = vcmp.ne.s32.totalorder %v350, 63
    %vm1347 = vcmp.ne.s32.totalorder %v351, 63
    %vm1348 = vcmp.ne.s32.totalorder %v352, 63
    %vm1349 = vcmp.ne.s32.totalorder %v353, 63
    %vm1350 = vcmp.ne.s32.totalorder %v354, 63
    %vm1351 = vcmp.ne.s32.totalorder %v355, 63
    %vm1352 = vcmp.ne.s32.totalorder %v356, 63
    %vm1353 = vmand %vm1233, %vm1323
    %vm1354 = vmand %vm1234, %vm1324
    %vm1355 = vmand %vm1235, %vm1325
    %vm1356 = vmand %vm1236, %vm1326
    %vm1357 = vmand %vm1237, %vm1327
    %vm1358 = vmand %vm1238, %vm1328
    %vm1359 = vmand %vm1239, %vm1329
    %vm1360 = vmand %vm1240, %vm1330
    %vm1361 = vmand %vm1241, %vm1331
    %vm1362 = vmand %vm1242, %vm1332
    %vm1363 = vmand %vm1243, %vm1333
    %vm1364 = vmand %vm1244, %vm1334
    %vm1365 = vmand %vm1245, %vm1335
    %vm1366 = vmand %vm1246, %vm1336
    %vm1367 = vmand %vm1247, %vm1337
    %vm1368 = vmand %vm1248, %vm1338
    %vm1369 = vmand %vm1249, %vm1339
    %vm1370 = vmand %vm1250, %vm1340
    %vm1371 = vmand %vm1251, %vm1341
    %vm1372 = vmand %vm1252, %vm1342
    %vm1373 = vmand %vm1253, %vm1343
    %vm1374 = vmand %vm1254, %vm1344
    %vm1375 = vmand %vm1255, %vm1345
    %vm1376 = vmand %vm1256, %vm1346
    %vm1377 = vmand %vm1257, %vm1347
    %vm1378 = vmand %vm1258, %vm1348
    %vm1379 = vmand %vm1259, %vm1349
    %vm1380 = vmand %vm1260, %vm1350
    %vm1381 = vmand %vm1261, %vm1351
    %vm1382 = vmand %vm1262, %vm1352
    %v1383 = vsel %vm1353, 1, 0
    %v1384 = vsel %vm1354, 1, 0
    %v1385 = vsel %vm1355, 1, 0
    %v1386 = vsel %vm1356, 1, 0
    %v1387 = vsel %vm1357, 1, 0
    %v1388 = vsel %vm1358, 1, 0
    %v1389 = vsel %vm1359, 1, 0
    %v1390 = vsel %vm1360, 1, 0
    %v1391 = vsel %vm1361, 1, 0
    %v1392 = vsel %vm1362, 1, 0
    %v1393 = vsel %vm1363, 1, 0
    %v1394 = vsel %vm1364, 1, 0
    %v1395 = vsel %vm1365, 1, 0
    %v1396 = vsel %vm1366, 1, 0
    %v1397 = vsel %vm1367, 1, 0
    %v1398 = vsel %vm1368, 1, 0
    %v1399 = vsel %vm1369, 1, 0
    %v1400 = vsel %vm1370, 1, 0
    %v1401 = vsel %vm1371, 1, 0
    %v1402 = vsel %vm1372, 1, 0
    %v1403 = vsel %vm1373, 1, 0
    %v1404 = vsel %vm1374, 1, 0
    %v1405 = vsel %vm1375, 1, 0
    %v1406 = vsel %vm1376, 1, 0
    %v1407 = vsel %vm1377, 1, 0
    %v1408 = vsel %vm1378, 1, 0
    %v1409 = vsel %vm1379, 1, 0
    %v1410 = vsel %vm1380, 1, 0
    %v1411 = vsel %vm1381, 1, 0
    %v1412 = vsel %vm1382, 1, 0
    %v1413 = vcvt.s32.f32 %v1383
    %v1414 = vcvt.s32.f32 %v1384
    %v1415 = vcvt.s32.f32 %v1385
    %v1416 = vcvt.s32.f32 %v1386
    %v1417 = vcvt.s32.f32 %v1387
    %v1418 = vcvt.s32.f32 %v1388
    %v1419 = vcvt.s32.f32 %v1389
    %v1420 = vcvt.s32.f32 %v1390
    %v1421 = vcvt.s32.f32 %v1391
    %v1422 = vcvt.s32.f32 %v1392
    %v1423 = vcvt.s32.f32 %v1393
    %v1424 = vcvt.s32.f32 %v1394
    %v1425 = vcvt.s32.f32 %v1395
    %v1426 = vcvt.s32.f32 %v1396
    %v1427 = vcvt.s32.f32 %v1397
    %v1428 = vcvt.s32.f32 %v1398
    %v1429 = vcvt.s32.f32 %v1399
    %v1430 = vcvt.s32.f32 %v1400
    %v1431 = vcvt.s32.f32 %v1401
    %v1432 = vcvt.s32.f32 %v1402
    %v1433 = vcvt.s32.f32 %v1403
    %v1434 = vcvt.s32.f32 %v1404
    %v1435 = vcvt.s32.f32 %v1405
    %v1436 = vcvt.s32.f32 %v1406
    %v1437 = vcvt.s32.f32 %v1407
    %v1438 = vcvt.s32.f32 %v1408
    %v1439 = vcvt.s32.f32 %v1409
    %v1440 = vcvt.s32.f32 %v1410
    %v1441 = vcvt.s32.f32 %v1411
    %v1442 = vcvt.s32.f32 %v1412
    %vm1443 = vcmp.lt.f32.partialorder %v1082, 3.0
    %vm1444 = vcmp.lt.f32.partialorder %v1085, 3.0
    %vm1445 = vcmp.lt.f32.partialorder %v1088, 3.0
    %vm1446 = vcmp.lt.f32.partialorder %v1091, 3.0
    %vm1447 = vcmp.lt.f32.partialorder %v1094, 3.0
    %vm1448 = vcmp.lt.f32.partialorder %v1097, 3.0
    %vm1449 = vcmp.lt.f32.partialorder %v1100, 3.0
    %vm1450 = vcmp.lt.f32.partialorder %v1103, 3.0
    %vm1451 = vcmp.lt.f32.partialorder %v1106, 3.0
    %vm1452 = vcmp.lt.f32.partialorder %v1109, 3.0
    %vm1453 = vcmp.lt.f32.partialorder %v1112, 3.0
    %vm1454 = vcmp.lt.f32.partialorder %v1115, 3.0
    %vm1455 = vcmp.lt.f32.partialorder %v1118, 3.0
    %vm1456 = vcmp.lt.f32.partialorder %v1121, 3.0
    %vm1457 = vcmp.lt.f32.partialorder %v1124, 3.0
    %vm1458 = vcmp.lt.f32.partialorder %v1127, 3.0
    %vm1459 = vcmp.lt.f32.partialorder %v1130, 3.0
    %vm1460 = vcmp.lt.f32.partialorder %v1133, 3.0
    %vm1461 = vcmp.lt.f32.partialorder %v1136, 3.0
    %vm1462 = vcmp.lt.f32.partialorder %v1139, 3.0
    %vm1463 = vcmp.lt.f32.partialorder %v1142, 3.0
    %vm1464 = vcmp.lt.f32.partialorder %v1145, 3.0
    %vm1465 = vcmp.lt.f32.partialorder %v1148, 3.0
    %vm1466 = vcmp.lt.f32.partialorder %v1151, 3.0
    %vm1467 = vcmp.lt.f32.partialorder %v1154, 3.0
    %vm1468 = vcmp.lt.f32.partialorder %v1157, 3.0
    %vm1469 = vcmp.lt.f32.partialorder %v1160, 3.0
    %vm1470 = vcmp.lt.f32.partialorder %v1163, 3.0
    %vm1471 = vcmp.lt.f32.partialorder %v1166, 3.0
    %vm1472 = vcmp.lt.f32.partialorder %v1169, 3.0
    %v1473 = vsel %vm1443, 1, 0
    %v1474 = vsel %vm1444, 1, 0
    %v1475 = vsel %vm1445, 1, 0
    %v1476 = vsel %vm1446, 1, 0
    %v1477 = vsel %vm1447, 1, 0
    %v1478 = vsel %vm1448, 1, 0
    %v1479 = vsel %vm1449, 1, 0
    %v1480 = vsel %vm1450, 1, 0
    %v1481 = vsel %vm1451, 1, 0
    %v1482 = vsel %vm1452, 1, 0
    %v1483 = vsel %vm1453, 1, 0
    %v1484 = vsel %vm1454, 1, 0
    %v1485 = vsel %vm1455, 1, 0
    %v1486 = vsel %vm1456, 1, 0
    %v1487 = vsel %vm1457, 1, 0
    %v1488 = vsel %vm1458, 1, 0
    %v1489 = vsel %vm1459, 1, 0
    %v1490 = vsel %vm1460, 1, 0
    %v1491 = vsel %vm1461, 1, 0
    %v1492 = vsel %vm1462, 1, 0
    %v1493 = vsel %vm1463, 1, 0
    %v1494 = vsel %vm1464, 1, 0
    %v1495 = vsel %vm1465, 1, 0
    %v1496 = vsel %vm1466, 1, 0
    %v1497 = vsel %vm1467, 1, 0
    %v1498 = vsel %vm1468, 1, 0
    %v1499 = vsel %vm1469, 1, 0
    %v1500 = vsel %vm1470, 1, 0
    %v1501 = vsel %vm1471, 1, 0
    %v1502 = vsel %vm1472, 1, 0
    %v1503 = vcvt.s32.f32 %v1473
    %v1504 = vcvt.s32.f32 %v1474
    %v1505 = vcvt.s32.f32 %v1475
    %v1506 = vcvt.s32.f32 %v1476
    %v1507 = vcvt.s32.f32 %v1477
    %v1508 = vcvt.s32.f32 %v1478
    %v1509 = vcvt.s32.f32 %v1479
    %v1510 = vcvt.s32.f32 %v1480
    %v1511 = vcvt.s32.f32 %v1481
    %v1512 = vcvt.s32.f32 %v1482
    %v1513 = vcvt.s32.f32 %v1483
    %v1514 = vcvt.s32.f32 %v1484
    %v1515 = vcvt.s32.f32 %v1485
    %v1516 = vcvt.s32.f32 %v1486
    %v1517 = vcvt.s32.f32 %v1487
    %v1518 = vcvt.s32.f32 %v1488
    %v1519 = vcvt.s32.f32 %v1489
    %v1520 = vcvt.s32.f32 %v1490
    %v1521 = vcvt.s32.f32 %v1491
    %v1522 = vcvt.s32.f32 %v1492
    %v1523 = vcvt.s32.f32 %v1493
    %v1524 = vcvt.s32.f32 %v1494
    %v1525 = vcvt.s32.f32 %v1495
    %v1526 = vcvt.s32.f32 %v1496
    %v1527 = vcvt.s32.f32 %v1497
    %v1528 = vcvt.s32.f32 %v1498
    %v1529 = vcvt.s32.f32 %v1499
    %v1530 = vcvt.s32.f32 %v1500
    %v1531 = vcvt.s32.f32 %v1501
    %v1532 = vcvt.s32.f32 %v1502
    %v1533 = vld [vmem:[#allocation8] sm:$0x1]
    %v1534 = vmul.f32 %v960, %v1293
    %v1535 = vmul.f32 %v961, %v1294
    %v1536 = vmul.f32 %v962, %v1295
    %v1537 = vmul.f32 %v963, %v1296
    %v1538 = vmul.f32 %v964, %v1297
    %v1539 = vmul.f32 %v965, %v1298
    %v1540 = vmul.f32 %v966, %v1299
    %v1541 = vmul.f32 %v967, %v1300
    %v1542 = vmul.f32 %v968, %v1301
    %v1543 = vmul.f32 %v969, %v1302
    %v1544 = vmul.f32 %v970, %v1303
    %v1545 = vmul.f32 %v971, %v1304
    %v1546 = vmul.f32 %v972, %v1305
    %v1547 = vmul.f32 %v973, %v1306
    %v1548 = vmul.f32 %v974, %v1307
    %v1549 = vmul.f32 %v975, %v1308
    %v1550 = vmul.f32 %v976, %v1309
    %v1551 = vmul.f32 %v977, %v1310
    %v1552 = vmul.f32 %v978, %v1311
    %v1553 = vmul.f32 %v979, %v1312
    %v1554 = vmul.f32 %v980, %v1313
    %v1555 = vmul.f32 %v981, %v1314
    %v1556 = vmul.f32 %v982, %v1315
    %v1557 = vmul.f32 %v983, %v1316
    %v1558 = vmul.f32 %v984, %v1317
    %v1559 = vmul.f32 %v985, %v1318
    %v1560 = vmul.f32 %v986, %v1319
    %v1561 = vmul.f32 %v987, %v1320
    %v1562 = vmul.f32 %v988, %v1321
    %v1563 = vmul.f32 %v989, %v1322
    %v1564 = vadd.f32 %v1534, %v1535
    %v1565 = vadd.f32 %v1564, %v1536
    %v1566 = vadd.f32 %v1565, %v1537
    %v1567 = vadd.f32 %v1566, %v1538
    %v1568 = vadd.f32 %v1567, %v1539
    %v1569 = vadd.f32 %v1568, %v1540
    %v1570 = vadd.f32 %v1569, %v1541
    %v1571 = vadd.f32 %v1570, %v1542
    %v1572 = vadd.f32 %v1571, %v1543
    %v1573 = vadd.f32 %v1572, %v1544
    %v1574 = vadd.f32 %v1573, %v1545
    %v1575 = vadd.f32 %v1574, %v1546
    %v1576 = vadd.f32 %v1575, %v1547
    %v1577 = vadd.f32 %v1576, %v1548
    %v1578 = vadd.f32 %v1577, %v1549
    %v1579 = vadd.f32 %v1578, %v1550
    %v1580 = vadd.f32 %v1579, %v1551
    %v1581 = vadd.f32 %v1580, %v1552
    %v1582 = vadd.f32 %v1581, %v1553
    %v1583 = vadd.f32 %v1582, %v1554
    %v1584 = vadd.f32 %v1583, %v1555
    %v1585 = vadd.f32 %v1584, %v1556
    %v1586 = vadd.f32 %v1585, %v1557
    %v1587 = vadd.f32 %v1586, %v1558
    %v1588 = vadd.f32 %v1587, %v1559
    %v1589 = vadd.f32 %v1588, %v1560
    %v1590 = vadd.f32 %v1589, %v1561
    %v1591 = vadd.f32 %v1590, %v1562
    %v1592 = vadd.f32 %v1591, %v1563
    %v1593 = vrot.slane %v1592, 4
    %v1594 = vadd.f32 %v1592, %v1593
    %v1595 = vrot.slane %v1594, 2
    %v1596 = vadd.f32 %v1594, %v1595
    %v1597 = vrot.slane %v1596, 1
    %v1598 = vadd.f32 %v1596, %v1597
    %v1599 = vadd.f32 %v1533, %v1598
    %vm1600 = vcmask 0
    %1601 = vst.msk [vmem:[#allocation8] sm:$0x1] %vm1600, %v1599
    %v1602 = vld [vmem:[#allocation9] sm:$0x1]
    %v1603 = vmul.f32 %v1503, %v1413
    %v1604 = vmul.f32 %v1504, %v1414
    %v1605 = vmul.f32 %v1505, %v1415
    %v1606 = vmul.f32 %v1506, %v1416
    %v1607 = vmul.f32 %v1507, %v1417
    %v1608 = vmul.f32 %v1508, %v1418
    %v1609 = vmul.f32 %v1509, %v1419
    %v1610 = vmul.f32 %v1510, %v1420
    %v1611 = vmul.f32 %v1511, %v1421
    %v1612 = vmul.f32 %v1512, %v1422
    %v1613 = vmul.f32 %v1513, %v1423
    %v1614 = vmul.f32 %v1514, %v1424
    %v1615 = vmul.f32 %v1515, %v1425
    %v1616 = vmul.f32 %v1516, %v1426
    %v1617 = vmul.f32 %v1517, %v1427
    %v1618 = vmul.f32 %v1518, %v1428
    %v1619 = vmul.f32 %v1519, %v1429
    %v1620 = vmul.f32 %v1520, %v1430
    %v1621 = vmul.f32 %v1521, %v1431
    %v1622 = vmul.f32 %v1522, %v1432
    %v1623 = vmul.f32 %v1523, %v1433
    %v1624 = vmul.f32 %v1524, %v1434
    %v1625 = vmul.f32 %v1525, %v1435
    %v1626 = vmul.f32 %v1526, %v1436
    %v1627 = vmul.f32 %v1527, %v1437
    %v1628 = vmul.f32 %v1528, %v1438
    %v1629 = vmul.f32 %v1529, %v1439
    %v1630 = vmul.f32 %v1530, %v1440
    %v1631 = vmul.f32 %v1531, %v1441
    %v1632 = vmul.f32 %v1532, %v1442
    %vm1633 = vcmask 7168
    %v1634 = vsel %vm1633, %v1603, 0.0
    %v1635 = vsel %vm1633, %v1604, 0.0
    %v1636 = vadd.f32 %v1634, %v1635
    %v1637 = vsel %vm1633, %v1605, 0.0
    %v1638 = vadd.f32 %v1636, %v1637
    %v1639 = vsel %vm1633, %v1606, 0.0
    %v1640 = vadd.f32 %v1638, %v1639
    %v1641 = vsel %vm1633, %v1607, 0.0
    %v1642 = vadd.f32 %v1640, %v1641
    %v1643 = vsel %vm1633, %v1608, 0.0
    %v1644 = vadd.f32 %v1642, %v1643
    %v1645 = vsel %vm1633, %v1609, 0.0
    %v1646 = vadd.f32 %v1644, %v1645
    %v1647 = vsel %vm1633, %v1610, 0.0
    %v1648 = vadd.f32 %v1646, %v1647
    %v1649 = vsel %vm1633, %v1611, 0.0
    %v1650 = vadd.f32 %v1648, %v1649
    %v1651 = vsel %vm1633, %v1612, 0.0
    %v1652 = vadd.f32 %v1650, %v1651
    %v1653 = vsel %vm1633, %v1613, 0.0
    %v1654 = vadd.f32 %v1652, %v1653
    %v1655 = vsel %vm1633, %v1614, 0.0
    %v1656 = vadd.f32 %v1654, %v1655
    %v1657 = vsel %vm1633, %v1615, 0.0
    %v1658 = vadd.f32 %v1656, %v1657
    %v1659 = vsel %vm1633, %v1616, 0.0
    %v1660 = vadd.f32 %v1658, %v1659
    %v1661 = vsel %vm1633, %v1617, 0.0
    %v1662 = vadd.f32 %v1660, %v1661
    %v1663 = vsel %vm1633, %v1618, 0.0
    %v1664 = vadd.f32 %v1662, %v1663
    %v1665 = vsel %vm1633, %v1619, 0.0
    %v1666 = vadd.f32 %v1664, %v1665
    %v1667 = vsel %vm1633, %v1620, 0.0
    %v1668 = vadd.f32 %v1666, %v1667
    %v1669 = vsel %vm1633, %v1621, 0.0
    %v1670 = vadd.f32 %v1668, %v1669
    %v1671 = vsel %vm1633, %v1622, 0.0
    %v1672 = vadd.f32 %v1670, %v1671
    %v1673 = vsel %vm1633, %v1623, 0.0
    %v1674 = vadd.f32 %v1672, %v1673
    %v1675 = vsel %vm1633, %v1624, 0.0
    %v1676 = vadd.f32 %v1674, %v1675
    %v1677 = vsel %vm1633, %v1625, 0.0
    %v1678 = vadd.f32 %v1676, %v1677
    %v1679 = vsel %vm1633, %v1626, 0.0
    %v1680 = vadd.f32 %v1678, %v1679
    %v1681 = vsel %vm1633, %v1627, 0.0
    %v1682 = vadd.f32 %v1680, %v1681
    %v1683 = vsel %vm1633, %v1628, 0.0
    %v1684 = vadd.f32 %v1682, %v1683
    %v1685 = vsel %vm1633, %v1629, 0.0
    %v1686 = vadd.f32 %v1684, %v1685
    %v1687 = vsel %vm1633, %v1630, 0.0
    %v1688 = vadd.f32 %v1686, %v1687
    %v1689 = vsel %vm1633, %v1631, 0.0
    %v1690 = vadd.f32 %v1688, %v1689
    %v1691 = vsel %vm1633, %v1632, 0.0
    %v1692 = vadd.f32 %v1690, %v1691
    %v1693 = vrot.slane %v1692, 4
    %v1694 = vadd.f32 %v1692, %v1693
    %v1695 = vrot.slane %v1694, 2
    %v1696 = vadd.f32 %v1694, %v1695
    %v1697 = vrot.slane %v1696, 1
    %v1698 = vadd.f32 %v1696, %v1697
    %v1699 = vadd.f32 %v1602, %v1698
    %1700 = vst.msk [vmem:[#allocation9] sm:$0x1] %vm1600, %v1699
    // Predicated region
    $region30: #{t2s_forward.9} parent=1 // pred_check
      _
    $region31: #{t2s_forward.9} parent=1 // pred_check_branch
      %1702 = sbr.rel (0) target = $region33
    $region32: #{t2s_forward.9} parent=1 // pred_region
      %s1704 = ssub.s32 16, 16
      %1705 = vsyncadd [#allocation4], %s1704
      %s1707 = sshll.u32 [#allocation8], 4
      %s1708 = int_to_ptr.vmem [resolvable:$true] %s1707
      %1710 = dma.vmem_to_hbm [thread:$0]  %s1708, 16, %s3, [#allocation4]
    $region33: #{t2s_forward.9} parent=1 // pred_fallthru
      _
    // Predicated region
    $region34: #{t2s_forward.9} parent=1 // pred_check
      _
    $region35: #{t2s_forward.9} parent=1 // pred_check_branch
      %1712 = sbr.rel (0) target = $region37
    $region36: #{t2s_forward.9} parent=1 // pred_region
      %s1714 = ssub.s32 16, 16
      %1715 = vsyncadd [#allocation10], %s1714
      %s1717 = sshll.u32 [#allocation9], 4
      %s1718 = int_to_ptr.vmem [resolvable:$true] %s1717
      %1720 = dma.vmem_to_hbm [thread:$0]  %s1718, 16, %s4, [#allocation10]
    $region37: #{t2s_forward.9} parent=1 // pred_fallthru
      _
    // Predicated region
    $region38: #{t2s_forward.9} parent=1 // pred_check
      _
    $region39: #{t2s_forward.9} parent=1 // pred_check_branch
      %1722 = sbr.rel (0) target = $region41
    $region40: #{t2s_forward.9} parent=1 // pred_region
      %1723 = dma.done [#allocation4], 16
    $region41: #{t2s_forward.9} parent=1 // pred_fallthru
      _
    // Predicated region
    $region42: #{t2s_forward.9} parent=1 // pred_check
      _
    $region43: #{t2s_forward.9} parent=1 // pred_check_branch
      %1725 = sbr.rel (0) target = $region45
    $region44: #{t2s_forward.9} parent=1 // pred_region
      %1726 = dma.done [#allocation10], 16
    $region45: #{t2s_forward.9} parent=1 // pred_fallthru
      _
    %1727 = vsyncpa [#allocation3], 1
    %1728 = vsyncpa [#allocation6], 1
    %1729 = vsyncpa [#allocation4], 1
    %1730 = vsyncpa [#allocation10], 1

// kernel: t2s_forward.5
$region0: #{t2s_forward.5}
  #allocation0 [shape = 'u32[]', space=smem, size = 0x4, offset = 0x4, fixed_abs, tag = 'smem constant byte address 0x4 - core index']
  #allocation1 [shape = 'u32[144,128]{1,0:T(1,128)}', space=vmem, size = 0x12000, scoped, tag = 'internal scratch']
  #allocation2 [shape = 'bf16[256,96]{1,0:T(16,128)(2,1)}', space=vmem, size = 0x10000, scoped, tag = 'scratch operand']
  #allocation3 [shape = 's32[1]{0}', space=sflag, size = 0x4, scoped, tag = 'scoped memory for t2s_forward.5']
  #allocation4 [shape = 'u8[512]{0}', space=smem, size = 0x200, scoped, tag = 'prefetched SMEM operand 0']
  #allocation5 [shape = 'u8[512]{0}', space=smem, size = 0x200, scoped, tag = 'prefetched SMEM operand 1']
  %s0 = inlined_call_operand.hbm [shape: s32[2], index: 0, kind: input, shape index: {}]
  %s1 = inlined_call_operand.hbm [shape: s32[2], index: 1, kind: input, shape index: {}]
  %s2 = inlined_call_operand.hbm [shape: f32[2,256,32], index: 2, kind: input, shape index: {}]
  %s3 = inlined_call_operand.hbm [shape: bf16[32,96], index: 3, kind: input, shape index: {}]
  %s4 = inlined_call_operand.hbm [shape: f32[1,96], index: 4, kind: input, shape index: {}]
  %s5 = inlined_call_operand.hbm [shape: bf16[32,32], index: 5, kind: input, shape index: {}]
  %s6 = inlined_call_operand.hbm [shape: f32[1,32], index: 6, kind: input, shape index: {}]
  %s7 = inlined_call_operand.hbm [shape: f32[1,32], index: 7, kind: input, shape index: {}]
  %s8 = inlined_call_operand.hbm [shape: f32[1,32], index: 8, kind: input, shape index: {}]
  %s9 = inlined_call_operand.hbm [shape: f32[2,256,32], index: 9, kind: output, shape index: {}]
  %s10 = sld [smem:[#allocation0]]
  $region93: #{t2s_forward.5} parent=0
    _
  %s12 = ssub.s32 1, %s10
  %s13 = scalar_select 0, %s12, %s10
  %15 = dma.hbm_to_smem %s0, 16, [#allocation4], [#allocation3]
  %17 = dma.hbm_to_smem %s1, 16, [#allocation5], [#allocation3]
  %18 = dma.done [#allocation3], 32
  %19 = sfence
  $region1: #{t2s_forward.5} parent=0
    #allocation6 [shape = 'u8[262144]{0}', space=vmem, size = 0x40000, scoped, tag = 'input window, operand 2']
    #allocation7 [shape = 's32[2]{0}', space=sflag, size = 0x8, scoped, tag = 'scoped memory for t2s_forward.5']
    #allocation8 [shape = 's32[2]{0}', space=sflag, size = 0x8, scoped, tag = 'scoped memory for t2s_forward.5']
    #allocation9 [shape = 'u8[8192]{0}', space=vmem, size = 0x2000, scoped, tag = 'input window, operand 3, single buffered']
    #allocation10 [shape = 's32[1]{0}', space=sflag, size = 0x4, scoped, tag = 'scoped memory for t2s_forward.5']
    #allocation11 [shape = 'u8[512]{0}', space=vmem, size = 0x400, scoped, tag = 'input window, operand 4, single buffered']
    #allocation12 [shape = 'u8[8192]{0}', space=vmem, size = 0x2000, scoped, tag = 'input window, operand 5, single buffered']
    #allocation13 [shape = 's32[1]{0}', space=sflag, size = 0x4, scoped, tag = 'scoped memory for t2s_forward.5']
    #allocation14 [shape = 'u8[512]{0}', space=vmem, size = 0x400, scoped, tag = 'input window, operand 6, single buffered']
    #allocation15 [shape = 'u8[512]{0}', space=vmem, size = 0x400, scoped, tag = 'input window, operand 7, single buffered']
    #allocation16 [shape = 's32[1]{0}', space=sflag, size = 0x4, scoped, tag = 'scoped memory for t2s_forward.5']
    #allocation17 [shape = 'u8[512]{0}', space=vmem, size = 0x400, scoped, tag = 'input window, operand 8, single buffered']
    #allocation18 [shape = 'u8[131072]{0}', space=vmem, size = 0x20000, scoped, tag = 'output window, operand 0']
    %20 = vsyncpa [#allocation7], 0
    %s21 = scalar_lea.sflag [#allocation7], 1
    %22 = vsyncpa %s21, 0
    %23 = vsyncpa [#allocation10], 0
    %24 = vsyncpa [#allocation13], 0
    %25 = vsyncpa [#allocation16], 0
    %26 = vsyncpa [#allocation8], 0
    %s27 = scalar_lea.sflag [#allocation8], 1
    %28 = vsyncpa %s27, 0
    loop: start=0, step=1, limit=6
    $region2: #{t2s_forward.5} parent=1 // loop_pre_header
      _
    $region3: #{t2s_forward.5} parent=1 // loop_header
      %s30 = sphi 0, %s34
      %p31 = scmp.ge.s32.totalorder %s30, 6
      %s37 = sphi 0, %s49
      %s38 = sphi 0, %s45
      %s39 = sphi 0, %s37
      %s40 = sphi 0, %s38
      %s41 = sphi 0, %s39
      %s42 = sphi 0, %s40
      %s52 = sphi 0, %s54
      %s55 = sphi 0, %s52
      %s56 = sphi 0, %s55
      %s72 = sphi 0, %s56
      %s76 = sphi 0, %s76
      %s78 = sphi 0, %s76
      %s79 = sphi 0, %s78
      %s93 = sphi 0, %s79
      %s97 = sphi 0, %s97
      %s99 = sphi 0, %s97
      %s100 = sphi 0, %s99
      %s114 = sphi 0, %s100
      %s118 = sphi 0, %s118
      %s120 = sphi 0, %s118
      %s121 = sphi 0, %s120
      %s135 = sphi 0, %s121
      %s139 = sphi 0, %s139
      %s141 = sphi 0, %s139
      %s142 = sphi 0, %s141
      %s156 = sphi 0, %s142
      %s160 = sphi 0, %s160
      %s162 = sphi 0, %s160
      %s163 = sphi 0, %s162
      %s177 = sphi 0, %s163
      %s181 = sphi 0, %s181
      %s183 = sphi 0, %s181
      %s184 = sphi 0, %s183
      %s198 = sphi 0, %s184
      %s206 = sphi 0, %s208
      %s209 = sphi 0, %s206
      %s210 = sphi 0, %s209
      %s226 = sphi 0, %s210
    $region4: #{t2s_forward.5} parent=1 // loop_header_branch
      %33 = sbr.rel (%p31) target = $region8
    $region5: #{t2s_forward.5} parent=1 // loop_body
      %s35 = ssub.s32 %s30, 1
      %s36 = ssub.s32 %s30, 2
      %s43 = sadd.s32 1, %s38
      %p44 = scmp.ge.s32.totalorder %s43, 2
      %s45 = scalar_select %p44, 0, %s43
      %s46 = sadd.s32 1, %s37
      %s47 = scalar_select %p44, %s46, %s37
      %p48 = scmp.ge.s32.totalorder %s47, 2
      %s49 = scalar_select %p48, 0, %s47
      %s50 = ssub.s32 %s37, %s49
      %p51 = scmp.eq.s32.totalorder %s50, 0
      %s53 = sadd.s32 %s52, 1
      %s54 = scalar_select %p51, %s52, %s53
      %p57 = pneg %p51
      %p58 = scmp.eq.s32.totalorder %s30, 3
      %p59 = por %p57, %p58
      %p60 = scmp.ne.s32.totalorder %s52, %s55
      %p61 = scmp.eq.s32.totalorder %s30, 0
      %p62 = por %p60, %p61
      %p63 = scmp.ne.s32.totalorder %s52, %s55
      %p64 = scmp.eq.s32.totalorder %s35, 3
      %p65 = por %p63, %p64
      %p66 = scmp.ne.s32.totalorder %s55, %s56
      %p67 = scmp.eq.s32.totalorder %s35, 0
      %p68 = por %p66, %p67
      %p69 = scmp.ne.s32.totalorder %s55, %s56
      %p70 = scmp.eq.s32.totalorder %s36, 3
      %p71 = por %p69, %p70
      %p73 = scmp.ne.s32.totalorder %s56, %s72
      %p74 = scmp.eq.s32.totalorder %s36, 0
      %p75 = por %p73, %p74
      %s77 = sadd.s32 %s76, 1
      %p80 = scmp.eq.s32.totalorder %s30, 3
      %p81 = scmp.ne.s32.totalorder %s76, %s78
      %p82 = scmp.eq.s32.totalorder %s30, 0
      %p83 = por %p81, %p82
      %p84 = scmp.ne.s32.totalorder %s76, %s78
      %p85 = scmp.eq.s32.totalorder %s35, 3
      %p86 = por %p84, %p85
      %p87 = scmp.ne.s32.totalorder %s78, %s79
      %p88 = scmp.eq.s32.totalorder %s35, 0
      %p89 = por %p87, %p88
      %p90 = scmp.ne.s32.totalorder %s78, %s79
      %p91 = scmp.eq.s32.totalorder %s36, 3
      %p92 = por %p90, %p91
      %p94 = scmp.ne.s32.totalorder %s79, %s93
      %p95 = scmp.eq.s32.totalorder %s36, 0
      %p96 = por %p94, %p95
      %s98 = sadd.s32 %s97, 1
      %p101 = scmp.eq.s32.totalorder %s30, 3
      %p102 = scmp.ne.s32.totalorder %s97, %s99
      %p103 = scmp.eq.s32.totalorder %s30, 0
      %p104 = por %p102, %p103
      %p105 = scmp.ne.s32.totalorder %s97, %s99
      %p106 = scmp.eq.s32.totalorder %s35, 3
      %p107 = por %p105, %p106
      %p108 = scmp.ne.s32.totalorder %s99, %s100
      %p109 = scmp.eq.s32.totalorder %s35, 0
      %p110 = por %p108, %p109
      %p111 = scmp.ne.s32.totalorder %s99, %s100
      %p112 = scmp.eq.s32.totalorder %s36, 3
      %p113 = por %p111, %p112
      %p115 = scmp.ne.s32.totalorder %s100, %s114
      %p116 = scmp.eq.s32.totalorder %s36, 0
      %p117 = por %p115, %p116
      %s119 = sadd.s32 %s118, 1
      %p122 = scmp.eq.s32.totalorder %s30, 3
      %p123 = scmp.ne.s32.totalorder %s118, %s120
      %p124 = scmp.eq.s32.totalorder %s30, 0
      %p125 = por %p123, %p124
      %p126 = scmp.ne.s32.totalorder %s118, %s120
      %p127 = scmp.eq.s32.totalorder %s35, 3
      %p128 = por %p126, %p127
      %p129 = scmp.ne.s32.totalorder %s120, %s121
      %p130 = scmp.eq.s32.totalorder %s35, 0
      %p131 = por %p129, %p130
      %p132 = scmp.ne.s32.totalorder %s120, %s121
      %p133 = scmp.eq.s32.totalorder %s36, 3
      %p134 = por %p132, %p133
      %p136 = scmp.ne.s32.totalorder %s121, %s135
      %p137 = scmp.eq.s32.totalorder %s36, 0
      %p138 = por %p136, %p137
      %s140 = sadd.s32 %s139, 1
      %p143 = scmp.eq.s32.totalorder %s30, 3
      %p144 = scmp.ne.s32.totalorder %s139, %s141
      %p145 = scmp.eq.s32.totalorder %s30, 0
      %p146 = por %p144, %p145
      %p147 = scmp.ne.s32.totalorder %s139, %s141
      %p148 = scmp.eq.s32.totalorder %s35, 3
      %p149 = por %p147, %p148
      %p150 = scmp.ne.s32.totalorder %s141, %s142
      %p151 = scmp.eq.s32.totalorder %s35, 0
      %p152 = por %p150, %p151
      %p153 = scmp.ne.s32.totalorder %s141, %s142
      %p154 = scmp.eq.s32.totalorder %s36, 3
      %p155 = por %p153, %p154
      %p157 = scmp.ne.s32.totalorder %s142, %s156
      %p158 = scmp.eq.s32.totalorder %s36, 0
      %p159 = por %p157, %p158
      %s161 = sadd.s32 %s160, 1
      %p164 = scmp.eq.s32.totalorder %s30, 3
      %p165 = scmp.ne.s32.totalorder %s160, %s162
      %p166 = scmp.eq.s32.totalorder %s30, 0
      %p167 = por %p165, %p166
      %p168 = scmp.ne.s32.totalorder %s160, %s162
      %p169 = scmp.eq.s32.totalorder %s35, 3
      %p170 = por %p168, %p169
      %p171 = scmp.ne.s32.totalorder %s162, %s163
      %p172 = scmp.eq.s32.totalorder %s35, 0
      %p173 = por %p171, %p172
      %p174 = scmp.ne.s32.totalorder %s162, %s163
      %p175 = scmp.eq.s32.totalorder %s36, 3
      %p176 = por %p174, %p175
      %p178 = scmp.ne.s32.totalorder %s163, %s177
      %p179 = scmp.eq.s32.totalorder %s36, 0
      %p180 = por %p178, %p179
      %s182 = sadd.s32 %s181, 1
      %p185 = scmp.eq.s32.totalorder %s30, 3
      %p186 = scmp.ne.s32.totalorder %s181, %s183
      %p187 = scmp.eq.s32.totalorder %s30, 0
      %p188 = por %p186, %p187
      %p189 = scmp.ne.s32.totalorder %s181, %s183
      %p190 = scmp.eq.s32.totalorder %s35, 3
      %p191 = por %p189, %p190
      %p192 = scmp.ne.s32.totalorder %s183, %s184
      %p193 = scmp.eq.s32.totalorder %s35, 0
      %p194 = por %p192, %p193
      %p195 = scmp.ne.s32.totalorder %s183, %s184
      %p196 = scmp.eq.s32.totalorder %s36, 3
      %p197 = por %p195, %p196
      %p199 = scmp.ne.s32.totalorder %s184, %s198
      %p200 = scmp.eq.s32.totalorder %s36, 0
      %p201 = por %p199, %p200
      %s202 = ssub.s32 %s37, %s49
      %s203 = ssub.s32 %s38, %s45
      %s204 = sor.u32 %s202, %s203
      %p205 = scmp.eq.s32.totalorder %s204, 0
      %s207 = sadd.s32 %s206, 1
      %s208 = scalar_select %p205, %s206, %s207
      %p211 = pneg %p205
      %p212 = scmp.eq.s32.totalorder %s30, 3
      %p213 = por %p211, %p212
      %p214 = scmp.ne.s32.totalorder %s206, %s209
      %p215 = scmp.eq.s32.totalorder %s30, 0
      %p216 = por %p214, %p215
      %p217 = scmp.ne.s32.totalorder %s206, %s209
      %p218 = scmp.eq.s32.totalorder %s35, 3
      %p219 = por %p217, %p218
      %p220 = scmp.ne.s32.totalorder %s209, %s210
      %p221 = scmp.eq.s32.totalorder %s35, 0
      %p222 = por %p220, %p221
      %p223 = scmp.ne.s32.totalorder %s209, %s210
      %p224 = scmp.eq.s32.totalorder %s36, 3
      %p225 = por %p223, %p224
      %p227 = scmp.ne.s32.totalorder %s210, %s226
      %p228 = scmp.eq.s32.totalorder %s36, 0
      %p229 = por %p227, %p228
      %p230 = scmp.le.s32.totalorder 1, %s30
      %p231 = scmp.lt.s32.totalorder %s30, 5
      %p232 = pnand %p230, %p231
      %p233 = pneg %p232
      // Predicated region
      $region9: #{t2s_forward.5} parent=5 // pred_check
        _
      $region10: #{t2s_forward.5} parent=5 // pred_check_branch
        %235 = sbr.rel (%p232) target = $region12
      $region11: #{t2s_forward.5} parent=5 // pred_region
        %s236 = ssub.s32 %s30, 1
        // Predicated region
        $region13: #{t2s_forward.5} parent=11 // pred_check
          %p237 = pneg %p89
        $region14: #{t2s_forward.5} parent=11 // pred_check_branch
          %239 = sbr.rel (%p237) target = $region16
        $region15: #{t2s_forward.5} parent=11 // pred_region
          %s241 = ssub.s32 256, 256
          %242 = vsyncadd [#allocation10], %s241
          %s243 = sshll.u32 [#allocation9], 4
          %s244 = int_to_ptr.vmem [resolvable:$true] %s243
          %249 = dma.hbm_to_vmem [thread:$0]  %s3, 256, %s244, [#allocation10], 64, 64, 4
        $region16: #{t2s_forward.5} parent=11 // pred_fallthru
          _
        // Predicated region
        $region17: #{t2s_forward.5} parent=11 // pred_check
          %p250 = pneg %p110
        $region18: #{t2s_forward.5} parent=11 // pred_check_branch
          %252 = sbr.rel (%p250) target = $region20
        $region19: #{t2s_forward.5} parent=11 // pred_region
          %s254 = ssub.s32 16, 16
          %255 = vsyncadd [#allocation10], %s254
          %s257 = sshll.u32 [#allocation11], 4
          %s258 = int_to_ptr.vmem [resolvable:$true] %s257
          %260 = dma.hbm_to_vmem [thread:$0]  %s4, 16, %s258, [#allocation10]
        $region20: #{t2s_forward.5} parent=11 // pred_fallthru
          _
        // Predicated region
        $region21: #{t2s_forward.5} parent=11 // pred_check
          %p261 = pneg %p131
        $region22: #{t2s_forward.5} parent=11 // pred_check_branch
          %263 = sbr.rel (%p261) target = $region24
        $region23: #{t2s_forward.5} parent=11 // pred_region
          %s265 = ssub.s32 256, 256
          %266 = vsyncadd [#allocation13], %s265
          %s267 = sshll.u32 [#allocation12], 4
          %s268 = int_to_ptr.vmem [resolvable:$true] %s267
          %273 = dma.hbm_to_vmem [thread:$0]  %s5, 256, %s268, [#allocation13], 64, 64, 4
        $region24: #{t2s_forward.5} parent=11 // pred_fallthru
          _
        // Predicated region
        $region25: #{t2s_forward.5} parent=11 // pred_check
          %p274 = pneg %p152
        $region26: #{t2s_forward.5} parent=11 // pred_check_branch
          %276 = sbr.rel (%p274) target = $region28
        $region27: #{t2s_forward.5} parent=11 // pred_region
          %s278 = ssub.s32 16, 16
          %279 = vsyncadd [#allocation13], %s278
          %s281 = sshll.u32 [#allocation14], 4
          %s282 = int_to_ptr.vmem [resolvable:$true] %s281
          %284 = dma.hbm_to_vmem [thread:$0]  %s6, 16, %s282, [#allocation13]
        $region28: #{t2s_forward.5} parent=11 // pred_fallthru
          _
        // Predicated region
        $region29: #{t2s_forward.5} parent=11 // pred_check
          %p285 = pneg %p173
        $region30: #{t2s_forward.5} parent=11 // pred_check_branch
          %287 = sbr.rel (%p285) target = $region32
        $region31: #{t2s_forward.5} parent=11 // pred_region
          %s289 = ssub.s32 16, 16
          %290 = vsyncadd [#allocation16], %s289
          %s292 = sshll.u32 [#allocation15], 4
          %s293 = int_to_ptr.vmem [resolvable:$true] %s292
          %295 = dma.hbm_to_vmem [thread:$0]  %s7, 16, %s293, [#allocation16]
        $region32: #{t2s_forward.5} parent=11 // pred_fallthru
          _
        // Predicated region
        $region33: #{t2s_forward.5} parent=11 // pred_check
          %p296 = pneg %p194
        $region34: #{t2s_forward.5} parent=11 // pred_check_branch
          %298 = sbr.rel (%p296) target = $region36
        $region35: #{t2s_forward.5} parent=11 // pred_region
          %s300 = ssub.s32 16, 16
          %301 = vsyncadd [#allocation16], %s300
          %s303 = sshll.u32 [#allocation17], 4
          %s304 = int_to_ptr.vmem [resolvable:$true] %s303
          %306 = dma.hbm_to_vmem [thread:$0]  %s8, 16, %s304, [#allocation16]
        $region36: #{t2s_forward.5} parent=11 // pred_fallthru
          _
      $region12: #{t2s_forward.5} parent=5 // pred_fallthru
        _
      %p307 = scmp.lt.s32.totalorder %s30, 4
      // Predicated region
      $region37: #{t2s_forward.5} parent=5 // pred_check
        %p308 = pneg %p307
      $region38: #{t2s_forward.5} parent=5 // pred_check_branch
        %310 = sbr.rel (%p308) target = $region40
      $region39: #{t2s_forward.5} parent=5 // pred_region
        // Predicated region
        $region41: #{t2s_forward.5} parent=39 // pred_check
          %p311 = pneg %p62
        $region42: #{t2s_forward.5} parent=39 // pred_check_branch
          %313 = sbr.rel (%p311) target = $region44
        $region43: #{t2s_forward.5} parent=39 // pred_region
          %s314 = sand.u32 %s52, 1
          %s315 = scalar_lea.sflag [#allocation7], %s314
          %s316 = sand.u32 %s52, 1
          %s317 = smul.addr %s316, 256
          %s318 = scalar_lea.vmem [#allocation6], %s317
          %s320 = ssub.s32 4096, 4096
          %321 = vsyncadd %s315, %s320
          %s322 = smul.addr %s37, 32
          %s323 = smul.addr %s322, 128
          %s324 = scalar_lea.hbm %s2, %s323
          %s325 = sshll.u32 %s318, 4
          %s326 = int_to_ptr.vmem [resolvable:$true] %s325
          %331 = dma.hbm_to_vmem [thread:$0]  %s324, 4096, %s326, %s315, 128, 128, 8
        $region44: #{t2s_forward.5} parent=39 // pred_fallthru
          _
      $region40: #{t2s_forward.5} parent=5 // pred_fallthru
        _
      %p332 = scmp.le.s32.totalorder 1, %s30
      %p333 = scmp.lt.s32.totalorder %s30, 5
      %p334 = pnand %p332, %p333
      %p335 = pneg %p334
      // Predicated region
      $region45: #{t2s_forward.5} parent=5 // pred_check
        _
      $region46: #{t2s_forward.5} parent=5 // pred_check_branch
        %337 = sbr.rel (%p334) target = $region48
      $region47: #{t2s_forward.5} parent=5 // pred_region
        %s338 = ssub.s32 %s30, 1
        %s339 = sand.u32 %s55, 1
        %s340 = scalar_lea.sflag [#allocation7], %s339
        %s341 = sand.u32 %s55, 1
        %s342 = smul.addr %s341, 256
        %s343 = scalar_lea.vmem [#allocation6], %s342
        // Predicated region
        $region49: #{t2s_forward.5} parent=47 // pred_check
          %p344 = pneg %p68
        $region50: #{t2s_forward.5} parent=47 // pred_check_branch
          %346 = sbr.rel (%p344) target = $region52
        $region51: #{t2s_forward.5} parent=47 // pred_region
          %347 = dma.done %s340, 4096
        $region52: #{t2s_forward.5} parent=47 // pred_fallthru
          _
        // Predicated region
        $region53: #{t2s_forward.5} parent=47 // pred_check
          %p348 = pneg %p89
        $region54: #{t2s_forward.5} parent=47 // pred_check_branch
          %350 = sbr.rel (%p348) target = $region56
        $region55: #{t2s_forward.5} parent=47 // pred_region
          %351 = dma.done [#allocation10], 256
        $region56: #{t2s_forward.5} parent=47 // pred_fallthru
          _
        // Predicated region
        $region57: #{t2s_forward.5} parent=47 // pred_check
          %p352 = pneg %p110
        $region58: #{t2s_forward.5} parent=47 // pred_check_branch
          %354 = sbr.rel (%p352) target = $region60
        $region59: #{t2s_forward.5} parent=47 // pred_region
          %355 = dma.done [#allocation10], 16
        $region60: #{t2s_forward.5} parent=47 // pred_fallthru
          _
        // Predicated region
        $region61: #{t2s_forward.5} parent=47 // pred_check
          %p356 = pneg %p131
        $region62: #{t2s_forward.5} parent=47 // pred_check_branch
          %358 = sbr.rel (%p356) target = $region64
        $region63: #{t2s_forward.5} parent=47 // pred_region
          %359 = dma.done [#allocation13], 256
        $region64: #{t2s_forward.5} parent=47 // pred_fallthru
          _
        // Predicated region
        $region65: #{t2s_forward.5} parent=47 // pred_check
          %p360 = pneg %p152
        $region66: #{t2s_forward.5} parent=47 // pred_check_branch
          %362 = sbr.rel (%p360) target = $region68
        $region67: #{t2s_forward.5} parent=47 // pred_region
          %363 = dma.done [#allocation13], 16
        $region68: #{t2s_forward.5} parent=47 // pred_fallthru
          _
        // Predicated region
        $region69: #{t2s_forward.5} parent=47 // pred_check
          %p364 = pneg %p173
        $region70: #{t2s_forward.5} parent=47 // pred_check_branch
          %366 = sbr.rel (%p364) target = $region72
        $region71: #{t2s_forward.5} parent=47 // pred_region
          %367 = dma.done [#allocation16], 16
        $region72: #{t2s_forward.5} parent=47 // pred_fallthru
          _
        // Predicated region
        $region73: #{t2s_forward.5} parent=47 // pred_check
          %p368 = pneg %p194
        $region74: #{t2s_forward.5} parent=47 // pred_check_branch
          %370 = sbr.rel (%p368) target = $region76
        $region75: #{t2s_forward.5} parent=47 // pred_region
          %371 = dma.done [#allocation16], 16
        $region76: #{t2s_forward.5} parent=47 // pred_fallthru
          _
        %s372 = sand.u32 %s55, 1
        %s373 = scalar_lea.sflag [#allocation7], %s372
        %s374 = sand.u32 %s55, 1
        %s375 = smul.addr %s374, 256
        %s376 = scalar_lea.vmem [#allocation6], %s375
        %p377 = pneg %p68
        %p378 = pneg %p65
        %p379 = pneg %p89
        %p380 = pneg %p86
        %p381 = pneg %p110
        %p382 = pneg %p107
        %p383 = pneg %p131
        %p384 = pneg %p128
        %p385 = pneg %p152
        %p386 = pneg %p149
        %p387 = pneg %p173
        %p388 = pneg %p170
        %p389 = pneg %p194
        %p390 = pneg %p191
        %p391 = pneg %p222
        %p392 = pneg %p219
        %s393 = sand.u32 %s209, 1
        %s394 = scalar_lea.sflag [#allocation8], %s393
        %s395 = sand.u32 %s209, 1
        %s396 = smul.addr %s395, 128
        %s397 = scalar_lea.vmem [#allocation18], %s396
        %s398 = smul.u32 16, %s40
        %p400 = scmp.eq.s32.totalorder %s40, 0
        // Predicated region
        $region77: #{t2s_forward.5} parent=47 // pred_check
          %p401 = pneg %p400
        $region78: #{t2s_forward.5} parent=47 // pred_check_branch
          %403 = sbr.rel (%p401) target = $region80
        $region79: #{t2s_forward.5} parent=47 // pred_region
          %v404 = vld [vmem:[%s343] sm:$0xff]
          %v405 = vld [vmem:[%s343 + $0x8] sm:$0xff]
          %v406 = vld [vmem:[%s343 + $0x10] sm:$0xff]
          %v407 = vld [vmem:[%s343 + $0x18] sm:$0xff]
          %v408 = vld [vmem:[%s343 + $0x20] sm:$0xff]
          %v409 = vld [vmem:[%s343 + $0x28] sm:$0xff]
          %v410 = vld [vmem:[%s343 + $0x30] sm:$0xff]
          %v411 = vld [vmem:[%s343 + $0x38] sm:$0xff]
          %v412 = vld [vmem:[%s343 + $0x40] sm:$0xff]
          %v413 = vld [vmem:[%s343 + $0x48] sm:$0xff]
          %v414 = vld [vmem:[%s343 + $0x50] sm:$0xff]
          %v415 = vld [vmem:[%s343 + $0x58] sm:$0xff]
          %v416 = vld [vmem:[%s343 + $0x60] sm:$0xff]
          %v417 = vld [vmem:[%s343 + $0x68] sm:$0xff]
          %v418 = vld [vmem:[%s343 + $0x70] sm:$0xff]
          %v419 = vld [vmem:[%s343 + $0x78] sm:$0xff]
          %v420 = vld [vmem:[%s343 + $0x80] sm:$0xff]
          %v421 = vld [vmem:[%s343 + $0x88] sm:$0xff]
          %v422 = vld [vmem:[%s343 + $0x90] sm:$0xff]
          %v423 = vld [vmem:[%s343 + $0x98] sm:$0xff]
          %v424 = vld [vmem:[%s343 + $0xa0] sm:$0xff]
          %v425 = vld [vmem:[%s343 + $0xa8] sm:$0xff]
          %v426 = vld [vmem:[%s343 + $0xb0] sm:$0xff]
          %v427 = vld [vmem:[%s343 + $0xb8] sm:$0xff]
          %v428 = vld [vmem:[%s343 + $0xc0] sm:$0xff]
          %v429 = vld [vmem:[%s343 + $0xc8] sm:$0xff]
          %v430 = vld [vmem:[%s343 + $0xd0] sm:$0xff]
          %v431 = vld [vmem:[%s343 + $0xd8] sm:$0xff]
          %v432 = vld [vmem:[%s343 + $0xe0] sm:$0xff]
          %v433 = vld [vmem:[%s343 + $0xe8] sm:$0xff]
          %v434 = vld [vmem:[%s343 + $0xf0] sm:$0xff]
          %v435 = vld [vmem:[%s343 + $0xf8] sm:$0xff]
          %v436 = vpack.c.bf16 %v405, %v404
          %v437 = vpack.c.bf16 %v407, %v406
          %v438 = vpack.c.bf16 %v409, %v408
          %v439 = vpack.c.bf16 %v411, %v410
          %v440 = vpack.c.bf16 %v413, %v412
          %v441 = vpack.c.bf16 %v415, %v414
          %v442 = vpack.c.bf16 %v417, %v416
          %v443 = vpack.c.bf16 %v419, %v418
          %v444 = vpack.c.bf16 %v421, %v420
          %v445 = vpack.c.bf16 %v423, %v422
          %v446 = vpack.c.bf16 %v425, %v424
          %v447 = vpack.c.bf16 %v427, %v426
          %v448 = vpack.c.bf16 %v429, %v428
          %v449 = vpack.c.bf16 %v431, %v430
          %v450 = vpack.c.bf16 %v433, %v432
          %v451 = vpack.c.bf16 %v435, %v434
          %v452 = vld [vmem:[#allocation9] sm:$0xf]
          %v453 = vld [vmem:[#allocation9 + $0x4] sm:$0xf]
          %v454 = vld [vmem:[#allocation9 + $0x8] sm:$0xf]
          %v455 = vld [vmem:[#allocation9 + $0xc] sm:$0xf]
          %v456 = vld [vmem:[#allocation11] sm:$0x1]
          %v458 = vlaneseq
          %v459 = vshrl.u32 %v458, 7
          %v460 = vsub.s32 0, %v459
          %v461 = vrot.slane %v456, %v460
          %v467 = vunpack.c.l.b16 %v452
          %v468 = vunpack.c.l.b16 %v453
          %v469 = vunpack.c.l.b16 %v454
          %v470 = vunpack.c.l.b16 %v455
          %v471 = vpack.c.b16 %v468, %v467
          %v472 = vpack.c.b16 %v470, %v469
          %vm475 = vcmask 261120
          %v477 = vsel %vm475, %v436, 0
          %v480 = vsel %vm475, %v437, 0
          %v483 = vsel %vm475, %v438, 0
          %v486 = vsel %vm475, %v439, 0
          %v489 = vsel %vm475, %v440, 0
          %v492 = vsel %vm475, %v441, 0
          %v495 = vsel %vm475, %v442, 0
          %v498 = vsel %vm475, %v443, 0
          %v501 = vsel %vm475, %v444, 0
          %v504 = vsel %vm475, %v445, 0
          %v507 = vsel %vm475, %v446, 0
          %v510 = vsel %vm475, %v447, 0
          %v513 = vsel %vm475, %v448, 0
          %v516 = vsel %vm475, %v449, 0
          %v519 = vsel %vm475, %v450, 0
          %v522 = vsel %vm475, %v451, 0
          %524 = vmatprep.subr.bf16.mxu0 0
          %525 = vmatpush1.bf16.msra.mxu0 %v471
          %526 = vmatprep.subr.bf16.mxu0 0
          %527 = vmatpush1.bf16.msra.mxu0 %v472
          %528 = vmatprep.subr.bf16.mxu0 0
          %529 = vmatpush1.bf16.msra.mxu0 0
          %530 = vmatprep.subr.bf16.mxu0 0
          %531 = vmatpush1.bf16.msra.mxu0 0
          %532 = vmatprep.subr.bf16.mxu0 0
          %533 = vmatpush1.bf16.msra.mxu0 0
          %534 = vmatprep.subr.bf16.mxu0 0
          %535 = vmatpush1.bf16.msra.mxu0 0
          %536 = vmatprep.subr.bf16.mxu0 0
          %537 = vmatpush1.bf16.msra.mxu0 0
          %538 = vmatprep.subr.bf16.mxu0 0
          %539 = vmatpush1.bf16.msra.mxu0 0
          %540 = vmatprep.subr.bf16.mxu0 0
          %541 = vmatpush1.bf16.msra.mxu0 0
          %542 = vmatprep.subr.bf16.mxu0 0
          %543 = vmatpush1.bf16.msra.mxu0 0
          %544 = vmatprep.subr.bf16.mxu0 0
          %545 = vmatpush1.bf16.msra.mxu0 0
          %546 = vmatprep.subr.bf16.mxu0 0
          %547 = vmatpush1.bf16.msra.mxu0 0
          %548 = vmatprep.subr.bf16.mxu0 0
          %549 = vmatpush1.bf16.msra.mxu0 0
          %550 = vmatprep.subr.bf16.mxu0 0
          %551 = vmatpush1.bf16.msra.mxu0 0
          %552 = vmatprep.subr.bf16.mxu0 0
          %553 = vmatpush1.bf16.msra.mxu0 0
          %554 = vmatprep.subr.bf16.mxu0 0
          %555 = vmatpush1.bf16.msra.mxu0 0
          %556 = vmatprep.mubr.bf16.mxu0 0
          %557 = vmatmul.mubr.bf16.gmra.mrb[0].mxu0 %v477
          %v558 = vpop.f32.mrb[0].mxu0
          %v559 = vadd.f32 %v461, %v558
          %v560 = vpop.f32.mrb[0].mxu0
          %v561 = vpop.f32.mrb[0].mxu0
          %v562 = vadd.f32 %v461, %v561
          %v563 = vpop.f32.mrb[0].mxu0
          %564 = vmatprep.mubr.bf16.mxu0 0
          %565 = vmatmul.mubr.bf16.gmra.mrb[0].mxu0 %v480
          %v566 = vpop.f32.mrb[0].mxu0
          %v567 = vadd.f32 %v461, %v566
          %v568 = vpop.f32.mrb[0].mxu0
          %v569 = vpop.f32.mrb[0].mxu0
          %v570 = vadd.f32 %v461, %v569
          %v571 = vpop.f32.mrb[0].mxu0
          %572 = vmatprep.mubr.bf16.mxu0 0
          %573 = vmatmul.mubr.bf16.gmra.mrb[0].mxu0 %v483
          %v574 = vpop.f32.mrb[0].mxu0
          %v575 = vadd.f32 %v461, %v574
          %v576 = vpop.f32.mrb[0].mxu0
          %v577 = vpop.f32.mrb[0].mxu0
          %v578 = vadd.f32 %v461, %v577
          %v579 = vpop.f32.mrb[0].mxu0
          %580 = vmatprep.mubr.bf16.mxu0 0
          %581 = vmatmul.mubr.bf16.gmra.mrb[0].mxu0 %v486
          %v582 = vpop.f32.mrb[0].mxu0
          %v583 = vadd.f32 %v461, %v582
          %v584 = vpop.f32.mrb[0].mxu0
          %v585 = vpop.f32.mrb[0].mxu0
          %v586 = vadd.f32 %v461, %v585
          %v587 = vpop.f32.mrb[0].mxu0
          %588 = vmatprep.mubr.bf16.mxu0 0
          %589 = vmatmul.mubr.bf16.gmra.mrb[0].mxu0 %v489
          %v590 = vpop.f32.mrb[0].mxu0
          %v591 = vadd.f32 %v461, %v590
          %v592 = vpop.f32.mrb[0].mxu0
          %v593 = vpop.f32.mrb[0].mxu0
          %v594 = vadd.f32 %v461, %v593
          %v595 = vpop.f32.mrb[0].mxu0
          %596 = vmatprep.mubr.bf16.mxu0 0
          %597 = vmatmul.mubr.bf16.gmra.mrb[0].mxu0 %v492
          %v598 = vpop.f32.mrb[0].mxu0
          %v599 = vadd.f32 %v461, %v598
          %v600 = vpop.f32.mrb[0].mxu0
          %v601 = vpop.f32.mrb[0].mxu0
          %v602 = vadd.f32 %v461, %v601
          %v603 = vpop.f32.mrb[0].mxu0
          %604 = vmatprep.mubr.bf16.mxu0 0
          %605 = vmatmul.mubr.bf16.gmra.mrb[0].mxu0 %v495
          %v606 = vpop.f32.mrb[0].mxu0
          %v607 = vadd.f32 %v461, %v606
          %v608 = vpop.f32.mrb[0].mxu0
          %v609 = vpop.f32.mrb[0].mxu0
          %v610 = vadd.f32 %v461, %v609
          %v611 = vpop.f32.mrb[0].mxu0
          %612 = vmatprep.mubr.bf16.mxu0 0
          %613 = vmatmul.mubr.bf16.gmra.mrb[0].mxu0 %v498
          %v614 = vpop.f32.mrb[0].mxu0
          %v615 = vadd.f32 %v461, %v614
          %v616 = vpop.f32.mrb[0].mxu0
          %v617 = vpop.f32.mrb[0].mxu0
          %v618 = vadd.f32 %v461, %v617
          %v619 = vpop.f32.mrb[0].mxu0
          %620 = vmatprep.mubr.bf16.mxu0 0
          %621 = vmatmul.mubr.bf16.gmra.mrb[0].mxu0 %v501
          %v622 = vpop.f32.mrb[0].mxu0
          %v623 = vadd.f32 %v461, %v622
          %v624 = vpop.f32.mrb[0].mxu0
          %v625 = vpop.f32.mrb[0].mxu0
          %v626 = vadd.f32 %v461, %v625
          %v627 = vpop.f32.mrb[0].mxu0
          %628 = vmatprep.mubr.bf16.mxu0 0
          %629 = vmatmul.mubr.bf16.gmra.mrb[0].mxu0 %v504
          %v630 = vpop.f32.mrb[0].mxu0
          %v631 = vadd.f32 %v461, %v630
          %v632 = vpop.f32.mrb[0].mxu0
          %v633 = vpop.f32.mrb[0].mxu0
          %v634 = vadd.f32 %v461, %v633
          %v635 = vpop.f32.mrb[0].mxu0
          %636 = vmatprep.mubr.bf16.mxu0 0
          %637 = vmatmul.mubr.bf16.gmra.mrb[0].mxu0 %v507
          %v638 = vpop.f32.mrb[0].mxu0
          %v639 = vadd.f32 %v461, %v638
          %v640 = vpop.f32.mrb[0].mxu0
          %v641 = vpop.f32.mrb[0].mxu0
          %v642 = vadd.f32 %v461, %v641
          %v643 = vpop.f32.mrb[0].mxu0
          %644 = vmatprep.mubr.bf16.mxu0 0
          %645 = vmatmul.mubr.bf16.gmra.mrb[0].mxu0 %v510
          %v646 = vpop.f32.mrb[0].mxu0
          %v647 = vadd.f32 %v461, %v646
          %v648 = vpop.f32.mrb[0].mxu0
          %v649 = vpop.f32.mrb[0].mxu0
          %v650 = vadd.f32 %v461, %v649
          %v651 = vpop.f32.mrb[0].mxu0
          %652 = vmatprep.mubr.bf16.mxu0 0
          %653 = vmatmul.mubr.bf16.gmra.mrb[0].mxu0 %v513
          %v654 = vpop.f32.mrb[0].mxu0
          %v655 = vadd.f32 %v461, %v654
          %v656 = vpop.f32.mrb[0].mxu0
          %v657 = vpop.f32.mrb[0].mxu0
          %v658 = vadd.f32 %v461, %v657
          %v659 = vpop.f32.mrb[0].mxu0
          %660 = vmatprep.mubr.bf16.mxu0 0
          %661 = vmatmul.mubr.bf16.gmra.mrb[0].mxu0 %v516
          %v662 = vpop.f32.mrb[0].mxu0
          %v663 = vadd.f32 %v461, %v662
          %v664 = vpop.f32.mrb[0].mxu0
          %v665 = vpop.f32.mrb[0].mxu0
          %v666 = vadd.f32 %v461, %v665
          %v667 = vpop.f32.mrb[0].mxu0
          %668 = vmatprep.mubr.bf16.mxu0 0
          %669 = vmatmul.mubr.bf16.gmra.mrb[0].mxu0 %v519
          %v670 = vpop.f32.mrb[0].mxu0
          %v671 = vadd.f32 %v461, %v670
          %v672 = vpop.f32.mrb[0].mxu0
          %v673 = vpop.f32.mrb[0].mxu0
          %v674 = vadd.f32 %v461, %v673
          %v675 = vpop.f32.mrb[0].mxu0
          %676 = vmatprep.mubr.bf16.mxu0 0
          %677 = vmatmul.mubr.bf16.gmra.mrb[0].mxu0 %v522
          %v678 = vpop.f32.mrb[0].mxu0
          %v679 = vadd.f32 %v461, %v678
          %v680 = vpop.f32.mrb[0].mxu0
          %v681 = vpop.f32.mrb[0].mxu0
          %v682 = vadd.f32 %v461, %v681
          %v683 = vpop.f32.mrb[0].mxu0
          %684 = vdwg.mxu0
          %v685 = vpack.c.bf16 %v562, %v559
          %v686 = vpack.c.bf16 %v570, %v567
          %v687 = vpack.c.bf16 %v578, %v575
          %v688 = vpack.c.bf16 %v586, %v583
          %v689 = vpack.c.bf16 %v594, %v591
          %v690 = vpack.c.bf16 %v602, %v599
          %v691 = vpack.c.bf16 %v610, %v607
          %v692 = vpack.c.bf16 %v618, %v615
          %v693 = vpack.c.bf16 %v626, %v623
          %v694 = vpack.c.bf16 %v634, %v631
          %v695 = vpack.c.bf16 %v642, %v639
          %v696 = vpack.c.bf16 %v650, %v647
          %v697 = vpack.c.bf16 %v658, %v655
          %v698 = vpack.c.bf16 %v666, %v663
          %v699 = vpack.c.bf16 %v674, %v671
          %v700 = vpack.c.bf16 %v682, %v679
          %vm701 = vcmask 785408
          %702 = vst.msk [vmem:[#allocation2] sm:$0xff] %vm701, %v685
          %703 = vst.msk [vmem:[#allocation2 + $0x8] sm:$0xff] %vm701, %v686
          %704 = vst.msk [vmem:[#allocation2 + $0x10] sm:$0xff] %vm701, %v687
          %705 = vst.msk [vmem:[#allocation2 + $0x18] sm:$0xff] %vm701, %v688
          %706 = vst.msk [vmem:[#allocation2 + $0x20] sm:$0xff] %vm701, %v689
          %707 = vst.msk [vmem:[#allocation2 + $0x28] sm:$0xff] %vm701, %v690
          %708 = vst.msk [vmem:[#allocation2 + $0x30] sm:$0xff] %vm701, %v691
          %709 = vst.msk [vmem:[#allocation2 + $0x38] sm:$0xff] %vm701, %v692
          %710 = vst.msk [vmem:[#allocation2 + $0x40] sm:$0xff] %vm701, %v693
          %711 = vst.msk [vmem:[#allocation2 + $0x48] sm:$0xff] %vm701, %v694
          %712 = vst.msk [vmem:[#allocation2 + $0x50] sm:$0xff] %vm701, %v695
          %713 = vst.msk [vmem:[#allocation2 + $0x58] sm:$0xff] %vm701, %v696
          %714 = vst.msk [vmem:[#allocation2 + $0x60] sm:$0xff] %vm701, %v697
          %715 = vst.msk [vmem:[#allocation2 + $0x68] sm:$0xff] %vm701, %v698
          %716 = vst.msk [vmem:[#allocation2 + $0x70] sm:$0xff] %vm701, %v699
          %717 = vst.msk [vmem:[#allocation2 + $0x78] sm:$0xff] %vm701, %v700
        $region80: #{t2s_forward.5} parent=47 // pred_fallthru
          _
        %s718 = sld [smem:[#allocation4 + %s39]]
        %s719 = sld [smem:[#allocation5 + %s39]]
        %s720 = smul.u32 %s40, 128
        %v721 = vlaneseq
        %v722 = vshrl.u32 %v721, 7
        %v723 = vadd.s32 %v722, 8
        %v724 = vadd.s32 %v722, 16
        %v725 = vadd.s32 %v722, 24
        %v726 = vadd.s32 %v722, 32
        %v727 = vadd.s32 %v722, 40
        %v728 = vadd.s32 %v722, 48
        %v729 = vadd.s32 %v722, 56
        %v730 = vadd.s32 %v722, 64
        %v731 = vadd.s32 %v722, 72
        %v732 = vadd.s32 %v722, 80
        %v733 = vadd.s32 %v722, 88
        %v734 = vadd.s32 %v722, 96
        %v735 = vadd.s32 %v722, 104
        %v736 = vadd.s32 %v722, 112
        %v737 = vadd.s32 %v722, 120
        %v738 = vstv %s720
        %v739 = vadd.s32 %v738, %v722
        %v740 = vadd.s32 %v738, %v723
        %v741 = vadd.s32 %v738, %v724
        %v742 = vadd.s32 %v738, %v725
        %v743 = vadd.s32 %v738, %v726
        %v744 = vadd.s32 %v738, %v727
        %v745 = vadd.s32 %v738, %v728
        %v746 = vadd.s32 %v738, %v729
        %v747 = vadd.s32 %v738, %v730
        %v748 = vadd.s32 %v738, %v731
        %v749 = vadd.s32 %v738, %v732
        %v750 = vadd.s32 %v738, %v733
        %v751 = vadd.s32 %v738, %v734
        %v752 = vadd.s32 %v738, %v735
        %v753 = vadd.s32 %v738, %v736
        %v754 = vadd.s32 %v738, %v737
        %v755 = vlaneseq
        %v756 = vand.u32 %v755, 127
        %v757 = vadd.s32 %v756, 128
        %vm758 = vcmp.lt.s32.totalorder %v739, 136
        %vm759 = vcmp.lt.s32.totalorder %v740, 136
        %vm760 = vcmp.lt.s32.totalorder %v741, 136
        %vm761 = vcmp.lt.s32.totalorder %v742, 136
        %vm762 = vcmp.lt.s32.totalorder %v743, 136
        %vm763 = vcmp.lt.s32.totalorder %v744, 136
        %vm764 = vcmp.lt.s32.totalorder %v745, 136
        %vm765 = vcmp.lt.s32.totalorder %v746, 136
        %vm766 = vcmp.lt.s32.totalorder %v747, 136
        %vm767 = vcmp.lt.s32.totalorder %v748, 136
        %vm768 = vcmp.lt.s32.totalorder %v749, 136
        %vm769 = vcmp.lt.s32.totalorder %v750, 136
        %vm770 = vcmp.lt.s32.totalorder %v751, 136
        %vm771 = vcmp.lt.s32.totalorder %v752, 136
        %vm772 = vcmp.lt.s32.totalorder %v753, 136
        %vm773 = vcmp.lt.s32.totalorder %v754, 136
        %vm774 = vcmp.ge.s32.totalorder %v756, 136
        %vm775 = vcmp.ge.s32.totalorder %v757, 136
        %vm776 = vmand %vm758, %vm774
        %vm777 = vmand %vm758, %vm775
        %vm778 = vmand %vm759, %vm774
        %vm779 = vmand %vm759, %vm775
        %vm780 = vmand %vm760, %vm774
        %vm781 = vmand %vm760, %vm775
        %vm782 = vmand %vm761, %vm774
        %vm783 = vmand %vm761, %vm775
        %vm784 = vmand %vm762, %vm774
        %vm785 = vmand %vm762, %vm775
        %vm786 = vmand %vm763, %vm774
        %vm787 = vmand %vm763, %vm775
        %vm788 = vmand %vm764, %vm774
        %vm789 = vmand %vm764, %vm775
        %vm790 = vmand %vm765, %vm774
        %vm791 = vmand %vm765, %vm775
        %vm792 = vmand %vm766, %vm774
        %vm793 = vmand %vm766, %vm775
        %vm794 = vmand %vm767, %vm774
        %vm795 = vmand %vm767, %vm775
        %vm796 = vmand %vm768, %vm774
        %vm797 = vmand %vm768, %vm775
        %vm798 = vmand %vm769, %vm774
        %vm799 = vmand %vm769, %vm775
        %vm800 = vmand %vm770, %vm774
        %vm801 = vmand %vm770, %vm775
        %vm802 = vmand %vm771, %vm774
        %vm803 = vmand %vm771, %vm775
        %vm804 = vmand %vm772, %vm774
        %vm805 = vmand %vm772, %vm775
        %vm806 = vmand %vm773, %vm774
        %vm807 = vmand %vm773, %vm775
        %vm808 = vcmp.ge.s32.totalorder %v739, 136
        %vm809 = vcmp.ge.s32.totalorder %v740, 136
        %vm810 = vcmp.ge.s32.totalorder %v741, 136
        %vm811 = vcmp.ge.s32.totalorder %v742, 136
        %vm812 = vcmp.ge.s32.totalorder %v743, 136
        %vm813 = vcmp.ge.s32.totalorder %v744, 136
        %vm814 = vcmp.ge.s32.totalorder %v745, 136
        %vm815 = vcmp.ge.s32.totalorder %v746, 136
        %vm816 = vcmp.ge.s32.totalorder %v747, 136
        %vm817 = vcmp.ge.s32.totalorder %v748, 136
        %vm818 = vcmp.ge.s32.totalorder %v749, 136
        %vm819 = vcmp.ge.s32.totalorder %v750, 136
        %vm820 = vcmp.ge.s32.totalorder %v751, 136
        %vm821 = vcmp.ge.s32.totalorder %v752, 136
        %vm822 = vcmp.ge.s32.totalorder %v753, 136
        %vm823 = vcmp.ge.s32.totalorder %v754, 136
        %vm824 = vcmp.gt.s32.totalorder %v756, %v739
        %vm825 = vcmp.gt.s32.totalorder %v757, %v739
        %vm826 = vcmp.gt.s32.totalorder %v756, %v740
        %vm827 = vcmp.gt.s32.totalorder %v757, %v740
        %vm828 = vcmp.gt.s32.totalorder %v756, %v741
        %vm829 = vcmp.gt.s32.totalorder %v757, %v741
        %vm830 = vcmp.gt.s32.totalorder %v756, %v742
        %vm831 = vcmp.gt.s32.totalorder %v757, %v742
        %vm832 = vcmp.gt.s32.totalorder %v756, %v743
        %vm833 = vcmp.gt.s32.totalorder %v757, %v743
        %vm834 = vcmp.gt.s32.totalorder %v756, %v744
        %vm835 = vcmp.gt.s32.totalorder %v757, %v744
        %vm836 = vcmp.gt.s32.totalorder %v756, %v745
        %vm837 = vcmp.gt.s32.totalorder %v757, %v745
        %vm838 = vcmp.gt.s32.totalorder %v756, %v746
        %vm839 = vcmp.gt.s32.totalorder %v757, %v746
        %vm840 = vcmp.gt.s32.totalorder %v756, %v747
        %vm841 = vcmp.gt.s32.totalorder %v757, %v747
        %vm842 = vcmp.gt.s32.totalorder %v756, %v748
        %vm843 = vcmp.gt.s32.totalorder %v757, %v748
        %vm844 = vcmp.gt.s32.totalorder %v756, %v749
        %vm845 = vcmp.gt.s32.totalorder %v757, %v749
        %vm846 = vcmp.gt.s32.totalorder %v756, %v750
        %vm847 = vcmp.gt.s32.totalorder %v757, %v750
        %vm848 = vcmp.gt.s32.totalorder %v756, %v751
        %vm849 = vcmp.gt.s32.totalorder %v757, %v751
        %vm850 = vcmp.gt.s32.totalorder %v756, %v752
        %vm851 = vcmp.gt.s32.totalorder %v757, %v752
        %vm852 = vcmp.gt.s32.totalorder %v756, %v753
        %vm853 = vcmp.gt.s32.totalorder %v757, %v753
        %vm854 = vcmp.gt.s32.totalorder %v756, %v754
        %vm855 = vcmp.gt.s32.totalorder %v757, %v754
        %vm856 = vmand %vm808, %vm824
        %vm857 = vmand %vm808, %vm825
        %vm858 = vmand %vm809, %vm826
        %vm859 = vmand %vm809, %vm827
        %vm860 = vmand %vm810, %vm828
        %vm861 = vmand %vm810, %vm829
        %vm862 = vmand %vm811, %vm830
        %vm863 = vmand %vm811, %vm831
        %vm864 = vmand %vm812, %vm832
        %vm865 = vmand %vm812, %vm833
        %vm866 = vmand %vm813, %vm834
        %vm867 = vmand %vm813, %vm835
        %vm868 = vmand %vm814, %vm836
        %vm869 = vmand %vm814, %vm837
        %vm870 = vmand %vm815, %vm838
        %vm871 = vmand %vm815, %vm839
        %vm872 = vmand %vm816, %vm840
        %vm873 = vmand %vm816, %vm841
        %vm874 = vmand %vm817, %vm842
        %vm875 = vmand %vm817, %vm843
        %vm876 = vmand %vm818, %vm844
        %vm877 = vmand %vm818, %vm845
        %vm878 = vmand %vm819, %vm846
        %vm879 = vmand %vm819, %vm847
        %vm880 = vmand %vm820, %vm848
        %vm881 = vmand %vm820, %vm849
        %vm882 = vmand %vm821, %vm850
        %vm883 = vmand %vm821, %vm851
        %vm884 = vmand %vm822, %vm852
        %vm885 = vmand %vm822, %vm853
        %vm886 = vmand %vm823, %vm854
        %vm887 = vmand %vm823, %vm855
        %vm888 = vmor %vm776, %vm856
        %vm889 = vmor %vm777, %vm857
        %vm890 = vmor %vm778, %vm858
        %vm891 = vmor %vm779, %vm859
        %vm892 = vmor %vm780, %vm860
        %vm893 = vmor %vm781, %vm861
        %vm894 = vmor %vm782, %vm862
        %vm895 = vmor %vm783, %vm863
        %vm896 = vmor %vm784, %vm864
        %vm897 = vmor %vm785, %vm865
        %vm898 = vmor %vm786, %vm866
        %vm899 = vmor %vm787, %vm867
        %vm900 = vmor %vm788, %vm868
        %vm901 = vmor %vm789, %vm869
        %vm902 = vmor %vm790, %vm870
        %vm903 = vmor %vm791, %vm871
        %vm904 = vmor %vm792, %vm872
        %vm905 = vmor %vm793, %vm873
        %vm906 = vmor %vm794, %vm874
        %vm907 = vmor %vm795, %vm875
        %vm908 = vmor %vm796, %vm876
        %vm909 = vmor %vm797, %vm877
        %vm910 = vmor %vm798, %vm878
        %vm911 = vmor %vm799, %vm879
        %vm912 = vmor %vm800, %vm880
        %vm913 = vmor %vm801, %vm881
        %vm914 = vmor %vm802, %vm882
        %vm915 = vmor %vm803, %vm883
        %vm916 = vmor %vm804, %vm884
        %vm917 = vmor %vm805, %vm885
        %vm918 = vmor %vm806, %vm886
        %vm919 = vmor %vm807, %vm887
        %vm920 = vcmp.lt.s32.totalorder %v756, 136
        %vm921 = vcmp.lt.s32.totalorder %v757, 136
        %v922 = vstv %s718
        %vm923 = vcmp.ge.s32.totalorder %v756, %v922
        %vm924 = vcmp.ge.s32.totalorder %v757, %v922
        %vm925 = vmand %vm920, %vm923
        %vm926 = vmand %vm921, %vm924
        %v927 = vsub.s32 %v756, 136
        %v928 = vsub.s32 %v757, 136
        %v929 = vstv %s719
        %vm930 = vcmp.ge.s32.totalorder %v927, %v929
        %vm931 = vcmp.ge.s32.totalorder %v928, %v929
        %vm932 = vmand %vm774, %vm930
        %vm933 = vmand %vm775, %vm931
        %vm934 = vmor %vm925, %vm932
        %vm935 = vmor %vm926, %vm933
        %vm936 = vmor %vm888, %vm934
        %vm937 = vmor %vm889, %vm935
        %vm938 = vmor %vm890, %vm934
        %vm939 = vmor %vm891, %vm935
        %vm940 = vmor %vm892, %vm934
        %vm941 = vmor %vm893, %vm935
        %vm942 = vmor %vm894, %vm934
        %vm943 = vmor %vm895, %vm935
        %vm944 = vmor %vm896, %vm934
        %vm945 = vmor %vm897, %vm935
        %vm946 = vmor %vm898, %vm934
        %vm947 = vmor %vm899, %vm935
        %vm948 = vmor %vm900, %vm934
        %vm949 = vmor %vm901, %vm935
        %vm950 = vmor %vm902, %vm934
        %vm951 = vmor %vm903, %vm935
        %vm952 = vmor %vm904, %vm934
        %vm953 = vmor %vm905, %vm935
        %vm954 = vmor %vm906, %vm934
        %vm955 = vmor %vm907, %vm935
        %vm956 = vmor %vm908, %vm934
        %vm957 = vmor %vm909, %vm935
        %vm958 = vmor %vm910, %vm934
        %vm959 = vmor %vm911, %vm935
        %vm960 = vmor %vm912, %vm934
        %vm961 = vmor %vm913, %vm935
        %vm962 = vmor %vm914, %vm934
        %vm963 = vmor %vm915, %vm935
        %vm964 = vmor %vm916, %vm934
        %vm965 = vmor %vm917, %vm935
        %vm966 = vmor %vm918, %vm934
        %vm967 = vmor %vm919, %vm935
        %s968 = sshra.s32 %s720, 4
        %s969 = sand.u32 %s720, 15
        %s970 = smul.addr %s968, 8
        %s971 = scalar_lea.vmem [#allocation2], %s970
        %v972 = vld [vmem:[%s971] sm:$0xff]
        %v973 = vld [vmem:[%s971 + $0x8] sm:$0xff]
        %v974 = vld [vmem:[%s971 + $0x10] sm:$0xff]
        %v975 = vld [vmem:[%s971 + $0x18] sm:$0xff]
        %v976 = vld [vmem:[%s971 + $0x20] sm:$0xff]
        %v977 = vld [vmem:[%s971 + $0x28] sm:$0xff]
        %v978 = vld [vmem:[%s971 + $0x30] sm:$0xff]
        %v979 = vld [vmem:[%s971 + $0x38] sm:$0xff]
        %v980 = vld [vmem:[#allocation2] sm:$0xff]
        %v981 = vld [vmem:[#allocation2 + $0x8] sm:$0xff]
        %v982 = vld [vmem:[#allocation2 + $0x10] sm:$0xff]
        %v983 = vld [vmem:[#allocation2 + $0x18] sm:$0xff]
        %v984 = vld [vmem:[#allocation2 + $0x20] sm:$0xff]
        %v985 = vld [vmem:[#allocation2 + $0x28] sm:$0xff]
        %v986 = vld [vmem:[#allocation2 + $0x30] sm:$0xff]
        %v987 = vld [vmem:[#allocation2 + $0x38] sm:$0xff]
        %v988 = vld [vmem:[#allocation2 + $0x40] sm:$0xff]
        %v989 = vld [vmem:[#allocation2 + $0x48] sm:$0xff]
        %v990 = vld [vmem:[#allocation2 + $0x50] sm:$0xff]
        %v991 = vld [vmem:[#allocation2 + $0x58] sm:$0xff]
        %v992 = vld [vmem:[#allocation2 + $0x60] sm:$0xff]
        %v993 = vld [vmem:[#allocation2 + $0x68] sm:$0xff]
        %v994 = vld [vmem:[#allocation2 + $0x70] sm:$0xff]
        %v995 = vld [vmem:[#allocation2 + $0x78] sm:$0xff]
        %1012 = vrot.lane.b32.xlu0 %v980, 96
        %v1013 = vpop.permute.xlu0 %1012
        %1014 = vrot.lane.b32.xlu0 %v981, 96
        %v1015 = vpop.permute.xlu0 %1014
        %1016 = vrot.lane.b32.xlu0 %v982, 96
        %v1017 = vpop.permute.xlu0 %1016
        %1018 = vrot.lane.b32.xlu0 %v983, 96
        %v1019 = vpop.permute.xlu0 %1018
        %1020 = vrot.lane.b32.xlu0 %v984, 96
        %v1021 = vpop.permute.xlu0 %1020
        %1022 = vrot.lane.b32.xlu0 %v985, 96
        %v1023 = vpop.permute.xlu0 %1022
        %1024 = vrot.lane.b32.xlu0 %v986, 96
        %v1025 = vpop.permute.xlu0 %1024
        %1026 = vrot.lane.b32.xlu0 %v987, 96
        %v1027 = vpop.permute.xlu0 %1026
        %1028 = vrot.lane.b32.xlu0 %v988, 96
        %v1029 = vpop.permute.xlu0 %1028
        %1030 = vrot.lane.b32.xlu0 %v989, 96
        %v1031 = vpop.permute.xlu0 %1030
        %1032 = vrot.lane.b32.xlu0 %v990, 96
        %v1033 = vpop.permute.xlu0 %1032
        %1034 = vrot.lane.b32.xlu0 %v991, 96
        %v1035 = vpop.permute.xlu0 %1034
        %1036 = vrot.lane.b32.xlu0 %v992, 96
        %v1037 = vpop.permute.xlu0 %1036
        %1038 = vrot.lane.b32.xlu0 %v993, 96
        %v1039 = vpop.permute.xlu0 %1038
        %1040 = vrot.lane.b32.xlu0 %v994, 96
        %v1041 = vpop.permute.xlu0 %1040
        %1042 = vrot.lane.b32.xlu0 %v995, 96
        %v1043 = vpop.permute.xlu0 %1042
        %vm1044 = vcmask 130048
        %v1046 = vsel %vm1044, %v972, 0
        %v1049 = vsel %vm1044, %v973, 0
        %v1052 = vsel %vm1044, %v974, 0
        %v1055 = vsel %vm1044, %v975, 0
        %v1058 = vsel %vm1044, %v976, 0
        %v1061 = vsel %vm1044, %v977, 0
        %v1064 = vsel %vm1044, %v978, 0
        %v1067 = vsel %vm1044, %v979, 0
        %v1070 = vsel %vm1044, %v1013, 0
        %v1073 = vsel %vm1044, %v1015, 0
        %v1076 = vsel %vm1044, %v1017, 0
        %v1079 = vsel %vm1044, %v1019, 0
        %v1082 = vsel %vm1044, %v1021, 0
        %v1085 = vsel %vm1044, %v1023, 0
        %v1088 = vsel %vm1044, %v1025, 0
        %v1091 = vsel %vm1044, %v1027, 0
        %v1094 = vsel %vm1044, %v1029, 0
        %v1097 = vsel %vm1044, %v1031, 0
        %v1100 = vsel %vm1044, %v1033, 0
        %v1103 = vsel %vm1044, %v1035, 0
        %v1106 = vsel %vm1044, %v1037, 0
        %v1109 = vsel %vm1044, %v1039, 0
        %v1112 = vsel %vm1044, %v1041, 0
        %v1115 = vsel %vm1044, %v1043, 0
        %1117 = vmatprep.subr.bf16.mxu0 0
        %1118 = vmatpush1.bf16.xpose.msra.mxu0 %v1070
        %1119 = vmatprep.subr.bf16.mxu0 0
        %1120 = vmatpush1.bf16.xpose.msra.mxu0 %v1073
        %1121 = vmatprep.subr.bf16.mxu0 0
        %1122 = vmatpush1.bf16.xpose.msra.mxu0 %v1076
        %1123 = vmatprep.subr.bf16.mxu0 0
        %1124 = vmatpush1.bf16.xpose.msra.mxu0 %v1079
        %1125 = vmatprep.subr.bf16.mxu0 0
        %1126 = vmatpush1.bf16.xpose.msra.mxu0 %v1082
        %1127 = vmatprep.subr.bf16.mxu0 0
        %1128 = vmatpush1.bf16.xpose.msra.mxu0 %v1085
        %1129 = vmatprep.subr.bf16.mxu0 0
        %1130 = vmatpush1.bf16.xpose.msra.mxu0 %v1088
        %1131 = vmatprep.subr.bf16.mxu0 0
        %1132 = vmatpush1.bf16.xpose.msra.mxu0 %v1091
        %1133 = vmatprep.subr.bf16.mxu0 0
        %1134 = vmatpush1.bf16.xpose.msra.mxu0 %v1094
        %1135 = vmatprep.subr.bf16.mxu0 0
        %1136 = vmatpush1.bf16.xpose.msra.mxu0 %v1097
        %1137 = vmatprep.subr.bf16.mxu0 0
        %1138 = vmatpush1.bf16.xpose.msra.mxu0 %v1100
        %1139 = vmatprep.subr.bf16.mxu0 0
        %1140 = vmatpush1.bf16.xpose.msra.mxu0 %v1103
        %1141 = vmatprep.subr.bf16.mxu0 0
        %1142 = vmatpush1.bf16.xpose.msra.mxu0 %v1106
        %1143 = vmatprep.subr.bf16.mxu0 0
        %1144 = vmatpush1.bf16.xpose.msra.mxu0 %v1109
        %1145 = vmatprep.subr.bf16.mxu0 0
        %1146 = vmatpush1.bf16.xpose.msra.mxu0 %v1112
        %1147 = vmatprep.subr.bf16.mxu0 0
        %1148 = vmatpush1.bf16.xpose.msra.mxu0 %v1115
        %1149 = vmatprep.mubr.bf16.mxu0 0
        %1150 = vmatmul.mubr.bf16.gmra.mrb[0].mxu0 %v1046
        %v1151 = vpop.f32.mrb[0].mxu0
        %v1152 = vadd.f32 0.0, %v1151
        %v1153 = vpop.f32.mrb[0].mxu0
        %v1154 = vadd.f32 0.0, %v1153
        %v1155 = vpop.f32.mrb[0].mxu0
        %v1156 = vadd.f32 0.0, %v1155
        %v1157 = vpop.f32.mrb[0].mxu0
        %v1158 = vadd.f32 0.0, %v1157
        %1159 = vmatprep.mubr.bf16.mxu0 0
        %1160 = vmatmul.mubr.bf16.gmra.mrb[0].mxu0 %v1049
        %v1161 = vpop.f32.mrb[0].mxu0
        %v1162 = vadd.f32 0.0, %v1161
        %v1163 = vpop.f32.mrb[0].mxu0
        %v1164 = vadd.f32 0.0, %v1163
        %v1165 = vpop.f32.mrb[0].mxu0
        %v1166 = vadd.f32 0.0, %v1165
        %v1167 = vpop.f32.mrb[0].mxu0
        %v1168 = vadd.f32 0.0, %v1167
        %1169 = vmatprep.mubr.bf16.mxu0 0
        %1170 = vmatmul.mubr.bf16.gmra.mrb[0].mxu0 %v1052
        %v1171 = vpop.f32.mrb[0].mxu0
        %v1172 = vadd.f32 0.0, %v1171
        %v1173 = vpop.f32.mrb[0].mxu0
        %v1174 = vadd.f32 0.0, %v1173
        %v1175 = vpop.f32.mrb[0].mxu0
        %v1176 = vadd.f32 0.0, %v1175
        %v1177 = vpop.f32.mrb[0].mxu0
        %v1178 = vadd.f32 0.0, %v1177
        %1179 = vmatprep.mubr.bf16.mxu0 0
        %1180 = vmatmul.mubr.bf16.gmra.mrb[0].mxu0 %v1055
        %v1181 = vpop.f32.mrb[0].mxu0
        %v1182 = vadd.f32 0.0, %v1181
        %v1183 = vpop.f32.mrb[0].mxu0
        %v1184 = vadd.f32 0.0, %v1183
        %v1185 = vpop.f32.mrb[0].mxu0
        %v1186 = vadd.f32 0.0, %v1185
        %v1187 = vpop.f32.mrb[0].mxu0
        %v1188 = vadd.f32 0.0, %v1187
        %1189 = vmatprep.mubr.bf16.mxu0 0
        %1190 = vmatmul.mubr.bf16.gmra.mrb[0].mxu0 %v1058
        %v1191 = vpop.f32.mrb[0].mxu0
        %v1192 = vadd.f32 0.0, %v1191
        %v1193 = vpop.f32.mrb[0].mxu0
        %v1194 = vadd.f32 0.0, %v1193
        %v1195 = vpop.f32.mrb[0].mxu0
        %v1196 = vadd.f32 0.0, %v1195
        %v1197 = vpop.f32.mrb[0].mxu0
        %v1198 = vadd.f32 0.0, %v1197
        %1199 = vmatprep.mubr.bf16.mxu0 0
        %1200 = vmatmul.mubr.bf16.gmra.mrb[0].mxu0 %v1061
        %v1201 = vpop.f32.mrb[0].mxu0
        %v1202 = vadd.f32 0.0, %v1201
        %v1203 = vpop.f32.mrb[0].mxu0
        %v1204 = vadd.f32 0.0, %v1203
        %v1205 = vpop.f32.mrb[0].mxu0
        %v1206 = vadd.f32 0.0, %v1205
        %v1207 = vpop.f32.mrb[0].mxu0
        %v1208 = vadd.f32 0.0, %v1207
        %1209 = vmatprep.mubr.bf16.mxu0 0
        %1210 = vmatmul.mubr.bf16.gmra.mrb[0].mxu0 %v1064
        %v1211 = vpop.f32.mrb[0].mxu0
        %v1212 = vadd.f32 0.0, %v1211
        %v1213 = vpop.f32.mrb[0].mxu0
        %v1214 = vadd.f32 0.0, %v1213
        %v1215 = vpop.f32.mrb[0].mxu0
        %v1216 = vadd.f32 0.0, %v1215
        %v1217 = vpop.f32.mrb[0].mxu0
        %v1218 = vadd.f32 0.0, %v1217
        %1219 = vmatprep.mubr.bf16.mxu0 0
        %1220 = vmatmul.mubr.bf16.gmra.mrb[0].mxu0 %v1067
        %v1221 = vpop.f32.mrb[0].mxu0
        %v1222 = vadd.f32 0.0, %v1221
        %v1223 = vpop.f32.mrb[0].mxu0
        %v1224 = vadd.f32 0.0, %v1223
        %v1225 = vpop.f32.mrb[0].mxu0
        %v1226 = vadd.f32 0.0, %v1225
        %v1227 = vpop.f32.mrb[0].mxu0
        %v1228 = vadd.f32 0.0, %v1227
        %1229 = vdwg.mxu0
        %v1230 = vmul.f32 %v1152, 0.25
        %v1231 = vmul.f32 %v1154, 0.25
        %v1232 = vmul.f32 %v1156, 0.25
        %v1233 = vmul.f32 %v1158, 0.25
        %v1234 = vmul.f32 %v1162, 0.25
        %v1235 = vmul.f32 %v1164, 0.25
        %v1236 = vmul.f32 %v1166, 0.25
        %v1237 = vmul.f32 %v1168, 0.25
        %v1238 = vmul.f32 %v1172, 0.25
        %v1239 = vmul.f32 %v1174, 0.25
        %v1240 = vmul.f32 %v1176, 0.25
        %v1241 = vmul.f32 %v1178, 0.25
        %v1242 = vmul.f32 %v1182, 0.25
        %v1243 = vmul.f32 %v1184, 0.25
        %v1244 = vmul.f32 %v1186, 0.25
        %v1245 = vmul.f32 %v1188, 0.25
        %v1246 = vmul.f32 %v1192, 0.25
        %v1247 = vmul.f32 %v1194, 0.25
        %v1248 = vmul.f32 %v1196, 0.25
        %v1249 = vmul.f32 %v1198, 0.25
        %v1250 = vmul.f32 %v1202, 0.25
        %v1251 = vmul.f32 %v1204, 0.25
        %v1252 = vmul.f32 %v1206, 0.25
        %v1253 = vmul.f32 %v1208, 0.25
        %v1254 = vmul.f32 %v1212, 0.25
        %v1255 = vmul.f32 %v1214, 0.25
        %v1256 = vmul.f32 %v1216, 0.25
        %v1257 = vmul.f32 %v1218, 0.25
        %v1258 = vmul.f32 %v1222, 0.25
        %v1259 = vmul.f32 %v1224, 0.25
        %v1260 = vmul.f32 %v1226, 0.25
        %v1261 = vmul.f32 %v1228, 0.25
        %v1262 = vsel %vm936, -1e+30, %v1230
        %v1263 = vsel %vm937, -1e+30, %v1231
        %v1264 = vsel %vm938, -1e+30, %v1232
        %v1265 = vsel %vm939, -1e+30, %v1233
        %v1266 = vsel %vm940, -1e+30, %v1234
        %v1267 = vsel %vm941, -1e+30, %v1235
        %v1268 = vsel %vm942, -1e+30, %v1236
        %v1269 = vsel %vm943, -1e+30, %v1237
        %v1270 = vsel %vm944, -1e+30, %v1238
        %v1271 = vsel %vm945, -1e+30, %v1239
        %v1272 = vsel %vm946, -1e+30, %v1240
        %v1273 = vsel %vm947, -1e+30, %v1241
        %v1274 = vsel %vm948, -1e+30, %v1242
        %v1275 = vsel %vm949, -1e+30, %v1243
        %v1276 = vsel %vm950, -1e+30, %v1244
        %v1277 = vsel %vm951, -1e+30, %v1245
        %v1278 = vsel %vm952, -1e+30, %v1246
        %v1279 = vsel %vm953, -1e+30, %v1247
        %v1280 = vsel %vm954, -1e+30, %v1248
        %v1281 = vsel %vm955, -1e+30, %v1249
        %v1282 = vsel %vm956, -1e+30, %v1250
        %v1283 = vsel %vm957, -1e+30, %v1251
        %v1284 = vsel %vm958, -1e+30, %v1252
        %v1285 = vsel %vm959, -1e+30, %v1253
        %v1286 = vsel %vm960, -1e+30, %v1254
        %v1287 = vsel %vm961, -1e+30, %v1255
        %v1288 = vsel %vm962, -1e+30, %v1256
        %v1289 = vsel %vm963, -1e+30, %v1257
        %v1290 = vsel %vm964, -1e+30, %v1258
        %v1291 = vsel %vm965, -1e+30, %v1259
        %v1292 = vsel %vm966, -1e+30, %v1260
        %v1293 = vsel %vm967, -1e+30, %v1261
        %v1294 = vmax.f32 %v1262, %v1263
        %1295 = vmax.xlane.f32.xlu0 %v1294
        %v1296 = vpop.xlane.xlu0 %1295
        %v1297 = vmax.f32 %v1264, %v1265
        %1298 = vmax.xlane.f32.xlu0 %v1297
        %v1299 = vpop.xlane.xlu0 %1298
        %v1300 = vmax.f32 %v1266, %v1267
        %1301 = vmax.xlane.f32.xlu0 %v1300
        %v1302 = vpop.xlane.xlu0 %1301
        %v1303 = vmax.f32 %v1268, %v1269
        %1304 = vmax.xlane.f32.xlu0 %v1303
        %v1305 = vpop.xlane.xlu0 %1304
        %v1306 = vmax.f32 %v1270, %v1271
        %1307 = vmax.xlane.f32.xlu0 %v1306
        %v1308 = vpop.xlane.xlu0 %1307
        %v1309 = vmax.f32 %v1272, %v1273
        %1310 = vmax.xlane.f32.xlu0 %v1309
        %v1311 = vpop.xlane.xlu0 %1310
        %v1312 = vmax.f32 %v1274, %v1275
        %1313 = vmax.xlane.f32.xlu0 %v1312
        %v1314 = vpop.xlane.xlu0 %1313
        %v1315 = vmax.f32 %v1276, %v1277
        %1316 = vmax.xlane.f32.xlu0 %v1315
        %v1317 = vpop.xlane.xlu0 %1316
        %v1318 = vmax.f32 %v1278, %v1279
        %1319 = vmax.xlane.f32.xlu0 %v1318
        %v1320 = vpop.xlane.xlu0 %1319
        %v1321 = vmax.f32 %v1280, %v1281
        %1322 = vmax.xlane.f32.xlu0 %v1321
        %v1323 = vpop.xlane.xlu0 %1322
        %v1324 = vmax.f32 %v1282, %v1283
        %1325 = vmax.xlane.f32.xlu0 %v1324
        %v1326 = vpop.xlane.xlu0 %1325
        %v1327 = vmax.f32 %v1284, %v1285
        %1328 = vmax.xlane.f32.xlu0 %v1327
        %v1329 = vpop.xlane.xlu0 %1328
        %v1330 = vmax.f32 %v1286, %v1287
        %1331 = vmax.xlane.f32.xlu0 %v1330
        %v1332 = vpop.xlane.xlu0 %1331
        %v1333 = vmax.f32 %v1288, %v1289
        %1334 = vmax.xlane.f32.xlu0 %v1333
        %v1335 = vpop.xlane.xlu0 %1334
        %v1336 = vmax.f32 %v1290, %v1291
        %1337 = vmax.xlane.f32.xlu0 %v1336
        %v1338 = vpop.xlane.xlu0 %1337
        %v1339 = vmax.f32 %v1292, %v1293
        %1340 = vmax.xlane.f32.xlu0 %v1339
        %v1341 = vpop.xlane.xlu0 %1340
        %v1342 = vsub.f32 %v1262, %v1296
        %v1343 = vsub.f32 %v1263, %v1296
        %v1344 = vsub.f32 %v1264, %v1299
        %v1345 = vsub.f32 %v1265, %v1299
        %v1346 = vsub.f32 %v1266, %v1302
        %v1347 = vsub.f32 %v1267, %v1302
        %v1348 = vsub.f32 %v1268, %v1305
        %v1349 = vsub.f32 %v1269, %v1305
        %v1350 = vsub.f32 %v1270, %v1308
        %v1351 = vsub.f32 %v1271, %v1308
        %v1352 = vsub.f32 %v1272, %v1311
        %v1353 = vsub.f32 %v1273, %v1311
        %v1354 = vsub.f32 %v1274, %v1314
        %v1355 = vsub.f32 %v1275, %v1314
        %v1356 = vsub.f32 %v1276, %v1317
        %v1357 = vsub.f32 %v1277, %v1317
        %v1358 = vsub.f32 %v1278, %v1320
        %v1359 = vsub.f32 %v1279, %v1320
        %v1360 = vsub.f32 %v1280, %v1323
        %v1361 = vsub.f32 %v1281, %v1323
        %v1362 = vsub.f32 %v1282, %v1326
        %v1363 = vsub.f32 %v1283, %v1326
        %v1364 = vsub.f32 %v1284, %v1329
        %v1365 = vsub.f32 %v1285, %v1329
        %v1366 = vsub.f32 %v1286, %v1332
        %v1367 = vsub.f32 %v1287, %v1332
        %v1368 = vsub.f32 %v1288, %v1335
        %v1369 = vsub.f32 %v1289, %v1335
        %v1370 = vsub.f32 %v1290, %v1338
        %v1371 = vsub.f32 %v1291, %v1338
        %v1372 = vsub.f32 %v1292, %v1341
        %v1373 = vsub.f32 %v1293, %v1341
        %v1374 = vmul.f32 %v1342, 1.442695
        %v1375 = vpow.pop %v1374
        %v1376 = vmul.f32 %v1343, 1.442695
        %v1377 = vpow.pop %v1376
        %v1378 = vmul.f32 %v1344, 1.442695
        %v1379 = vpow.pop %v1378
        %v1380 = vmul.f32 %v1345, 1.442695
        %v1381 = vpow.pop %v1380
        %v1382 = vmul.f32 %v1346, 1.442695
        %v1383 = vpow.pop %v1382
        %v1384 = vmul.f32 %v1347, 1.442695
        %v1385 = vpow.pop %v1384
        %v1386 = vmul.f32 %v1348, 1.442695
        %v1387 = vpow.pop %v1386
        %v1388 = vmul.f32 %v1349, 1.442695
        %v1389 = vpow.pop %v1388
        %v1390 = vmul.f32 %v1350, 1.442695
        %v1391 = vpow.pop %v1390
        %v1392 = vmul.f32 %v1351, 1.442695
        %v1393 = vpow.pop %v1392
        %v1394 = vmul.f32 %v1352, 1.442695
        %v1395 = vpow.pop %v1394
        %v1396 = vmul.f32 %v1353, 1.442695
        %v1397 = vpow.pop %v1396
        %v1398 = vmul.f32 %v1354, 1.442695
        %v1399 = vpow.pop %v1398
        %v1400 = vmul.f32 %v1355, 1.442695
        %v1401 = vpow.pop %v1400
        %v1402 = vmul.f32 %v1356, 1.442695
        %v1403 = vpow.pop %v1402
        %v1404 = vmul.f32 %v1357, 1.442695
        %v1405 = vpow.pop %v1404
        %v1406 = vmul.f32 %v1358, 1.442695
        %v1407 = vpow.pop %v1406
        %v1408 = vmul.f32 %v1359, 1.442695
        %v1409 = vpow.pop %v1408
        %v1410 = vmul.f32 %v1360, 1.442695
        %v1411 = vpow.pop %v1410
        %v1412 = vmul.f32 %v1361, 1.442695
        %v1413 = vpow.pop %v1412
        %v1414 = vmul.f32 %v1362, 1.442695
        %v1415 = vpow.pop %v1414
        %v1416 = vmul.f32 %v1363, 1.442695
        %v1417 = vpow.pop %v1416
        %v1418 = vmul.f32 %v1364, 1.442695
        %v1419 = vpow.pop %v1418
        %v1420 = vmul.f32 %v1365, 1.442695
        %v1421 = vpow.pop %v1420
        %v1422 = vmul.f32 %v1366, 1.442695
        %v1423 = vpow.pop %v1422
        %v1424 = vmul.f32 %v1367, 1.442695
        %v1425 = vpow.pop %v1424
        %v1426 = vmul.f32 %v1368, 1.442695
        %v1427 = vpow.pop %v1426
        %v1428 = vmul.f32 %v1369, 1.442695
        %v1429 = vpow.pop %v1428
        %v1430 = vmul.f32 %v1370, 1.442695
        %v1431 = vpow.pop %v1430
        %v1432 = vmul.f32 %v1371, 1.442695
        %v1433 = vpow.pop %v1432
        %v1434 = vmul.f32 %v1372, 1.442695
        %v1435 = vpow.pop %v1434
        %v1436 = vmul.f32 %v1373, 1.442695
        %v1437 = vpow.pop %v1436
        %v1438 = vadd.f32 %v1375, %v1377
        %1439 = vadd.xlane.f32.xlu0 %v1438
        %v1440 = vpop.xlane.xlu0 %1439
        %v1441 = vadd.f32 %v1379, %v1381
        %1442 = vadd.xlane.f32.xlu0 %v1441
        %v1443 = vpop.xlane.xlu0 %1442
        %v1444 = vadd.f32 %v1383, %v1385
        %1445 = vadd.xlane.f32.xlu0 %v1444
        %v1446 = vpop.xlane.xlu0 %1445
        %v1447 = vadd.f32 %v1387, %v1389
        %1448 = vadd.xlane.f32.xlu0 %v1447
        %v1449 = vpop.xlane.xlu0 %1448
        %v1450 = vadd.f32 %v1391, %v1393
        %1451 = vadd.xlane.f32.xlu0 %v1450
        %v1452 = vpop.xlane.xlu0 %1451
        %v1453 = vadd.f32 %v1395, %v1397
        %1454 = vadd.xlane.f32.xlu0 %v1453
        %v1455 = vpop.xlane.xlu0 %1454
        %v1456 = vadd.f32 %v1399, %v1401
        %1457 = vadd.xlane.f32.xlu0 %v1456
        %v1458 = vpop.xlane.xlu0 %1457
        %v1459 = vadd.f32 %v1403, %v1405
        %1460 = vadd.xlane.f32.xlu0 %v1459
        %v1461 = vpop.xlane.xlu0 %1460
        %v1462 = vadd.f32 %v1407, %v1409
        %1463 = vadd.xlane.f32.xlu0 %v1462
        %v1464 = vpop.xlane.xlu0 %1463
        %v1465 = vadd.f32 %v1411, %v1413
        %1466 = vadd.xlane.f32.xlu0 %v1465
        %v1467 = vpop.xlane.xlu0 %1466
        %v1468 = vadd.f32 %v1415, %v1417
        %1469 = vadd.xlane.f32.xlu0 %v1468
        %v1470 = vpop.xlane.xlu0 %1469
        %v1471 = vadd.f32 %v1419, %v1421
        %1472 = vadd.xlane.f32.xlu0 %v1471
        %v1473 = vpop.xlane.xlu0 %1472
        %v1474 = vadd.f32 %v1423, %v1425
        %1475 = vadd.xlane.f32.xlu0 %v1474
        %v1476 = vpop.xlane.xlu0 %1475
        %v1477 = vadd.f32 %v1427, %v1429
        %1478 = vadd.xlane.f32.xlu0 %v1477
        %v1479 = vpop.xlane.xlu0 %1478
        %v1480 = vadd.f32 %v1431, %v1433
        %1481 = vadd.xlane.f32.xlu0 %v1480
        %v1482 = vpop.xlane.xlu0 %1481
        %v1483 = vadd.f32 %v1435, %v1437
        %1484 = vadd.xlane.f32.xlu0 %v1483
        %v1485 = vpop.xlane.xlu0 %1484
        %v1486 = vrcp.pop %v1440
        %v1487 = vrcp.pop %v1443
        %v1488 = vrcp.pop %v1446
        %v1489 = vrcp.pop %v1449
        %v1490 = vrcp.pop %v1452
        %v1491 = vrcp.pop %v1455
        %v1492 = vrcp.pop %v1458
        %v1493 = vrcp.pop %v1461
        %v1494 = vrcp.pop %v1464
        %v1495 = vrcp.pop %v1467
        %v1496 = vrcp.pop %v1470
        %v1497 = vrcp.pop %v1473
        %v1498 = vrcp.pop %v1476
        %v1499 = vrcp.pop %v1479
        %v1500 = vrcp.pop %v1482
        %v1501 = vrcp.pop %v1485
        %v1502 = vmul.f32 %v1375, %v1486
        %v1503 = vmul.f32 %v1377, %v1486
        %v1504 = vmul.f32 %v1379, %v1487
        %v1505 = vmul.f32 %v1381, %v1487
        %v1506 = vmul.f32 %v1383, %v1488
        %v1507 = vmul.f32 %v1385, %v1488
        %v1508 = vmul.f32 %v1387, %v1489
        %v1509 = vmul.f32 %v1389, %v1489
        %v1510 = vmul.f32 %v1391, %v1490
        %v1511 = vmul.f32 %v1393, %v1490
        %v1512 = vmul.f32 %v1395, %v1491
        %v1513 = vmul.f32 %v1397, %v1491
        %v1514 = vmul.f32 %v1399, %v1492
        %v1515 = vmul.f32 %v1401, %v1492
        %v1516 = vmul.f32 %v1403, %v1493
        %v1517 = vmul.f32 %v1405, %v1493
        %v1518 = vmul.f32 %v1407, %v1494
        %v1519 = vmul.f32 %v1409, %v1494
        %v1520 = vmul.f32 %v1411, %v1495
        %v1521 = vmul.f32 %v1413, %v1495
        %v1522 = vmul.f32 %v1415, %v1496
        %v1523 = vmul.f32 %v1417, %v1496
        %v1524 = vmul.f32 %v1419, %v1497
        %v1525 = vmul.f32 %v1421, %v1497
        %v1526 = vmul.f32 %v1423, %v1498
        %v1527 = vmul.f32 %v1425, %v1498
        %v1528 = vmul.f32 %v1427, %v1499
        %v1529 = vmul.f32 %v1429, %v1499
        %v1530 = vmul.f32 %v1431, %v1500
        %v1531 = vmul.f32 %v1433, %v1500
        %v1532 = vmul.f32 %v1435, %v1501
        %v1533 = vmul.f32 %v1437, %v1501
        %v1534 = vpack.c.bf16 %v1504, %v1502
        %v1535 = vpack.c.bf16 %v1505, %v1503
        %v1536 = vpack.c.bf16 %v1508, %v1506
        %v1537 = vpack.c.bf16 %v1509, %v1507
        %v1538 = vpack.c.bf16 %v1512, %v1510
        %v1539 = vpack.c.bf16 %v1513, %v1511
        %v1540 = vpack.c.bf16 %v1516, %v1514
        %v1541 = vpack.c.bf16 %v1517, %v1515
        %v1542 = vpack.c.bf16 %v1520, %v1518
        %v1543 = vpack.c.bf16 %v1521, %v1519
        %v1544 = vpack.c.bf16 %v1524, %v1522
        %v1545 = vpack.c.bf16 %v1525, %v1523
        %v1546 = vpack.c.bf16 %v1528, %v1526
        %v1547 = vpack.c.bf16 %v1529, %v1527
        %v1548 = vpack.c.bf16 %v1532, %v1530
        %v1549 = vpack.c.bf16 %v1533, %v1531
        %1550 = vrot.lane.b32.xlu0 %v980, 64
        %v1551 = vpop.permute.xlu0 %1550
        %1552 = vrot.lane.b32.xlu0 %v981, 64
        %v1553 = vpop.permute.xlu0 %1552
        %1554 = vrot.lane.b32.xlu0 %v982, 64
        %v1555 = vpop.permute.xlu0 %1554
        %1556 = vrot.lane.b32.xlu0 %v983, 64
        %v1557 = vpop.permute.xlu0 %1556
        %1558 = vrot.lane.b32.xlu0 %v984, 64
        %v1559 = vpop.permute.xlu0 %1558
        %1560 = vrot.lane.b32.xlu0 %v985, 64
        %v1561 = vpop.permute.xlu0 %1560
        %1562 = vrot.lane.b32.xlu0 %v986, 64
        %v1563 = vpop.permute.xlu0 %1562
        %1564 = vrot.lane.b32.xlu0 %v987, 64
        %v1565 = vpop.permute.xlu0 %1564
        %1566 = vrot.lane.b32.xlu0 %v988, 64
        %v1567 = vpop.permute.xlu0 %1566
        %1568 = vrot.lane.b32.xlu0 %v989, 64
        %v1569 = vpop.permute.xlu0 %1568
        %1570 = vrot.lane.b32.xlu0 %v990, 64
        %v1571 = vpop.permute.xlu0 %1570
        %1572 = vrot.lane.b32.xlu0 %v991, 64
        %v1573 = vpop.permute.xlu0 %1572
        %1574 = vrot.lane.b32.xlu0 %v992, 64
        %v1575 = vpop.permute.xlu0 %1574
        %1576 = vrot.lane.b32.xlu0 %v993, 64
        %v1577 = vpop.permute.xlu0 %1576
        %1578 = vrot.lane.b32.xlu0 %v994, 64
        %v1579 = vpop.permute.xlu0 %1578
        %1580 = vrot.lane.b32.xlu0 %v995, 64
        %v1581 = vpop.permute.xlu0 %1580
        %1598 = vmatprep.subr.bf16.mxu0 0
        %1599 = vmatpush1.bf16.msra.mxu0 %v1551
        %1600 = vmatprep.subr.bf16.mxu0 0
        %1601 = vmatpush1.bf16.msra.mxu0 %v1553
        %1602 = vmatprep.subr.bf16.mxu0 0
        %1603 = vmatpush1.bf16.msra.mxu0 %v1555
        %1604 = vmatprep.subr.bf16.mxu0 0
        %1605 = vmatpush1.bf16.msra.mxu0 %v1557
        %1606 = vmatprep.subr.bf16.mxu0 0
        %1607 = vmatpush1.bf16.msra.mxu0 %v1559
        %1608 = vmatprep.subr.bf16.mxu0 0
        %1609 = vmatpush1.bf16.msra.mxu0 %v1561
        %1610 = vmatprep.subr.bf16.mxu0 0
        %1611 = vmatpush1.bf16.msra.mxu0 %v1563
        %1612 = vmatprep.subr.bf16.mxu0 0
        %1613 = vmatpush1.bf16.msra.mxu0 %v1565
        %1614 = vmatprep.subr.bf16.mxu0 0
        %1615 = vmatpush1.bf16.msra.mxu0 %v1567
        %1616 = vmatprep.subr.bf16.mxu0 0
        %1617 = vmatpush1.bf16.msra.mxu0 %v1569
        %1618 = vmatprep.subr.bf16.mxu0 0
        %1619 = vmatpush1.bf16.msra.mxu0 %v1571
        %1620 = vmatprep.subr.bf16.mxu0 0
        %1621 = vmatpush1.bf16.msra.mxu0 %v1573
        %1622 = vmatprep.subr.bf16.mxu0 0
        %1623 = vmatpush1.bf16.msra.mxu0 %v1575
        %1624 = vmatprep.subr.bf16.mxu0 0
        %1625 = vmatpush1.bf16.msra.mxu0 %v1577
        %1626 = vmatprep.subr.bf16.mxu0 0
        %1627 = vmatpush1.bf16.msra.mxu0 %v1579
        %1628 = vmatprep.subr.bf16.mxu0 0
        %1629 = vmatpush1.bf16.msra.mxu0 %v1581
        %1630 = vmatprep.mubr.bf16.mxu0 %v1535
        %1631 = vmatmul.mubr.bf16.gmra.mrb[0].mxu0 %v1534
        %v1632 = vpop.f32.mrb[0].mxu0
        %v1633 = vadd.f32 0.0, %v1632
        %v1634 = vpop.f32.mrb[0].mxu0
        %v1635 = vpop.f32.mrb[0].mxu0
        %v1636 = vadd.f32 0.0, %v1635
        %v1637 = vpop.f32.mrb[0].mxu0
        %1638 = vmatprep.mubr.bf16.mxu0 %v1537
        %1639 = vmatmul.mubr.bf16.gmra.mrb[0].mxu0 %v1536
        %v1640 = vpop.f32.mrb[0].mxu0
        %v1641 = vadd.f32 0.0, %v1640
        %v1642 = vpop.f32.mrb[0].mxu0
        %v1643 = vpop.f32.mrb[0].mxu0
        %v1644 = vadd.f32 0.0, %v1643
        %v1645 = vpop.f32.mrb[0].mxu0
        %1646 = vmatprep.mubr.bf16.mxu0 %v1539
        %1647 = vmatmul.mubr.bf16.gmra.mrb[0].mxu0 %v1538
        %v1648 = vpop.f32.mrb[0].mxu0
        %v1649 = vadd.f32 0.0, %v1648
        %v1650 = vpop.f32.mrb[0].mxu0
        %v1651 = vpop.f32.mrb[0].mxu0
        %v1652 = vadd.f32 0.0, %v1651
        %v1653 = vpop.f32.mrb[0].mxu0
        %1654 = vmatprep.mubr.bf16.mxu0 %v1541
        %1655 = vmatmul.mubr.bf16.gmra.mrb[0].mxu0 %v1540
        %v1656 = vpop.f32.mrb[0].mxu0
        %v1657 = vadd.f32 0.0, %v1656
        %v1658 = vpop.f32.mrb[0].mxu0
        %v1659 = vpop.f32.mrb[0].mxu0
        %v1660 = vadd.f32 0.0, %v1659
        %v1661 = vpop.f32.mrb[0].mxu0
        %1662 = vmatprep.mubr.bf16.mxu0 %v1543
        %1663 = vmatmul.mubr.bf16.gmra.mrb[0].mxu0 %v1542
        %v1664 = vpop.f32.mrb[0].mxu0
        %v1665 = vadd.f32 0.0, %v1664
        %v1666 = vpop.f32.mrb[0].mxu0
        %v1667 = vpop.f32.mrb[0].mxu0
        %v1668 = vadd.f32 0.0, %v1667
        %v1669 = vpop.f32.mrb[0].mxu0
        %1670 = vmatprep.mubr.bf16.mxu0 %v1545
        %1671 = vmatmul.mubr.bf16.gmra.mrb[0].mxu0 %v1544
        %v1672 = vpop.f32.mrb[0].mxu0
        %v1673 = vadd.f32 0.0, %v1672
        %v1674 = vpop.f32.mrb[0].mxu0
        %v1675 = vpop.f32.mrb[0].mxu0
        %v1676 = vadd.f32 0.0, %v1675
        %v1677 = vpop.f32.mrb[0].mxu0
        %1678 = vmatprep.mubr.bf16.mxu0 %v1547
        %1679 = vmatmul.mubr.bf16.gmra.mrb[0].mxu0 %v1546
        %v1680 = vpop.f32.mrb[0].mxu0
        %v1681 = vadd.f32 0.0, %v1680
        %v1682 = vpop.f32.mrb[0].mxu0
        %v1683 = vpop.f32.mrb[0].mxu0
        %v1684 = vadd.f32 0.0, %v1683
        %v1685 = vpop.f32.mrb[0].mxu0
        %1686 = vmatprep.mubr.bf16.mxu0 %v1549
        %1687 = vmatmul.mubr.bf16.gmra.mrb[0].mxu0 %v1548
        %v1688 = vpop.f32.mrb[0].mxu0
        %v1689 = vadd.f32 0.0, %v1688
        %v1690 = vpop.f32.mrb[0].mxu0
        %v1691 = vpop.f32.mrb[0].mxu0
        %v1692 = vadd.f32 0.0, %v1691
        %v1693 = vpop.f32.mrb[0].mxu0
        %1694 = vdwg.mxu0
        %v1695 = vpack.c.bf16 %v1636, %v1633
        %v1696 = vpack.c.bf16 %v1644, %v1641
        %v1697 = vpack.c.bf16 %v1652, %v1649
        %v1698 = vpack.c.bf16 %v1660, %v1657
        %v1699 = vpack.c.bf16 %v1668, %v1665
        %v1700 = vpack.c.bf16 %v1676, %v1673
        %v1701 = vpack.c.bf16 %v1684, %v1681
        %v1702 = vpack.c.bf16 %v1692, %v1689
        %v1703 = vld [vmem:[#allocation12] sm:$0xf]
        %v1704 = vld [vmem:[#allocation12 + $0x4] sm:$0xf]
        %1713 = vrot.lane.b32.xlu0 %v972, 112
        %v1714 = vpop.permute.xlu0 %1713
        %1715 = vrot.lane.b32.xlu0 %v973, 112
        %v1716 = vpop.permute.xlu0 %1715
        %1717 = vrot.lane.b32.xlu0 %v974, 112
        %v1718 = vpop.permute.xlu0 %1717
        %1719 = vrot.lane.b32.xlu0 %v975, 112
        %v1720 = vpop.permute.xlu0 %1719
        %1721 = vrot.lane.b32.xlu0 %v976, 112
        %v1722 = vpop.permute.xlu0 %1721
        %1723 = vrot.lane.b32.xlu0 %v977, 112
        %v1724 = vpop.permute.xlu0 %1723
        %1725 = vrot.lane.b32.xlu0 %v978, 112
        %v1726 = vpop.permute.xlu0 %1725
        %1727 = vrot.lane.b32.xlu0 %v979, 112
        %v1728 = vpop.permute.xlu0 %1727
        %1729 = vrot.lane.b32.xlu0 %v980, 80
        %v1730 = vpop.permute.xlu0 %1729
        %1731 = vrot.lane.b32.xlu0 %v981, 80
        %v1732 = vpop.permute.xlu0 %1731
        %1733 = vrot.lane.b32.xlu0 %v982, 80
        %v1734 = vpop.permute.xlu0 %1733
        %1735 = vrot.lane.b32.xlu0 %v983, 80
        %v1736 = vpop.permute.xlu0 %1735
        %1737 = vrot.lane.b32.xlu0 %v984, 80
        %v1738 = vpop.permute.xlu0 %1737
        %1739 = vrot.lane.b32.xlu0 %v985, 80
        %v1740 = vpop.permute.xlu0 %1739
        %1741 = vrot.lane.b32.xlu0 %v986, 80
        %v1742 = vpop.permute.xlu0 %1741
        %1743 = vrot.lane.b32.xlu0 %v987, 80
        %v1744 = vpop.permute.xlu0 %1743
        %1745 = vrot.lane.b32.xlu0 %v988, 80
        %v1746 = vpop.permute.xlu0 %1745
        %1747 = vrot.lane.b32.xlu0 %v989, 80
        %v1748 = vpop.permute.xlu0 %1747
        %1749 = vrot.lane.b32.xlu0 %v990, 80
        %v1750 = vpop.permute.xlu0 %1749
        %1751 = vrot.lane.b32.xlu0 %v991, 80
        %v1752 = vpop.permute.xlu0 %1751
        %1753 = vrot.lane.b32.xlu0 %v992, 80
        %v1754 = vpop.permute.xlu0 %1753
        %1755 = vrot.lane.b32.xlu0 %v993, 80
        %v1756 = vpop.permute.xlu0 %1755
        %1757 = vrot.lane.b32.xlu0 %v994, 80
        %v1758 = vpop.permute.xlu0 %1757
        %1759 = vrot.lane.b32.xlu0 %v995, 80
        %v1760 = vpop.permute.xlu0 %1759
        %v1762 = vsel %vm1044, %v1714, 0
        %v1765 = vsel %vm1044, %v1716, 0
        %v1768 = vsel %vm1044, %v1718, 0
        %v1771 = vsel %vm1044, %v1720, 0
        %v1774 = vsel %vm1044, %v1722, 0
        %v1777 = vsel %vm1044, %v1724, 0
        %v1780 = vsel %vm1044, %v1726, 0
        %v1783 = vsel %vm1044, %v1728, 0
        %v1786 = vsel %vm1044, %v1730, 0
        %v1789 = vsel %vm1044, %v1732, 0
        %v1792 = vsel %vm1044, %v1734, 0
        %v1795 = vsel %vm1044, %v1736, 0
        %v1798 = vsel %vm1044, %v1738, 0
        %v1801 = vsel %vm1044, %v1740, 0
        %v1804 = vsel %vm1044, %v1742, 0
        %v1807 = vsel %vm1044, %v1744, 0
        %v1810 = vsel %vm1044, %v1746, 0
        %v1813 = vsel %vm1044, %v1748, 0
        %v1816 = vsel %vm1044, %v1750, 0
        %v1819 = vsel %vm1044, %v1752, 0
        %v1822 = vsel %vm1044, %v1754, 0
        %v1825 = vsel %vm1044, %v1756, 0
        %v1828 = vsel %vm1044, %v1758, 0
        %v1831 = vsel %vm1044, %v1760, 0
        %1833 = vmatprep.subr.bf16.mxu0 0
        %1834 = vmatpush1.bf16.xpose.msra.mxu0 %v1786
        %1835 = vmatprep.subr.bf16.mxu0 0
        %1836 = vmatpush1.bf16.xpose.msra.mxu0 %v1789
        %1837 = vmatprep.subr.bf16.mxu0 0
        %1838 = vmatpush1.bf16.xpose.msra.mxu0 %v1792
        %1839 = vmatprep.subr.bf16.mxu0 0
        %1840 = vmatpush1.bf16.xpose.msra.mxu0 %v1795
        %1841 = vmatprep.subr.bf16.mxu0 0
        %1842 = vmatpush1.bf16.xpose.msra.mxu0 %v1798
        %1843 = vmatprep.subr.bf16.mxu0 0
        %1844 = vmatpush1.bf16.xpose.msra.mxu0 %v1801
        %1845 = vmatprep.subr.bf16.mxu0 0
        %1846 = vmatpush1.bf16.xpose.msra.mxu0 %v1804
        %1847 = vmatprep.subr.bf16.mxu0 0
        %1848 = vmatpush1.bf16.xpose.msra.mxu0 %v1807
        %1849 = vmatprep.subr.bf16.mxu0 0
        %1850 = vmatpush1.bf16.xpose.msra.mxu0 %v1810
        %1851 = vmatprep.subr.bf16.mxu0 0
        %1852 = vmatpush1.bf16.xpose.msra.mxu0 %v1813
        %1853 = vmatprep.subr.bf16.mxu0 0
        %1854 = vmatpush1.bf16.xpose.msra.mxu0 %v1816
        %1855 = vmatprep.subr.bf16.mxu0 0
        %1856 = vmatpush1.bf16.xpose.msra.mxu0 %v1819
        %1857 = vmatprep.subr.bf16.mxu0 0
        %1858 = vmatpush1.bf16.xpose.msra.mxu0 %v1822
        %1859 = vmatprep.subr.bf16.mxu0 0
        %1860 = vmatpush1.bf16.xpose.msra.mxu0 %v1825
        %1861 = vmatprep.subr.bf16.mxu0 0
        %1862 = vmatpush1.bf16.xpose.msra.mxu0 %v1828
        %1863 = vmatprep.subr.bf16.mxu0 0
        %1864 = vmatpush1.bf16.xpose.msra.mxu0 %v1831
        %1865 = vmatprep.mubr.bf16.mxu0 0
        %1866 = vmatmul.mubr.bf16.gmra.mrb[0].mxu0 %v1762
        %v1867 = vpop.f32.mrb[0].mxu0
        %v1868 = vadd.f32 0.0, %v1867
        %v1869 = vpop.f32.mrb[0].mxu0
        %v1870 = vadd.f32 0.0, %v1869
        %v1871 = vpop.f32.mrb[0].mxu0
        %v1872 = vadd.f32 0.0, %v1871
        %v1873 = vpop.f32.mrb[0].mxu0
        %v1874 = vadd.f32 0.0, %v1873
        %1875 = vmatprep.mubr.bf16.mxu0 0
        %1876 = vmatmul.mubr.bf16.gmra.mrb[0].mxu0 %v1765
        %v1877 = vpop.f32.mrb[0].mxu0
        %v1878 = vadd.f32 0.0, %v1877
        %v1879 = vpop.f32.mrb[0].mxu0
        %v1880 = vadd.f32 0.0, %v1879
        %v1881 = vpop.f32.mrb[0].mxu0
        %v1882 = vadd.f32 0.0, %v1881
        %v1883 = vpop.f32.mrb[0].mxu0
        %v1884 = vadd.f32 0.0, %v1883
        %1885 = vmatprep.mubr.bf16.mxu0 0
        %1886 = vmatmul.mubr.bf16.gmra.mrb[0].mxu0 %v1768
        %v1887 = vpop.f32.mrb[0].mxu0
        %v1888 = vadd.f32 0.0, %v1887
        %v1889 = vpop.f32.mrb[0].mxu0
        %v1890 = vadd.f32 0.0, %v1889
        %v1891 = vpop.f32.mrb[0].mxu0
        %v1892 = vadd.f32 0.0, %v1891
        %v1893 = vpop.f32.mrb[0].mxu0
        %v1894 = vadd.f32 0.0, %v1893
        %1895 = vmatprep.mubr.bf16.mxu0 0
        %1896 = vmatmul.mubr.bf16.gmra.mrb[0].mxu0 %v1771
        %v1897 = vpop.f32.mrb[0].mxu0
        %v1898 = vadd.f32 0.0, %v1897
        %v1899 = vpop.f32.mrb[0].mxu0
        %v1900 = vadd.f32 0.0, %v1899
        %v1901 = vpop.f32.mrb[0].mxu0
        %v1902 = vadd.f32 0.0, %v1901
        %v1903 = vpop.f32.mrb[0].mxu0
        %v1904 = vadd.f32 0.0, %v1903
        %1905 = vmatprep.mubr.bf16.mxu0 0
        %1906 = vmatmul.mubr.bf16.gmra.mrb[0].mxu0 %v1774
        %v1907 = vpop.f32.mrb[0].mxu0
        %v1908 = vadd.f32 0.0, %v1907
        %v1909 = vpop.f32.mrb[0].mxu0
        %v1910 = vadd.f32 0.0, %v1909
        %v1911 = vpop.f32.mrb[0].mxu0
        %v1912 = vadd.f32 0.0, %v1911
        %v1913 = vpop.f32.mrb[0].mxu0
        %v1914 = vadd.f32 0.0, %v1913
        %1915 = vmatprep.mubr.bf16.mxu0 0
        %1916 = vmatmul.mubr.bf16.gmra.mrb[0].mxu0 %v1777
        %v1917 = vpop.f32.mrb[0].mxu0
        %v1918 = vadd.f32 0.0, %v1917
        %v1919 = vpop.f32.mrb[0].mxu0
        %v1920 = vadd.f32 0.0, %v1919
        %v1921 = vpop.f32.mrb[0].mxu0
        %v1922 = vadd.f32 0.0, %v1921
        %v1923 = vpop.f32.mrb[0].mxu0
        %v1924 = vadd.f32 0.0, %v1923
        %1925 = vmatprep.mubr.bf16.mxu0 0
        %1926 = vmatmul.mubr.bf16.gmra.mrb[0].mxu0 %v1780
        %v1927 = vpop.f32.mrb[0].mxu0
        %v1928 = vadd.f32 0.0, %v1927
        %v1929 = vpop.f32.mrb[0].mxu0
        %v1930 = vadd.f32 0.0, %v1929
        %v1931 = vpop.f32.mrb[0].mxu0
        %v1932 = vadd.f32 0.0, %v1931
        %v1933 = vpop.f32.mrb[0].mxu0
        %v1934 = vadd.f32 0.0, %v1933
        %1935 = vmatprep.mubr.bf16.mxu0 0
        %1936 = vmatmul.mubr.bf16.gmra.mrb[0].mxu0 %v1783
        %v1937 = vpop.f32.mrb[0].mxu0
        %v1938 = vadd.f32 0.0, %v1937
        %v1939 = vpop.f32.mrb[0].mxu0
        %v1940 = vadd.f32 0.0, %v1939
        %v1941 = vpop.f32.mrb[0].mxu0
        %v1942 = vadd.f32 0.0, %v1941
        %v1943 = vpop.f32.mrb[0].mxu0
        %v1944 = vadd.f32 0.0, %v1943
        %1945 = vdwg.mxu0
        %v1946 = vmul.f32 %v1868, 0.25
        %v1947 = vmul.f32 %v1870, 0.25
        %v1948 = vmul.f32 %v1872, 0.25
        %v1949 = vmul.f32 %v1874, 0.25
        %v1950 = vmul.f32 %v1878, 0.25
        %v1951 = vmul.f32 %v1880, 0.25
        %v1952 = vmul.f32 %v1882, 0.25
        %v1953 = vmul.f32 %v1884, 0.25
        %v1954 = vmul.f32 %v1888, 0.25
        %v1955 = vmul.f32 %v1890, 0.25
        %v1956 = vmul.f32 %v1892, 0.25
        %v1957 = vmul.f32 %v1894, 0.25
        %v1958 = vmul.f32 %v1898, 0.25
        %v1959 = vmul.f32 %v1900, 0.25
        %v1960 = vmul.f32 %v1902, 0.25
        %v1961 = vmul.f32 %v1904, 0.25
        %v1962 = vmul.f32 %v1908, 0.25
        %v1963 = vmul.f32 %v1910, 0.25
        %v1964 = vmul.f32 %v1912, 0.25
        %v1965 = vmul.f32 %v1914, 0.25
        %v1966 = vmul.f32 %v1918, 0.25
        %v1967 = vmul.f32 %v1920, 0.25
        %v1968 = vmul.f32 %v1922, 0.25
        %v1969 = vmul.f32 %v1924, 0.25
        %v1970 = vmul.f32 %v1928, 0.25
        %v1971 = vmul.f32 %v1930, 0.25
        %v1972 = vmul.f32 %v1932, 0.25
        %v1973 = vmul.f32 %v1934, 0.25
        %v1974 = vmul.f32 %v1938, 0.25
        %v1975 = vmul.f32 %v1940, 0.25
        %v1976 = vmul.f32 %v1942, 0.25
        %v1977 = vmul.f32 %v1944, 0.25
        %v1978 = vsel %vm936, -1e+30, %v1946
        %v1979 = vsel %vm937, -1e+30, %v1947
        %v1980 = vsel %vm938, -1e+30, %v1948
        %v1981 = vsel %vm939, -1e+30, %v1949
        %v1982 = vsel %vm940, -1e+30, %v1950
        %v1983 = vsel %vm941, -1e+30, %v1951
        %v1984 = vsel %vm942, -1e+30, %v1952
        %v1985 = vsel %vm943, -1e+30, %v1953
        %v1986 = vsel %vm944, -1e+30, %v1954
        %v1987 = vsel %vm945, -1e+30, %v1955
        %v1988 = vsel %vm946, -1e+30, %v1956
        %v1989 = vsel %vm947, -1e+30, %v1957
        %v1990 = vsel %vm948, -1e+30, %v1958
        %v1991 = vsel %vm949, -1e+30, %v1959
        %v1992 = vsel %vm950, -1e+30, %v1960
        %v1993 = vsel %vm951, -1e+30, %v1961
        %v1994 = vsel %vm952, -1e+30, %v1962
        %v1995 = vsel %vm953, -1e+30, %v1963
        %v1996 = vsel %vm954, -1e+30, %v1964
        %v1997 = vsel %vm955, -1e+30, %v1965
        %v1998 = vsel %vm956, -1e+30, %v1966
        %v1999 = vsel %vm957, -1e+30, %v1967
        %v2000 = vsel %vm958, -1e+30, %v1968
        %v2001 = vsel %vm959, -1e+30, %v1969
        %v2002 = vsel %vm960, -1e+30, %v1970
        %v2003 = vsel %vm961, -1e+30, %v1971
        %v2004 = vsel %vm962, -1e+30, %v1972
        %v2005 = vsel %vm963, -1e+30, %v1973
        %v2006 = vsel %vm964, -1e+30, %v1974
        %v2007 = vsel %vm965, -1e+30, %v1975
        %v2008 = vsel %vm966, -1e+30, %v1976
        %v2009 = vsel %vm967, -1e+30, %v1977
        %v2010 = vmax.f32 %v1978, %v1979
        %2011 = vmax.xlane.f32.xlu0 %v2010
        %v2012 = vpop.xlane.xlu0 %2011
        %v2013 = vmax.f32 %v1980, %v1981
        %2014 = vmax.xlane.f32.xlu0 %v2013
        %v2015 = vpop.xlane.xlu0 %2014
        %v2016 = vmax.f32 %v1982, %v1983
        %2017 = vmax.xlane.f32.xlu0 %v2016
        %v2018 = vpop.xlane.xlu0 %2017
        %v2019 = vmax.f32 %v1984, %v1985
        %2020 = vmax.xlane.f32.xlu0 %v2019
        %v2021 = vpop.xlane.xlu0 %2020
        %v2022 = vmax.f32 %v1986, %v1987
        %2023 = vmax.xlane.f32.xlu0 %v2022
        %v2024 = vpop.xlane.xlu0 %2023
        %v2025 = vmax.f32 %v1988, %v1989
        %2026 = vmax.xlane.f32.xlu0 %v2025
        %v2027 = vpop.xlane.xlu0 %2026
        %v2028 = vmax.f32 %v1990, %v1991
        %2029 = vmax.xlane.f32.xlu0 %v2028
        %v2030 = vpop.xlane.xlu0 %2029
        %v2031 = vmax.f32 %v1992, %v1993
        %2032 = vmax.xlane.f32.xlu0 %v2031
        %v2033 = vpop.xlane.xlu0 %2032
        %v2034 = vmax.f32 %v1994, %v1995
        %2035 = vmax.xlane.f32.xlu0 %v2034
        %v2036 = vpop.xlane.xlu0 %2035
        %v2037 = vmax.f32 %v1996, %v1997
        %2038 = vmax.xlane.f32.xlu0 %v2037
        %v2039 = vpop.xlane.xlu0 %2038
        %v2040 = vmax.f32 %v1998, %v1999
        %2041 = vmax.xlane.f32.xlu0 %v2040
        %v2042 = vpop.xlane.xlu0 %2041
        %v2043 = vmax.f32 %v2000, %v2001
        %2044 = vmax.xlane.f32.xlu0 %v2043
        %v2045 = vpop.xlane.xlu0 %2044
        %v2046 = vmax.f32 %v2002, %v2003
        %2047 = vmax.xlane.f32.xlu0 %v2046
        %v2048 = vpop.xlane.xlu0 %2047
        %v2049 = vmax.f32 %v2004, %v2005
        %2050 = vmax.xlane.f32.xlu0 %v2049
        %v2051 = vpop.xlane.xlu0 %2050
        %v2052 = vmax.f32 %v2006, %v2007
        %2053 = vmax.xlane.f32.xlu0 %v2052
        %v2054 = vpop.xlane.xlu0 %2053
        %v2055 = vmax.f32 %v2008, %v2009
        %2056 = vmax.xlane.f32.xlu0 %v2055
        %v2057 = vpop.xlane.xlu0 %2056
        %v2058 = vsub.f32 %v1978, %v2012
        %v2059 = vsub.f32 %v1979, %v2012
        %v2060 = vsub.f32 %v1980, %v2015
        %v2061 = vsub.f32 %v1981, %v2015
        %v2062 = vsub.f32 %v1982, %v2018
        %v2063 = vsub.f32 %v1983, %v2018
        %v2064 = vsub.f32 %v1984, %v2021
        %v2065 = vsub.f32 %v1985, %v2021
        %v2066 = vsub.f32 %v1986, %v2024
        %v2067 = vsub.f32 %v1987, %v2024
        %v2068 = vsub.f32 %v1988, %v2027
        %v2069 = vsub.f32 %v1989, %v2027
        %v2070 = vsub.f32 %v1990, %v2030
        %v2071 = vsub.f32 %v1991, %v2030
        %v2072 = vsub.f32 %v1992, %v2033
        %v2073 = vsub.f32 %v1993, %v2033
        %v2074 = vsub.f32 %v1994, %v2036
        %v2075 = vsub.f32 %v1995, %v2036
        %v2076 = vsub.f32 %v1996, %v2039
        %v2077 = vsub.f32 %v1997, %v2039
        %v2078 = vsub.f32 %v1998, %v2042
        %v2079 = vsub.f32 %v1999, %v2042
        %v2080 = vsub.f32 %v2000, %v2045
        %v2081 = vsub.f32 %v2001, %v2045
        %v2082 = vsub.f32 %v2002, %v2048
        %v2083 = vsub.f32 %v2003, %v2048
        %v2084 = vsub.f32 %v2004, %v2051
        %v2085 = vsub.f32 %v2005, %v2051
        %v2086 = vsub.f32 %v2006, %v2054
        %v2087 = vsub.f32 %v2007, %v2054
        %v2088 = vsub.f32 %v2008, %v2057
        %v2089 = vsub.f32 %v2009, %v2057
        %v2090 = vmul.f32 %v2058, 1.442695
        %v2091 = vpow.pop %v2090
        %v2092 = vmul.f32 %v2059, 1.442695
        %v2093 = vpow.pop %v2092
        %v2094 = vmul.f32 %v2060, 1.442695
        %v2095 = vpow.pop %v2094
        %v2096 = vmul.f32 %v2061, 1.442695
        %v2097 = vpow.pop %v2096
        %v2098 = vmul.f32 %v2062, 1.442695
        %v2099 = vpow.pop %v2098
        %v2100 = vmul.f32 %v2063, 1.442695
        %v2101 = vpow.pop %v2100
        %v2102 = vmul.f32 %v2064, 1.442695
        %v2103 = vpow.pop %v2102
        %v2104 = vmul.f32 %v2065, 1.442695
        %v2105 = vpow.pop %v2104
        %v2106 = vmul.f32 %v2066, 1.442695
        %v2107 = vpow.pop %v2106
        %v2108 = vmul.f32 %v2067, 1.442695
        %v2109 = vpow.pop %v2108
        %v2110 = vmul.f32 %v2068, 1.442695
        %v2111 = vpow.pop %v2110
        %v2112 = vmul.f32 %v2069, 1.442695
        %v2113 = vpow.pop %v2112
        %v2114 = vmul.f32 %v2070, 1.442695
        %v2115 = vpow.pop %v2114
        %v2116 = vmul.f32 %v2071, 1.442695
        %v2117 = vpow.pop %v2116
        %v2118 = vmul.f32 %v2072, 1.442695
        %v2119 = vpow.pop %v2118
        %v2120 = vmul.f32 %v2073, 1.442695
        %v2121 = vpow.pop %v2120
        %v2122 = vmul.f32 %v2074, 1.442695
        %v2123 = vpow.pop %v2122
        %v2124 = vmul.f32 %v2075, 1.442695
        %v2125 = vpow.pop %v2124
        %v2126 = vmul.f32 %v2076, 1.442695
        %v2127 = vpow.pop %v2126
        %v2128 = vmul.f32 %v2077, 1.442695
        %v2129 = vpow.pop %v2128
        %v2130 = vmul.f32 %v2078, 1.442695
        %v2131 = vpow.pop %v2130
        %v2132 = vmul.f32 %v2079, 1.442695
        %v2133 = vpow.pop %v2132
        %v2134 = vmul.f32 %v2080, 1.442695
        %v2135 = vpow.pop %v2134
        %v2136 = vmul.f32 %v2081, 1.442695
        %v2137 = vpow.pop %v2136
        %v2138 = vmul.f32 %v2082, 1.442695
        %v2139 = vpow.pop %v2138
        %v2140 = vmul.f32 %v2083, 1.442695
        %v2141 = vpow.pop %v2140
        %v2142 = vmul.f32 %v2084, 1.442695
        %v2143 = vpow.pop %v2142
        %v2144 = vmul.f32 %v2085, 1.442695
        %v2145 = vpow.pop %v2144
        %v2146 = vmul.f32 %v2086, 1.442695
        %v2147 = vpow.pop %v2146
        %v2148 = vmul.f32 %v2087, 1.442695
        %v2149 = vpow.pop %v2148
        %v2150 = vmul.f32 %v2088, 1.442695
        %v2151 = vpow.pop %v2150
        %v2152 = vmul.f32 %v2089, 1.442695
        %v2153 = vpow.pop %v2152
        %v2154 = vadd.f32 %v2091, %v2093
        %2155 = vadd.xlane.f32.xlu0 %v2154
        %v2156 = vpop.xlane.xlu0 %2155
        %v2157 = vadd.f32 %v2095, %v2097
        %2158 = vadd.xlane.f32.xlu0 %v2157
        %v2159 = vpop.xlane.xlu0 %2158
        %v2160 = vadd.f32 %v2099, %v2101
        %2161 = vadd.xlane.f32.xlu0 %v2160
        %v2162 = vpop.xlane.xlu0 %2161
        %v2163 = vadd.f32 %v2103, %v2105
        %2164 = vadd.xlane.f32.xlu0 %v2163
        %v2165 = vpop.xlane.xlu0 %2164
        %v2166 = vadd.f32 %v2107, %v2109
        %2167 = vadd.xlane.f32.xlu0 %v2166
        %v2168 = vpop.xlane.xlu0 %2167
        %v2169 = vadd.f32 %v2111, %v2113
        %2170 = vadd.xlane.f32.xlu0 %v2169
        %v2171 = vpop.xlane.xlu0 %2170
        %v2172 = vadd.f32 %v2115, %v2117
        %2173 = vadd.xlane.f32.xlu0 %v2172
        %v2174 = vpop.xlane.xlu0 %2173
        %v2175 = vadd.f32 %v2119, %v2121
        %2176 = vadd.xlane.f32.xlu0 %v2175
        %v2177 = vpop.xlane.xlu0 %2176
        %v2178 = vadd.f32 %v2123, %v2125
        %2179 = vadd.xlane.f32.xlu0 %v2178
        %v2180 = vpop.xlane.xlu0 %2179
        %v2181 = vadd.f32 %v2127, %v2129
        %2182 = vadd.xlane.f32.xlu0 %v2181
        %v2183 = vpop.xlane.xlu0 %2182
        %v2184 = vadd.f32 %v2131, %v2133
        %2185 = vadd.xlane.f32.xlu0 %v2184
        %v2186 = vpop.xlane.xlu0 %2185
        %v2187 = vadd.f32 %v2135, %v2137
        %2188 = vadd.xlane.f32.xlu0 %v2187
        %v2189 = vpop.xlane.xlu0 %2188
        %v2190 = vadd.f32 %v2139, %v2141
        %2191 = vadd.xlane.f32.xlu0 %v2190
        %v2192 = vpop.xlane.xlu0 %2191
        %v2193 = vadd.f32 %v2143, %v2145
        %2194 = vadd.xlane.f32.xlu0 %v2193
        %v2195 = vpop.xlane.xlu0 %2194
        %v2196 = vadd.f32 %v2147, %v2149
        %2197 = vadd.xlane.f32.xlu0 %v2196
        %v2198 = vpop.xlane.xlu0 %2197
        %v2199 = vadd.f32 %v2151, %v2153
        %2200 = vadd.xlane.f32.xlu0 %v2199
        %v2201 = vpop.xlane.xlu0 %2200
        %v2202 = vrcp.pop %v2156
        %v2203 = vrcp.pop %v2159
        %v2204 = vrcp.pop %v2162
        %v2205 = vrcp.pop %v2165
        %v2206 = vrcp.pop %v2168
        %v2207 = vrcp.pop %v2171
        %v2208 = vrcp.pop %v2174
        %v2209 = vrcp.pop %v2177
        %v2210 = vrcp.pop %v2180
        %v2211 = vrcp.pop %v2183
        %v2212 = vrcp.pop %v2186
        %v2213 = vrcp.pop %v2189
        %v2214 = vrcp.pop %v2192
        %v2215 = vrcp.pop %v2195
        %v2216 = vrcp.pop %v2198
        %v2217 = vrcp.pop %v2201
        %v2218 = vmul.f32 %v2091, %v2202
        %v2219 = vmul.f32 %v2093, %v2202
        %v2220 = vmul.f32 %v2095, %v2203
        %v2221 = vmul.f32 %v2097, %v2203
        %v2222 = vmul.f32 %v2099, %v2204
        %v2223 = vmul.f32 %v2101, %v2204
        %v2224 = vmul.f32 %v2103, %v2205
        %v2225 = vmul.f32 %v2105, %v2205
        %v2226 = vmul.f32 %v2107, %v2206
        %v2227 = vmul.f32 %v2109, %v2206
        %v2228 = vmul.f32 %v2111, %v2207
        %v2229 = vmul.f32 %v2113, %v2207
        %v2230 = vmul.f32 %v2115, %v2208
        %v2231 = vmul.f32 %v2117, %v2208
        %v2232 = vmul.f32 %v2119, %v2209
        %v2233 = vmul.f32 %v2121, %v2209
        %v2234 = vmul.f32 %v2123, %v2210
        %v2235 = vmul.f32 %v2125, %v2210
        %v2236 = vmul.f32 %v2127, %v2211
        %v2237 = vmul.f32 %v2129, %v2211
        %v2238 = vmul.f32 %v2131, %v2212
        %v2239 = vmul.f32 %v2133, %v2212
        %v2240 = vmul.f32 %v2135, %v2213
        %v2241 = vmul.f32 %v2137, %v2213
        %v2242 = vmul.f32 %v2139, %v2214
        %v2243 = vmul.f32 %v2141, %v2214
        %v2244 = vmul.f32 %v2143, %v2215
        %v2245 = vmul.f32 %v2145, %v2215
        %v2246 = vmul.f32 %v2147, %v2216
        %v2247 = vmul.f32 %v2149, %v2216
        %v2248 = vmul.f32 %v2151, %v2217
        %v2249 = vmul.f32 %v2153, %v2217
        %v2250 = vpack.c.bf16 %v2220, %v2218
        %v2251 = vpack.c.bf16 %v2221, %v2219
        %v2252 = vpack.c.bf16 %v2224, %v2222
        %v2253 = vpack.c.bf16 %v2225, %v2223
        %v2254 = vpack.c.bf16 %v2228, %v2226
        %v2255 = vpack.c.bf16 %v2229, %v2227
        %v2256 = vpack.c.bf16 %v2232, %v2230
        %v2257 = vpack.c.bf16 %v2233, %v2231
        %v2258 = vpack.c.bf16 %v2236, %v2234
        %v2259 = vpack.c.bf16 %v2237, %v2235
        %v2260 = vpack.c.bf16 %v2240, %v2238
        %v2261 = vpack.c.bf16 %v2241, %v2239
        %v2262 = vpack.c.bf16 %v2244, %v2242
        %v2263 = vpack.c.bf16 %v2245, %v2243
        %v2264 = vpack.c.bf16 %v2248, %v2246
        %v2265 = vpack.c.bf16 %v2249, %v2247
        %2266 = vrot.lane.b32.xlu0 %v980, 48
        %v2267 = vpop.permute.xlu0 %2266
        %2268 = vrot.lane.b32.xlu0 %v981, 48
        %v2269 = vpop.permute.xlu0 %2268
        %2270 = vrot.lane.b32.xlu0 %v982, 48
        %v2271 = vpop.permute.xlu0 %2270
        %2272 = vrot.lane.b32.xlu0 %v983, 48
        %v2273 = vpop.permute.xlu0 %2272
        %2274 = vrot.lane.b32.xlu0 %v984, 48
        %v2275 = vpop.permute.xlu0 %2274
        %2276 = vrot.lane.b32.xlu0 %v985, 48
        %v2277 = vpop.permute.xlu0 %2276
        %2278 = vrot.lane.b32.xlu0 %v986, 48
        %v2279 = vpop.permute.xlu0 %2278
        %2280 = vrot.lane.b32.xlu0 %v987, 48
        %v2281 = vpop.permute.xlu0 %2280
        %2282 = vrot.lane.b32.xlu0 %v988, 48
        %v2283 = vpop.permute.xlu0 %2282
        %2284 = vrot.lane.b32.xlu0 %v989, 48
        %v2285 = vpop.permute.xlu0 %2284
        %2286 = vrot.lane.b32.xlu0 %v990, 48
        %v2287 = vpop.permute.xlu0 %2286
        %2288 = vrot.lane.b32.xlu0 %v991, 48
        %v2289 = vpop.permute.xlu0 %2288
        %2290 = vrot.lane.b32.xlu0 %v992, 48
        %v2291 = vpop.permute.xlu0 %2290
        %2292 = vrot.lane.b32.xlu0 %v993, 48
        %v2293 = vpop.permute.xlu0 %2292
        %2294 = vrot.lane.b32.xlu0 %v994, 48
        %v2295 = vpop.permute.xlu0 %2294
        %2296 = vrot.lane.b32.xlu0 %v995, 48
        %v2297 = vpop.permute.xlu0 %2296
        %2314 = vmatprep.subr.bf16.mxu0 0
        %2315 = vmatpush1.bf16.msra.mxu0 %v2267
        %2316 = vmatprep.subr.bf16.mxu0 0
        %2317 = vmatpush1.bf16.msra.mxu0 %v2269
        %2318 = vmatprep.subr.bf16.mxu0 0
        %2319 = vmatpush1.bf16.msra.mxu0 %v2271
        %2320 = vmatprep.subr.bf16.mxu0 0
        %2321 = vmatpush1.bf16.msra.mxu0 %v2273
        %2322 = vmatprep.subr.bf16.mxu0 0
        %2323 = vmatpush1.bf16.msra.mxu0 %v2275
        %2324 = vmatprep.subr.bf16.mxu0 0
        %2325 = vmatpush1.bf16.msra.mxu0 %v2277
        %2326 = vmatprep.subr.bf16.mxu0 0
        %2327 = vmatpush1.bf16.msra.mxu0 %v2279
        %2328 = vmatprep.subr.bf16.mxu0 0
        %2329 = vmatpush1.bf16.msra.mxu0 %v2281
        %2330 = vmatprep.subr.bf16.mxu0 0
        %2331 = vmatpush1.bf16.msra.mxu0 %v2283
        %2332 = vmatprep.subr.bf16.mxu0 0
        %2333 = vmatpush1.bf16.msra.mxu0 %v2285
        %2334 = vmatprep.subr.bf16.mxu0 0
        %2335 = vmatpush1.bf16.msra.mxu0 %v2287
        %2336 = vmatprep.subr.bf16.mxu0 0
        %2337 = vmatpush1.bf16.msra.mxu0 %v2289
        %2338 = vmatprep.subr.bf16.mxu0 0
        %2339 = vmatpush1.bf16.msra.mxu0 %v2291
        %2340 = vmatprep.subr.bf16.mxu0 0
        %2341 = vmatpush1.bf16.msra.mxu0 %v2293
        %2342 = vmatprep.subr.bf16.mxu0 0
        %2343 = vmatpush1.bf16.msra.mxu0 %v2295
        %2344 = vmatprep.subr.bf16.mxu0 0
        %2345 = vmatpush1.bf16.msra.mxu0 %v2297
        %2346 = vmatprep.mubr.bf16.mxu0 %v2251
        %2347 = vmatmul.mubr.bf16.gmra.mrb[0].mxu0 %v2250
        %v2348 = vpop.f32.mrb[0].mxu0
        %v2349 = vadd.f32 0.0, %v2348
        %v2350 = vpop.f32.mrb[0].mxu0
        %v2351 = vpop.f32.mrb[0].mxu0
        %v2352 = vadd.f32 0.0, %v2351
        %v2353 = vpop.f32.mrb[0].mxu0
        %2354 = vmatprep.mubr.bf16.mxu0 %v2253
        %2355 = vmatmul.mubr.bf16.gmra.mrb[0].mxu0 %v2252
        %v2356 = vpop.f32.mrb[0].mxu0
        %v2357 = vadd.f32 0.0, %v2356
        %v2358 = vpop.f32.mrb[0].mxu0
        %v2359 = vpop.f32.mrb[0].mxu0
        %v2360 = vadd.f32 0.0, %v2359
        %v2361 = vpop.f32.mrb[0].mxu0
        %2362 = vmatprep.mubr.bf16.mxu0 %v2255
        %2363 = vmatmul.mubr.bf16.gmra.mrb[0].mxu0 %v2254
        %v2364 = vpop.f32.mrb[0].mxu0
        %v2365 = vadd.f32 0.0, %v2364
        %v2366 = vpop.f32.mrb[0].mxu0
        %v2367 = vpop.f32.mrb[0].mxu0
        %v2368 = vadd.f32 0.0, %v2367
        %v2369 = vpop.f32.mrb[0].mxu0
        %2370 = vmatprep.mubr.bf16.mxu0 %v2257
        %2371 = vmatmul.mubr.bf16.gmra.mrb[0].mxu0 %v2256
        %v2372 = vpop.f32.mrb[0].mxu0
        %v2373 = vadd.f32 0.0, %v2372
        %v2374 = vpop.f32.mrb[0].mxu0
        %v2375 = vpop.f32.mrb[0].mxu0
        %v2376 = vadd.f32 0.0, %v2375
        %v2377 = vpop.f32.mrb[0].mxu0
        %2378 = vmatprep.mubr.bf16.mxu0 %v2259
        %2379 = vmatmul.mubr.bf16.gmra.mrb[0].mxu0 %v2258
        %v2380 = vpop.f32.mrb[0].mxu0
        %v2381 = vadd.f32 0.0, %v2380
        %v2382 = vpop.f32.mrb[0].mxu0
        %v2383 = vpop.f32.mrb[0].mxu0
        %v2384 = vadd.f32 0.0, %v2383
        %v2385 = vpop.f32.mrb[0].mxu0
        %2386 = vmatprep.mubr.bf16.mxu0 %v2261
        %2387 = vmatmul.mubr.bf16.gmra.mrb[0].mxu0 %v2260
        %v2388 = vpop.f32.mrb[0].mxu0
        %v2389 = vadd.f32 0.0, %v2388
        %v2390 = vpop.f32.mrb[0].mxu0
        %v2391 = vpop.f32.mrb[0].mxu0
        %v2392 = vadd.f32 0.0, %v2391
        %v2393 = vpop.f32.mrb[0].mxu0
        %2394 = vmatprep.mubr.bf16.mxu0 %v2263
        %2395 = vmatmul.mubr.bf16.gmra.mrb[0].mxu0 %v2262
        %v2396 = vpop.f32.mrb[0].mxu0
        %v2397 = vadd.f32 0.0, %v2396
        %v2398 = vpop.f32.mrb[0].mxu0
        %v2399 = vpop.f32.mrb[0].mxu0
        %v2400 = vadd.f32 0.0, %v2399
        %v2401 = vpop.f32.mrb[0].mxu0
        %2402 = vmatprep.mubr.bf16.mxu0 %v2265
        %2403 = vmatmul.mubr.bf16.gmra.mrb[0].mxu0 %v2264
        %v2404 = vpop.f32.mrb[0].mxu0
        %v2405 = vadd.f32 0.0, %v2404
        %v2406 = vpop.f32.mrb[0].mxu0
        %v2407 = vpop.f32.mrb[0].mxu0
        %v2408 = vadd.f32 0.0, %v2407
        %v2409 = vpop.f32.mrb[0].mxu0
        %2410 = vdwg.mxu0
        %v2411 = vpack.c.bf16 %v2352, %v2349
        %v2412 = vpack.c.bf16 %v2360, %v2357
        %v2413 = vpack.c.bf16 %v2368, %v2365
        %v2414 = vpack.c.bf16 %v2376, %v2373
        %v2415 = vpack.c.bf16 %v2384, %v2381
        %v2416 = vpack.c.bf16 %v2392, %v2389
        %v2417 = vpack.c.bf16 %v2400, %v2397
        %v2418 = vpack.c.bf16 %v2408, %v2405
        %v2419 = vld [vmem:[#allocation12 + $0x8] sm:$0xf]
        %v2420 = vld [vmem:[#allocation12 + $0xc] sm:$0xf]
        %v2423 = vunpack.c.l.b16 %v2419
        %v2424 = vunpack.c.l.b16 %v2420
        %v2425 = vpack.c.b16 %v2424, %v2423
        %v2428 = vsel %vm1044, %v2411, 0
        %v2431 = vsel %vm1044, %v2412, 0
        %v2434 = vsel %vm1044, %v2413, 0
        %v2437 = vsel %vm1044, %v2414, 0
        %v2440 = vsel %vm1044, %v2415, 0
        %v2443 = vsel %vm1044, %v2416, 0
        %v2446 = vsel %vm1044, %v2417, 0
        %v2449 = vsel %vm1044, %v2418, 0
        %2451 = vmatprep.subr.bf16.mxu0 0
        %2452 = vmatpush1.bf16.msra.mxu0 %v2425
        %2453 = vmatprep.subr.bf16.mxu0 0
        %2454 = vmatpush1.bf16.msra.mxu0 0
        %2455 = vmatprep.subr.bf16.mxu0 0
        %2456 = vmatpush1.bf16.msra.mxu0 0
        %2457 = vmatprep.subr.bf16.mxu0 0
        %2458 = vmatpush1.bf16.msra.mxu0 0
        %2459 = vmatprep.subr.bf16.mxu0 0
        %2460 = vmatpush1.bf16.msra.mxu0 0
        %2461 = vmatprep.subr.bf16.mxu0 0
        %2462 = vmatpush1.bf16.msra.mxu0 0
        %2463 = vmatprep.subr.bf16.mxu0 0
        %2464 = vmatpush1.bf16.msra.mxu0 0
        %2465 = vmatprep.subr.bf16.mxu0 0
        %2466 = vmatpush1.bf16.msra.mxu0 0
        %2467 = vmatprep.subr.bf16.mxu0 0
        %2468 = vmatpush1.bf16.msra.mxu0 0
        %2469 = vmatprep.subr.bf16.mxu0 0
        %2470 = vmatpush1.bf16.msra.mxu0 0
        %2471 = vmatprep.subr.bf16.mxu0 0
        %2472 = vmatpush1.bf16.msra.mxu0 0
        %2473 = vmatprep.subr.bf16.mxu0 0
        %2474 = vmatpush1.bf16.msra.mxu0 0
        %2475 = vmatprep.subr.bf16.mxu0 0
        %2476 = vmatpush1.bf16.msra.mxu0 0
        %2477 = vmatprep.subr.bf16.mxu0 0
        %2478 = vmatpush1.bf16.msra.mxu0 0
        %2479 = vmatprep.subr.bf16.mxu0 0
        %2480 = vmatpush1.bf16.msra.mxu0 0
        %2481 = vmatprep.subr.bf16.mxu0 0
        %2482 = vmatpush1.bf16.msra.mxu0 0
        %2483 = vmatprep.mubr.bf16.mxu0 0
        %2484 = vmatmul.mubr.bf16.gmra.mrb[0].mxu0 %v2428
        %v2485 = vpop.f32.mrb[0].mxu0
        %v2486 = vadd.f32 0.0, %v2485
        %v2487 = vpop.f32.mrb[0].mxu0
        %v2488 = vpop.f32.mrb[0].mxu0
        %v2489 = vadd.f32 0.0, %v2488
        %v2490 = vpop.f32.mrb[0].mxu0
        %2491 = vmatprep.mubr.bf16.mxu0 0
        %2492 = vmatmul.mubr.bf16.gmra.mrb[0].mxu0 %v2431
        %v2493 = vpop.f32.mrb[0].mxu0
        %v2494 = vadd.f32 0.0, %v2493
        %v2495 = vpop.f32.mrb[0].mxu0
        %v2496 = vpop.f32.mrb[0].mxu0
        %v2497 = vadd.f32 0.0, %v2496
        %v2498 = vpop.f32.mrb[0].mxu0
        %2499 = vmatprep.mubr.bf16.mxu0 0
        %2500 = vmatmul.mubr.bf16.gmra.mrb[0].mxu0 %v2434
        %v2501 = vpop.f32.mrb[0].mxu0
        %v2502 = vadd.f32 0.0, %v2501
        %v2503 = vpop.f32.mrb[0].mxu0
        %v2504 = vpop.f32.mrb[0].mxu0
        %v2505 = vadd.f32 0.0, %v2504
        %v2506 = vpop.f32.mrb[0].mxu0
        %2507 = vmatprep.mubr.bf16.mxu0 0
        %2508 = vmatmul.mubr.bf16.gmra.mrb[0].mxu0 %v2437
        %v2509 = vpop.f32.mrb[0].mxu0
        %v2510 = vadd.f32 0.0, %v2509
        %v2511 = vpop.f32.mrb[0].mxu0
        %v2512 = vpop.f32.mrb[0].mxu0
        %v2513 = vadd.f32 0.0, %v2512
        %v2514 = vpop.f32.mrb[0].mxu0
        %2515 = vmatprep.mubr.bf16.mxu0 0
        %2516 = vmatmul.mubr.bf16.gmra.mrb[0].mxu0 %v2440
        %v2517 = vpop.f32.mrb[0].mxu0
        %v2518 = vadd.f32 0.0, %v2517
        %v2519 = vpop.f32.mrb[0].mxu0
        %v2520 = vpop.f32.mrb[0].mxu0
        %v2521 = vadd.f32 0.0, %v2520
        %v2522 = vpop.f32.mrb[0].mxu0
        %2523 = vmatprep.mubr.bf16.mxu0 0
        %2524 = vmatmul.mubr.bf16.gmra.mrb[0].mxu0 %v2443
        %v2525 = vpop.f32.mrb[0].mxu0
        %v2526 = vadd.f32 0.0, %v2525
        %v2527 = vpop.f32.mrb[0].mxu0
        %v2528 = vpop.f32.mrb[0].mxu0
        %v2529 = vadd.f32 0.0, %v2528
        %v2530 = vpop.f32.mrb[0].mxu0
        %2531 = vmatprep.mubr.bf16.mxu0 0
        %2532 = vmatmul.mubr.bf16.gmra.mrb[0].mxu0 %v2446
        %v2533 = vpop.f32.mrb[0].mxu0
        %v2534 = vadd.f32 0.0, %v2533
        %v2535 = vpop.f32.mrb[0].mxu0
        %v2536 = vpop.f32.mrb[0].mxu0
        %v2537 = vadd.f32 0.0, %v2536
        %v2538 = vpop.f32.mrb[0].mxu0
        %2539 = vmatprep.mubr.bf16.mxu0 0
        %2540 = vmatmul.mubr.bf16.gmra.mrb[0].mxu0 %v2449
        %v2541 = vpop.f32.mrb[0].mxu0
        %v2542 = vadd.f32 0.0, %v2541
        %v2543 = vpop.f32.mrb[0].mxu0
        %v2544 = vpop.f32.mrb[0].mxu0
        %v2545 = vadd.f32 0.0, %v2544
        %v2546 = vpop.f32.mrb[0].mxu0
        %2547 = vdwg.mxu0
        %v2550 = vunpack.c.l.b16 %v1703
        %v2551 = vunpack.c.l.b16 %v1704
        %v2552 = vpack.c.b16 %v2551, %v2550
        %v2555 = vsel %vm1044, %v1695, 0
        %v2558 = vsel %vm1044, %v1696, 0
        %v2561 = vsel %vm1044, %v1697, 0
        %v2564 = vsel %vm1044, %v1698, 0
        %v2567 = vsel %vm1044, %v1699, 0
        %v2570 = vsel %vm1044, %v1700, 0
        %v2573 = vsel %vm1044, %v1701, 0
        %v2576 = vsel %vm1044, %v1702, 0
        %2578 = vmatprep.subr.bf16.mxu0 0
        %2579 = vmatpush1.bf16.msra.mxu0 %v2552
        %2580 = vmatprep.subr.bf16.mxu0 0
        %2581 = vmatpush1.bf16.msra.mxu0 0
        %2582 = vmatprep.subr.bf16.mxu0 0
        %2583 = vmatpush1.bf16.msra.mxu0 0
        %2584 = vmatprep.subr.bf16.mxu0 0
        %2585 = vmatpush1.bf16.msra.mxu0 0
        %2586 = vmatprep.subr.bf16.mxu0 0
        %2587 = vmatpush1.bf16.msra.mxu0 0
        %2588 = vmatprep.subr.bf16.mxu0 0
        %2589 = vmatpush1.bf16.msra.mxu0 0
        %2590 = vmatprep.subr.bf16.mxu0 0
        %2591 = vmatpush1.bf16.msra.mxu0 0
        %2592 = vmatprep.subr.bf16.mxu0 0
        %2593 = vmatpush1.bf16.msra.mxu0 0
        %2594 = vmatprep.subr.bf16.mxu0 0
        %2595 = vmatpush1.bf16.msra.mxu0 0
        %2596 = vmatprep.subr.bf16.mxu0 0
        %2597 = vmatpush1.bf16.msra.mxu0 0
        %2598 = vmatprep.subr.bf16.mxu0 0
        %2599 = vmatpush1.bf16.msra.mxu0 0
        %2600 = vmatprep.subr.bf16.mxu0 0
        %2601 = vmatpush1.bf16.msra.mxu0 0
        %2602 = vmatprep.subr.bf16.mxu0 0
        %2603 = vmatpush1.bf16.msra.mxu0 0
        %2604 = vmatprep.subr.bf16.mxu0 0
        %2605 = vmatpush1.bf16.msra.mxu0 0
        %2606 = vmatprep.subr.bf16.mxu0 0
        %2607 = vmatpush1.bf16.msra.mxu0 0
        %2608 = vmatprep.subr.bf16.mxu0 0
        %2609 = vmatpush1.bf16.msra.mxu0 0
        %2610 = vmatprep.mubr.bf16.mxu0 0
        %2611 = vmatmul.mubr.bf16.gmra.mrb[0].mxu0 %v2555
        %v2612 = vpop.f32.mrb[0].mxu0
        %v2613 = vadd.f32 %v2486, %v2612
        %v2614 = vpop.f32.mrb[0].mxu0
        %v2615 = vpop.f32.mrb[0].mxu0
        %v2616 = vadd.f32 %v2489, %v2615
        %v2617 = vpop.f32.mrb[0].mxu0
        %2618 = vmatprep.mubr.bf16.mxu0 0
        %2619 = vmatmul.mubr.bf16.gmra.mrb[0].mxu0 %v2558
        %v2620 = vpop.f32.mrb[0].mxu0
        %v2621 = vadd.f32 %v2494, %v2620
        %v2622 = vpop.f32.mrb[0].mxu0
        %v2623 = vpop.f32.mrb[0].mxu0
        %v2624 = vadd.f32 %v2497, %v2623
        %v2625 = vpop.f32.mrb[0].mxu0
        %2626 = vmatprep.mubr.bf16.mxu0 0
        %2627 = vmatmul.mubr.bf16.gmra.mrb[0].mxu0 %v2561
        %v2628 = vpop.f32.mrb[0].mxu0
        %v2629 = vadd.f32 %v2502, %v2628
        %v2630 = vpop.f32.mrb[0].mxu0
        %v2631 = vpop.f32.mrb[0].mxu0
        %v2632 = vadd.f32 %v2505, %v2631
        %v2633 = vpop.f32.mrb[0].mxu0
        %2634 = vmatprep.mubr.bf16.mxu0 0
        %2635 = vmatmul.mubr.bf16.gmra.mrb[0].mxu0 %v2564
        %v2636 = vpop.f32.mrb[0].mxu0
        %v2637 = vadd.f32 %v2510, %v2636
        %v2638 = vpop.f32.mrb[0].mxu0
        %v2639 = vpop.f32.mrb[0].mxu0
        %v2640 = vadd.f32 %v2513, %v2639
        %v2641 = vpop.f32.mrb[0].mxu0
        %2642 = vmatprep.mubr.bf16.mxu0 0
        %2643 = vmatmul.mubr.bf16.gmra.mrb[0].mxu0 %v2567
        %v2644 = vpop.f32.mrb[0].mxu0
        %v2645 = vadd.f32 %v2518, %v2644
        %v2646 = vpop.f32.mrb[0].mxu0
        %v2647 = vpop.f32.mrb[0].mxu0
        %v2648 = vadd.f32 %v2521, %v2647
        %v2649 = vpop.f32.mrb[0].mxu0
        %2650 = vmatprep.mubr.bf16.mxu0 0
        %2651 = vmatmul.mubr.bf16.gmra.mrb[0].mxu0 %v2570
        %v2652 = vpop.f32.mrb[0].mxu0
        %v2653 = vadd.f32 %v2526, %v2652
        %v2654 = vpop.f32.mrb[0].mxu0
        %v2655 = vpop.f32.mrb[0].mxu0
        %v2656 = vadd.f32 %v2529, %v2655
        %v2657 = vpop.f32.mrb[0].mxu0
        %2658 = vmatprep.mubr.bf16.mxu0 0
        %2659 = vmatmul.mubr.bf16.gmra.mrb[0].mxu0 %v2573
        %v2660 = vpop.f32.mrb[0].mxu0
        %v2661 = vadd.f32 %v2534, %v2660
        %v2662 = vpop.f32.mrb[0].mxu0
        %v2663 = vpop.f32.mrb[0].mxu0
        %v2664 = vadd.f32 %v2537, %v2663
        %v2665 = vpop.f32.mrb[0].mxu0
        %2666 = vmatprep.mubr.bf16.mxu0 0
        %2667 = vmatmul.mubr.bf16.gmra.mrb[0].mxu0 %v2576
        %v2668 = vpop.f32.mrb[0].mxu0
        %v2669 = vadd.f32 %v2542, %v2668
        %v2670 = vpop.f32.mrb[0].mxu0
        %v2671 = vpop.f32.mrb[0].mxu0
        %v2672 = vadd.f32 %v2545, %v2671
        %v2673 = vpop.f32.mrb[0].mxu0
        %2674 = vdwg.mxu0
        %v2675 = vld [vmem:[#allocation14] sm:$0x1]
        %v2677 = vlaneseq
        %v2678 = vshrl.u32 %v2677, 7
        %v2679 = vsub.s32 0, %v2678
        %v2680 = vrot.slane %v2675, %v2679
        %v2682 = vadd.f32 %v2613, %v2680
        %v2683 = vadd.f32 %v2616, %v2680
        %v2684 = vadd.f32 %v2621, %v2680
        %v2685 = vadd.f32 %v2624, %v2680
        %v2686 = vadd.f32 %v2629, %v2680
        %v2687 = vadd.f32 %v2632, %v2680
        %v2688 = vadd.f32 %v2637, %v2680
        %v2689 = vadd.f32 %v2640, %v2680
        %v2690 = vadd.f32 %v2645, %v2680
        %v2691 = vadd.f32 %v2648, %v2680
        %v2692 = vadd.f32 %v2653, %v2680
        %v2693 = vadd.f32 %v2656, %v2680
        %v2694 = vadd.f32 %v2661, %v2680
        %v2695 = vadd.f32 %v2664, %v2680
        %v2696 = vadd.f32 %v2669, %v2680
        %v2697 = vadd.f32 %v2672, %v2680
        %s2698 = scalar_lea.vmem %s343, %s720 [#allocation6]
        %v2699 = vld [vmem:[%s2698] sm:$0xff]
        %v2700 = vld [vmem:[%s2698 + $0x8] sm:$0xff]
        %v2701 = vld [vmem:[%s2698 + $0x10] sm:$0xff]
        %v2702 = vld [vmem:[%s2698 + $0x18] sm:$0xff]
        %v2703 = vld [vmem:[%s2698 + $0x20] sm:$0xff]
        %v2704 = vld [vmem:[%s2698 + $0x28] sm:$0xff]
        %v2705 = vld [vmem:[%s2698 + $0x30] sm:$0xff]
        %v2706 = vld [vmem:[%s2698 + $0x38] sm:$0xff]
        %v2707 = vld [vmem:[%s2698 + $0x40] sm:$0xff]
        %v2708 = vld [vmem:[%s2698 + $0x48] sm:$0xff]
        %v2709 = vld [vmem:[%s2698 + $0x50] sm:$0xff]
        %v2710 = vld [vmem:[%s2698 + $0x58] sm:$0xff]
        %v2711 = vld [vmem:[%s2698 + $0x60] sm:$0xff]
        %v2712 = vld [vmem:[%s2698 + $0x68] sm:$0xff]
        %v2713 = vld [vmem:[%s2698 + $0x70] sm:$0xff]
        %v2714 = vld [vmem:[%s2698 + $0x78] sm:$0xff]
        %v2715 = vadd.f32 %v2682, %v2699
        %v2716 = vadd.f32 %v2683, %v2700
        %v2717 = vadd.f32 %v2684, %v2701
        %v2718 = vadd.f32 %v2685, %v2702
        %v2719 = vadd.f32 %v2686, %v2703
        %v2720 = vadd.f32 %v2687, %v2704
        %v2721 = vadd.f32 %v2688, %v2705
        %v2722 = vadd.f32 %v2689, %v2706
        %v2723 = vadd.f32 %v2690, %v2707
        %v2724 = vadd.f32 %v2691, %v2708
        %v2725 = vadd.f32 %v2692, %v2709
        %v2726 = vadd.f32 %v2693, %v2710
        %v2727 = vadd.f32 %v2694, %v2711
        %v2728 = vadd.f32 %v2695, %v2712
        %v2729 = vadd.f32 %v2696, %v2713
        %v2730 = vadd.f32 %v2697, %v2714
        %vm2731 = vcmask 261120
        %v2732 = vsel %vm2731, %v2715, 0.0
        %2733 = vadd.xlane.f32.xlu0 %v2732
        %v2734 = vpop.xlane.xlu0 %2733
        %v2735 = vsel %vm2731, %v2716, 0.0
        %2736 = vadd.xlane.f32.xlu0 %v2735
        %v2737 = vpop.xlane.xlu0 %2736
        %v2738 = vsel %vm2731, %v2717, 0.0
        %2739 = vadd.xlane.f32.xlu0 %v2738
        %v2740 = vpop.xlane.xlu0 %2739
        %v2741 = vsel %vm2731, %v2718, 0.0
        %2742 = vadd.xlane.f32.xlu0 %v2741
        %v2743 = vpop.xlane.xlu0 %2742
        %v2744 = vsel %vm2731, %v2719, 0.0
        %2745 = vadd.xlane.f32.xlu0 %v2744
        %v2746 = vpop.xlane.xlu0 %2745
        %v2747 = vsel %vm2731, %v2720, 0.0
        %2748 = vadd.xlane.f32.xlu0 %v2747
        %v2749 = vpop.xlane.xlu0 %2748
        %v2750 = vsel %vm2731, %v2721, 0.0
        %2751 = vadd.xlane.f32.xlu0 %v2750
        %v2752 = vpop.xlane.xlu0 %2751
        %v2753 = vsel %vm2731, %v2722, 0.0
        %2754 = vadd.xlane.f32.xlu0 %v2753
        %v2755 = vpop.xlane.xlu0 %2754
        %v2756 = vsel %vm2731, %v2723, 0.0
        %2757 = vadd.xlane.f32.xlu0 %v2756
        %v2758 = vpop.xlane.xlu0 %2757
        %v2759 = vsel %vm2731, %v2724, 0.0
        %2760 = vadd.xlane.f32.xlu0 %v2759
        %v2761 = vpop.xlane.xlu0 %2760
        %v2762 = vsel %vm2731, %v2725, 0.0
        %2763 = vadd.xlane.f32.xlu0 %v2762
        %v2764 = vpop.xlane.xlu0 %2763
        %v2765 = vsel %vm2731, %v2726, 0.0
        %2766 = vadd.xlane.f32.xlu0 %v2765
        %v2767 = vpop.xlane.xlu0 %2766
        %v2768 = vsel %vm2731, %v2727, 0.0
        %2769 = vadd.xlane.f32.xlu0 %v2768
        %v2770 = vpop.xlane.xlu0 %2769
        %v2771 = vsel %vm2731, %v2728, 0.0
        %2772 = vadd.xlane.f32.xlu0 %v2771
        %v2773 = vpop.xlane.xlu0 %2772
        %v2774 = vsel %vm2731, %v2729, 0.0
        %2775 = vadd.xlane.f32.xlu0 %v2774
        %v2776 = vpop.xlane.xlu0 %2775
        %v2777 = vsel %vm2731, %v2730, 0.0
        %2778 = vadd.xlane.f32.xlu0 %v2777
        %v2779 = vpop.xlane.xlu0 %2778
        %v2780 = vrcp.pop 32.0
        %v2781 = vmul.f32 %v2734, %v2780
        %v2782 = vmul.f32 %v2737, %v2780
        %v2783 = vmul.f32 %v2740, %v2780
        %v2784 = vmul.f32 %v2743, %v2780
        %v2785 = vmul.f32 %v2746, %v2780
        %v2786 = vmul.f32 %v2749, %v2780
        %v2787 = vmul.f32 %v2752, %v2780
        %v2788 = vmul.f32 %v2755, %v2780
        %v2789 = vmul.f32 %v2758, %v2780
        %v2790 = vmul.f32 %v2761, %v2780
        %v2791 = vmul.f32 %v2764, %v2780
        %v2792 = vmul.f32 %v2767, %v2780
        %v2793 = vmul.f32 %v2770, %v2780
        %v2794 = vmul.f32 %v2773, %v2780
        %v2795 = vmul.f32 %v2776, %v2780
        %v2796 = vmul.f32 %v2779, %v2780
        %v2797 = vsub.f32 %v2715, %v2781
        %v2798 = vsub.f32 %v2716, %v2782
        %v2799 = vsub.f32 %v2717, %v2783
        %v2800 = vsub.f32 %v2718, %v2784
        %v2801 = vsub.f32 %v2719, %v2785
        %v2802 = vsub.f32 %v2720, %v2786
        %v2803 = vsub.f32 %v2721, %v2787
        %v2804 = vsub.f32 %v2722, %v2788
        %v2805 = vsub.f32 %v2723, %v2789
        %v2806 = vsub.f32 %v2724, %v2790
        %v2807 = vsub.f32 %v2725, %v2791
        %v2808 = vsub.f32 %v2726, %v2792
        %v2809 = vsub.f32 %v2727, %v2793
        %v2810 = vsub.f32 %v2728, %v2794
        %v2811 = vsub.f32 %v2729, %v2795
        %v2812 = vsub.f32 %v2730, %v2796
        %v2813 = vmul.f32 %v2797, %v2797
        %v2814 = vmul.f32 %v2798, %v2798
        %v2815 = vmul.f32 %v2799, %v2799
        %v2816 = vmul.f32 %v2800, %v2800
        %v2817 = vmul.f32 %v2801, %v2801
        %v2818 = vmul.f32 %v2802, %v2802
        %v2819 = vmul.f32 %v2803, %v2803
        %v2820 = vmul.f32 %v2804, %v2804
        %v2821 = vmul.f32 %v2805, %v2805
        %v2822 = vmul.f32 %v2806, %v2806
        %v2823 = vmul.f32 %v2807, %v2807
        %v2824 = vmul.f32 %v2808, %v2808
        %v2825 = vmul.f32 %v2809, %v2809
        %v2826 = vmul.f32 %v2810, %v2810
        %v2827 = vmul.f32 %v2811, %v2811
        %v2828 = vmul.f32 %v2812, %v2812
        %v2829 = vsel %vm2731, %v2813, 0.0
        %2830 = vadd.xlane.f32.xlu0 %v2829
        %v2831 = vpop.xlane.xlu0 %2830
        %v2832 = vsel %vm2731, %v2814, 0.0
        %2833 = vadd.xlane.f32.xlu0 %v2832
        %v2834 = vpop.xlane.xlu0 %2833
        %v2835 = vsel %vm2731, %v2815, 0.0
        %2836 = vadd.xlane.f32.xlu0 %v2835
        %v2837 = vpop.xlane.xlu0 %2836
        %v2838 = vsel %vm2731, %v2816, 0.0
        %2839 = vadd.xlane.f32.xlu0 %v2838
        %v2840 = vpop.xlane.xlu0 %2839
        %v2841 = vsel %vm2731, %v2817, 0.0
        %2842 = vadd.xlane.f32.xlu0 %v2841
        %v2843 = vpop.xlane.xlu0 %2842
        %v2844 = vsel %vm2731, %v2818, 0.0
        %2845 = vadd.xlane.f32.xlu0 %v2844
        %v2846 = vpop.xlane.xlu0 %2845
        %v2847 = vsel %vm2731, %v2819, 0.0
        %2848 = vadd.xlane.f32.xlu0 %v2847
        %v2849 = vpop.xlane.xlu0 %2848
        %v2850 = vsel %vm2731, %v2820, 0.0
        %2851 = vadd.xlane.f32.xlu0 %v2850
        %v2852 = vpop.xlane.xlu0 %2851
        %v2853 = vsel %vm2731, %v2821, 0.0
        %2854 = vadd.xlane.f32.xlu0 %v2853
        %v2855 = vpop.xlane.xlu0 %2854
        %v2856 = vsel %vm2731, %v2822, 0.0
        %2857 = vadd.xlane.f32.xlu0 %v2856
        %v2858 = vpop.xlane.xlu0 %2857
        %v2859 = vsel %vm2731, %v2823, 0.0
        %2860 = vadd.xlane.f32.xlu0 %v2859
        %v2861 = vpop.xlane.xlu0 %2860
        %v2862 = vsel %vm2731, %v2824, 0.0
        %2863 = vadd.xlane.f32.xlu0 %v2862
        %v2864 = vpop.xlane.xlu0 %2863
        %v2865 = vsel %vm2731, %v2825, 0.0
        %2866 = vadd.xlane.f32.xlu0 %v2865
        %v2867 = vpop.xlane.xlu0 %2866
        %v2868 = vsel %vm2731, %v2826, 0.0
        %2869 = vadd.xlane.f32.xlu0 %v2868
        %v2870 = vpop.xlane.xlu0 %2869
        %v2871 = vsel %vm2731, %v2827, 0.0
        %2872 = vadd.xlane.f32.xlu0 %v2871
        %v2873 = vpop.xlane.xlu0 %2872
        %v2874 = vsel %vm2731, %v2828, 0.0
        %2875 = vadd.xlane.f32.xlu0 %v2874
        %v2876 = vpop.xlane.xlu0 %2875
        %v2877 = vmul.f32 %v2831, %v2780
        %v2878 = vmul.f32 %v2834, %v2780
        %v2879 = vmul.f32 %v2837, %v2780
        %v2880 = vmul.f32 %v2840, %v2780
        %v2881 = vmul.f32 %v2843, %v2780
        %v2882 = vmul.f32 %v2846, %v2780
        %v2883 = vmul.f32 %v2849, %v2780
        %v2884 = vmul.f32 %v2852, %v2780
        %v2885 = vmul.f32 %v2855, %v2780
        %v2886 = vmul.f32 %v2858, %v2780
        %v2887 = vmul.f32 %v2861, %v2780
        %v2888 = vmul.f32 %v2864, %v2780
        %v2889 = vmul.f32 %v2867, %v2780
        %v2890 = vmul.f32 %v2870, %v2780
        %v2891 = vmul.f32 %v2873, %v2780
        %v2892 = vmul.f32 %v2876, %v2780
        %v2893 = vadd.f32 %v2877, 1e-05
        %v2894 = vadd.f32 %v2878, 1e-05
        %v2895 = vadd.f32 %v2879, 1e-05
        %v2896 = vadd.f32 %v2880, 1e-05
        %v2897 = vadd.f32 %v2881, 1e-05
        %v2898 = vadd.f32 %v2882, 1e-05
        %v2899 = vadd.f32 %v2883, 1e-05
        %v2900 = vadd.f32 %v2884, 1e-05
        %v2901 = vadd.f32 %v2885, 1e-05
        %v2902 = vadd.f32 %v2886, 1e-05
        %v2903 = vadd.f32 %v2887, 1e-05
        %v2904 = vadd.f32 %v2888, 1e-05
        %v2905 = vadd.f32 %v2889, 1e-05
        %v2906 = vadd.f32 %v2890, 1e-05
        %v2907 = vadd.f32 %v2891, 1e-05
        %v2908 = vadd.f32 %v2892, 1e-05
        %v2909 = vrsqrt.pop %v2893
        %v2910 = vrsqrt.pop %v2894
        %v2911 = vrsqrt.pop %v2895
        %v2912 = vrsqrt.pop %v2896
        %v2913 = vrsqrt.pop %v2897
        %v2914 = vrsqrt.pop %v2898
        %v2915 = vrsqrt.pop %v2899
        %v2916 = vrsqrt.pop %v2900
        %v2917 = vrsqrt.pop %v2901
        %v2918 = vrsqrt.pop %v2902
        %v2919 = vrsqrt.pop %v2903
        %v2920 = vrsqrt.pop %v2904
        %v2921 = vrsqrt.pop %v2905
        %v2922 = vrsqrt.pop %v2906
        %v2923 = vrsqrt.pop %v2907
        %v2924 = vrsqrt.pop %v2908
        %v2925 = vmul.f32 %v2797, %v2909
        %v2926 = vmul.f32 %v2798, %v2910
        %v2927 = vmul.f32 %v2799, %v2911
        %v2928 = vmul.f32 %v2800, %v2912
        %v2929 = vmul.f32 %v2801, %v2913
        %v2930 = vmul.f32 %v2802, %v2914
        %v2931 = vmul.f32 %v2803, %v2915
        %v2932 = vmul.f32 %v2804, %v2916
        %v2933 = vmul.f32 %v2805, %v2917
        %v2934 = vmul.f32 %v2806, %v2918
        %v2935 = vmul.f32 %v2807, %v2919
        %v2936 = vmul.f32 %v2808, %v2920
        %v2937 = vmul.f32 %v2809, %v2921
        %v2938 = vmul.f32 %v2810, %v2922
        %v2939 = vmul.f32 %v2811, %v2923
        %v2940 = vmul.f32 %v2812, %v2924
        %v2941 = vld [vmem:[#allocation15] sm:$0x1]
        %v2943 = vlaneseq
        %v2944 = vshrl.u32 %v2943, 7
        %v2945 = vsub.s32 0, %v2944
        %v2946 = vrot.slane %v2941, %v2945
        %v2948 = vmul.f32 %v2925, %v2946
        %v2949 = vmul.f32 %v2926, %v2946
        %v2950 = vmul.f32 %v2927, %v2946
        %v2951 = vmul.f32 %v2928, %v2946
        %v2952 = vmul.f32 %v2929, %v2946
        %v2953 = vmul.f32 %v2930, %v2946
        %v2954 = vmul.f32 %v2931, %v2946
        %v2955 = vmul.f32 %v2932, %v2946
        %v2956 = vmul.f32 %v2933, %v2946
        %v2957 = vmul.f32 %v2934, %v2946
        %v2958 = vmul.f32 %v2935, %v2946
        %v2959 = vmul.f32 %v2936, %v2946
        %v2960 = vmul.f32 %v2937, %v2946
        %v2961 = vmul.f32 %v2938, %v2946
        %v2962 = vmul.f32 %v2939, %v2946
        %v2963 = vmul.f32 %v2940, %v2946
        %v2964 = vld [vmem:[#allocation17] sm:$0x1]
        %v2966 = vlaneseq
        %v2967 = vshrl.u32 %v2966, 7
        %v2968 = vsub.s32 0, %v2967
        %v2969 = vrot.slane %v2964, %v2968
        %v2971 = vadd.f32 %v2948, %v2969
        %v2972 = vadd.f32 %v2949, %v2969
        %v2973 = vadd.f32 %v2950, %v2969
        %v2974 = vadd.f32 %v2951, %v2969
        %v2975 = vadd.f32 %v2952, %v2969
        %v2976 = vadd.f32 %v2953, %v2969
        %v2977 = vadd.f32 %v2954, %v2969
        %v2978 = vadd.f32 %v2955, %v2969
        %v2979 = vadd.f32 %v2956, %v2969
        %v2980 = vadd.f32 %v2957, %v2969
        %v2981 = vadd.f32 %v2958, %v2969
        %v2982 = vadd.f32 %v2959, %v2969
        %v2983 = vadd.f32 %v2960, %v2969
        %v2984 = vadd.f32 %v2961, %v2969
        %v2985 = vadd.f32 %v2962, %v2969
        %v2986 = vadd.f32 %v2963, %v2969
        %2987 = vst.msk [vmem:[%s397] sm:$0xff] %vm2731, %v2971
        %2988 = vst.msk [vmem:[%s397 + $0x8] sm:$0xff] %vm2731, %v2972
        %2989 = vst.msk [vmem:[%s397 + $0x10] sm:$0xff] %vm2731, %v2973
        %2990 = vst.msk [vmem:[%s397 + $0x18] sm:$0xff] %vm2731, %v2974
        %2991 = vst.msk [vmem:[%s397 + $0x20] sm:$0xff] %vm2731, %v2975
        %2992 = vst.msk [vmem:[%s397 + $0x28] sm:$0xff] %vm2731, %v2976
        %2993 = vst.msk [vmem:[%s397 + $0x30] sm:$0xff] %vm2731, %v2977
        %2994 = vst.msk [vmem:[%s397 + $0x38] sm:$0xff] %vm2731, %v2978
        %2995 = vst.msk [vmem:[%s397 + $0x40] sm:$0xff] %vm2731, %v2979
        %2996 = vst.msk [vmem:[%s397 + $0x48] sm:$0xff] %vm2731, %v2980
        %2997 = vst.msk [vmem:[%s397 + $0x50] sm:$0xff] %vm2731, %v2981
        %2998 = vst.msk [vmem:[%s397 + $0x58] sm:$0xff] %vm2731, %v2982
        %2999 = vst.msk [vmem:[%s397 + $0x60] sm:$0xff] %vm2731, %v2983
        %3000 = vst.msk [vmem:[%s397 + $0x68] sm:$0xff] %vm2731, %v2984
        %3001 = vst.msk [vmem:[%s397 + $0x70] sm:$0xff] %vm2731, %v2985
        %3002 = vst.msk [vmem:[%s397 + $0x78] sm:$0xff] %vm2731, %v2986
        %s3003 = sand.u32 %s209, 1
        %s3004 = scalar_lea.sflag [#allocation8], %s3003
        %s3005 = sand.u32 %s209, 1
        %s3006 = smul.addr %s3005, 128
        %s3007 = scalar_lea.vmem [#allocation18], %s3006
        // Predicated region
        $region81: #{t2s_forward.5} parent=47 // pred_check
          %p3008 = pneg %p219
        $region82: #{t2s_forward.5} parent=47 // pred_check_branch
          %3010 = sbr.rel (%p3008) target = $region84
        $region83: #{t2s_forward.5} parent=47 // pred_region
          %s3011 = smul.u32 16, %s40
          %s3013 = ssub.s32 2048, 2048
          %3014 = vsyncadd %s3004, %s3013
          %s3015 = smul.addr %s39, 32
          %s3016 = sadd.s32 %s3011, %s3015
          %s3017 = smul.addr %s3016, 128
          %s3018 = scalar_lea.hbm %s9, %s3017
          %s3019 = sshll.u32 %s3007, 4
          %s3020 = int_to_ptr.vmem [resolvable:$true] %s3019
          %3025 = dma.vmem_to_hbm [thread:$0]  %s3020, 2048, %s3018, %s3004, 128, 128, 8
        $region84: #{t2s_forward.5} parent=47 // pred_fallthru
          _
      $region48: #{t2s_forward.5} parent=5 // pred_fallthru
        _
      %p3026 = scmp.le.s32.totalorder 2, %s30
      // Predicated region
      $region85: #{t2s_forward.5} parent=5 // pred_check
        %p3027 = pneg %p3026
      $region86: #{t2s_forward.5} parent=5 // pred_check_branch
        %3029 = sbr.rel (%p3027) target = $region88
      $region87: #{t2s_forward.5} parent=5 // pred_region
        %s3030 = ssub.s32 %s30, 2
        // Predicated region
        $region89: #{t2s_forward.5} parent=87 // pred_check
          %p3031 = pneg %p225
        $region90: #{t2s_forward.5} parent=87 // pred_check_branch
          %3033 = sbr.rel (%p3031) target = $region92
        $region91: #{t2s_forward.5} parent=87 // pred_region
          %s3034 = sand.u32 %s210, 1
          %s3035 = scalar_lea.sflag [#allocation8], %s3034
          %s3036 = sand.u32 %s210, 1
          %s3037 = smul.addr %s3036, 128
          %s3038 = scalar_lea.vmem [#allocation18], %s3037
          %3039 = dma.done %s3035, 2048
        $region92: #{t2s_forward.5} parent=87 // pred_fallthru
          _
      $region88: #{t2s_forward.5} parent=5 // pred_fallthru
        _
    $region6: #{t2s_forward.5} parent=1 // loop_footer
      %s34 = sadd.s32 1, %s30
    $region7: #{t2s_forward.5} parent=1 // loop_footer_branch
      %29 = sbr.rel target = $region3
    $region8: #{t2s_forward.5} parent=1 // loop_exit
      _
    %3040 = vsyncpa [#allocation7], 1
    %s3041 = scalar_lea.sflag [#allocation7], 1
    %3042 = vsyncpa %s3041, 1
    %3043 = vsyncpa [#allocation10], 1
    %3044 = vsyncpa [#allocation13], 1
    %3045 = vsyncpa [#allocation16], 1
    %3046 = vsyncpa [#allocation8], 1
    %s3047 = scalar_lea.sflag [#allocation8], 1
    %3048 = vsyncpa %s3047, 1

</llo_original>
